<compile_context>
chip_gen: v6e
topology: v6e:2x2x1
jax: 0.10.0
libtpu: 0.0.40
codegen_flags: <defaults>
</compile_context>

<pallas_src>
import jax
import jax.numpy as jnp
from jax.experimental import pallas as pl
from jax.experimental.pallas import tpu as pltpu

EPS = 1e-5  # nn.InstanceNorm2d default eps (affine=False, track_running_stats=False)


# ----------------------------- in-kernel helpers -----------------------------

def _conv3x3_reflect(x, w_ref, b_ref):
    """3x3 conv, stride 1, reflect padding=1, as 3 large-K bf16 MXU matmuls.

    x:     (H, W, Cin)        f32 value
    w_ref: (3, 3*Cin, Cout)   bf16 VMEM ref, first axis = kh, second = (kw, cin) flattened
    b_ref: (1, Cout)          f32 VMEM ref
    returns (H, W, Cout) f32
    """
    H, W, C = x.shape
    cout = b_ref.shape[-1]

    xb = x.astype(jnp.bfloat16)

    # Reflect padding along W (PyTorch 'reflect': index -1 -> 1, index W -> W-2).
    xw = jnp.concatenate([xb[:, 1:2], xb, xb[:, W - 2:W - 1]], axis=1)      # (H, W+2, C)

    # Hoisted column taps: cols[i, j] = [xw[i, j+0], xw[i, j+1], xw[i, j+2]]  (dj-major, cin)
    cols = jnp.concatenate([xw[:, 0:W], xw[:, 1:W + 1], xw[:, 2:W + 2]],
                           axis=-1)                                          # (H, W, 3C)

    # Reflect padding along H on the leading axis (leading-axis slices below are free).
    colsp = jnp.concatenate([cols[1:2], cols, cols[H - 2:H - 1]], axis=0)    # (H+2, W, 3C)

    acc = None
    for di in range(3):
        patch = colsp[di:di + H].reshape(H * W, 3 * C)                       # bf16 (HW, 3C)
        part = jnp.dot(patch, w_ref[di], preferred_element_type=jnp.float32)
        acc = part if acc is None else acc + part
    acc = acc + b_ref[...]                                                   # (1, Cout) broadcast
    return acc.reshape(H, W, cout)


def _instance_norm(h):
    """InstanceNorm2d (affine=False): per-channel mean / biased var over spatial dims, f32."""
    H, W, C = h.shape
    hf = h.reshape(H * W, C)
    mean = jnp.mean(hf, axis=0, keepdims=True)               # (1, C)
    ctr = hf - mean
    var = jnp.mean(ctr * ctr, axis=0, keepdims=True)         # biased variance
    return (ctr * jax.lax.rsqrt(var + EPS)).reshape(H, W, C)


# --------------------------------- kernel ------------------------------------

def r256_kernel(x_ref, w1_ref, b1_ref, w2_ref, b2_ref, o_ref):
    # x_ref / o_ref blocks: (1, H, W, C) -- one batch element per grid step.
    x = x_ref[0]                                              # (H, W, C) f32
    h = _conv3x3_reflect(x, w1_ref, b1_ref)
    h = jnp.maximum(_instance_norm(h), 0.0)                   # ReLU (f32)
    h = _conv3x3_reflect(h, w2_ref, b2_ref)
    h = _instance_norm(h)
    o_ref[0] = x + h                                          # residual add (f32)


# -------------------------------- wrapper ------------------------------------

def r256_block(x_nchw, w1, b1, w2, b2):
    """x_nchw: (B, C, H, W); w*: (Cout, Cin, 3, 3) PyTorch layout; b*: (Cout,)."""
    B, C, H, W = x_nchw.shape
    # NOTE: if the surrounding model is already NHWC these boundary transposes can be dropped.
    x = jnp.transpose(x_nchw, (0, 2, 3, 1)).astype(jnp.float32)              # NHWC

    def prep_w(w):
        # OIHW -> (kh, kw, cin, cout) -> (kh, kw*cin, cout), bf16 for the MXU.
        return (jnp.transpose(w, (2, 3, 1, 0))
                .reshape(3, 3 * C, C)
                .astype(jnp.bfloat16))

    w1t = prep_w(w1)
    w2t = prep_w(w2)
    b1r = b1.reshape(1, C).astype(jnp.float32)
    b2r = b2.reshape(1, C).astype(jnp.float32)

    out = pl.pallas_call(
        r256_kernel,
        out_shape=jax.ShapeDtypeStruct((B, H, W, C), jnp.float32),
        grid_spec=pltpu.PrefetchScalarGridSpec(
            num_scalar_prefetch=0,
            grid=(B,),
            in_specs=[
                pl.BlockSpec((1, H, W, C), lambda b: (b, 0, 0, 0)),
                pl.BlockSpec((3, 3 * C, C), lambda b: (0, 0, 0)),
                pl.BlockSpec((1, C), lambda b: (0, 0)),
                pl.BlockSpec((3, 3 * C, C), lambda b: (0, 0, 0)),
                pl.BlockSpec((1, C), lambda b: (0, 0)),
            ],
            out_specs=pl.BlockSpec((1, H, W, C), lambda b: (b, 0, 0, 0)),
        ),
        compiler_params=pltpu.CompilerParams(
            dimension_semantics=("parallel",),
            vmem_limit_bytes=32 * 1024 * 1024,   # actual need at H=W=16 is ~8-12 MiB
        ),
    )(x, w1t, b1r, w2t, b2r)

    return jnp.transpose(out, (0, 3, 1, 2))                                  # back to NCHW


# --------------------------- pure-JAX reference -------------------------------

def r256_reference(x, w1, b1, w2, b2):
    def conv(h, w, b):
        hp = jnp.pad(h, ((0, 0), (0, 0), (1, 1), (1, 1)), mode="reflect")
        y = jax.lax.conv_general_dilated(
            hp, w, window_strides=(1, 1), padding="VALID",
            dimension_numbers=("NCHW", "OIHW", "NCHW"))
        return y + b[None, :, None, None]

    def inorm(h):
        m = jnp.mean(h, axis=(2, 3), keepdims=True)
        v = jnp.mean((h - m) ** 2, axis=(2, 3), keepdims=True)
        return (h - m) * jax.lax.rsqrt(v + EPS)

    h = conv(x, w1, b1)
    h = jnp.maximum(inorm(h), 0.0)
    h = conv(h, w2, b2)
    h = inorm(h)
    return x + h


# ----------------------------------- main -------------------------------------

if __name__ == "__main__":
    key = jax.random.PRNGKey(0)
    kx, kw1, kb1, kw2, kb2 = jax.random.split(key, 5)

    # Channel count is fixed to 256 by the module; keep batch/spatial small.
    B, C, H, W = 2, 256, 16, 16
    x = jax.random.normal(kx, (B, C, H, W), jnp.float32)

    # Deterministic synthetic parameters (Conv2d-like uniform(-1/sqrt(fan_in), +)).
    fan_in = C * 3 * 3
    lim = 1.0 / (fan_in ** 0.5)
    w1 = jax.random.uniform(kw1, (C, C, 3, 3), jnp.float32, -lim, lim)
    b1 = jax.random.uniform(kb1, (C,), jnp.float32, -lim, lim)
    w2 = jax.random.uniform(kw2, (C, C, 3, 3), jnp.float32, -lim, lim)
    b2 = jax.random.uniform(kb2, (C,), jnp.float32, -lim, lim)

    out = jax.block_until_ready(r256_block(x, w1, b1, w2, b2))
    ref = jax.block_until_ready(r256_reference(x, w1, b1, w2, b2))

    assert out.shape == x.shape, (out.shape, x.shape)
    max_err = float(jnp.max(jnp.abs(out - ref)))
    assert max_err < 5e-2, f"mismatch vs reference, max_err={max_err}"
    print("KERNEL_OK")
</pallas_src>

<mosaic_0001>
module attributes {stable_mosaic.version = 11 : i64} {
  func.func @r256_kernel(%arg0: i32, %arg1: memref<1x16x16x256xf32, #tpu.memory_space<vmem>>, %arg2: memref<3x768x256xbf16, #tpu.memory_space<vmem>>, %arg3: memref<1x256xf32, #tpu.memory_space<vmem>>, %arg4: memref<3x768x256xbf16, #tpu.memory_space<vmem>>, %arg5: memref<1x256xf32, #tpu.memory_space<vmem>>, %arg6: memref<1x16x16x256xf32, #tpu.memory_space<vmem>>) attributes {dimension_semantics = [#tpu.dimension_semantics<parallel>], iteration_bounds = array<i64: 2>, scalar_prefetch = 0 : i64, scratch_operands = 0 : i64, tpu.core_type = #tpu.core_type<tc>, window_params = [{transform_indices = @transform_0, window_bounds = array<i64: 1, 16, 16, 256>}, {pipeline_mode = #tpu.pipeline_mode<synchronous>, transform_indices = @transform_1, window_bounds = array<i64: 3, 768, 256>}, {pipeline_mode = #tpu.pipeline_mode<synchronous>, transform_indices = @transform_2, window_bounds = array<i64: 1, 256>}, {pipeline_mode = #tpu.pipeline_mode<synchronous>, transform_indices = @transform_3, window_bounds = array<i64: 3, 768, 256>}, {pipeline_mode = #tpu.pipeline_mode<synchronous>, transform_indices = @transform_4, window_bounds = array<i64: 1, 256>}, {transform_indices = @transform_5, window_bounds = array<i64: 1, 16, 16, 256>}]} {
    %c0 = arith.constant 0 : index
    %c0_0 = arith.constant 0 : index
    %c0_1 = arith.constant 0 : index
    %c0_2 = arith.constant 0 : index
    %0 = vector.load %arg1[%c0, %c0_0, %c0_1, %c0_2] : memref<1x16x16x256xf32, #tpu.memory_space<vmem>>, vector<1x16x16x256xf32>
    %1 = vector.shape_cast %0 : vector<1x16x16x256xf32> to vector<16x16x256xf32>
    %2 = arith.truncf %1 : vector<16x16x256xf32> to vector<16x16x256xbf16>
    %3 = vector.extract_strided_slice %2 {offsets = [0, 1, 0], sizes = [16, 1, 256], strides = [1, 1, 1]} : vector<16x16x256xbf16> to vector<16x1x256xbf16>
    %4 = vector.extract_strided_slice %2 {offsets = [0, 14, 0], sizes = [16, 1, 256], strides = [1, 1, 1]} : vector<16x16x256xbf16> to vector<16x1x256xbf16>
    %5 = tpu.concatenate %3, %2, %4 in 1 : vector<16x1x256xbf16>, vector<16x16x256xbf16>, vector<16x1x256xbf16> -> vector<16x18x256xbf16>
    %6 = vector.extract_strided_slice %5 {offsets = [0, 0, 0], sizes = [16, 16, 256], strides = [1, 1, 1]} : vector<16x18x256xbf16> to vector<16x16x256xbf16>
    %7 = vector.extract_strided_slice %5 {offsets = [0, 1, 0], sizes = [16, 16, 256], strides = [1, 1, 1]} : vector<16x18x256xbf16> to vector<16x16x256xbf16>
    %8 = vector.extract_strided_slice %5 {offsets = [0, 2, 0], sizes = [16, 16, 256], strides = [1, 1, 1]} : vector<16x18x256xbf16> to vector<16x16x256xbf16>
    %9 = tpu.concatenate %6, %7, %8 in 2 : vector<16x16x256xbf16>, vector<16x16x256xbf16>, vector<16x16x256xbf16> -> vector<16x16x768xbf16>
    %10 = vector.extract_strided_slice %9 {offsets = [1, 0, 0], sizes = [1, 16, 768], strides = [1, 1, 1]} : vector<16x16x768xbf16> to vector<1x16x768xbf16>
    %11 = vector.extract_strided_slice %9 {offsets = [14, 0, 0], sizes = [1, 16, 768], strides = [1, 1, 1]} : vector<16x16x768xbf16> to vector<1x16x768xbf16>
    %12 = tpu.concatenate %10, %9, %11 in 0 : vector<1x16x768xbf16>, vector<16x16x768xbf16>, vector<1x16x768xbf16> -> vector<18x16x768xbf16>
    %13 = vector.extract_strided_slice %12 {offsets = [0, 0, 0], sizes = [16, 16, 768], strides = [1, 1, 1]} : vector<18x16x768xbf16> to vector<16x16x768xbf16>
    %14 = vector.shape_cast %13 : vector<16x16x768xbf16> to vector<256x768xbf16>
    %c0_3 = arith.constant 0 : index
    %c0_4 = arith.constant 0 : index
    %c0_5 = arith.constant 0 : index
    %15 = vector.load %arg2[%c0_3, %c0_4, %c0_5] : memref<3x768x256xbf16, #tpu.memory_space<vmem>>, vector<1x768x256xbf16>
    %16 = vector.shape_cast %15 : vector<1x768x256xbf16> to vector<768x256xbf16>
    %cst = arith.constant dense<0.000000e+00> : vector<256x256xf32>
    %17 = tpu.matmul %14, %16, %cst {dimension_numbers = #tpu.dot_dimension_numbers<[1], [0], [0], [1], [0, 0, 1, 1], [], []>} : vector<256x768xbf16>, vector<768x256xbf16>, vector<256x256xf32> -> vector<256x256xf32>
    %18 = vector.extract_strided_slice %12 {offsets = [1, 0, 0], sizes = [16, 16, 768], strides = [1, 1, 1]} : vector<18x16x768xbf16> to vector<16x16x768xbf16>
    %19 = vector.shape_cast %18 : vector<16x16x768xbf16> to vector<256x768xbf16>
    %c1 = arith.constant 1 : index
    %c0_6 = arith.constant 0 : index
    %c0_7 = arith.constant 0 : index
    %20 = vector.load %arg2[%c1, %c0_6, %c0_7] : memref<3x768x256xbf16, #tpu.memory_space<vmem>>, vector<1x768x256xbf16>
    %21 = vector.shape_cast %20 : vector<1x768x256xbf16> to vector<768x256xbf16>
    %cst_8 = arith.constant dense<0.000000e+00> : vector<256x256xf32>
    %22 = tpu.matmul %19, %21, %cst_8 {dimension_numbers = #tpu.dot_dimension_numbers<[1], [0], [0], [1], [0, 0, 1, 1], [], []>} : vector<256x768xbf16>, vector<768x256xbf16>, vector<256x256xf32> -> vector<256x256xf32>
    %23 = arith.addf %17, %22 : vector<256x256xf32>
    %24 = vector.extract_strided_slice %12 {offsets = [2, 0, 0], sizes = [16, 16, 768], strides = [1, 1, 1]} : vector<18x16x768xbf16> to vector<16x16x768xbf16>
    %25 = vector.shape_cast %24 : vector<16x16x768xbf16> to vector<256x768xbf16>
    %c2 = arith.constant 2 : index
    %c0_9 = arith.constant 0 : index
    %c0_10 = arith.constant 0 : index
    %26 = vector.load %arg2[%c2, %c0_9, %c0_10] : memref<3x768x256xbf16, #tpu.memory_space<vmem>>, vector<1x768x256xbf16>
    %27 = vector.shape_cast %26 : vector<1x768x256xbf16> to vector<768x256xbf16>
    %cst_11 = arith.constant dense<0.000000e+00> : vector<256x256xf32>
    %28 = tpu.matmul %25, %27, %cst_11 {dimension_numbers = #tpu.dot_dimension_numbers<[1], [0], [0], [1], [0, 0, 1, 1], [], []>} : vector<256x768xbf16>, vector<768x256xbf16>, vector<256x256xf32> -> vector<256x256xf32>
    %29 = arith.addf %23, %28 : vector<256x256xf32>
    %c0_12 = arith.constant 0 : index
    %c0_13 = arith.constant 0 : index
    %30 = vector.load %arg3[%c0_12, %c0_13] : memref<1x256xf32, #tpu.memory_space<vmem>>, vector<1x256xf32>
    %31 = vector.broadcast %30 : vector<1x256xf32> to vector<256x256xf32>
    %32 = arith.addf %29, %31 : vector<256x256xf32>
    %33 = vector.shape_cast %32 : vector<256x256xf32> to vector<16x16x256xf32>
    %34 = vector.shape_cast %33 : vector<16x16x256xf32> to vector<256x256xf32>
    %cst_14 = arith.constant dense<0.000000e+00> : vector<256xf32>
    %35 = vector.multi_reduction <add>, %34, %cst_14 [0] : vector<256x256xf32> to vector<256xf32>
    %36 = vector.shape_cast %35 : vector<256xf32> to vector<1x256xf32>
    %cst_15 = arith.constant 2.560000e+02 : f32
    %37 = vector.broadcast %cst_15 : f32 to vector<1x256xf32>
    %38 = arith.divf %36, %37 : vector<1x256xf32>
    %39 = vector.broadcast %38 : vector<1x256xf32> to vector<256x256xf32>
    %40 = arith.subf %34, %39 : vector<256x256xf32>
    %41 = arith.mulf %40, %40 : vector<256x256xf32>
    %cst_16 = arith.constant dense<0.000000e+00> : vector<256xf32>
    %42 = vector.multi_reduction <add>, %41, %cst_16 [0] : vector<256x256xf32> to vector<256xf32>
    %43 = vector.shape_cast %42 : vector<256xf32> to vector<1x256xf32>
    %cst_17 = arith.constant 2.560000e+02 : f32
    %44 = vector.broadcast %cst_17 : f32 to vector<1x256xf32>
    %45 = arith.divf %43, %44 : vector<1x256xf32>
    %cst_18 = arith.constant 9.99999974E-6 : f32
    %46 = vector.broadcast %cst_18 : f32 to vector<1x256xf32>
    %47 = arith.addf %45, %46 : vector<1x256xf32>
    %48 = math.rsqrt %47 : vector<1x256xf32>
    %49 = vector.broadcast %48 : vector<1x256xf32> to vector<256x256xf32>
    %50 = arith.mulf %40, %49 : vector<256x256xf32>
    %51 = vector.shape_cast %50 : vector<256x256xf32> to vector<16x16x256xf32>
    %cst_19 = arith.constant 0.000000e+00 : f32
    %52 = vector.broadcast %cst_19 : f32 to vector<16x16x256xf32>
    %53 = arith.maximumf %51, %52 : vector<16x16x256xf32>
    %54 = arith.truncf %53 : vector<16x16x256xf32> to vector<16x16x256xbf16>
    %55 = vector.extract_strided_slice %54 {offsets = [0, 1, 0], sizes = [16, 1, 256], strides = [1, 1, 1]} : vector<16x16x256xbf16> to vector<16x1x256xbf16>
    %56 = vector.extract_strided_slice %54 {offsets = [0, 14, 0], sizes = [16, 1, 256], strides = [1, 1, 1]} : vector<16x16x256xbf16> to vector<16x1x256xbf16>
    %57 = tpu.concatenate %55, %54, %56 in 1 : vector<16x1x256xbf16>, vector<16x16x256xbf16>, vector<16x1x256xbf16> -> vector<16x18x256xbf16>
    %58 = vector.extract_strided_slice %57 {offsets = [0, 0, 0], sizes = [16, 16, 256], strides = [1, 1, 1]} : vector<16x18x256xbf16> to vector<16x16x256xbf16>
    %59 = vector.extract_strided_slice %57 {offsets = [0, 1, 0], sizes = [16, 16, 256], strides = [1, 1, 1]} : vector<16x18x256xbf16> to vector<16x16x256xbf16>
    %60 = vector.extract_strided_slice %57 {offsets = [0, 2, 0], sizes = [16, 16, 256], strides = [1, 1, 1]} : vector<16x18x256xbf16> to vector<16x16x256xbf16>
    %61 = tpu.concatenate %58, %59, %60 in 2 : vector<16x16x256xbf16>, vector<16x16x256xbf16>, vector<16x16x256xbf16> -> vector<16x16x768xbf16>
    %62 = vector.extract_strided_slice %61 {offsets = [1, 0, 0], sizes = [1, 16, 768], strides = [1, 1, 1]} : vector<16x16x768xbf16> to vector<1x16x768xbf16>
    %63 = vector.extract_strided_slice %61 {offsets = [14, 0, 0], sizes = [1, 16, 768], strides = [1, 1, 1]} : vector<16x16x768xbf16> to vector<1x16x768xbf16>
    %64 = tpu.concatenate %62, %61, %63 in 0 : vector<1x16x768xbf16>, vector<16x16x768xbf16>, vector<1x16x768xbf16> -> vector<18x16x768xbf16>
    %65 = vector.extract_strided_slice %64 {offsets = [0, 0, 0], sizes = [16, 16, 768], strides = [1, 1, 1]} : vector<18x16x768xbf16> to vector<16x16x768xbf16>
    %66 = vector.shape_cast %65 : vector<16x16x768xbf16> to vector<256x768xbf16>
    %c0_20 = arith.constant 0 : index
    %c0_21 = arith.constant 0 : index
    %c0_22 = arith.constant 0 : index
    %67 = vector.load %arg4[%c0_20, %c0_21, %c0_22] : memref<3x768x256xbf16, #tpu.memory_space<vmem>>, vector<1x768x256xbf16>
    %68 = vector.shape_cast %67 : vector<1x768x256xbf16> to vector<768x256xbf16>
    %cst_23 = arith.constant dense<0.000000e+00> : vector<256x256xf32>
    %69 = tpu.matmul %66, %68, %cst_23 {dimension_numbers = #tpu.dot_dimension_numbers<[1], [0], [0], [1], [0, 0, 1, 1], [], []>} : vector<256x768xbf16>, vector<768x256xbf16>, vector<256x256xf32> -> vector<256x256xf32>
    %70 = vector.extract_strided_slice %64 {offsets = [1, 0, 0], sizes = [16, 16, 768], strides = [1, 1, 1]} : vector<18x16x768xbf16> to vector<16x16x768xbf16>
    %71 = vector.shape_cast %70 : vector<16x16x768xbf16> to vector<256x768xbf16>
    %c1_24 = arith.constant 1 : index
    %c0_25 = arith.constant 0 : index
    %c0_26 = arith.constant 0 : index
    %72 = vector.load %arg4[%c1_24, %c0_25, %c0_26] : memref<3x768x256xbf16, #tpu.memory_space<vmem>>, vector<1x768x256xbf16>
    %73 = vector.shape_cast %72 : vector<1x768x256xbf16> to vector<768x256xbf16>
    %cst_27 = arith.constant dense<0.000000e+00> : vector<256x256xf32>
    %74 = tpu.matmul %71, %73, %cst_27 {dimension_numbers = #tpu.dot_dimension_numbers<[1], [0], [0], [1], [0, 0, 1, 1], [], []>} : vector<256x768xbf16>, vector<768x256xbf16>, vector<256x256xf32> -> vector<256x256xf32>
    %75 = arith.addf %69, %74 : vector<256x256xf32>
    %76 = vector.extract_strided_slice %64 {offsets = [2, 0, 0], sizes = [16, 16, 768], strides = [1, 1, 1]} : vector<18x16x768xbf16> to vector<16x16x768xbf16>
    %77 = vector.shape_cast %76 : vector<16x16x768xbf16> to vector<256x768xbf16>
    %c2_28 = arith.constant 2 : index
    %c0_29 = arith.constant 0 : index
    %c0_30 = arith.constant 0 : index
    %78 = vector.load %arg4[%c2_28, %c0_29, %c0_30] : memref<3x768x256xbf16, #tpu.memory_space<vmem>>, vector<1x768x256xbf16>
    %79 = vector.shape_cast %78 : vector<1x768x256xbf16> to vector<768x256xbf16>
    %cst_31 = arith.constant dense<0.000000e+00> : vector<256x256xf32>
    %80 = tpu.matmul %77, %79, %cst_31 {dimension_numbers = #tpu.dot_dimension_numbers<[1], [0], [0], [1], [0, 0, 1, 1], [], []>} : vector<256x768xbf16>, vector<768x256xbf16>, vector<256x256xf32> -> vector<256x256xf32>
    %81 = arith.addf %75, %80 : vector<256x256xf32>
    %c0_32 = arith.constant 0 : index
    %c0_33 = arith.constant 0 : index
    %82 = vector.load %arg5[%c0_32, %c0_33] : memref<1x256xf32, #tpu.memory_space<vmem>>, vector<1x256xf32>
    %83 = vector.broadcast %82 : vector<1x256xf32> to vector<256x256xf32>
    %84 = arith.addf %81, %83 : vector<256x256xf32>
    %85 = vector.shape_cast %84 : vector<256x256xf32> to vector<16x16x256xf32>
    %86 = vector.shape_cast %85 : vector<16x16x256xf32> to vector<256x256xf32>
    %cst_34 = arith.constant dense<0.000000e+00> : vector<256xf32>
    %87 = vector.multi_reduction <add>, %86, %cst_34 [0] : vector<256x256xf32> to vector<256xf32>
    %88 = vector.shape_cast %87 : vector<256xf32> to vector<1x256xf32>
    %cst_35 = arith.constant 2.560000e+02 : f32
    %89 = vector.broadcast %cst_35 : f32 to vector<1x256xf32>
    %90 = arith.divf %88, %89 : vector<1x256xf32>
    %91 = vector.broadcast %90 : vector<1x256xf32> to vector<256x256xf32>
    %92 = arith.subf %86, %91 : vector<256x256xf32>
    %93 = arith.mulf %92, %92 : vector<256x256xf32>
    %cst_36 = arith.constant dense<0.000000e+00> : vector<256xf32>
    %94 = vector.multi_reduction <add>, %93, %cst_36 [0] : vector<256x256xf32> to vector<256xf32>
    %95 = vector.shape_cast %94 : vector<256xf32> to vector<1x256xf32>
    %cst_37 = arith.constant 2.560000e+02 : f32
    %96 = vector.broadcast %cst_37 : f32 to vector<1x256xf32>
    %97 = arith.divf %95, %96 : vector<1x256xf32>
    %cst_38 = arith.constant 9.99999974E-6 : f32
    %98 = vector.broadcast %cst_38 : f32 to vector<1x256xf32>
    %99 = arith.addf %97, %98 : vector<1x256xf32>
    %100 = math.rsqrt %99 : vector<1x256xf32>
    %101 = vector.broadcast %100 : vector<1x256xf32> to vector<256x256xf32>
    %102 = arith.mulf %92, %101 : vector<256x256xf32>
    %103 = vector.shape_cast %102 : vector<256x256xf32> to vector<16x16x256xf32>
    %104 = arith.addf %1, %103 : vector<16x16x256xf32>
    %c0_39 = arith.constant 0 : index
    %c0_40 = arith.constant 0 : index
    %c0_41 = arith.constant 0 : index
    %c0_42 = arith.constant 0 : index
    %105 = vector.load %arg6[%c0_39, %c0_40, %c0_41, %c0_42] : memref<1x16x16x256xf32, #tpu.memory_space<vmem>>, vector<1x16x16x256xf32>
    %106 = vector.shape_cast %105 : vector<1x16x16x256xf32> to vector<16x16x256xf32>
    %107 = vector.shape_cast %104 : vector<16x16x256xf32> to vector<1x16x16x256xf32>
    tpu.vector_store %arg6[%c0_39, %c0_40, %c0_41, %c0_42], %107 {strides = array<i32>} : memref<1x16x16x256xf32, #tpu.memory_space<vmem>>, vector<1x16x16x256xf32>,
    return
  }
  func.func @transform_0(%arg0: i32) -> (i32, i32, i32, i32) {
    %c0_i32 = arith.constant 0 : i32
    %c0_i32_0 = arith.constant 0 : i32
    %c0_i32_1 = arith.constant 0 : i32
    %c0_i32_2 = arith.constant 0 : i32
    return %arg0, %c0_i32, %c0_i32_0, %c0_i32_1 : i32, i32, i32, i32
  }
  func.func @transform_1(%arg0: i32) -> (i32, i32, i32) {
    %c0_i32 = arith.constant 0 : i32
    %c0_i32_0 = arith.constant 0 : i32
    %c0_i32_1 = arith.constant 0 : i32
    %c0_i32_2 = arith.constant 0 : i32
    return %c0_i32, %c0_i32_0, %c0_i32_1 : i32, i32, i32
  }
  func.func @transform_2(%arg0: i32) -> (i32, i32) {
    %c0_i32 = arith.constant 0 : i32
    %c0_i32_0 = arith.constant 0 : i32
    %c0_i32_1 = arith.constant 0 : i32
    return %c0_i32, %c0_i32_0 : i32, i32
  }
  func.func @transform_3(%arg0: i32) -> (i32, i32, i32) {
    %c0_i32 = arith.constant 0 : i32
    %c0_i32_0 = arith.constant 0 : i32
    %c0_i32_1 = arith.constant 0 : i32
    %c0_i32_2 = arith.constant 0 : i32
    return %c0_i32, %c0_i32_0, %c0_i32_1 : i32, i32, i32
  }
  func.func @transform_4(%arg0: i32) -> (i32, i32) {
    %c0_i32 = arith.constant 0 : i32
    %c0_i32_0 = arith.constant 0 : i32
    %c0_i32_1 = arith.constant 0 : i32
    return %c0_i32, %c0_i32_0 : i32, i32
  }
  func.func @transform_5(%arg0: i32) -> (i32, i32, i32, i32) {
    %c0_i32 = arith.constant 0 : i32
    %c0_i32_0 = arith.constant 0 : i32
    %c0_i32_1 = arith.constant 0 : i32
    %c0_i32_2 = arith.constant 0 : i32
    return %arg0, %c0_i32, %c0_i32_0, %c0_i32_1 : i32, i32, i32, i32
  }
}

</mosaic_0001>

<llo_original>
// kernel: tpu_custom_call.1
$region0: #{tpu_custom_call.1}
  #allocation0 [shape = 'u32[]', space=smem, size = 0x4, offset = 0x4, fixed_abs, tag = 'smem constant byte address 0x4 - core index']
  #allocation1 [shape = 'u32[144,128]{1,0:T(1,128)}', space=vmem, size = 0x12000, scoped, tag = 'internal scratch']
  %s0 = inlined_call_operand.hbm [shape: f32[2,16,16,256], index: 0, kind: input, shape index: {}]
  %s1 = inlined_call_operand.hbm [shape: bf16[3,768,256], index: 1, kind: input, shape index: {}]
  %s2 = inlined_call_operand.hbm [shape: f32[1,256], index: 2, kind: input, shape index: {}]
  %s3 = inlined_call_operand.hbm [shape: bf16[3,768,256], index: 3, kind: input, shape index: {}]
  %s4 = inlined_call_operand.hbm [shape: f32[1,256], index: 4, kind: input, shape index: {}]
  %s5 = inlined_call_operand.hbm [shape: f32[2,16,16,256], index: 5, kind: output, shape index: {}]
  %s6 = sld [smem:[#allocation0]]
  $region73: #{tpu_custom_call.1} parent=0
    _
  %s8 = ssub.s32 1, %s6
  %s9 = scalar_select 0, %s8, %s6
  $region1: #{tpu_custom_call.1} parent=0
    #allocation2 [shape = 'u8[524288]{0}', space=vmem, size = 0x80000, scoped, tag = 'input window, operand 0']
    #allocation3 [shape = 's32[2]{0}', space=sflag, size = 0x8, scoped, tag = 'scoped memory for tpu_custom_call.1']
    #allocation4 [shape = 's32[2]{0}', space=sflag, size = 0x8, scoped, tag = 'scoped memory for tpu_custom_call.1']
    #allocation5 [shape = 'u8[1179648]{0}', space=vmem, size = 0x120000, scoped, tag = 'input window, operand 1, single buffered']
    #allocation6 [shape = 's32[1]{0}', space=sflag, size = 0x4, scoped, tag = 'scoped memory for tpu_custom_call.1']
    #allocation7 [shape = 'u8[1024]{0}', space=vmem, size = 0x400, scoped, tag = 'input window, operand 2, single buffered']
    #allocation8 [shape = 'u8[1179648]{0}', space=vmem, size = 0x120000, scoped, tag = 'input window, operand 3, single buffered']
    #allocation9 [shape = 's32[1]{0}', space=sflag, size = 0x4, scoped, tag = 'scoped memory for tpu_custom_call.1']
    #allocation10 [shape = 'u8[1024]{0}', space=vmem, size = 0x400, scoped, tag = 'input window, operand 4, single buffered']
    #allocation11 [shape = 'u8[524288]{0}', space=vmem, size = 0x80000, scoped, tag = 'output window, operand 0']
    %10 = vsyncpa [#allocation3], 0
    %s11 = scalar_lea.sflag [#allocation3], 1
    %12 = vsyncpa %s11, 0
    %13 = vsyncpa [#allocation6], 0
    %14 = vsyncpa [#allocation9], 0
    %15 = vsyncpa [#allocation4], 0
    %s16 = scalar_lea.sflag [#allocation4], 1
    %17 = vsyncpa %s16, 0
    loop: start=0, step=1, limit=4
    $region2: #{tpu_custom_call.1} parent=1 // loop_pre_header
      _
    $region3: #{tpu_custom_call.1} parent=1 // loop_header
      %s19 = sphi 0, %s23
      %p20 = scmp.ge.s32.totalorder %s19, 4
      %s29 = sphi 0, %s31
      %s32 = sphi 0, %s29
      %s33 = sphi 0, %s32
      %s49 = sphi 0, %s33
      %s53 = sphi 0, %s53
      %s55 = sphi 0, %s53
      %s56 = sphi 0, %s55
      %s70 = sphi 0, %s56
      %s74 = sphi 0, %s74
      %s76 = sphi 0, %s74
      %s77 = sphi 0, %s76
      %s91 = sphi 0, %s77
      %s95 = sphi 0, %s95
      %s97 = sphi 0, %s95
      %s98 = sphi 0, %s97
      %s112 = sphi 0, %s98
      %s116 = sphi 0, %s116
      %s118 = sphi 0, %s116
      %s119 = sphi 0, %s118
      %s133 = sphi 0, %s119
      %s139 = sphi 0, %s141
      %s142 = sphi 0, %s139
      %s143 = sphi 0, %s142
      %s159 = sphi 0, %s143
    $region4: #{tpu_custom_call.1} parent=1 // loop_header_branch
      %22 = sbr.rel (%p20) target = $region8
    $region5: #{tpu_custom_call.1} parent=1 // loop_body
      %s24 = ssub.s32 %s19, 1
      %s25 = ssub.s32 %s19, 2
      %s26 = sadd.s32 %s19, 1
      %s27 = ssub.s32 %s19, %s26
      %p28 = scmp.eq.s32.totalorder %s27, 0
      %s30 = sadd.s32 %s29, 1
      %s31 = scalar_select %p28, %s29, %s30
      %p34 = pneg %p28
      %p35 = scmp.eq.s32.totalorder %s19, 1
      %p36 = por %p34, %p35
      %p37 = scmp.ne.s32.totalorder %s29, %s32
      %p38 = scmp.eq.s32.totalorder %s19, 0
      %p39 = por %p37, %p38
      %p40 = scmp.ne.s32.totalorder %s29, %s32
      %p41 = scmp.eq.s32.totalorder %s24, 1
      %p42 = por %p40, %p41
      %p43 = scmp.ne.s32.totalorder %s32, %s33
      %p44 = scmp.eq.s32.totalorder %s24, 0
      %p45 = por %p43, %p44
      %p46 = scmp.ne.s32.totalorder %s32, %s33
      %p47 = scmp.eq.s32.totalorder %s25, 1
      %p48 = por %p46, %p47
      %p50 = scmp.ne.s32.totalorder %s33, %s49
      %p51 = scmp.eq.s32.totalorder %s25, 0
      %p52 = por %p50, %p51
      %s54 = sadd.s32 %s53, 1
      %p57 = scmp.eq.s32.totalorder %s19, 1
      %p58 = scmp.ne.s32.totalorder %s53, %s55
      %p59 = scmp.eq.s32.totalorder %s19, 0
      %p60 = por %p58, %p59
      %p61 = scmp.ne.s32.totalorder %s53, %s55
      %p62 = scmp.eq.s32.totalorder %s24, 1
      %p63 = por %p61, %p62
      %p64 = scmp.ne.s32.totalorder %s55, %s56
      %p65 = scmp.eq.s32.totalorder %s24, 0
      %p66 = por %p64, %p65
      %p67 = scmp.ne.s32.totalorder %s55, %s56
      %p68 = scmp.eq.s32.totalorder %s25, 1
      %p69 = por %p67, %p68
      %p71 = scmp.ne.s32.totalorder %s56, %s70
      %p72 = scmp.eq.s32.totalorder %s25, 0
      %p73 = por %p71, %p72
      %s75 = sadd.s32 %s74, 1
      %p78 = scmp.eq.s32.totalorder %s19, 1
      %p79 = scmp.ne.s32.totalorder %s74, %s76
      %p80 = scmp.eq.s32.totalorder %s19, 0
      %p81 = por %p79, %p80
      %p82 = scmp.ne.s32.totalorder %s74, %s76
      %p83 = scmp.eq.s32.totalorder %s24, 1
      %p84 = por %p82, %p83
      %p85 = scmp.ne.s32.totalorder %s76, %s77
      %p86 = scmp.eq.s32.totalorder %s24, 0
      %p87 = por %p85, %p86
      %p88 = scmp.ne.s32.totalorder %s76, %s77
      %p89 = scmp.eq.s32.totalorder %s25, 1
      %p90 = por %p88, %p89
      %p92 = scmp.ne.s32.totalorder %s77, %s91
      %p93 = scmp.eq.s32.totalorder %s25, 0
      %p94 = por %p92, %p93
      %s96 = sadd.s32 %s95, 1
      %p99 = scmp.eq.s32.totalorder %s19, 1
      %p100 = scmp.ne.s32.totalorder %s95, %s97
      %p101 = scmp.eq.s32.totalorder %s19, 0
      %p102 = por %p100, %p101
      %p103 = scmp.ne.s32.totalorder %s95, %s97
      %p104 = scmp.eq.s32.totalorder %s24, 1
      %p105 = por %p103, %p104
      %p106 = scmp.ne.s32.totalorder %s97, %s98
      %p107 = scmp.eq.s32.totalorder %s24, 0
      %p108 = por %p106, %p107
      %p109 = scmp.ne.s32.totalorder %s97, %s98
      %p110 = scmp.eq.s32.totalorder %s25, 1
      %p111 = por %p109, %p110
      %p113 = scmp.ne.s32.totalorder %s98, %s112
      %p114 = scmp.eq.s32.totalorder %s25, 0
      %p115 = por %p113, %p114
      %s117 = sadd.s32 %s116, 1
      %p120 = scmp.eq.s32.totalorder %s19, 1
      %p121 = scmp.ne.s32.totalorder %s116, %s118
      %p122 = scmp.eq.s32.totalorder %s19, 0
      %p123 = por %p121, %p122
      %p124 = scmp.ne.s32.totalorder %s116, %s118
      %p125 = scmp.eq.s32.totalorder %s24, 1
      %p126 = por %p124, %p125
      %p127 = scmp.ne.s32.totalorder %s118, %s119
      %p128 = scmp.eq.s32.totalorder %s24, 0
      %p129 = por %p127, %p128
      %p130 = scmp.ne.s32.totalorder %s118, %s119
      %p131 = scmp.eq.s32.totalorder %s25, 1
      %p132 = por %p130, %p131
      %p134 = scmp.ne.s32.totalorder %s119, %s133
      %p135 = scmp.eq.s32.totalorder %s25, 0
      %p136 = por %p134, %p135
      %s137 = ssub.s32 %s19, %s26
      %p138 = scmp.eq.s32.totalorder %s137, 0
      %s140 = sadd.s32 %s139, 1
      %s141 = scalar_select %p138, %s139, %s140
      %p144 = pneg %p138
      %p145 = scmp.eq.s32.totalorder %s19, 1
      %p146 = por %p144, %p145
      %p147 = scmp.ne.s32.totalorder %s139, %s142
      %p148 = scmp.eq.s32.totalorder %s19, 0
      %p149 = por %p147, %p148
      %p150 = scmp.ne.s32.totalorder %s139, %s142
      %p151 = scmp.eq.s32.totalorder %s24, 1
      %p152 = por %p150, %p151
      %p153 = scmp.ne.s32.totalorder %s142, %s143
      %p154 = scmp.eq.s32.totalorder %s24, 0
      %p155 = por %p153, %p154
      %p156 = scmp.ne.s32.totalorder %s142, %s143
      %p157 = scmp.eq.s32.totalorder %s25, 1
      %p158 = por %p156, %p157
      %p160 = scmp.ne.s32.totalorder %s143, %s159
      %p161 = scmp.eq.s32.totalorder %s25, 0
      %p162 = por %p160, %p161
      %p163 = scmp.le.s32.totalorder 1, %s19
      %p164 = scmp.lt.s32.totalorder %s19, 3
      %p165 = pnand %p163, %p164
      %p166 = pneg %p165
      // Predicated region
      $region9: #{tpu_custom_call.1} parent=5 // pred_check
        _
      $region10: #{tpu_custom_call.1} parent=5 // pred_check_branch
        %168 = sbr.rel (%p165) target = $region12
      $region11: #{tpu_custom_call.1} parent=5 // pred_region
        %s169 = ssub.s32 %s19, 1
        // Predicated region
        $region13: #{tpu_custom_call.1} parent=11 // pred_check
          %p170 = pneg %p66
        $region14: #{tpu_custom_call.1} parent=11 // pred_check_branch
          %172 = sbr.rel (%p170) target = $region16
        $region15: #{tpu_custom_call.1} parent=11 // pred_region
          %s174 = ssub.s32 36864, 36864
          %175 = vsyncadd [#allocation6], %s174
          %s176 = sshll.u32 [#allocation5], 4
          %s177 = int_to_ptr.vmem [resolvable:$true] %s176
          %182 = dma.hbm_to_vmem [thread:$0]  %s1, 36864, %s177, [#allocation6], 128, 128, 8
        $region16: #{tpu_custom_call.1} parent=11 // pred_fallthru
          _
        // Predicated region
        $region17: #{tpu_custom_call.1} parent=11 // pred_check
          %p183 = pneg %p87
        $region18: #{tpu_custom_call.1} parent=11 // pred_check_branch
          %185 = sbr.rel (%p183) target = $region20
        $region19: #{tpu_custom_call.1} parent=11 // pred_region
          %s187 = ssub.s32 32, 32
          %188 = vsyncadd [#allocation6], %s187
          %s190 = sshll.u32 [#allocation7], 4
          %s191 = int_to_ptr.vmem [resolvable:$true] %s190
          %193 = dma.hbm_to_vmem [thread:$0]  %s2, 32, %s191, [#allocation6]
        $region20: #{tpu_custom_call.1} parent=11 // pred_fallthru
          _
        // Predicated region
        $region21: #{tpu_custom_call.1} parent=11 // pred_check
          %p194 = pneg %p108
        $region22: #{tpu_custom_call.1} parent=11 // pred_check_branch
          %196 = sbr.rel (%p194) target = $region24
        $region23: #{tpu_custom_call.1} parent=11 // pred_region
          %s198 = ssub.s32 36864, 36864
          %199 = vsyncadd [#allocation9], %s198
          %s200 = sshll.u32 [#allocation8], 4
          %s201 = int_to_ptr.vmem [resolvable:$true] %s200
          %206 = dma.hbm_to_vmem [thread:$0]  %s3, 36864, %s201, [#allocation9], 128, 128, 8
        $region24: #{tpu_custom_call.1} parent=11 // pred_fallthru
          _
        // Predicated region
        $region25: #{tpu_custom_call.1} parent=11 // pred_check
          %p207 = pneg %p129
        $region26: #{tpu_custom_call.1} parent=11 // pred_check_branch
          %209 = sbr.rel (%p207) target = $region28
        $region27: #{tpu_custom_call.1} parent=11 // pred_region
          %s211 = ssub.s32 32, 32
          %212 = vsyncadd [#allocation9], %s211
          %s214 = sshll.u32 [#allocation10], 4
          %s215 = int_to_ptr.vmem [resolvable:$true] %s214
          %217 = dma.hbm_to_vmem [thread:$0]  %s4, 32, %s215, [#allocation9]
        $region28: #{tpu_custom_call.1} parent=11 // pred_fallthru
          _
      $region12: #{tpu_custom_call.1} parent=5 // pred_fallthru
        _
      %p218 = scmp.lt.s32.totalorder %s19, 2
      // Predicated region
      $region29: #{tpu_custom_call.1} parent=5 // pred_check
        %p219 = pneg %p218
      $region30: #{tpu_custom_call.1} parent=5 // pred_check_branch
        %221 = sbr.rel (%p219) target = $region32
      $region31: #{tpu_custom_call.1} parent=5 // pred_region
        // Predicated region
        $region33: #{tpu_custom_call.1} parent=31 // pred_check
          %p222 = pneg %p39
        $region34: #{tpu_custom_call.1} parent=31 // pred_check_branch
          %224 = sbr.rel (%p222) target = $region36
        $region35: #{tpu_custom_call.1} parent=31 // pred_region
          %s225 = sand.u32 %s29, 1
          %s226 = scalar_lea.sflag [#allocation3], %s225
          %s227 = sand.u32 %s29, 1
          %s228 = smul.addr %s227, 512
          %s229 = scalar_lea.vmem [#allocation2], %s228
          %s231 = ssub.s32 8192, 8192
          %232 = vsyncadd %s226, %s231
          %s233 = smul.addr %s19, 64
          %s234 = smul.addr %s233, 128
          %s235 = scalar_lea.hbm %s0, %s234
          %s236 = sshll.u32 %s229, 4
          %s237 = int_to_ptr.vmem [resolvable:$true] %s236
          %242 = dma.hbm_to_vmem [thread:$0]  %s235, 8192, %s237, %s226, 256, 256, 16
        $region36: #{tpu_custom_call.1} parent=31 // pred_fallthru
          _
      $region32: #{tpu_custom_call.1} parent=5 // pred_fallthru
        _
      %p243 = scmp.le.s32.totalorder 1, %s19
      %p244 = scmp.lt.s32.totalorder %s19, 3
      %p245 = pnand %p243, %p244
      %p246 = pneg %p245
      // Predicated region
      $region37: #{tpu_custom_call.1} parent=5 // pred_check
        _
      $region38: #{tpu_custom_call.1} parent=5 // pred_check_branch
        %248 = sbr.rel (%p245) target = $region40
      $region39: #{tpu_custom_call.1} parent=5 // pred_region
        %s249 = ssub.s32 %s19, 1
        %s250 = sand.u32 %s32, 1
        %s251 = scalar_lea.sflag [#allocation3], %s250
        %s252 = sand.u32 %s32, 1
        %s253 = smul.addr %s252, 512
        %s254 = scalar_lea.vmem [#allocation2], %s253
        // Predicated region
        $region41: #{tpu_custom_call.1} parent=39 // pred_check
          %p255 = pneg %p45
        $region42: #{tpu_custom_call.1} parent=39 // pred_check_branch
          %257 = sbr.rel (%p255) target = $region44
        $region43: #{tpu_custom_call.1} parent=39 // pred_region
          %258 = dma.done %s251, 8192
        $region44: #{tpu_custom_call.1} parent=39 // pred_fallthru
          _
        // Predicated region
        $region45: #{tpu_custom_call.1} parent=39 // pred_check
          %p259 = pneg %p66
        $region46: #{tpu_custom_call.1} parent=39 // pred_check_branch
          %261 = sbr.rel (%p259) target = $region48
        $region47: #{tpu_custom_call.1} parent=39 // pred_region
          %262 = dma.done [#allocation6], 36864
        $region48: #{tpu_custom_call.1} parent=39 // pred_fallthru
          _
        // Predicated region
        $region49: #{tpu_custom_call.1} parent=39 // pred_check
          %p263 = pneg %p87
        $region50: #{tpu_custom_call.1} parent=39 // pred_check_branch
          %265 = sbr.rel (%p263) target = $region52
        $region51: #{tpu_custom_call.1} parent=39 // pred_region
          %266 = dma.done [#allocation6], 32
        $region52: #{tpu_custom_call.1} parent=39 // pred_fallthru
          _
        // Predicated region
        $region53: #{tpu_custom_call.1} parent=39 // pred_check
          %p267 = pneg %p108
        $region54: #{tpu_custom_call.1} parent=39 // pred_check_branch
          %269 = sbr.rel (%p267) target = $region56
        $region55: #{tpu_custom_call.1} parent=39 // pred_region
          %270 = dma.done [#allocation9], 36864
        $region56: #{tpu_custom_call.1} parent=39 // pred_fallthru
          _
        // Predicated region
        $region57: #{tpu_custom_call.1} parent=39 // pred_check
          %p271 = pneg %p129
        $region58: #{tpu_custom_call.1} parent=39 // pred_check_branch
          %273 = sbr.rel (%p271) target = $region60
        $region59: #{tpu_custom_call.1} parent=39 // pred_region
          %274 = dma.done [#allocation9], 32
        $region60: #{tpu_custom_call.1} parent=39 // pred_fallthru
          _
        %s275 = sand.u32 %s32, 1
        %s276 = scalar_lea.sflag [#allocation3], %s275
        %s277 = sand.u32 %s32, 1
        %s278 = smul.addr %s277, 512
        %s279 = scalar_lea.vmem [#allocation2], %s278
        %p280 = pneg %p45
        %p281 = pneg %p42
        %p282 = pneg %p66
        %p283 = pneg %p63
        %p284 = pneg %p87
        %p285 = pneg %p84
        %p286 = pneg %p108
        %p287 = pneg %p105
        %p288 = pneg %p129
        %p289 = pneg %p126
        %p290 = pneg %p155
        %p291 = pneg %p152
        %s292 = sand.u32 %s142, 1
        %s293 = scalar_lea.sflag [#allocation4], %s292
        %s294 = sand.u32 %s142, 1
        %s295 = smul.addr %s294, 512
        %s296 = scalar_lea.vmem [#allocation11], %s295
        %v297 = vld [vmem:[%s254] sm:$0xff]
        %v298 = vld [vmem:[%s254 + $0x8] sm:$0xff]
        %v299 = vld [vmem:[%s254 + $0x10] sm:$0xff]
        %v300 = vld [vmem:[%s254 + $0x18] sm:$0xff]
        %v301 = vld [vmem:[%s254 + $0x20] sm:$0xff]
        %v302 = vld [vmem:[%s254 + $0x28] sm:$0xff]
        %v303 = vld [vmem:[%s254 + $0x30] sm:$0xff]
        %v304 = vld [vmem:[%s254 + $0x38] sm:$0xff]
        %v305 = vld [vmem:[%s254 + $0x40] sm:$0xff]
        %v306 = vld [vmem:[%s254 + $0x48] sm:$0xff]
        %v307 = vld [vmem:[%s254 + $0x50] sm:$0xff]
        %v308 = vld [vmem:[%s254 + $0x58] sm:$0xff]
        %v309 = vld [vmem:[%s254 + $0x60] sm:$0xff]
        %v310 = vld [vmem:[%s254 + $0x68] sm:$0xff]
        %v311 = vld [vmem:[%s254 + $0x70] sm:$0xff]
        %v312 = vld [vmem:[%s254 + $0x78] sm:$0xff]
        %v313 = vld [vmem:[%s254 + $0x80] sm:$0xff]
        %v314 = vld [vmem:[%s254 + $0x88] sm:$0xff]
        %v315 = vld [vmem:[%s254 + $0x90] sm:$0xff]
        %v316 = vld [vmem:[%s254 + $0x98] sm:$0xff]
        %v317 = vld [vmem:[%s254 + $0xa0] sm:$0xff]
        %v318 = vld [vmem:[%s254 + $0xa8] sm:$0xff]
        %v319 = vld [vmem:[%s254 + $0xb0] sm:$0xff]
        %v320 = vld [vmem:[%s254 + $0xb8] sm:$0xff]
        %v321 = vld [vmem:[%s254 + $0xc0] sm:$0xff]
        %v322 = vld [vmem:[%s254 + $0xc8] sm:$0xff]
        %v323 = vld [vmem:[%s254 + $0xd0] sm:$0xff]
        %v324 = vld [vmem:[%s254 + $0xd8] sm:$0xff]
        %v325 = vld [vmem:[%s254 + $0xe0] sm:$0xff]
        %v326 = vld [vmem:[%s254 + $0xe8] sm:$0xff]
        %v327 = vld [vmem:[%s254 + $0xf0] sm:$0xff]
        %v328 = vld [vmem:[%s254 + $0xf8] sm:$0xff]
        %v329 = vld [vmem:[%s254 + $0x100] sm:$0xff]
        %v330 = vld [vmem:[%s254 + $0x108] sm:$0xff]
        %v331 = vld [vmem:[%s254 + $0x110] sm:$0xff]
        %v332 = vld [vmem:[%s254 + $0x118] sm:$0xff]
        %v333 = vld [vmem:[%s254 + $0x120] sm:$0xff]
        %v334 = vld [vmem:[%s254 + $0x128] sm:$0xff]
        %v335 = vld [vmem:[%s254 + $0x130] sm:$0xff]
        %v336 = vld [vmem:[%s254 + $0x138] sm:$0xff]
        %v337 = vld [vmem:[%s254 + $0x140] sm:$0xff]
        %v338 = vld [vmem:[%s254 + $0x148] sm:$0xff]
        %v339 = vld [vmem:[%s254 + $0x150] sm:$0xff]
        %v340 = vld [vmem:[%s254 + $0x158] sm:$0xff]
        %v341 = vld [vmem:[%s254 + $0x160] sm:$0xff]
        %v342 = vld [vmem:[%s254 + $0x168] sm:$0xff]
        %v343 = vld [vmem:[%s254 + $0x170] sm:$0xff]
        %v344 = vld [vmem:[%s254 + $0x178] sm:$0xff]
        %v345 = vld [vmem:[%s254 + $0x180] sm:$0xff]
        %v346 = vld [vmem:[%s254 + $0x188] sm:$0xff]
        %v347 = vld [vmem:[%s254 + $0x190] sm:$0xff]
        %v348 = vld [vmem:[%s254 + $0x198] sm:$0xff]
        %v349 = vld [vmem:[%s254 + $0x1a0] sm:$0xff]
        %v350 = vld [vmem:[%s254 + $0x1a8] sm:$0xff]
        %v351 = vld [vmem:[%s254 + $0x1b0] sm:$0xff]
        %v352 = vld [vmem:[%s254 + $0x1b8] sm:$0xff]
        %v353 = vld [vmem:[%s254 + $0x1c0] sm:$0xff]
        %v354 = vld [vmem:[%s254 + $0x1c8] sm:$0xff]
        %v355 = vld [vmem:[%s254 + $0x1d0] sm:$0xff]
        %v356 = vld [vmem:[%s254 + $0x1d8] sm:$0xff]
        %v357 = vld [vmem:[%s254 + $0x1e0] sm:$0xff]
        %v358 = vld [vmem:[%s254 + $0x1e8] sm:$0xff]
        %v359 = vld [vmem:[%s254 + $0x1f0] sm:$0xff]
        %v360 = vld [vmem:[%s254 + $0x1f8] sm:$0xff]
        %v361 = vpack.c.bf16 %v299, %v297
        %v362 = vpack.c.bf16 %v300, %v298
        %v363 = vpack.c.bf16 %v303, %v301
        %v364 = vpack.c.bf16 %v304, %v302
        %v365 = vpack.c.bf16 %v307, %v305
        %v366 = vpack.c.bf16 %v308, %v306
        %v367 = vpack.c.bf16 %v311, %v309
        %v368 = vpack.c.bf16 %v312, %v310
        %v369 = vpack.c.bf16 %v315, %v313
        %v370 = vpack.c.bf16 %v316, %v314
        %v371 = vpack.c.bf16 %v319, %v317
        %v372 = vpack.c.bf16 %v320, %v318
        %v373 = vpack.c.bf16 %v323, %v321
        %v374 = vpack.c.bf16 %v324, %v322
        %v375 = vpack.c.bf16 %v327, %v325
        %v376 = vpack.c.bf16 %v328, %v326
        %v377 = vpack.c.bf16 %v331, %v329
        %v378 = vpack.c.bf16 %v332, %v330
        %v379 = vpack.c.bf16 %v335, %v333
        %v380 = vpack.c.bf16 %v336, %v334
        %v381 = vpack.c.bf16 %v339, %v337
        %v382 = vpack.c.bf16 %v340, %v338
        %v383 = vpack.c.bf16 %v343, %v341
        %v384 = vpack.c.bf16 %v344, %v342
        %v385 = vpack.c.bf16 %v347, %v345
        %v386 = vpack.c.bf16 %v348, %v346
        %v387 = vpack.c.bf16 %v351, %v349
        %v388 = vpack.c.bf16 %v352, %v350
        %v389 = vpack.c.bf16 %v355, %v353
        %v390 = vpack.c.bf16 %v356, %v354
        %v391 = vpack.c.bf16 %v359, %v357
        %v392 = vpack.c.bf16 %v360, %v358
        %v394 = vshrl.u32 %v361, 16
        %v397 = vshrl.u32 %v362, 16
        %v400 = vshrl.u32 %v363, 16
        %v403 = vshrl.u32 %v364, 16
        %v406 = vshrl.u32 %v365, 16
        %v409 = vshrl.u32 %v366, 16
        %v412 = vshrl.u32 %v367, 16
        %v415 = vshrl.u32 %v368, 16
        %v418 = vshrl.u32 %v369, 16
        %v421 = vshrl.u32 %v370, 16
        %v424 = vshrl.u32 %v371, 16
        %v427 = vshrl.u32 %v372, 16
        %v430 = vshrl.u32 %v373, 16
        %v433 = vshrl.u32 %v374, 16
        %v436 = vshrl.u32 %v375, 16
        %v439 = vshrl.u32 %v376, 16
        %v442 = vshrl.u32 %v377, 16
        %v445 = vshrl.u32 %v378, 16
        %v448 = vshrl.u32 %v379, 16
        %v451 = vshrl.u32 %v380, 16
        %v454 = vshrl.u32 %v381, 16
        %v457 = vshrl.u32 %v382, 16
        %v460 = vshrl.u32 %v383, 16
        %v463 = vshrl.u32 %v384, 16
        %v466 = vshrl.u32 %v385, 16
        %v469 = vshrl.u32 %v386, 16
        %v472 = vshrl.u32 %v387, 16
        %v475 = vshrl.u32 %v388, 16
        %v478 = vshrl.u32 %v389, 16
        %v481 = vshrl.u32 %v390, 16
        %v484 = vshrl.u32 %v391, 16
        %v487 = vshrl.u32 %v392, 16
        %v521 = vrot.slane %v394, 7
        %v522 = vshll.u32 %v361, 16
        %v524 = vor.u32 %v521, %v522
        %v525 = vrot.slane %v397, 7
        %v526 = vshll.u32 %v362, 16
        %v528 = vor.u32 %v525, %v526
        %v529 = vrot.slane %v400, 7
        %v530 = vshll.u32 %v363, 16
        %v532 = vor.u32 %v529, %v530
        %v533 = vrot.slane %v403, 7
        %v534 = vshll.u32 %v364, 16
        %v536 = vor.u32 %v533, %v534
        %v537 = vrot.slane %v406, 7
        %v538 = vshll.u32 %v365, 16
        %v540 = vor.u32 %v537, %v538
        %v541 = vrot.slane %v409, 7
        %v542 = vshll.u32 %v366, 16
        %v544 = vor.u32 %v541, %v542
        %v545 = vrot.slane %v412, 7
        %v546 = vshll.u32 %v367, 16
        %v548 = vor.u32 %v545, %v546
        %v549 = vrot.slane %v415, 7
        %v550 = vshll.u32 %v368, 16
        %v552 = vor.u32 %v549, %v550
        %v553 = vrot.slane %v418, 7
        %v554 = vshll.u32 %v369, 16
        %v556 = vor.u32 %v553, %v554
        %v557 = vrot.slane %v421, 7
        %v558 = vshll.u32 %v370, 16
        %v560 = vor.u32 %v557, %v558
        %v561 = vrot.slane %v424, 7
        %v562 = vshll.u32 %v371, 16
        %v564 = vor.u32 %v561, %v562
        %v565 = vrot.slane %v427, 7
        %v566 = vshll.u32 %v372, 16
        %v568 = vor.u32 %v565, %v566
        %v569 = vrot.slane %v430, 7
        %v570 = vshll.u32 %v373, 16
        %v572 = vor.u32 %v569, %v570
        %v573 = vrot.slane %v433, 7
        %v574 = vshll.u32 %v374, 16
        %v576 = vor.u32 %v573, %v574
        %v577 = vrot.slane %v436, 7
        %v578 = vshll.u32 %v375, 16
        %v580 = vor.u32 %v577, %v578
        %v581 = vrot.slane %v439, 7
        %v582 = vshll.u32 %v376, 16
        %v584 = vor.u32 %v581, %v582
        %v585 = vrot.slane %v442, 7
        %v586 = vshll.u32 %v377, 16
        %v588 = vor.u32 %v585, %v586
        %v589 = vrot.slane %v445, 7
        %v590 = vshll.u32 %v378, 16
        %v592 = vor.u32 %v589, %v590
        %v593 = vrot.slane %v448, 7
        %v594 = vshll.u32 %v379, 16
        %v596 = vor.u32 %v593, %v594
        %v597 = vrot.slane %v451, 7
        %v598 = vshll.u32 %v380, 16
        %v600 = vor.u32 %v597, %v598
        %v601 = vrot.slane %v454, 7
        %v602 = vshll.u32 %v381, 16
        %v604 = vor.u32 %v601, %v602
        %v605 = vrot.slane %v457, 7
        %v606 = vshll.u32 %v382, 16
        %v608 = vor.u32 %v605, %v606
        %v609 = vrot.slane %v460, 7
        %v610 = vshll.u32 %v383, 16
        %v612 = vor.u32 %v609, %v610
        %v613 = vrot.slane %v463, 7
        %v614 = vshll.u32 %v384, 16
        %v616 = vor.u32 %v613, %v614
        %v617 = vrot.slane %v466, 7
        %v618 = vshll.u32 %v385, 16
        %v620 = vor.u32 %v617, %v618
        %v621 = vrot.slane %v469, 7
        %v622 = vshll.u32 %v386, 16
        %v624 = vor.u32 %v621, %v622
        %v625 = vrot.slane %v472, 7
        %v626 = vshll.u32 %v387, 16
        %v628 = vor.u32 %v625, %v626
        %v629 = vrot.slane %v475, 7
        %v630 = vshll.u32 %v388, 16
        %v632 = vor.u32 %v629, %v630
        %v633 = vrot.slane %v478, 7
        %v634 = vshll.u32 %v389, 16
        %v636 = vor.u32 %v633, %v634
        %v637 = vrot.slane %v481, 7
        %v638 = vshll.u32 %v390, 16
        %v640 = vor.u32 %v637, %v638
        %v641 = vrot.slane %v484, 7
        %v642 = vshll.u32 %v391, 16
        %v644 = vor.u32 %v641, %v642
        %v645 = vrot.slane %v487, 7
        %v646 = vshll.u32 %v392, 16
        %v648 = vor.u32 %v645, %v646
        %v713 = vrot.slane %v522, 7
        %v714 = vrot.slane %v526, 7
        %v715 = vrot.slane %v530, 7
        %v716 = vrot.slane %v534, 7
        %v717 = vrot.slane %v538, 7
        %v718 = vrot.slane %v542, 7
        %v719 = vrot.slane %v546, 7
        %v720 = vrot.slane %v550, 7
        %v721 = vrot.slane %v554, 7
        %v722 = vrot.slane %v558, 7
        %v723 = vrot.slane %v562, 7
        %v724 = vrot.slane %v566, 7
        %v725 = vrot.slane %v570, 7
        %v726 = vrot.slane %v574, 7
        %v727 = vrot.slane %v578, 7
        %v728 = vrot.slane %v582, 7
        %v729 = vrot.slane %v586, 7
        %v730 = vrot.slane %v590, 7
        %v731 = vrot.slane %v594, 7
        %v732 = vrot.slane %v598, 7
        %v733 = vrot.slane %v602, 7
        %v734 = vrot.slane %v606, 7
        %v735 = vrot.slane %v610, 7
        %v736 = vrot.slane %v614, 7
        %v737 = vrot.slane %v618, 7
        %v738 = vrot.slane %v622, 7
        %v739 = vrot.slane %v626, 7
        %v740 = vrot.slane %v630, 7
        %v741 = vrot.slane %v634, 7
        %v742 = vrot.slane %v638, 7
        %v743 = vrot.slane %v642, 7
        %v744 = vrot.slane %v646, 7
        %vm777 = vcmask 1040384
        %vm778 = vsmask.f32 256
        %vm779 = vmand %vm777, %vm778
        %v780 = vsel %vm779, %v394, %v524
        %v781 = vsel %vm779, %v397, %v528
        %v782 = vsel %vm779, %v400, %v532
        %v783 = vsel %vm779, %v403, %v536
        %v784 = vsel %vm779, %v406, %v540
        %v785 = vsel %vm779, %v409, %v544
        %v786 = vsel %vm779, %v412, %v548
        %v787 = vsel %vm779, %v415, %v552
        %v788 = vsel %vm779, %v418, %v556
        %v789 = vsel %vm779, %v421, %v560
        %v790 = vsel %vm779, %v424, %v564
        %v791 = vsel %vm779, %v427, %v568
        %v792 = vsel %vm779, %v430, %v572
        %v793 = vsel %vm779, %v433, %v576
        %v794 = vsel %vm779, %v436, %v580
        %v795 = vsel %vm779, %v439, %v584
        %v796 = vsel %vm779, %v442, %v588
        %v797 = vsel %vm779, %v445, %v592
        %v798 = vsel %vm779, %v448, %v596
        %v799 = vsel %vm779, %v451, %v600
        %v800 = vsel %vm779, %v454, %v604
        %v801 = vsel %vm779, %v457, %v608
        %v802 = vsel %vm779, %v460, %v612
        %v803 = vsel %vm779, %v463, %v616
        %v804 = vsel %vm779, %v466, %v620
        %v805 = vsel %vm779, %v469, %v624
        %v806 = vsel %vm779, %v472, %v628
        %v807 = vsel %vm779, %v475, %v632
        %v808 = vsel %vm779, %v478, %v636
        %v809 = vsel %vm779, %v481, %v640
        %v810 = vsel %vm779, %v484, %v644
        %v811 = vsel %vm779, %v487, %v648
        %v812 = vsel %vm779, %v521, %v713
        %v813 = vsel %vm779, %v525, %v714
        %v814 = vsel %vm779, %v529, %v715
        %v815 = vsel %vm779, %v533, %v716
        %v816 = vsel %vm779, %v537, %v717
        %v817 = vsel %vm779, %v541, %v718
        %v818 = vsel %vm779, %v545, %v719
        %v819 = vsel %vm779, %v549, %v720
        %v820 = vsel %vm779, %v553, %v721
        %v821 = vsel %vm779, %v557, %v722
        %v822 = vsel %vm779, %v561, %v723
        %v823 = vsel %vm779, %v565, %v724
        %v824 = vsel %vm779, %v569, %v725
        %v825 = vsel %vm779, %v573, %v726
        %v826 = vsel %vm779, %v577, %v727
        %v827 = vsel %vm779, %v581, %v728
        %v828 = vsel %vm779, %v585, %v729
        %v829 = vsel %vm779, %v589, %v730
        %v830 = vsel %vm779, %v593, %v731
        %v831 = vsel %vm779, %v597, %v732
        %v832 = vsel %vm779, %v601, %v733
        %v833 = vsel %vm779, %v605, %v734
        %v834 = vsel %vm779, %v609, %v735
        %v835 = vsel %vm779, %v613, %v736
        %v836 = vsel %vm779, %v617, %v737
        %v837 = vsel %vm779, %v621, %v738
        %v838 = vsel %vm779, %v625, %v739
        %v839 = vsel %vm779, %v629, %v740
        %v840 = vsel %vm779, %v633, %v741
        %v841 = vsel %vm779, %v637, %v742
        %v842 = vsel %vm779, %v641, %v743
        %v843 = vsel %vm779, %v645, %v744
        %vm844 = vsmask.f32 7424
        %v846 = vshrl.u32 %v780, 16
        %v848 = vshll.u32 %v780, 16
        %v850 = vrot.slane %v848, 1
        %v851 = vor.u32 %v846, %v850
        %v853 = vshll.u32 %v812, 16
        %v855 = vrot.slane %v853, 1
        %v856 = vsel %vm844, %v851, %v855
        %v858 = vshrl.u32 %v781, 16
        %v860 = vshll.u32 %v781, 16
        %v862 = vrot.slane %v860, 1
        %v863 = vor.u32 %v858, %v862
        %v865 = vshll.u32 %v813, 16
        %v867 = vrot.slane %v865, 1
        %v868 = vsel %vm844, %v863, %v867
        %v870 = vshrl.u32 %v782, 16
        %v872 = vshll.u32 %v782, 16
        %v874 = vrot.slane %v872, 1
        %v875 = vor.u32 %v870, %v874
        %v877 = vshll.u32 %v814, 16
        %v879 = vrot.slane %v877, 1
        %v880 = vsel %vm844, %v875, %v879
        %v882 = vshrl.u32 %v783, 16
        %v884 = vshll.u32 %v783, 16
        %v886 = vrot.slane %v884, 1
        %v887 = vor.u32 %v882, %v886
        %v889 = vshll.u32 %v815, 16
        %v891 = vrot.slane %v889, 1
        %v892 = vsel %vm844, %v887, %v891
        %v894 = vshrl.u32 %v784, 16
        %v896 = vshll.u32 %v784, 16
        %v898 = vrot.slane %v896, 1
        %v899 = vor.u32 %v894, %v898
        %v901 = vshll.u32 %v816, 16
        %v903 = vrot.slane %v901, 1
        %v904 = vsel %vm844, %v899, %v903
        %v906 = vshrl.u32 %v785, 16
        %v908 = vshll.u32 %v785, 16
        %v910 = vrot.slane %v908, 1
        %v911 = vor.u32 %v906, %v910
        %v913 = vshll.u32 %v817, 16
        %v915 = vrot.slane %v913, 1
        %v916 = vsel %vm844, %v911, %v915
        %v918 = vshrl.u32 %v786, 16
        %v920 = vshll.u32 %v786, 16
        %v922 = vrot.slane %v920, 1
        %v923 = vor.u32 %v918, %v922
        %v925 = vshll.u32 %v818, 16
        %v927 = vrot.slane %v925, 1
        %v928 = vsel %vm844, %v923, %v927
        %v930 = vshrl.u32 %v787, 16
        %v932 = vshll.u32 %v787, 16
        %v934 = vrot.slane %v932, 1
        %v935 = vor.u32 %v930, %v934
        %v937 = vshll.u32 %v819, 16
        %v939 = vrot.slane %v937, 1
        %v940 = vsel %vm844, %v935, %v939
        %v942 = vshrl.u32 %v788, 16
        %v944 = vshll.u32 %v788, 16
        %v946 = vrot.slane %v944, 1
        %v947 = vor.u32 %v942, %v946
        %v949 = vshll.u32 %v820, 16
        %v951 = vrot.slane %v949, 1
        %v952 = vsel %vm844, %v947, %v951
        %v954 = vshrl.u32 %v789, 16
        %v956 = vshll.u32 %v789, 16
        %v958 = vrot.slane %v956, 1
        %v959 = vor.u32 %v954, %v958
        %v961 = vshll.u32 %v821, 16
        %v963 = vrot.slane %v961, 1
        %v964 = vsel %vm844, %v959, %v963
        %v966 = vshrl.u32 %v790, 16
        %v968 = vshll.u32 %v790, 16
        %v970 = vrot.slane %v968, 1
        %v971 = vor.u32 %v966, %v970
        %v973 = vshll.u32 %v822, 16
        %v975 = vrot.slane %v973, 1
        %v976 = vsel %vm844, %v971, %v975
        %v978 = vshrl.u32 %v791, 16
        %v980 = vshll.u32 %v791, 16
        %v982 = vrot.slane %v980, 1
        %v983 = vor.u32 %v978, %v982
        %v985 = vshll.u32 %v823, 16
        %v987 = vrot.slane %v985, 1
        %v988 = vsel %vm844, %v983, %v987
        %v990 = vshrl.u32 %v792, 16
        %v992 = vshll.u32 %v792, 16
        %v994 = vrot.slane %v992, 1
        %v995 = vor.u32 %v990, %v994
        %v997 = vshll.u32 %v824, 16
        %v999 = vrot.slane %v997, 1
        %v1000 = vsel %vm844, %v995, %v999
        %v1002 = vshrl.u32 %v793, 16
        %v1004 = vshll.u32 %v793, 16
        %v1006 = vrot.slane %v1004, 1
        %v1007 = vor.u32 %v1002, %v1006
        %v1009 = vshll.u32 %v825, 16
        %v1011 = vrot.slane %v1009, 1
        %v1012 = vsel %vm844, %v1007, %v1011
        %v1014 = vshrl.u32 %v794, 16
        %v1016 = vshll.u32 %v794, 16
        %v1018 = vrot.slane %v1016, 1
        %v1019 = vor.u32 %v1014, %v1018
        %v1021 = vshll.u32 %v826, 16
        %v1023 = vrot.slane %v1021, 1
        %v1024 = vsel %vm844, %v1019, %v1023
        %v1026 = vshrl.u32 %v795, 16
        %v1028 = vshll.u32 %v795, 16
        %v1030 = vrot.slane %v1028, 1
        %v1031 = vor.u32 %v1026, %v1030
        %v1033 = vshll.u32 %v827, 16
        %v1035 = vrot.slane %v1033, 1
        %v1036 = vsel %vm844, %v1031, %v1035
        %v1038 = vshrl.u32 %v796, 16
        %v1040 = vshll.u32 %v796, 16
        %v1042 = vrot.slane %v1040, 1
        %v1043 = vor.u32 %v1038, %v1042
        %v1045 = vshll.u32 %v828, 16
        %v1047 = vrot.slane %v1045, 1
        %v1048 = vsel %vm844, %v1043, %v1047
        %v1050 = vshrl.u32 %v797, 16
        %v1052 = vshll.u32 %v797, 16
        %v1054 = vrot.slane %v1052, 1
        %v1055 = vor.u32 %v1050, %v1054
        %v1057 = vshll.u32 %v829, 16
        %v1059 = vrot.slane %v1057, 1
        %v1060 = vsel %vm844, %v1055, %v1059
        %v1062 = vshrl.u32 %v798, 16
        %v1064 = vshll.u32 %v798, 16
        %v1066 = vrot.slane %v1064, 1
        %v1067 = vor.u32 %v1062, %v1066
        %v1069 = vshll.u32 %v830, 16
        %v1071 = vrot.slane %v1069, 1
        %v1072 = vsel %vm844, %v1067, %v1071
        %v1074 = vshrl.u32 %v799, 16
        %v1076 = vshll.u32 %v799, 16
        %v1078 = vrot.slane %v1076, 1
        %v1079 = vor.u32 %v1074, %v1078
        %v1081 = vshll.u32 %v831, 16
        %v1083 = vrot.slane %v1081, 1
        %v1084 = vsel %vm844, %v1079, %v1083
        %v1086 = vshrl.u32 %v800, 16
        %v1088 = vshll.u32 %v800, 16
        %v1090 = vrot.slane %v1088, 1
        %v1091 = vor.u32 %v1086, %v1090
        %v1093 = vshll.u32 %v832, 16
        %v1095 = vrot.slane %v1093, 1
        %v1096 = vsel %vm844, %v1091, %v1095
        %v1098 = vshrl.u32 %v801, 16
        %v1100 = vshll.u32 %v801, 16
        %v1102 = vrot.slane %v1100, 1
        %v1103 = vor.u32 %v1098, %v1102
        %v1105 = vshll.u32 %v833, 16
        %v1107 = vrot.slane %v1105, 1
        %v1108 = vsel %vm844, %v1103, %v1107
        %v1110 = vshrl.u32 %v802, 16
        %v1112 = vshll.u32 %v802, 16
        %v1114 = vrot.slane %v1112, 1
        %v1115 = vor.u32 %v1110, %v1114
        %v1117 = vshll.u32 %v834, 16
        %v1119 = vrot.slane %v1117, 1
        %v1120 = vsel %vm844, %v1115, %v1119
        %v1122 = vshrl.u32 %v803, 16
        %v1124 = vshll.u32 %v803, 16
        %v1126 = vrot.slane %v1124, 1
        %v1127 = vor.u32 %v1122, %v1126
        %v1129 = vshll.u32 %v835, 16
        %v1131 = vrot.slane %v1129, 1
        %v1132 = vsel %vm844, %v1127, %v1131
        %v1134 = vshrl.u32 %v804, 16
        %v1136 = vshll.u32 %v804, 16
        %v1138 = vrot.slane %v1136, 1
        %v1139 = vor.u32 %v1134, %v1138
        %v1141 = vshll.u32 %v836, 16
        %v1143 = vrot.slane %v1141, 1
        %v1144 = vsel %vm844, %v1139, %v1143
        %v1146 = vshrl.u32 %v805, 16
        %v1148 = vshll.u32 %v805, 16
        %v1150 = vrot.slane %v1148, 1
        %v1151 = vor.u32 %v1146, %v1150
        %v1153 = vshll.u32 %v837, 16
        %v1155 = vrot.slane %v1153, 1
        %v1156 = vsel %vm844, %v1151, %v1155
        %v1158 = vshrl.u32 %v806, 16
        %v1160 = vshll.u32 %v806, 16
        %v1162 = vrot.slane %v1160, 1
        %v1163 = vor.u32 %v1158, %v1162
        %v1165 = vshll.u32 %v838, 16
        %v1167 = vrot.slane %v1165, 1
        %v1168 = vsel %vm844, %v1163, %v1167
        %v1170 = vshrl.u32 %v807, 16
        %v1172 = vshll.u32 %v807, 16
        %v1174 = vrot.slane %v1172, 1
        %v1175 = vor.u32 %v1170, %v1174
        %v1177 = vshll.u32 %v839, 16
        %v1179 = vrot.slane %v1177, 1
        %v1180 = vsel %vm844, %v1175, %v1179
        %v1182 = vshrl.u32 %v808, 16
        %v1184 = vshll.u32 %v808, 16
        %v1186 = vrot.slane %v1184, 1
        %v1187 = vor.u32 %v1182, %v1186
        %v1189 = vshll.u32 %v840, 16
        %v1191 = vrot.slane %v1189, 1
        %v1192 = vsel %vm844, %v1187, %v1191
        %v1194 = vshrl.u32 %v809, 16
        %v1196 = vshll.u32 %v809, 16
        %v1198 = vrot.slane %v1196, 1
        %v1199 = vor.u32 %v1194, %v1198
        %v1201 = vshll.u32 %v841, 16
        %v1203 = vrot.slane %v1201, 1
        %v1204 = vsel %vm844, %v1199, %v1203
        %v1206 = vshrl.u32 %v810, 16
        %v1208 = vshll.u32 %v810, 16
        %v1210 = vrot.slane %v1208, 1
        %v1211 = vor.u32 %v1206, %v1210
        %v1213 = vshll.u32 %v842, 16
        %v1215 = vrot.slane %v1213, 1
        %v1216 = vsel %vm844, %v1211, %v1215
        %v1218 = vshrl.u32 %v811, 16
        %v1220 = vshll.u32 %v811, 16
        %v1222 = vrot.slane %v1220, 1
        %v1223 = vor.u32 %v1218, %v1222
        %v1225 = vshll.u32 %v843, 16
        %v1227 = vrot.slane %v1225, 1
        %v1228 = vsel %vm844, %v1223, %v1227
        %vm1325 = vcmask 1046528
        %v1326 = vrot.slane %v780, 1
        %v1327 = vrot.slane %v812, 1
        %v1328 = vsel %vm1325, %v1326, %v1327
        %v1329 = vrot.slane %v781, 1
        %v1330 = vrot.slane %v813, 1
        %v1331 = vsel %vm1325, %v1329, %v1330
        %v1332 = vrot.slane %v782, 1
        %v1333 = vrot.slane %v814, 1
        %v1334 = vsel %vm1325, %v1332, %v1333
        %v1335 = vrot.slane %v783, 1
        %v1336 = vrot.slane %v815, 1
        %v1337 = vsel %vm1325, %v1335, %v1336
        %v1338 = vrot.slane %v784, 1
        %v1339 = vrot.slane %v816, 1
        %v1340 = vsel %vm1325, %v1338, %v1339
        %v1341 = vrot.slane %v785, 1
        %v1342 = vrot.slane %v817, 1
        %v1343 = vsel %vm1325, %v1341, %v1342
        %v1344 = vrot.slane %v786, 1
        %v1345 = vrot.slane %v818, 1
        %v1346 = vsel %vm1325, %v1344, %v1345
        %v1347 = vrot.slane %v787, 1
        %v1348 = vrot.slane %v819, 1
        %v1349 = vsel %vm1325, %v1347, %v1348
        %v1350 = vrot.slane %v788, 1
        %v1351 = vrot.slane %v820, 1
        %v1352 = vsel %vm1325, %v1350, %v1351
        %v1353 = vrot.slane %v789, 1
        %v1354 = vrot.slane %v821, 1
        %v1355 = vsel %vm1325, %v1353, %v1354
        %v1356 = vrot.slane %v790, 1
        %v1357 = vrot.slane %v822, 1
        %v1358 = vsel %vm1325, %v1356, %v1357
        %v1359 = vrot.slane %v791, 1
        %v1360 = vrot.slane %v823, 1
        %v1361 = vsel %vm1325, %v1359, %v1360
        %v1362 = vrot.slane %v792, 1
        %v1363 = vrot.slane %v824, 1
        %v1364 = vsel %vm1325, %v1362, %v1363
        %v1365 = vrot.slane %v793, 1
        %v1366 = vrot.slane %v825, 1
        %v1367 = vsel %vm1325, %v1365, %v1366
        %v1368 = vrot.slane %v794, 1
        %v1369 = vrot.slane %v826, 1
        %v1370 = vsel %vm1325, %v1368, %v1369
        %v1371 = vrot.slane %v795, 1
        %v1372 = vrot.slane %v827, 1
        %v1373 = vsel %vm1325, %v1371, %v1372
        %v1374 = vrot.slane %v796, 1
        %v1375 = vrot.slane %v828, 1
        %v1376 = vsel %vm1325, %v1374, %v1375
        %v1377 = vrot.slane %v797, 1
        %v1378 = vrot.slane %v829, 1
        %v1379 = vsel %vm1325, %v1377, %v1378
        %v1380 = vrot.slane %v798, 1
        %v1381 = vrot.slane %v830, 1
        %v1382 = vsel %vm1325, %v1380, %v1381
        %v1383 = vrot.slane %v799, 1
        %v1384 = vrot.slane %v831, 1
        %v1385 = vsel %vm1325, %v1383, %v1384
        %v1386 = vrot.slane %v800, 1
        %v1387 = vrot.slane %v832, 1
        %v1388 = vsel %vm1325, %v1386, %v1387
        %v1389 = vrot.slane %v801, 1
        %v1390 = vrot.slane %v833, 1
        %v1391 = vsel %vm1325, %v1389, %v1390
        %v1392 = vrot.slane %v802, 1
        %v1393 = vrot.slane %v834, 1
        %v1394 = vsel %vm1325, %v1392, %v1393
        %v1395 = vrot.slane %v803, 1
        %v1396 = vrot.slane %v835, 1
        %v1397 = vsel %vm1325, %v1395, %v1396
        %v1398 = vrot.slane %v804, 1
        %v1399 = vrot.slane %v836, 1
        %v1400 = vsel %vm1325, %v1398, %v1399
        %v1401 = vrot.slane %v805, 1
        %v1402 = vrot.slane %v837, 1
        %v1403 = vsel %vm1325, %v1401, %v1402
        %v1404 = vrot.slane %v806, 1
        %v1405 = vrot.slane %v838, 1
        %v1406 = vsel %vm1325, %v1404, %v1405
        %v1407 = vrot.slane %v807, 1
        %v1408 = vrot.slane %v839, 1
        %v1409 = vsel %vm1325, %v1407, %v1408
        %v1410 = vrot.slane %v808, 1
        %v1411 = vrot.slane %v840, 1
        %v1412 = vsel %vm1325, %v1410, %v1411
        %v1413 = vrot.slane %v809, 1
        %v1414 = vrot.slane %v841, 1
        %v1415 = vsel %vm1325, %v1413, %v1414
        %v1416 = vrot.slane %v810, 1
        %v1417 = vrot.slane %v842, 1
        %v1418 = vsel %vm1325, %v1416, %v1417
        %v1419 = vrot.slane %v811, 1
        %v1420 = vrot.slane %v843, 1
        %v1421 = vsel %vm1325, %v1419, %v1420
        %v1454 = vld [vmem:[#allocation5] sm:$0xff]
        %v1455 = vld [vmem:[#allocation5 + $0x8] sm:$0xff]
        %v1456 = vld [vmem:[#allocation5 + $0x10] sm:$0xff]
        %v1457 = vld [vmem:[#allocation5 + $0x18] sm:$0xff]
        %v1458 = vld [vmem:[#allocation5 + $0x20] sm:$0xff]
        %v1459 = vld [vmem:[#allocation5 + $0x28] sm:$0xff]
        %v1460 = vld [vmem:[#allocation5 + $0x30] sm:$0xff]
        %v1461 = vld [vmem:[#allocation5 + $0x38] sm:$0xff]
        %v1462 = vld [vmem:[#allocation5 + $0x40] sm:$0xff]
        %v1463 = vld [vmem:[#allocation5 + $0x48] sm:$0xff]
        %v1464 = vld [vmem:[#allocation5 + $0x50] sm:$0xff]
        %v1465 = vld [vmem:[#allocation5 + $0x58] sm:$0xff]
        %v1466 = vld [vmem:[#allocation5 + $0x60] sm:$0xff]
        %v1467 = vld [vmem:[#allocation5 + $0x68] sm:$0xff]
        %v1468 = vld [vmem:[#allocation5 + $0x70] sm:$0xff]
        %v1469 = vld [vmem:[#allocation5 + $0x78] sm:$0xff]
        %v1470 = vld [vmem:[#allocation5 + $0x80] sm:$0xff]
        %v1471 = vld [vmem:[#allocation5 + $0x88] sm:$0xff]
        %v1472 = vld [vmem:[#allocation5 + $0x90] sm:$0xff]
        %v1473 = vld [vmem:[#allocation5 + $0x98] sm:$0xff]
        %v1474 = vld [vmem:[#allocation5 + $0xa0] sm:$0xff]
        %v1475 = vld [vmem:[#allocation5 + $0xa8] sm:$0xff]
        %v1476 = vld [vmem:[#allocation5 + $0xb0] sm:$0xff]
        %v1477 = vld [vmem:[#allocation5 + $0xb8] sm:$0xff]
        %v1478 = vld [vmem:[#allocation5 + $0xc0] sm:$0xff]
        %v1479 = vld [vmem:[#allocation5 + $0xc8] sm:$0xff]
        %v1480 = vld [vmem:[#allocation5 + $0xd0] sm:$0xff]
        %v1481 = vld [vmem:[#allocation5 + $0xd8] sm:$0xff]
        %v1482 = vld [vmem:[#allocation5 + $0xe0] sm:$0xff]
        %v1483 = vld [vmem:[#allocation5 + $0xe8] sm:$0xff]
        %v1484 = vld [vmem:[#allocation5 + $0xf0] sm:$0xff]
        %v1485 = vld [vmem:[#allocation5 + $0xf8] sm:$0xff]
        %v1486 = vld [vmem:[#allocation5 + $0x100] sm:$0xff]
        %v1487 = vld [vmem:[#allocation5 + $0x108] sm:$0xff]
        %v1488 = vld [vmem:[#allocation5 + $0x110] sm:$0xff]
        %v1489 = vld [vmem:[#allocation5 + $0x118] sm:$0xff]
        %v1490 = vld [vmem:[#allocation5 + $0x120] sm:$0xff]
        %v1491 = vld [vmem:[#allocation5 + $0x128] sm:$0xff]
        %v1492 = vld [vmem:[#allocation5 + $0x130] sm:$0xff]
        %v1493 = vld [vmem:[#allocation5 + $0x138] sm:$0xff]
        %v1494 = vld [vmem:[#allocation5 + $0x140] sm:$0xff]
        %v1495 = vld [vmem:[#allocation5 + $0x148] sm:$0xff]
        %v1496 = vld [vmem:[#allocation5 + $0x150] sm:$0xff]
        %v1497 = vld [vmem:[#allocation5 + $0x158] sm:$0xff]
        %v1498 = vld [vmem:[#allocation5 + $0x160] sm:$0xff]
        %v1499 = vld [vmem:[#allocation5 + $0x168] sm:$0xff]
        %v1500 = vld [vmem:[#allocation5 + $0x170] sm:$0xff]
        %v1501 = vld [vmem:[#allocation5 + $0x178] sm:$0xff]
        %v1502 = vld [vmem:[#allocation5 + $0x180] sm:$0xff]
        %v1503 = vld [vmem:[#allocation5 + $0x188] sm:$0xff]
        %v1504 = vld [vmem:[#allocation5 + $0x190] sm:$0xff]
        %v1505 = vld [vmem:[#allocation5 + $0x198] sm:$0xff]
        %v1506 = vld [vmem:[#allocation5 + $0x1a0] sm:$0xff]
        %v1507 = vld [vmem:[#allocation5 + $0x1a8] sm:$0xff]
        %v1508 = vld [vmem:[#allocation5 + $0x1b0] sm:$0xff]
        %v1509 = vld [vmem:[#allocation5 + $0x1b8] sm:$0xff]
        %v1510 = vld [vmem:[#allocation5 + $0x1c0] sm:$0xff]
        %v1511 = vld [vmem:[#allocation5 + $0x1c8] sm:$0xff]
        %v1512 = vld [vmem:[#allocation5 + $0x1d0] sm:$0xff]
        %v1513 = vld [vmem:[#allocation5 + $0x1d8] sm:$0xff]
        %v1514 = vld [vmem:[#allocation5 + $0x1e0] sm:$0xff]
        %v1515 = vld [vmem:[#allocation5 + $0x1e8] sm:$0xff]
        %v1516 = vld [vmem:[#allocation5 + $0x1f0] sm:$0xff]
        %v1517 = vld [vmem:[#allocation5 + $0x1f8] sm:$0xff]
        %v1518 = vld [vmem:[#allocation5 + $0x200] sm:$0xff]
        %v1519 = vld [vmem:[#allocation5 + $0x208] sm:$0xff]
        %v1520 = vld [vmem:[#allocation5 + $0x210] sm:$0xff]
        %v1521 = vld [vmem:[#allocation5 + $0x218] sm:$0xff]
        %v1522 = vld [vmem:[#allocation5 + $0x220] sm:$0xff]
        %v1523 = vld [vmem:[#allocation5 + $0x228] sm:$0xff]
        %v1524 = vld [vmem:[#allocation5 + $0x230] sm:$0xff]
        %v1525 = vld [vmem:[#allocation5 + $0x238] sm:$0xff]
        %v1526 = vld [vmem:[#allocation5 + $0x240] sm:$0xff]
        %v1527 = vld [vmem:[#allocation5 + $0x248] sm:$0xff]
        %v1528 = vld [vmem:[#allocation5 + $0x250] sm:$0xff]
        %v1529 = vld [vmem:[#allocation5 + $0x258] sm:$0xff]
        %v1530 = vld [vmem:[#allocation5 + $0x260] sm:$0xff]
        %v1531 = vld [vmem:[#allocation5 + $0x268] sm:$0xff]
        %v1532 = vld [vmem:[#allocation5 + $0x270] sm:$0xff]
        %v1533 = vld [vmem:[#allocation5 + $0x278] sm:$0xff]
        %v1534 = vld [vmem:[#allocation5 + $0x280] sm:$0xff]
        %v1535 = vld [vmem:[#allocation5 + $0x288] sm:$0xff]
        %v1536 = vld [vmem:[#allocation5 + $0x290] sm:$0xff]
        %v1537 = vld [vmem:[#allocation5 + $0x298] sm:$0xff]
        %v1538 = vld [vmem:[#allocation5 + $0x2a0] sm:$0xff]
        %v1539 = vld [vmem:[#allocation5 + $0x2a8] sm:$0xff]
        %v1540 = vld [vmem:[#allocation5 + $0x2b0] sm:$0xff]
        %v1541 = vld [vmem:[#allocation5 + $0x2b8] sm:$0xff]
        %v1542 = vld [vmem:[#allocation5 + $0x2c0] sm:$0xff]
        %v1543 = vld [vmem:[#allocation5 + $0x2c8] sm:$0xff]
        %v1544 = vld [vmem:[#allocation5 + $0x2d0] sm:$0xff]
        %v1545 = vld [vmem:[#allocation5 + $0x2d8] sm:$0xff]
        %v1546 = vld [vmem:[#allocation5 + $0x2e0] sm:$0xff]
        %v1547 = vld [vmem:[#allocation5 + $0x2e8] sm:$0xff]
        %v1548 = vld [vmem:[#allocation5 + $0x2f0] sm:$0xff]
        %v1549 = vld [vmem:[#allocation5 + $0x2f8] sm:$0xff]
        %s1550 = scalar_lea.vmem [#allocation5], 768
        %v1551 = vld [vmem:[%s1550] sm:$0xff]
        %v1552 = vld [vmem:[%s1550 + $0x8] sm:$0xff]
        %v1553 = vld [vmem:[%s1550 + $0x10] sm:$0xff]
        %v1554 = vld [vmem:[%s1550 + $0x18] sm:$0xff]
        %v1555 = vld [vmem:[%s1550 + $0x20] sm:$0xff]
        %v1556 = vld [vmem:[%s1550 + $0x28] sm:$0xff]
        %v1557 = vld [vmem:[%s1550 + $0x30] sm:$0xff]
        %v1558 = vld [vmem:[%s1550 + $0x38] sm:$0xff]
        %v1559 = vld [vmem:[%s1550 + $0x40] sm:$0xff]
        %v1560 = vld [vmem:[%s1550 + $0x48] sm:$0xff]
        %v1561 = vld [vmem:[%s1550 + $0x50] sm:$0xff]
        %v1562 = vld [vmem:[%s1550 + $0x58] sm:$0xff]
        %v1563 = vld [vmem:[%s1550 + $0x60] sm:$0xff]
        %v1564 = vld [vmem:[%s1550 + $0x68] sm:$0xff]
        %v1565 = vld [vmem:[%s1550 + $0x70] sm:$0xff]
        %v1566 = vld [vmem:[%s1550 + $0x78] sm:$0xff]
        %v1567 = vld [vmem:[%s1550 + $0x80] sm:$0xff]
        %v1568 = vld [vmem:[%s1550 + $0x88] sm:$0xff]
        %v1569 = vld [vmem:[%s1550 + $0x90] sm:$0xff]
        %v1570 = vld [vmem:[%s1550 + $0x98] sm:$0xff]
        %v1571 = vld [vmem:[%s1550 + $0xa0] sm:$0xff]
        %v1572 = vld [vmem:[%s1550 + $0xa8] sm:$0xff]
        %v1573 = vld [vmem:[%s1550 + $0xb0] sm:$0xff]
        %v1574 = vld [vmem:[%s1550 + $0xb8] sm:$0xff]
        %v1575 = vld [vmem:[%s1550 + $0xc0] sm:$0xff]
        %v1576 = vld [vmem:[%s1550 + $0xc8] sm:$0xff]
        %v1577 = vld [vmem:[%s1550 + $0xd0] sm:$0xff]
        %v1578 = vld [vmem:[%s1550 + $0xd8] sm:$0xff]
        %v1579 = vld [vmem:[%s1550 + $0xe0] sm:$0xff]
        %v1580 = vld [vmem:[%s1550 + $0xe8] sm:$0xff]
        %v1581 = vld [vmem:[%s1550 + $0xf0] sm:$0xff]
        %v1582 = vld [vmem:[%s1550 + $0xf8] sm:$0xff]
        %v1583 = vld [vmem:[%s1550 + $0x100] sm:$0xff]
        %v1584 = vld [vmem:[%s1550 + $0x108] sm:$0xff]
        %v1585 = vld [vmem:[%s1550 + $0x110] sm:$0xff]
        %v1586 = vld [vmem:[%s1550 + $0x118] sm:$0xff]
        %v1587 = vld [vmem:[%s1550 + $0x120] sm:$0xff]
        %v1588 = vld [vmem:[%s1550 + $0x128] sm:$0xff]
        %v1589 = vld [vmem:[%s1550 + $0x130] sm:$0xff]
        %v1590 = vld [vmem:[%s1550 + $0x138] sm:$0xff]
        %v1591 = vld [vmem:[%s1550 + $0x140] sm:$0xff]
        %v1592 = vld [vmem:[%s1550 + $0x148] sm:$0xff]
        %v1593 = vld [vmem:[%s1550 + $0x150] sm:$0xff]
        %v1594 = vld [vmem:[%s1550 + $0x158] sm:$0xff]
        %v1595 = vld [vmem:[%s1550 + $0x160] sm:$0xff]
        %v1596 = vld [vmem:[%s1550 + $0x168] sm:$0xff]
        %v1597 = vld [vmem:[%s1550 + $0x170] sm:$0xff]
        %v1598 = vld [vmem:[%s1550 + $0x178] sm:$0xff]
        %v1599 = vld [vmem:[%s1550 + $0x180] sm:$0xff]
        %v1600 = vld [vmem:[%s1550 + $0x188] sm:$0xff]
        %v1601 = vld [vmem:[%s1550 + $0x190] sm:$0xff]
        %v1602 = vld [vmem:[%s1550 + $0x198] sm:$0xff]
        %v1603 = vld [vmem:[%s1550 + $0x1a0] sm:$0xff]
        %v1604 = vld [vmem:[%s1550 + $0x1a8] sm:$0xff]
        %v1605 = vld [vmem:[%s1550 + $0x1b0] sm:$0xff]
        %v1606 = vld [vmem:[%s1550 + $0x1b8] sm:$0xff]
        %v1607 = vld [vmem:[%s1550 + $0x1c0] sm:$0xff]
        %v1608 = vld [vmem:[%s1550 + $0x1c8] sm:$0xff]
        %v1609 = vld [vmem:[%s1550 + $0x1d0] sm:$0xff]
        %v1610 = vld [vmem:[%s1550 + $0x1d8] sm:$0xff]
        %v1611 = vld [vmem:[%s1550 + $0x1e0] sm:$0xff]
        %v1612 = vld [vmem:[%s1550 + $0x1e8] sm:$0xff]
        %v1613 = vld [vmem:[%s1550 + $0x1f0] sm:$0xff]
        %v1614 = vld [vmem:[%s1550 + $0x1f8] sm:$0xff]
        %v1615 = vld [vmem:[%s1550 + $0x200] sm:$0xff]
        %v1616 = vld [vmem:[%s1550 + $0x208] sm:$0xff]
        %v1617 = vld [vmem:[%s1550 + $0x210] sm:$0xff]
        %v1618 = vld [vmem:[%s1550 + $0x218] sm:$0xff]
        %v1619 = vld [vmem:[%s1550 + $0x220] sm:$0xff]
        %v1620 = vld [vmem:[%s1550 + $0x228] sm:$0xff]
        %v1621 = vld [vmem:[%s1550 + $0x230] sm:$0xff]
        %v1622 = vld [vmem:[%s1550 + $0x238] sm:$0xff]
        %v1623 = vld [vmem:[%s1550 + $0x240] sm:$0xff]
        %v1624 = vld [vmem:[%s1550 + $0x248] sm:$0xff]
        %v1625 = vld [vmem:[%s1550 + $0x250] sm:$0xff]
        %v1626 = vld [vmem:[%s1550 + $0x258] sm:$0xff]
        %v1627 = vld [vmem:[%s1550 + $0x260] sm:$0xff]
        %v1628 = vld [vmem:[%s1550 + $0x268] sm:$0xff]
        %v1629 = vld [vmem:[%s1550 + $0x270] sm:$0xff]
        %v1630 = vld [vmem:[%s1550 + $0x278] sm:$0xff]
        %v1631 = vld [vmem:[%s1550 + $0x280] sm:$0xff]
        %v1632 = vld [vmem:[%s1550 + $0x288] sm:$0xff]
        %v1633 = vld [vmem:[%s1550 + $0x290] sm:$0xff]
        %v1634 = vld [vmem:[%s1550 + $0x298] sm:$0xff]
        %v1635 = vld [vmem:[%s1550 + $0x2a0] sm:$0xff]
        %v1636 = vld [vmem:[%s1550 + $0x2a8] sm:$0xff]
        %v1637 = vld [vmem:[%s1550 + $0x2b0] sm:$0xff]
        %v1638 = vld [vmem:[%s1550 + $0x2b8] sm:$0xff]
        %v1639 = vld [vmem:[%s1550 + $0x2c0] sm:$0xff]
        %v1640 = vld [vmem:[%s1550 + $0x2c8] sm:$0xff]
        %v1641 = vld [vmem:[%s1550 + $0x2d0] sm:$0xff]
        %v1642 = vld [vmem:[%s1550 + $0x2d8] sm:$0xff]
        %v1643 = vld [vmem:[%s1550 + $0x2e0] sm:$0xff]
        %v1644 = vld [vmem:[%s1550 + $0x2e8] sm:$0xff]
        %v1645 = vld [vmem:[%s1550 + $0x2f0] sm:$0xff]
        %v1646 = vld [vmem:[%s1550 + $0x2f8] sm:$0xff]
        %v1743 = vunpack.c.l.b16 %v1551
        %v1744 = vunpack.c.h.b16 %v1551
        %v1745 = vunpack.c.l.b16 %v1552
        %v1746 = vunpack.c.h.b16 %v1552
        %v1747 = vunpack.c.l.b16 %v1553
        %v1748 = vunpack.c.h.b16 %v1553
        %v1749 = vunpack.c.l.b16 %v1554
        %v1750 = vunpack.c.h.b16 %v1554
        %v1751 = vunpack.c.l.b16 %v1555
        %v1752 = vunpack.c.h.b16 %v1555
        %v1753 = vunpack.c.l.b16 %v1556
        %v1754 = vunpack.c.h.b16 %v1556
        %v1755 = vunpack.c.l.b16 %v1557
        %v1756 = vunpack.c.h.b16 %v1557
        %v1757 = vunpack.c.l.b16 %v1558
        %v1758 = vunpack.c.h.b16 %v1558
        %v1759 = vunpack.c.l.b16 %v1559
        %v1760 = vunpack.c.h.b16 %v1559
        %v1761 = vunpack.c.l.b16 %v1560
        %v1762 = vunpack.c.h.b16 %v1560
        %v1763 = vunpack.c.l.b16 %v1561
        %v1764 = vunpack.c.h.b16 %v1561
        %v1765 = vunpack.c.l.b16 %v1562
        %v1766 = vunpack.c.h.b16 %v1562
        %v1767 = vunpack.c.l.b16 %v1563
        %v1768 = vunpack.c.h.b16 %v1563
        %v1769 = vunpack.c.l.b16 %v1564
        %v1770 = vunpack.c.h.b16 %v1564
        %v1771 = vunpack.c.l.b16 %v1565
        %v1772 = vunpack.c.h.b16 %v1565
        %v1773 = vunpack.c.l.b16 %v1566
        %v1774 = vunpack.c.h.b16 %v1566
        %v1775 = vunpack.c.l.b16 %v1567
        %v1776 = vunpack.c.h.b16 %v1567
        %v1777 = vunpack.c.l.b16 %v1568
        %v1778 = vunpack.c.h.b16 %v1568
        %v1779 = vunpack.c.l.b16 %v1569
        %v1780 = vunpack.c.h.b16 %v1569
        %v1781 = vunpack.c.l.b16 %v1570
        %v1782 = vunpack.c.h.b16 %v1570
        %v1783 = vunpack.c.l.b16 %v1571
        %v1784 = vunpack.c.h.b16 %v1571
        %v1785 = vunpack.c.l.b16 %v1572
        %v1786 = vunpack.c.h.b16 %v1572
        %v1787 = vunpack.c.l.b16 %v1573
        %v1788 = vunpack.c.h.b16 %v1573
        %v1789 = vunpack.c.l.b16 %v1574
        %v1790 = vunpack.c.h.b16 %v1574
        %v1791 = vunpack.c.l.b16 %v1575
        %v1792 = vunpack.c.h.b16 %v1575
        %v1793 = vunpack.c.l.b16 %v1576
        %v1794 = vunpack.c.h.b16 %v1576
        %v1795 = vunpack.c.l.b16 %v1577
        %v1796 = vunpack.c.h.b16 %v1577
        %v1797 = vunpack.c.l.b16 %v1578
        %v1798 = vunpack.c.h.b16 %v1578
        %v1799 = vunpack.c.l.b16 %v1579
        %v1800 = vunpack.c.h.b16 %v1579
        %v1801 = vunpack.c.l.b16 %v1580
        %v1802 = vunpack.c.h.b16 %v1580
        %v1803 = vunpack.c.l.b16 %v1581
        %v1804 = vunpack.c.h.b16 %v1581
        %v1805 = vunpack.c.l.b16 %v1582
        %v1806 = vunpack.c.h.b16 %v1582
        %v1807 = vunpack.c.l.b16 %v1583
        %v1808 = vunpack.c.h.b16 %v1583
        %v1809 = vunpack.c.l.b16 %v1584
        %v1810 = vunpack.c.h.b16 %v1584
        %v1811 = vunpack.c.l.b16 %v1585
        %v1812 = vunpack.c.h.b16 %v1585
        %v1813 = vunpack.c.l.b16 %v1586
        %v1814 = vunpack.c.h.b16 %v1586
        %v1815 = vunpack.c.l.b16 %v1587
        %v1816 = vunpack.c.h.b16 %v1587
        %v1817 = vunpack.c.l.b16 %v1588
        %v1818 = vunpack.c.h.b16 %v1588
        %v1819 = vunpack.c.l.b16 %v1589
        %v1820 = vunpack.c.h.b16 %v1589
        %v1821 = vunpack.c.l.b16 %v1590
        %v1822 = vunpack.c.h.b16 %v1590
        %v1823 = vunpack.c.l.b16 %v1591
        %v1824 = vunpack.c.h.b16 %v1591
        %v1825 = vunpack.c.l.b16 %v1592
        %v1826 = vunpack.c.h.b16 %v1592
        %v1827 = vunpack.c.l.b16 %v1593
        %v1828 = vunpack.c.h.b16 %v1593
        %v1829 = vunpack.c.l.b16 %v1594
        %v1830 = vunpack.c.h.b16 %v1594
        %v1831 = vunpack.c.l.b16 %v1595
        %v1832 = vunpack.c.h.b16 %v1595
        %v1833 = vunpack.c.l.b16 %v1596
        %v1834 = vunpack.c.h.b16 %v1596
        %v1835 = vunpack.c.l.b16 %v1597
        %v1836 = vunpack.c.h.b16 %v1597
        %v1837 = vunpack.c.l.b16 %v1598
        %v1838 = vunpack.c.h.b16 %v1598
        %v1839 = vunpack.c.l.b16 %v1599
        %v1840 = vunpack.c.h.b16 %v1599
        %v1841 = vunpack.c.l.b16 %v1600
        %v1842 = vunpack.c.h.b16 %v1600
        %v1843 = vunpack.c.l.b16 %v1601
        %v1844 = vunpack.c.h.b16 %v1601
        %v1845 = vunpack.c.l.b16 %v1602
        %v1846 = vunpack.c.h.b16 %v1602
        %v1847 = vunpack.c.l.b16 %v1603
        %v1848 = vunpack.c.h.b16 %v1603
        %v1849 = vunpack.c.l.b16 %v1604
        %v1850 = vunpack.c.h.b16 %v1604
        %v1851 = vunpack.c.l.b16 %v1605
        %v1852 = vunpack.c.h.b16 %v1605
        %v1853 = vunpack.c.l.b16 %v1606
        %v1854 = vunpack.c.h.b16 %v1606
        %v1855 = vunpack.c.l.b16 %v1607
        %v1856 = vunpack.c.h.b16 %v1607
        %v1857 = vunpack.c.l.b16 %v1608
        %v1858 = vunpack.c.h.b16 %v1608
        %v1859 = vunpack.c.l.b16 %v1609
        %v1860 = vunpack.c.h.b16 %v1609
        %v1861 = vunpack.c.l.b16 %v1610
        %v1862 = vunpack.c.h.b16 %v1610
        %v1863 = vunpack.c.l.b16 %v1611
        %v1864 = vunpack.c.h.b16 %v1611
        %v1865 = vunpack.c.l.b16 %v1612
        %v1866 = vunpack.c.h.b16 %v1612
        %v1867 = vunpack.c.l.b16 %v1613
        %v1868 = vunpack.c.h.b16 %v1613
        %v1869 = vunpack.c.l.b16 %v1614
        %v1870 = vunpack.c.h.b16 %v1614
        %v1871 = vunpack.c.l.b16 %v1615
        %v1872 = vunpack.c.h.b16 %v1615
        %v1873 = vunpack.c.l.b16 %v1616
        %v1874 = vunpack.c.h.b16 %v1616
        %v1875 = vunpack.c.l.b16 %v1617
        %v1876 = vunpack.c.h.b16 %v1617
        %v1877 = vunpack.c.l.b16 %v1618
        %v1878 = vunpack.c.h.b16 %v1618
        %v1879 = vunpack.c.l.b16 %v1619
        %v1880 = vunpack.c.h.b16 %v1619
        %v1881 = vunpack.c.l.b16 %v1620
        %v1882 = vunpack.c.h.b16 %v1620
        %v1883 = vunpack.c.l.b16 %v1621
        %v1884 = vunpack.c.h.b16 %v1621
        %v1885 = vunpack.c.l.b16 %v1622
        %v1886 = vunpack.c.h.b16 %v1622
        %v1887 = vunpack.c.l.b16 %v1623
        %v1888 = vunpack.c.h.b16 %v1623
        %v1889 = vunpack.c.l.b16 %v1624
        %v1890 = vunpack.c.h.b16 %v1624
        %v1891 = vunpack.c.l.b16 %v1625
        %v1892 = vunpack.c.h.b16 %v1625
        %v1893 = vunpack.c.l.b16 %v1626
        %v1894 = vunpack.c.h.b16 %v1626
        %v1895 = vunpack.c.l.b16 %v1627
        %v1896 = vunpack.c.h.b16 %v1627
        %v1897 = vunpack.c.l.b16 %v1628
        %v1898 = vunpack.c.h.b16 %v1628
        %v1899 = vunpack.c.l.b16 %v1629
        %v1900 = vunpack.c.h.b16 %v1629
        %v1901 = vunpack.c.l.b16 %v1630
        %v1902 = vunpack.c.h.b16 %v1630
        %v1903 = vunpack.c.l.b16 %v1631
        %v1904 = vunpack.c.h.b16 %v1631
        %v1905 = vunpack.c.l.b16 %v1632
        %v1906 = vunpack.c.h.b16 %v1632
        %v1907 = vunpack.c.l.b16 %v1633
        %v1908 = vunpack.c.h.b16 %v1633
        %v1909 = vunpack.c.l.b16 %v1634
        %v1910 = vunpack.c.h.b16 %v1634
        %v1911 = vunpack.c.l.b16 %v1635
        %v1912 = vunpack.c.h.b16 %v1635
        %v1913 = vunpack.c.l.b16 %v1636
        %v1914 = vunpack.c.h.b16 %v1636
        %v1915 = vunpack.c.l.b16 %v1637
        %v1916 = vunpack.c.h.b16 %v1637
        %v1917 = vunpack.c.l.b16 %v1638
        %v1918 = vunpack.c.h.b16 %v1638
        %v1919 = vunpack.c.l.b16 %v1639
        %v1920 = vunpack.c.h.b16 %v1639
        %v1921 = vunpack.c.l.b16 %v1640
        %v1922 = vunpack.c.h.b16 %v1640
        %v1923 = vunpack.c.l.b16 %v1641
        %v1924 = vunpack.c.h.b16 %v1641
        %v1925 = vunpack.c.l.b16 %v1642
        %v1926 = vunpack.c.h.b16 %v1642
        %v1927 = vunpack.c.l.b16 %v1643
        %v1928 = vunpack.c.h.b16 %v1643
        %v1929 = vunpack.c.l.b16 %v1644
        %v1930 = vunpack.c.h.b16 %v1644
        %v1931 = vunpack.c.l.b16 %v1645
        %v1932 = vunpack.c.h.b16 %v1645
        %v1933 = vunpack.c.l.b16 %v1646
        %v1934 = vunpack.c.h.b16 %v1646
        %v1935 = vpack.c.b16 %v1745, %v1743
        %v1936 = vpack.c.b16 %v1746, %v1744
        %v1937 = vpack.c.b16 %v1749, %v1747
        %v1938 = vpack.c.b16 %v1750, %v1748
        %v1939 = vpack.c.b16 %v1753, %v1751
        %v1940 = vpack.c.b16 %v1754, %v1752
        %v1941 = vpack.c.b16 %v1757, %v1755
        %v1942 = vpack.c.b16 %v1758, %v1756
        %v1943 = vpack.c.b16 %v1761, %v1759
        %v1944 = vpack.c.b16 %v1762, %v1760
        %v1945 = vpack.c.b16 %v1765, %v1763
        %v1946 = vpack.c.b16 %v1766, %v1764
        %v1947 = vpack.c.b16 %v1769, %v1767
        %v1948 = vpack.c.b16 %v1770, %v1768
        %v1949 = vpack.c.b16 %v1773, %v1771
        %v1950 = vpack.c.b16 %v1774, %v1772
        %v1951 = vpack.c.b16 %v1777, %v1775
        %v1952 = vpack.c.b16 %v1778, %v1776
        %v1953 = vpack.c.b16 %v1781, %v1779
        %v1954 = vpack.c.b16 %v1782, %v1780
        %v1955 = vpack.c.b16 %v1785, %v1783
        %v1956 = vpack.c.b16 %v1786, %v1784
        %v1957 = vpack.c.b16 %v1789, %v1787
        %v1958 = vpack.c.b16 %v1790, %v1788
        %v1959 = vpack.c.b16 %v1793, %v1791
        %v1960 = vpack.c.b16 %v1794, %v1792
        %v1961 = vpack.c.b16 %v1797, %v1795
        %v1962 = vpack.c.b16 %v1798, %v1796
        %v1963 = vpack.c.b16 %v1801, %v1799
        %v1964 = vpack.c.b16 %v1802, %v1800
        %v1965 = vpack.c.b16 %v1805, %v1803
        %v1966 = vpack.c.b16 %v1806, %v1804
        %v1967 = vpack.c.b16 %v1809, %v1807
        %v1968 = vpack.c.b16 %v1810, %v1808
        %v1969 = vpack.c.b16 %v1813, %v1811
        %v1970 = vpack.c.b16 %v1814, %v1812
        %v1971 = vpack.c.b16 %v1817, %v1815
        %v1972 = vpack.c.b16 %v1818, %v1816
        %v1973 = vpack.c.b16 %v1821, %v1819
        %v1974 = vpack.c.b16 %v1822, %v1820
        %v1975 = vpack.c.b16 %v1825, %v1823
        %v1976 = vpack.c.b16 %v1826, %v1824
        %v1977 = vpack.c.b16 %v1829, %v1827
        %v1978 = vpack.c.b16 %v1830, %v1828
        %v1979 = vpack.c.b16 %v1833, %v1831
        %v1980 = vpack.c.b16 %v1834, %v1832
        %v1981 = vpack.c.b16 %v1837, %v1835
        %v1982 = vpack.c.b16 %v1838, %v1836
        %v1983 = vpack.c.b16 %v1841, %v1839
        %v1984 = vpack.c.b16 %v1842, %v1840
        %v1985 = vpack.c.b16 %v1845, %v1843
        %v1986 = vpack.c.b16 %v1846, %v1844
        %v1987 = vpack.c.b16 %v1849, %v1847
        %v1988 = vpack.c.b16 %v1850, %v1848
        %v1989 = vpack.c.b16 %v1853, %v1851
        %v1990 = vpack.c.b16 %v1854, %v1852
        %v1991 = vpack.c.b16 %v1857, %v1855
        %v1992 = vpack.c.b16 %v1858, %v1856
        %v1993 = vpack.c.b16 %v1861, %v1859
        %v1994 = vpack.c.b16 %v1862, %v1860
        %v1995 = vpack.c.b16 %v1865, %v1863
        %v1996 = vpack.c.b16 %v1866, %v1864
        %v1997 = vpack.c.b16 %v1869, %v1867
        %v1998 = vpack.c.b16 %v1870, %v1868
        %v1999 = vpack.c.b16 %v1873, %v1871
        %v2000 = vpack.c.b16 %v1874, %v1872
        %v2001 = vpack.c.b16 %v1877, %v1875
        %v2002 = vpack.c.b16 %v1878, %v1876
        %v2003 = vpack.c.b16 %v1881, %v1879
        %v2004 = vpack.c.b16 %v1882, %v1880
        %v2005 = vpack.c.b16 %v1885, %v1883
        %v2006 = vpack.c.b16 %v1886, %v1884
        %v2007 = vpack.c.b16 %v1889, %v1887
        %v2008 = vpack.c.b16 %v1890, %v1888
        %v2009 = vpack.c.b16 %v1893, %v1891
        %v2010 = vpack.c.b16 %v1894, %v1892
        %v2011 = vpack.c.b16 %v1897, %v1895
        %v2012 = vpack.c.b16 %v1898, %v1896
        %v2013 = vpack.c.b16 %v1901, %v1899
        %v2014 = vpack.c.b16 %v1902, %v1900
        %v2015 = vpack.c.b16 %v1905, %v1903
        %v2016 = vpack.c.b16 %v1906, %v1904
        %v2017 = vpack.c.b16 %v1909, %v1907
        %v2018 = vpack.c.b16 %v1910, %v1908
        %v2019 = vpack.c.b16 %v1913, %v1911
        %v2020 = vpack.c.b16 %v1914, %v1912
        %v2021 = vpack.c.b16 %v1917, %v1915
        %v2022 = vpack.c.b16 %v1918, %v1916
        %v2023 = vpack.c.b16 %v1921, %v1919
        %v2024 = vpack.c.b16 %v1922, %v1920
        %v2025 = vpack.c.b16 %v1925, %v1923
        %v2026 = vpack.c.b16 %v1926, %v1924
        %v2027 = vpack.c.b16 %v1929, %v1927
        %v2028 = vpack.c.b16 %v1930, %v1928
        %v2029 = vpack.c.b16 %v1933, %v1931
        %v2030 = vpack.c.b16 %v1934, %v1932
        %2127 = vmatprep.subr.bf16.mxu0 %v1950
        %2128 = vmatpush1.bf16.msra.mxu0 %v1949
        %2129 = vmatprep.subr.bf16.mxu0 %v1948
        %2130 = vmatpush1.bf16.msra.mxu0 %v1947
        %2131 = vmatprep.subr.bf16.mxu0 %v1946
        %2132 = vmatpush1.bf16.msra.mxu0 %v1945
        %2133 = vmatprep.subr.bf16.mxu0 %v1944
        %2134 = vmatpush1.bf16.msra.mxu0 %v1943
        %2135 = vmatprep.subr.bf16.mxu0 %v1942
        %2136 = vmatpush1.bf16.msra.mxu0 %v1941
        %2137 = vmatprep.subr.bf16.mxu0 %v1940
        %2138 = vmatpush1.bf16.msra.mxu0 %v1939
        %2139 = vmatprep.subr.bf16.mxu0 %v1938
        %2140 = vmatpush1.bf16.msra.mxu0 %v1937
        %2141 = vmatprep.subr.bf16.mxu0 %v1936
        %2142 = vmatpush1.bf16.msra.mxu0 %v1935
        %2143 = vmatprep.subr.bf16.mxu0 %v1966
        %2144 = vmatpush2.bf16.msra.mxu0 %v1965
        %2145 = vmatprep.subr.bf16.mxu0 %v1964
        %2146 = vmatpush2.bf16.msra.mxu0 %v1963
        %2147 = vmatprep.subr.bf16.mxu0 %v1962
        %2148 = vmatpush2.bf16.msra.mxu0 %v1961
        %2149 = vmatprep.subr.bf16.mxu0 %v1960
        %2150 = vmatpush2.bf16.msra.mxu0 %v1959
        %2151 = vmatprep.subr.bf16.mxu0 %v1958
        %2152 = vmatpush2.bf16.msra.mxu0 %v1957
        %2153 = vmatprep.subr.bf16.mxu0 %v1956
        %2154 = vmatpush2.bf16.msra.mxu0 %v1955
        %2155 = vmatprep.subr.bf16.mxu0 %v1954
        %2156 = vmatpush2.bf16.msra.mxu0 %v1953
        %2157 = vmatprep.subr.bf16.mxu0 %v1952
        %2158 = vmatpush2.bf16.msra.mxu0 %v1951
        %2159 = vmatprep.mubr.bf16.mxu0 %v781
        %2160 = vmatmul.mubr.bf16.gmra.mxu0 %v780
        %v2161 = vpop.f32.mrf.mxu0
        %v2162 = vadd.f32 0.0, %v2161
        %v2163 = vpop.f32.mrf.mxu0
        %v2164 = vadd.f32 0.0, %v2163
        %v2165 = vpop.f32.mrf.mxu0
        %v2166 = vadd.f32 0.0, %v2165
        %v2167 = vpop.f32.mrf.mxu0
        %v2168 = vadd.f32 0.0, %v2167
        %2169 = vmatprep.mubr.bf16.mxu0 %v783
        %2170 = vmatmul.mubr.bf16.gmra.mxu0 %v782
        %v2171 = vpop.f32.mrf.mxu0
        %v2172 = vadd.f32 0.0, %v2171
        %v2173 = vpop.f32.mrf.mxu0
        %v2174 = vadd.f32 0.0, %v2173
        %v2175 = vpop.f32.mrf.mxu0
        %v2176 = vadd.f32 0.0, %v2175
        %v2177 = vpop.f32.mrf.mxu0
        %v2178 = vadd.f32 0.0, %v2177
        %2179 = vmatprep.mubr.bf16.mxu0 %v785
        %2180 = vmatmul.mubr.bf16.gmra.mxu0 %v784
        %v2181 = vpop.f32.mrf.mxu0
        %v2182 = vadd.f32 0.0, %v2181
        %v2183 = vpop.f32.mrf.mxu0
        %v2184 = vadd.f32 0.0, %v2183
        %v2185 = vpop.f32.mrf.mxu0
        %v2186 = vadd.f32 0.0, %v2185
        %v2187 = vpop.f32.mrf.mxu0
        %v2188 = vadd.f32 0.0, %v2187
        %2189 = vmatprep.mubr.bf16.mxu0 %v787
        %2190 = vmatmul.mubr.bf16.gmra.mxu0 %v786
        %v2191 = vpop.f32.mrf.mxu0
        %v2192 = vadd.f32 0.0, %v2191
        %v2193 = vpop.f32.mrf.mxu0
        %v2194 = vadd.f32 0.0, %v2193
        %v2195 = vpop.f32.mrf.mxu0
        %v2196 = vadd.f32 0.0, %v2195
        %v2197 = vpop.f32.mrf.mxu0
        %v2198 = vadd.f32 0.0, %v2197
        %2199 = vmatprep.mubr.bf16.mxu0 %v789
        %2200 = vmatmul.mubr.bf16.gmra.mxu0 %v788
        %v2201 = vpop.f32.mrf.mxu0
        %v2202 = vadd.f32 0.0, %v2201
        %v2203 = vpop.f32.mrf.mxu0
        %v2204 = vadd.f32 0.0, %v2203
        %v2205 = vpop.f32.mrf.mxu0
        %v2206 = vadd.f32 0.0, %v2205
        %v2207 = vpop.f32.mrf.mxu0
        %v2208 = vadd.f32 0.0, %v2207
        %2209 = vmatprep.mubr.bf16.mxu0 %v791
        %2210 = vmatmul.mubr.bf16.gmra.mxu0 %v790
        %v2211 = vpop.f32.mrf.mxu0
        %v2212 = vadd.f32 0.0, %v2211
        %v2213 = vpop.f32.mrf.mxu0
        %v2214 = vadd.f32 0.0, %v2213
        %v2215 = vpop.f32.mrf.mxu0
        %v2216 = vadd.f32 0.0, %v2215
        %v2217 = vpop.f32.mrf.mxu0
        %v2218 = vadd.f32 0.0, %v2217
        %2219 = vmatprep.mubr.bf16.mxu0 %v793
        %2220 = vmatmul.mubr.bf16.gmra.mxu0 %v792
        %v2221 = vpop.f32.mrf.mxu0
        %v2222 = vadd.f32 0.0, %v2221
        %v2223 = vpop.f32.mrf.mxu0
        %v2224 = vadd.f32 0.0, %v2223
        %v2225 = vpop.f32.mrf.mxu0
        %v2226 = vadd.f32 0.0, %v2225
        %v2227 = vpop.f32.mrf.mxu0
        %v2228 = vadd.f32 0.0, %v2227
        %2229 = vmatprep.mubr.bf16.mxu0 %v795
        %2230 = vmatmul.mubr.bf16.gmra.mxu0 %v794
        %v2231 = vpop.f32.mrf.mxu0
        %v2232 = vadd.f32 0.0, %v2231
        %v2233 = vpop.f32.mrf.mxu0
        %v2234 = vadd.f32 0.0, %v2233
        %v2235 = vpop.f32.mrf.mxu0
        %v2236 = vadd.f32 0.0, %v2235
        %v2237 = vpop.f32.mrf.mxu0
        %v2238 = vadd.f32 0.0, %v2237
        %2239 = vmatprep.mubr.bf16.mxu0 %v797
        %2240 = vmatmul.mubr.bf16.gmra.mxu0 %v796
        %v2241 = vpop.f32.mrf.mxu0
        %v2242 = vadd.f32 0.0, %v2241
        %v2243 = vpop.f32.mrf.mxu0
        %v2244 = vadd.f32 0.0, %v2243
        %v2245 = vpop.f32.mrf.mxu0
        %v2246 = vadd.f32 0.0, %v2245
        %v2247 = vpop.f32.mrf.mxu0
        %v2248 = vadd.f32 0.0, %v2247
        %2249 = vmatprep.mubr.bf16.mxu0 %v799
        %2250 = vmatmul.mubr.bf16.gmra.mxu0 %v798
        %v2251 = vpop.f32.mrf.mxu0
        %v2252 = vadd.f32 0.0, %v2251
        %v2253 = vpop.f32.mrf.mxu0
        %v2254 = vadd.f32 0.0, %v2253
        %v2255 = vpop.f32.mrf.mxu0
        %v2256 = vadd.f32 0.0, %v2255
        %v2257 = vpop.f32.mrf.mxu0
        %v2258 = vadd.f32 0.0, %v2257
        %2259 = vmatprep.mubr.bf16.mxu0 %v801
        %2260 = vmatmul.mubr.bf16.gmra.mxu0 %v800
        %v2261 = vpop.f32.mrf.mxu0
        %v2262 = vadd.f32 0.0, %v2261
        %v2263 = vpop.f32.mrf.mxu0
        %v2264 = vadd.f32 0.0, %v2263
        %v2265 = vpop.f32.mrf.mxu0
        %v2266 = vadd.f32 0.0, %v2265
        %v2267 = vpop.f32.mrf.mxu0
        %v2268 = vadd.f32 0.0, %v2267
        %2269 = vmatprep.mubr.bf16.mxu0 %v803
        %2270 = vmatmul.mubr.bf16.gmra.mxu0 %v802
        %v2271 = vpop.f32.mrf.mxu0
        %v2272 = vadd.f32 0.0, %v2271
        %v2273 = vpop.f32.mrf.mxu0
        %v2274 = vadd.f32 0.0, %v2273
        %v2275 = vpop.f32.mrf.mxu0
        %v2276 = vadd.f32 0.0, %v2275
        %v2277 = vpop.f32.mrf.mxu0
        %v2278 = vadd.f32 0.0, %v2277
        %2279 = vmatprep.mubr.bf16.mxu0 %v805
        %2280 = vmatmul.mubr.bf16.gmra.mxu0 %v804
        %v2281 = vpop.f32.mrf.mxu0
        %v2282 = vadd.f32 0.0, %v2281
        %v2283 = vpop.f32.mrf.mxu0
        %v2284 = vadd.f32 0.0, %v2283
        %v2285 = vpop.f32.mrf.mxu0
        %v2286 = vadd.f32 0.0, %v2285
        %v2287 = vpop.f32.mrf.mxu0
        %v2288 = vadd.f32 0.0, %v2287
        %2289 = vmatprep.mubr.bf16.mxu0 %v807
        %2290 = vmatmul.mubr.bf16.gmra.mxu0 %v806
        %v2291 = vpop.f32.mrf.mxu0
        %v2292 = vadd.f32 0.0, %v2291
        %v2293 = vpop.f32.mrf.mxu0
        %v2294 = vadd.f32 0.0, %v2293
        %v2295 = vpop.f32.mrf.mxu0
        %v2296 = vadd.f32 0.0, %v2295
        %v2297 = vpop.f32.mrf.mxu0
        %v2298 = vadd.f32 0.0, %v2297
        %2299 = vmatprep.mubr.bf16.mxu0 %v809
        %2300 = vmatmul.mubr.bf16.gmra.mxu0 %v808
        %v2301 = vpop.f32.mrf.mxu0
        %v2302 = vadd.f32 0.0, %v2301
        %v2303 = vpop.f32.mrf.mxu0
        %v2304 = vadd.f32 0.0, %v2303
        %v2305 = vpop.f32.mrf.mxu0
        %v2306 = vadd.f32 0.0, %v2305
        %v2307 = vpop.f32.mrf.mxu0
        %v2308 = vadd.f32 0.0, %v2307
        %2309 = vmatprep.mubr.bf16.mxu0 %v811
        %2310 = vmatmul.mubr.bf16.gmra.mxu0 %v810
        %v2311 = vpop.f32.mrf.mxu0
        %v2312 = vadd.f32 0.0, %v2311
        %v2313 = vpop.f32.mrf.mxu0
        %v2314 = vadd.f32 0.0, %v2313
        %v2315 = vpop.f32.mrf.mxu0
        %v2316 = vadd.f32 0.0, %v2315
        %v2317 = vpop.f32.mrf.mxu0
        %v2318 = vadd.f32 0.0, %v2317
        %2319 = vdwg.mxu0
        %2320 = vmatprep.subr.bf16.mxu0 %v1982
        %2321 = vmatpush1.bf16.msra.mxu0 %v1981
        %2322 = vmatprep.subr.bf16.mxu0 %v1980
        %2323 = vmatpush1.bf16.msra.mxu0 %v1979
        %2324 = vmatprep.subr.bf16.mxu0 %v1978
        %2325 = vmatpush1.bf16.msra.mxu0 %v1977
        %2326 = vmatprep.subr.bf16.mxu0 %v1976
        %2327 = vmatpush1.bf16.msra.mxu0 %v1975
        %2328 = vmatprep.subr.bf16.mxu0 %v1974
        %2329 = vmatpush1.bf16.msra.mxu0 %v1973
        %2330 = vmatprep.subr.bf16.mxu0 %v1972
        %2331 = vmatpush1.bf16.msra.mxu0 %v1971
        %2332 = vmatprep.subr.bf16.mxu0 %v1970
        %2333 = vmatpush1.bf16.msra.mxu0 %v1969
        %2334 = vmatprep.subr.bf16.mxu0 %v1968
        %2335 = vmatpush1.bf16.msra.mxu0 %v1967
        %2336 = vmatprep.subr.bf16.mxu0 %v1998
        %2337 = vmatpush2.bf16.msra.mxu0 %v1997
        %2338 = vmatprep.subr.bf16.mxu0 %v1996
        %2339 = vmatpush2.bf16.msra.mxu0 %v1995
        %2340 = vmatprep.subr.bf16.mxu0 %v1994
        %2341 = vmatpush2.bf16.msra.mxu0 %v1993
        %2342 = vmatprep.subr.bf16.mxu0 %v1992
        %2343 = vmatpush2.bf16.msra.mxu0 %v1991
        %2344 = vmatprep.subr.bf16.mxu0 %v1990
        %2345 = vmatpush2.bf16.msra.mxu0 %v1989
        %2346 = vmatprep.subr.bf16.mxu0 %v1988
        %2347 = vmatpush2.bf16.msra.mxu0 %v1987
        %2348 = vmatprep.subr.bf16.mxu0 %v1986
        %2349 = vmatpush2.bf16.msra.mxu0 %v1985
        %2350 = vmatprep.subr.bf16.mxu0 %v1984
        %2351 = vmatpush2.bf16.msra.mxu0 %v1983
        %2352 = vmatprep.mubr.bf16.mxu0 %v868
        %2353 = vmatmul.mubr.bf16.gmra.mxu0 %v856
        %v2354 = vpop.f32.mrf.mxu0
        %v2355 = vadd.f32 %v2162, %v2354
        %v2356 = vpop.f32.mrf.mxu0
        %v2357 = vadd.f32 %v2164, %v2356
        %v2358 = vpop.f32.mrf.mxu0
        %v2359 = vadd.f32 %v2166, %v2358
        %v2360 = vpop.f32.mrf.mxu0
        %v2361 = vadd.f32 %v2168, %v2360
        %2362 = vmatprep.mubr.bf16.mxu0 %v892
        %2363 = vmatmul.mubr.bf16.gmra.mxu0 %v880
        %v2364 = vpop.f32.mrf.mxu0
        %v2365 = vadd.f32 %v2172, %v2364
        %v2366 = vpop.f32.mrf.mxu0
        %v2367 = vadd.f32 %v2174, %v2366
        %v2368 = vpop.f32.mrf.mxu0
        %v2369 = vadd.f32 %v2176, %v2368
        %v2370 = vpop.f32.mrf.mxu0
        %v2371 = vadd.f32 %v2178, %v2370
        %2372 = vmatprep.mubr.bf16.mxu0 %v916
        %2373 = vmatmul.mubr.bf16.gmra.mxu0 %v904
        %v2374 = vpop.f32.mrf.mxu0
        %v2375 = vadd.f32 %v2182, %v2374
        %v2376 = vpop.f32.mrf.mxu0
        %v2377 = vadd.f32 %v2184, %v2376
        %v2378 = vpop.f32.mrf.mxu0
        %v2379 = vadd.f32 %v2186, %v2378
        %v2380 = vpop.f32.mrf.mxu0
        %v2381 = vadd.f32 %v2188, %v2380
        %2382 = vmatprep.mubr.bf16.mxu0 %v940
        %2383 = vmatmul.mubr.bf16.gmra.mxu0 %v928
        %v2384 = vpop.f32.mrf.mxu0
        %v2385 = vadd.f32 %v2192, %v2384
        %v2386 = vpop.f32.mrf.mxu0
        %v2387 = vadd.f32 %v2194, %v2386
        %v2388 = vpop.f32.mrf.mxu0
        %v2389 = vadd.f32 %v2196, %v2388
        %v2390 = vpop.f32.mrf.mxu0
        %v2391 = vadd.f32 %v2198, %v2390
        %2392 = vmatprep.mubr.bf16.mxu0 %v964
        %2393 = vmatmul.mubr.bf16.gmra.mxu0 %v952
        %v2394 = vpop.f32.mrf.mxu0
        %v2395 = vadd.f32 %v2202, %v2394
        %v2396 = vpop.f32.mrf.mxu0
        %v2397 = vadd.f32 %v2204, %v2396
        %v2398 = vpop.f32.mrf.mxu0
        %v2399 = vadd.f32 %v2206, %v2398
        %v2400 = vpop.f32.mrf.mxu0
        %v2401 = vadd.f32 %v2208, %v2400
        %2402 = vmatprep.mubr.bf16.mxu0 %v988
        %2403 = vmatmul.mubr.bf16.gmra.mxu0 %v976
        %v2404 = vpop.f32.mrf.mxu0
        %v2405 = vadd.f32 %v2212, %v2404
        %v2406 = vpop.f32.mrf.mxu0
        %v2407 = vadd.f32 %v2214, %v2406
        %v2408 = vpop.f32.mrf.mxu0
        %v2409 = vadd.f32 %v2216, %v2408
        %v2410 = vpop.f32.mrf.mxu0
        %v2411 = vadd.f32 %v2218, %v2410
        %2412 = vmatprep.mubr.bf16.mxu0 %v1012
        %2413 = vmatmul.mubr.bf16.gmra.mxu0 %v1000
        %v2414 = vpop.f32.mrf.mxu0
        %v2415 = vadd.f32 %v2222, %v2414
        %v2416 = vpop.f32.mrf.mxu0
        %v2417 = vadd.f32 %v2224, %v2416
        %v2418 = vpop.f32.mrf.mxu0
        %v2419 = vadd.f32 %v2226, %v2418
        %v2420 = vpop.f32.mrf.mxu0
        %v2421 = vadd.f32 %v2228, %v2420
        %2422 = vmatprep.mubr.bf16.mxu0 %v1036
        %2423 = vmatmul.mubr.bf16.gmra.mxu0 %v1024
        %v2424 = vpop.f32.mrf.mxu0
        %v2425 = vadd.f32 %v2232, %v2424
        %v2426 = vpop.f32.mrf.mxu0
        %v2427 = vadd.f32 %v2234, %v2426
        %v2428 = vpop.f32.mrf.mxu0
        %v2429 = vadd.f32 %v2236, %v2428
        %v2430 = vpop.f32.mrf.mxu0
        %v2431 = vadd.f32 %v2238, %v2430
        %2432 = vmatprep.mubr.bf16.mxu0 %v1060
        %2433 = vmatmul.mubr.bf16.gmra.mxu0 %v1048
        %v2434 = vpop.f32.mrf.mxu0
        %v2435 = vadd.f32 %v2242, %v2434
        %v2436 = vpop.f32.mrf.mxu0
        %v2437 = vadd.f32 %v2244, %v2436
        %v2438 = vpop.f32.mrf.mxu0
        %v2439 = vadd.f32 %v2246, %v2438
        %v2440 = vpop.f32.mrf.mxu0
        %v2441 = vadd.f32 %v2248, %v2440
        %2442 = vmatprep.mubr.bf16.mxu0 %v1084
        %2443 = vmatmul.mubr.bf16.gmra.mxu0 %v1072
        %v2444 = vpop.f32.mrf.mxu0
        %v2445 = vadd.f32 %v2252, %v2444
        %v2446 = vpop.f32.mrf.mxu0
        %v2447 = vadd.f32 %v2254, %v2446
        %v2448 = vpop.f32.mrf.mxu0
        %v2449 = vadd.f32 %v2256, %v2448
        %v2450 = vpop.f32.mrf.mxu0
        %v2451 = vadd.f32 %v2258, %v2450
        %2452 = vmatprep.mubr.bf16.mxu0 %v1108
        %2453 = vmatmul.mubr.bf16.gmra.mxu0 %v1096
        %v2454 = vpop.f32.mrf.mxu0
        %v2455 = vadd.f32 %v2262, %v2454
        %v2456 = vpop.f32.mrf.mxu0
        %v2457 = vadd.f32 %v2264, %v2456
        %v2458 = vpop.f32.mrf.mxu0
        %v2459 = vadd.f32 %v2266, %v2458
        %v2460 = vpop.f32.mrf.mxu0
        %v2461 = vadd.f32 %v2268, %v2460
        %2462 = vmatprep.mubr.bf16.mxu0 %v1132
        %2463 = vmatmul.mubr.bf16.gmra.mxu0 %v1120
        %v2464 = vpop.f32.mrf.mxu0
        %v2465 = vadd.f32 %v2272, %v2464
        %v2466 = vpop.f32.mrf.mxu0
        %v2467 = vadd.f32 %v2274, %v2466
        %v2468 = vpop.f32.mrf.mxu0
        %v2469 = vadd.f32 %v2276, %v2468
        %v2470 = vpop.f32.mrf.mxu0
        %v2471 = vadd.f32 %v2278, %v2470
        %2472 = vmatprep.mubr.bf16.mxu0 %v1156
        %2473 = vmatmul.mubr.bf16.gmra.mxu0 %v1144
        %v2474 = vpop.f32.mrf.mxu0
        %v2475 = vadd.f32 %v2282, %v2474
        %v2476 = vpop.f32.mrf.mxu0
        %v2477 = vadd.f32 %v2284, %v2476
        %v2478 = vpop.f32.mrf.mxu0
        %v2479 = vadd.f32 %v2286, %v2478
        %v2480 = vpop.f32.mrf.mxu0
        %v2481 = vadd.f32 %v2288, %v2480
        %2482 = vmatprep.mubr.bf16.mxu0 %v1180
        %2483 = vmatmul.mubr.bf16.gmra.mxu0 %v1168
        %v2484 = vpop.f32.mrf.mxu0
        %v2485 = vadd.f32 %v2292, %v2484
        %v2486 = vpop.f32.mrf.mxu0
        %v2487 = vadd.f32 %v2294, %v2486
        %v2488 = vpop.f32.mrf.mxu0
        %v2489 = vadd.f32 %v2296, %v2488
        %v2490 = vpop.f32.mrf.mxu0
        %v2491 = vadd.f32 %v2298, %v2490
        %2492 = vmatprep.mubr.bf16.mxu0 %v1204
        %2493 = vmatmul.mubr.bf16.gmra.mxu0 %v1192
        %v2494 = vpop.f32.mrf.mxu0
        %v2495 = vadd.f32 %v2302, %v2494
        %v2496 = vpop.f32.mrf.mxu0
        %v2497 = vadd.f32 %v2304, %v2496
        %v2498 = vpop.f32.mrf.mxu0
        %v2499 = vadd.f32 %v2306, %v2498
        %v2500 = vpop.f32.mrf.mxu0
        %v2501 = vadd.f32 %v2308, %v2500
        %2502 = vmatprep.mubr.bf16.mxu0 %v1228
        %2503 = vmatmul.mubr.bf16.gmra.mxu0 %v1216
        %v2504 = vpop.f32.mrf.mxu0
        %v2505 = vadd.f32 %v2312, %v2504
        %v2506 = vpop.f32.mrf.mxu0
        %v2507 = vadd.f32 %v2314, %v2506
        %v2508 = vpop.f32.mrf.mxu0
        %v2509 = vadd.f32 %v2316, %v2508
        %v2510 = vpop.f32.mrf.mxu0
        %v2511 = vadd.f32 %v2318, %v2510
        %2512 = vdwg.mxu0
        %2513 = vmatprep.subr.bf16.mxu0 %v2014
        %2514 = vmatpush1.bf16.msra.mxu0 %v2013
        %2515 = vmatprep.subr.bf16.mxu0 %v2012
        %2516 = vmatpush1.bf16.msra.mxu0 %v2011
        %2517 = vmatprep.subr.bf16.mxu0 %v2010
        %2518 = vmatpush1.bf16.msra.mxu0 %v2009
        %2519 = vmatprep.subr.bf16.mxu0 %v2008
        %2520 = vmatpush1.bf16.msra.mxu0 %v2007
        %2521 = vmatprep.subr.bf16.mxu0 %v2006
        %2522 = vmatpush1.bf16.msra.mxu0 %v2005
        %2523 = vmatprep.subr.bf16.mxu0 %v2004
        %2524 = vmatpush1.bf16.msra.mxu0 %v2003
        %2525 = vmatprep.subr.bf16.mxu0 %v2002
        %2526 = vmatpush1.bf16.msra.mxu0 %v2001
        %2527 = vmatprep.subr.bf16.mxu0 %v2000
        %2528 = vmatpush1.bf16.msra.mxu0 %v1999
        %2529 = vmatprep.subr.bf16.mxu0 %v2030
        %2530 = vmatpush2.bf16.msra.mxu0 %v2029
        %2531 = vmatprep.subr.bf16.mxu0 %v2028
        %2532 = vmatpush2.bf16.msra.mxu0 %v2027
        %2533 = vmatprep.subr.bf16.mxu0 %v2026
        %2534 = vmatpush2.bf16.msra.mxu0 %v2025
        %2535 = vmatprep.subr.bf16.mxu0 %v2024
        %2536 = vmatpush2.bf16.msra.mxu0 %v2023
        %2537 = vmatprep.subr.bf16.mxu0 %v2022
        %2538 = vmatpush2.bf16.msra.mxu0 %v2021
        %2539 = vmatprep.subr.bf16.mxu0 %v2020
        %2540 = vmatpush2.bf16.msra.mxu0 %v2019
        %2541 = vmatprep.subr.bf16.mxu0 %v2018
        %2542 = vmatpush2.bf16.msra.mxu0 %v2017
        %2543 = vmatprep.subr.bf16.mxu0 %v2016
        %2544 = vmatpush2.bf16.msra.mxu0 %v2015
        %2545 = vmatprep.mubr.bf16.mxu0 %v1331
        %2546 = vmatmul.mubr.bf16.gmra.mxu0 %v1328
        %v2547 = vpop.f32.mrf.mxu0
        %v2548 = vadd.f32 %v2355, %v2547
        %v2549 = vpop.f32.mrf.mxu0
        %v2550 = vadd.f32 %v2357, %v2549
        %v2551 = vpop.f32.mrf.mxu0
        %v2552 = vadd.f32 %v2359, %v2551
        %v2553 = vpop.f32.mrf.mxu0
        %v2554 = vadd.f32 %v2361, %v2553
        %2555 = vmatprep.mubr.bf16.mxu0 %v1337
        %2556 = vmatmul.mubr.bf16.gmra.mxu0 %v1334
        %v2557 = vpop.f32.mrf.mxu0
        %v2558 = vadd.f32 %v2365, %v2557
        %v2559 = vpop.f32.mrf.mxu0
        %v2560 = vadd.f32 %v2367, %v2559
        %v2561 = vpop.f32.mrf.mxu0
        %v2562 = vadd.f32 %v2369, %v2561
        %v2563 = vpop.f32.mrf.mxu0
        %v2564 = vadd.f32 %v2371, %v2563
        %2565 = vmatprep.mubr.bf16.mxu0 %v1343
        %2566 = vmatmul.mubr.bf16.gmra.mxu0 %v1340
        %v2567 = vpop.f32.mrf.mxu0
        %v2568 = vadd.f32 %v2375, %v2567
        %v2569 = vpop.f32.mrf.mxu0
        %v2570 = vadd.f32 %v2377, %v2569
        %v2571 = vpop.f32.mrf.mxu0
        %v2572 = vadd.f32 %v2379, %v2571
        %v2573 = vpop.f32.mrf.mxu0
        %v2574 = vadd.f32 %v2381, %v2573
        %2575 = vmatprep.mubr.bf16.mxu0 %v1349
        %2576 = vmatmul.mubr.bf16.gmra.mxu0 %v1346
        %v2577 = vpop.f32.mrf.mxu0
        %v2578 = vadd.f32 %v2385, %v2577
        %v2579 = vpop.f32.mrf.mxu0
        %v2580 = vadd.f32 %v2387, %v2579
        %v2581 = vpop.f32.mrf.mxu0
        %v2582 = vadd.f32 %v2389, %v2581
        %v2583 = vpop.f32.mrf.mxu0
        %v2584 = vadd.f32 %v2391, %v2583
        %2585 = vmatprep.mubr.bf16.mxu0 %v1355
        %2586 = vmatmul.mubr.bf16.gmra.mxu0 %v1352
        %v2587 = vpop.f32.mrf.mxu0
        %v2588 = vadd.f32 %v2395, %v2587
        %v2589 = vpop.f32.mrf.mxu0
        %v2590 = vadd.f32 %v2397, %v2589
        %v2591 = vpop.f32.mrf.mxu0
        %v2592 = vadd.f32 %v2399, %v2591
        %v2593 = vpop.f32.mrf.mxu0
        %v2594 = vadd.f32 %v2401, %v2593
        %2595 = vmatprep.mubr.bf16.mxu0 %v1361
        %2596 = vmatmul.mubr.bf16.gmra.mxu0 %v1358
        %v2597 = vpop.f32.mrf.mxu0
        %v2598 = vadd.f32 %v2405, %v2597
        %v2599 = vpop.f32.mrf.mxu0
        %v2600 = vadd.f32 %v2407, %v2599
        %v2601 = vpop.f32.mrf.mxu0
        %v2602 = vadd.f32 %v2409, %v2601
        %v2603 = vpop.f32.mrf.mxu0
        %v2604 = vadd.f32 %v2411, %v2603
        %2605 = vmatprep.mubr.bf16.mxu0 %v1367
        %2606 = vmatmul.mubr.bf16.gmra.mxu0 %v1364
        %v2607 = vpop.f32.mrf.mxu0
        %v2608 = vadd.f32 %v2415, %v2607
        %v2609 = vpop.f32.mrf.mxu0
        %v2610 = vadd.f32 %v2417, %v2609
        %v2611 = vpop.f32.mrf.mxu0
        %v2612 = vadd.f32 %v2419, %v2611
        %v2613 = vpop.f32.mrf.mxu0
        %v2614 = vadd.f32 %v2421, %v2613
        %2615 = vmatprep.mubr.bf16.mxu0 %v1373
        %2616 = vmatmul.mubr.bf16.gmra.mxu0 %v1370
        %v2617 = vpop.f32.mrf.mxu0
        %v2618 = vadd.f32 %v2425, %v2617
        %v2619 = vpop.f32.mrf.mxu0
        %v2620 = vadd.f32 %v2427, %v2619
        %v2621 = vpop.f32.mrf.mxu0
        %v2622 = vadd.f32 %v2429, %v2621
        %v2623 = vpop.f32.mrf.mxu0
        %v2624 = vadd.f32 %v2431, %v2623
        %2625 = vmatprep.mubr.bf16.mxu0 %v1379
        %2626 = vmatmul.mubr.bf16.gmra.mxu0 %v1376
        %v2627 = vpop.f32.mrf.mxu0
        %v2628 = vadd.f32 %v2435, %v2627
        %v2629 = vpop.f32.mrf.mxu0
        %v2630 = vadd.f32 %v2437, %v2629
        %v2631 = vpop.f32.mrf.mxu0
        %v2632 = vadd.f32 %v2439, %v2631
        %v2633 = vpop.f32.mrf.mxu0
        %v2634 = vadd.f32 %v2441, %v2633
        %2635 = vmatprep.mubr.bf16.mxu0 %v1385
        %2636 = vmatmul.mubr.bf16.gmra.mxu0 %v1382
        %v2637 = vpop.f32.mrf.mxu0
        %v2638 = vadd.f32 %v2445, %v2637
        %v2639 = vpop.f32.mrf.mxu0
        %v2640 = vadd.f32 %v2447, %v2639
        %v2641 = vpop.f32.mrf.mxu0
        %v2642 = vadd.f32 %v2449, %v2641
        %v2643 = vpop.f32.mrf.mxu0
        %v2644 = vadd.f32 %v2451, %v2643
        %2645 = vmatprep.mubr.bf16.mxu0 %v1391
        %2646 = vmatmul.mubr.bf16.gmra.mxu0 %v1388
        %v2647 = vpop.f32.mrf.mxu0
        %v2648 = vadd.f32 %v2455, %v2647
        %v2649 = vpop.f32.mrf.mxu0
        %v2650 = vadd.f32 %v2457, %v2649
        %v2651 = vpop.f32.mrf.mxu0
        %v2652 = vadd.f32 %v2459, %v2651
        %v2653 = vpop.f32.mrf.mxu0
        %v2654 = vadd.f32 %v2461, %v2653
        %2655 = vmatprep.mubr.bf16.mxu0 %v1397
        %2656 = vmatmul.mubr.bf16.gmra.mxu0 %v1394
        %v2657 = vpop.f32.mrf.mxu0
        %v2658 = vadd.f32 %v2465, %v2657
        %v2659 = vpop.f32.mrf.mxu0
        %v2660 = vadd.f32 %v2467, %v2659
        %v2661 = vpop.f32.mrf.mxu0
        %v2662 = vadd.f32 %v2469, %v2661
        %v2663 = vpop.f32.mrf.mxu0
        %v2664 = vadd.f32 %v2471, %v2663
        %2665 = vmatprep.mubr.bf16.mxu0 %v1403
        %2666 = vmatmul.mubr.bf16.gmra.mxu0 %v1400
        %v2667 = vpop.f32.mrf.mxu0
        %v2668 = vadd.f32 %v2475, %v2667
        %v2669 = vpop.f32.mrf.mxu0
        %v2670 = vadd.f32 %v2477, %v2669
        %v2671 = vpop.f32.mrf.mxu0
        %v2672 = vadd.f32 %v2479, %v2671
        %v2673 = vpop.f32.mrf.mxu0
        %v2674 = vadd.f32 %v2481, %v2673
        %2675 = vmatprep.mubr.bf16.mxu0 %v1409
        %2676 = vmatmul.mubr.bf16.gmra.mxu0 %v1406
        %v2677 = vpop.f32.mrf.mxu0
        %v2678 = vadd.f32 %v2485, %v2677
        %v2679 = vpop.f32.mrf.mxu0
        %v2680 = vadd.f32 %v2487, %v2679
        %v2681 = vpop.f32.mrf.mxu0
        %v2682 = vadd.f32 %v2489, %v2681
        %v2683 = vpop.f32.mrf.mxu0
        %v2684 = vadd.f32 %v2491, %v2683
        %2685 = vmatprep.mubr.bf16.mxu0 %v1415
        %2686 = vmatmul.mubr.bf16.gmra.mxu0 %v1412
        %v2687 = vpop.f32.mrf.mxu0
        %v2688 = vadd.f32 %v2495, %v2687
        %v2689 = vpop.f32.mrf.mxu0
        %v2690 = vadd.f32 %v2497, %v2689
        %v2691 = vpop.f32.mrf.mxu0
        %v2692 = vadd.f32 %v2499, %v2691
        %v2693 = vpop.f32.mrf.mxu0
        %v2694 = vadd.f32 %v2501, %v2693
        %2695 = vmatprep.mubr.bf16.mxu0 %v1421
        %2696 = vmatmul.mubr.bf16.gmra.mxu0 %v1418
        %v2697 = vpop.f32.mrf.mxu0
        %v2698 = vadd.f32 %v2505, %v2697
        %v2699 = vpop.f32.mrf.mxu0
        %v2700 = vadd.f32 %v2507, %v2699
        %v2701 = vpop.f32.mrf.mxu0
        %v2702 = vadd.f32 %v2509, %v2701
        %v2703 = vpop.f32.mrf.mxu0
        %v2704 = vadd.f32 %v2511, %v2703
        %2705 = vdwg.mxu0
        %v2802 = vunpack.c.l.b16 %v1454
        %v2803 = vunpack.c.h.b16 %v1454
        %v2804 = vunpack.c.l.b16 %v1455
        %v2805 = vunpack.c.h.b16 %v1455
        %v2806 = vunpack.c.l.b16 %v1456
        %v2807 = vunpack.c.h.b16 %v1456
        %v2808 = vunpack.c.l.b16 %v1457
        %v2809 = vunpack.c.h.b16 %v1457
        %v2810 = vunpack.c.l.b16 %v1458
        %v2811 = vunpack.c.h.b16 %v1458
        %v2812 = vunpack.c.l.b16 %v1459
        %v2813 = vunpack.c.h.b16 %v1459
        %v2814 = vunpack.c.l.b16 %v1460
        %v2815 = vunpack.c.h.b16 %v1460
        %v2816 = vunpack.c.l.b16 %v1461
        %v2817 = vunpack.c.h.b16 %v1461
        %v2818 = vunpack.c.l.b16 %v1462
        %v2819 = vunpack.c.h.b16 %v1462
        %v2820 = vunpack.c.l.b16 %v1463
        %v2821 = vunpack.c.h.b16 %v1463
        %v2822 = vunpack.c.l.b16 %v1464
        %v2823 = vunpack.c.h.b16 %v1464
        %v2824 = vunpack.c.l.b16 %v1465
        %v2825 = vunpack.c.h.b16 %v1465
        %v2826 = vunpack.c.l.b16 %v1466
        %v2827 = vunpack.c.h.b16 %v1466
        %v2828 = vunpack.c.l.b16 %v1467
        %v2829 = vunpack.c.h.b16 %v1467
        %v2830 = vunpack.c.l.b16 %v1468
        %v2831 = vunpack.c.h.b16 %v1468
        %v2832 = vunpack.c.l.b16 %v1469
        %v2833 = vunpack.c.h.b16 %v1469
        %v2834 = vunpack.c.l.b16 %v1470
        %v2835 = vunpack.c.h.b16 %v1470
        %v2836 = vunpack.c.l.b16 %v1471
        %v2837 = vunpack.c.h.b16 %v1471
        %v2838 = vunpack.c.l.b16 %v1472
        %v2839 = vunpack.c.h.b16 %v1472
        %v2840 = vunpack.c.l.b16 %v1473
        %v2841 = vunpack.c.h.b16 %v1473
        %v2842 = vunpack.c.l.b16 %v1474
        %v2843 = vunpack.c.h.b16 %v1474
        %v2844 = vunpack.c.l.b16 %v1475
        %v2845 = vunpack.c.h.b16 %v1475
        %v2846 = vunpack.c.l.b16 %v1476
        %v2847 = vunpack.c.h.b16 %v1476
        %v2848 = vunpack.c.l.b16 %v1477
        %v2849 = vunpack.c.h.b16 %v1477
        %v2850 = vunpack.c.l.b16 %v1478
        %v2851 = vunpack.c.h.b16 %v1478
        %v2852 = vunpack.c.l.b16 %v1479
        %v2853 = vunpack.c.h.b16 %v1479
        %v2854 = vunpack.c.l.b16 %v1480
        %v2855 = vunpack.c.h.b16 %v1480
        %v2856 = vunpack.c.l.b16 %v1481
        %v2857 = vunpack.c.h.b16 %v1481
        %v2858 = vunpack.c.l.b16 %v1482
        %v2859 = vunpack.c.h.b16 %v1482
        %v2860 = vunpack.c.l.b16 %v1483
        %v2861 = vunpack.c.h.b16 %v1483
        %v2862 = vunpack.c.l.b16 %v1484
        %v2863 = vunpack.c.h.b16 %v1484
        %v2864 = vunpack.c.l.b16 %v1485
        %v2865 = vunpack.c.h.b16 %v1485
        %v2866 = vunpack.c.l.b16 %v1486
        %v2867 = vunpack.c.h.b16 %v1486
        %v2868 = vunpack.c.l.b16 %v1487
        %v2869 = vunpack.c.h.b16 %v1487
        %v2870 = vunpack.c.l.b16 %v1488
        %v2871 = vunpack.c.h.b16 %v1488
        %v2872 = vunpack.c.l.b16 %v1489
        %v2873 = vunpack.c.h.b16 %v1489
        %v2874 = vunpack.c.l.b16 %v1490
        %v2875 = vunpack.c.h.b16 %v1490
        %v2876 = vunpack.c.l.b16 %v1491
        %v2877 = vunpack.c.h.b16 %v1491
        %v2878 = vunpack.c.l.b16 %v1492
        %v2879 = vunpack.c.h.b16 %v1492
        %v2880 = vunpack.c.l.b16 %v1493
        %v2881 = vunpack.c.h.b16 %v1493
        %v2882 = vunpack.c.l.b16 %v1494
        %v2883 = vunpack.c.h.b16 %v1494
        %v2884 = vunpack.c.l.b16 %v1495
        %v2885 = vunpack.c.h.b16 %v1495
        %v2886 = vunpack.c.l.b16 %v1496
        %v2887 = vunpack.c.h.b16 %v1496
        %v2888 = vunpack.c.l.b16 %v1497
        %v2889 = vunpack.c.h.b16 %v1497
        %v2890 = vunpack.c.l.b16 %v1498
        %v2891 = vunpack.c.h.b16 %v1498
        %v2892 = vunpack.c.l.b16 %v1499
        %v2893 = vunpack.c.h.b16 %v1499
        %v2894 = vunpack.c.l.b16 %v1500
        %v2895 = vunpack.c.h.b16 %v1500
        %v2896 = vunpack.c.l.b16 %v1501
        %v2897 = vunpack.c.h.b16 %v1501
        %v2898 = vunpack.c.l.b16 %v1502
        %v2899 = vunpack.c.h.b16 %v1502
        %v2900 = vunpack.c.l.b16 %v1503
        %v2901 = vunpack.c.h.b16 %v1503
        %v2902 = vunpack.c.l.b16 %v1504
        %v2903 = vunpack.c.h.b16 %v1504
        %v2904 = vunpack.c.l.b16 %v1505
        %v2905 = vunpack.c.h.b16 %v1505
        %v2906 = vunpack.c.l.b16 %v1506
        %v2907 = vunpack.c.h.b16 %v1506
        %v2908 = vunpack.c.l.b16 %v1507
        %v2909 = vunpack.c.h.b16 %v1507
        %v2910 = vunpack.c.l.b16 %v1508
        %v2911 = vunpack.c.h.b16 %v1508
        %v2912 = vunpack.c.l.b16 %v1509
        %v2913 = vunpack.c.h.b16 %v1509
        %v2914 = vunpack.c.l.b16 %v1510
        %v2915 = vunpack.c.h.b16 %v1510
        %v2916 = vunpack.c.l.b16 %v1511
        %v2917 = vunpack.c.h.b16 %v1511
        %v2918 = vunpack.c.l.b16 %v1512
        %v2919 = vunpack.c.h.b16 %v1512
        %v2920 = vunpack.c.l.b16 %v1513
        %v2921 = vunpack.c.h.b16 %v1513
        %v2922 = vunpack.c.l.b16 %v1514
        %v2923 = vunpack.c.h.b16 %v1514
        %v2924 = vunpack.c.l.b16 %v1515
        %v2925 = vunpack.c.h.b16 %v1515
        %v2926 = vunpack.c.l.b16 %v1516
        %v2927 = vunpack.c.h.b16 %v1516
        %v2928 = vunpack.c.l.b16 %v1517
        %v2929 = vunpack.c.h.b16 %v1517
        %v2930 = vunpack.c.l.b16 %v1518
        %v2931 = vunpack.c.h.b16 %v1518
        %v2932 = vunpack.c.l.b16 %v1519
        %v2933 = vunpack.c.h.b16 %v1519
        %v2934 = vunpack.c.l.b16 %v1520
        %v2935 = vunpack.c.h.b16 %v1520
        %v2936 = vunpack.c.l.b16 %v1521
        %v2937 = vunpack.c.h.b16 %v1521
        %v2938 = vunpack.c.l.b16 %v1522
        %v2939 = vunpack.c.h.b16 %v1522
        %v2940 = vunpack.c.l.b16 %v1523
        %v2941 = vunpack.c.h.b16 %v1523
        %v2942 = vunpack.c.l.b16 %v1524
        %v2943 = vunpack.c.h.b16 %v1524
        %v2944 = vunpack.c.l.b16 %v1525
        %v2945 = vunpack.c.h.b16 %v1525
        %v2946 = vunpack.c.l.b16 %v1526
        %v2947 = vunpack.c.h.b16 %v1526
        %v2948 = vunpack.c.l.b16 %v1527
        %v2949 = vunpack.c.h.b16 %v1527
        %v2950 = vunpack.c.l.b16 %v1528
        %v2951 = vunpack.c.h.b16 %v1528
        %v2952 = vunpack.c.l.b16 %v1529
        %v2953 = vunpack.c.h.b16 %v1529
        %v2954 = vunpack.c.l.b16 %v1530
        %v2955 = vunpack.c.h.b16 %v1530
        %v2956 = vunpack.c.l.b16 %v1531
        %v2957 = vunpack.c.h.b16 %v1531
        %v2958 = vunpack.c.l.b16 %v1532
        %v2959 = vunpack.c.h.b16 %v1532
        %v2960 = vunpack.c.l.b16 %v1533
        %v2961 = vunpack.c.h.b16 %v1533
        %v2962 = vunpack.c.l.b16 %v1534
        %v2963 = vunpack.c.h.b16 %v1534
        %v2964 = vunpack.c.l.b16 %v1535
        %v2965 = vunpack.c.h.b16 %v1535
        %v2966 = vunpack.c.l.b16 %v1536
        %v2967 = vunpack.c.h.b16 %v1536
        %v2968 = vunpack.c.l.b16 %v1537
        %v2969 = vunpack.c.h.b16 %v1537
        %v2970 = vunpack.c.l.b16 %v1538
        %v2971 = vunpack.c.h.b16 %v1538
        %v2972 = vunpack.c.l.b16 %v1539
        %v2973 = vunpack.c.h.b16 %v1539
        %v2974 = vunpack.c.l.b16 %v1540
        %v2975 = vunpack.c.h.b16 %v1540
        %v2976 = vunpack.c.l.b16 %v1541
        %v2977 = vunpack.c.h.b16 %v1541
        %v2978 = vunpack.c.l.b16 %v1542
        %v2979 = vunpack.c.h.b16 %v1542
        %v2980 = vunpack.c.l.b16 %v1543
        %v2981 = vunpack.c.h.b16 %v1543
        %v2982 = vunpack.c.l.b16 %v1544
        %v2983 = vunpack.c.h.b16 %v1544
        %v2984 = vunpack.c.l.b16 %v1545
        %v2985 = vunpack.c.h.b16 %v1545
        %v2986 = vunpack.c.l.b16 %v1546
        %v2987 = vunpack.c.h.b16 %v1546
        %v2988 = vunpack.c.l.b16 %v1547
        %v2989 = vunpack.c.h.b16 %v1547
        %v2990 = vunpack.c.l.b16 %v1548
        %v2991 = vunpack.c.h.b16 %v1548
        %v2992 = vunpack.c.l.b16 %v1549
        %v2993 = vunpack.c.h.b16 %v1549
        %v2994 = vpack.c.b16 %v2804, %v2802
        %v2995 = vpack.c.b16 %v2805, %v2803
        %v2996 = vpack.c.b16 %v2808, %v2806
        %v2997 = vpack.c.b16 %v2809, %v2807
        %v2998 = vpack.c.b16 %v2812, %v2810
        %v2999 = vpack.c.b16 %v2813, %v2811
        %v3000 = vpack.c.b16 %v2816, %v2814
        %v3001 = vpack.c.b16 %v2817, %v2815
        %v3002 = vpack.c.b16 %v2820, %v2818
        %v3003 = vpack.c.b16 %v2821, %v2819
        %v3004 = vpack.c.b16 %v2824, %v2822
        %v3005 = vpack.c.b16 %v2825, %v2823
        %v3006 = vpack.c.b16 %v2828, %v2826
        %v3007 = vpack.c.b16 %v2829, %v2827
        %v3008 = vpack.c.b16 %v2832, %v2830
        %v3009 = vpack.c.b16 %v2833, %v2831
        %v3010 = vpack.c.b16 %v2836, %v2834
        %v3011 = vpack.c.b16 %v2837, %v2835
        %v3012 = vpack.c.b16 %v2840, %v2838
        %v3013 = vpack.c.b16 %v2841, %v2839
        %v3014 = vpack.c.b16 %v2844, %v2842
        %v3015 = vpack.c.b16 %v2845, %v2843
        %v3016 = vpack.c.b16 %v2848, %v2846
        %v3017 = vpack.c.b16 %v2849, %v2847
        %v3018 = vpack.c.b16 %v2852, %v2850
        %v3019 = vpack.c.b16 %v2853, %v2851
        %v3020 = vpack.c.b16 %v2856, %v2854
        %v3021 = vpack.c.b16 %v2857, %v2855
        %v3022 = vpack.c.b16 %v2860, %v2858
        %v3023 = vpack.c.b16 %v2861, %v2859
        %v3024 = vpack.c.b16 %v2864, %v2862
        %v3025 = vpack.c.b16 %v2865, %v2863
        %v3026 = vpack.c.b16 %v2868, %v2866
        %v3027 = vpack.c.b16 %v2869, %v2867
        %v3028 = vpack.c.b16 %v2872, %v2870
        %v3029 = vpack.c.b16 %v2873, %v2871
        %v3030 = vpack.c.b16 %v2876, %v2874
        %v3031 = vpack.c.b16 %v2877, %v2875
        %v3032 = vpack.c.b16 %v2880, %v2878
        %v3033 = vpack.c.b16 %v2881, %v2879
        %v3034 = vpack.c.b16 %v2884, %v2882
        %v3035 = vpack.c.b16 %v2885, %v2883
        %v3036 = vpack.c.b16 %v2888, %v2886
        %v3037 = vpack.c.b16 %v2889, %v2887
        %v3038 = vpack.c.b16 %v2892, %v2890
        %v3039 = vpack.c.b16 %v2893, %v2891
        %v3040 = vpack.c.b16 %v2896, %v2894
        %v3041 = vpack.c.b16 %v2897, %v2895
        %v3042 = vpack.c.b16 %v2900, %v2898
        %v3043 = vpack.c.b16 %v2901, %v2899
        %v3044 = vpack.c.b16 %v2904, %v2902
        %v3045 = vpack.c.b16 %v2905, %v2903
        %v3046 = vpack.c.b16 %v2908, %v2906
        %v3047 = vpack.c.b16 %v2909, %v2907
        %v3048 = vpack.c.b16 %v2912, %v2910
        %v3049 = vpack.c.b16 %v2913, %v2911
        %v3050 = vpack.c.b16 %v2916, %v2914
        %v3051 = vpack.c.b16 %v2917, %v2915
        %v3052 = vpack.c.b16 %v2920, %v2918
        %v3053 = vpack.c.b16 %v2921, %v2919
        %v3054 = vpack.c.b16 %v2924, %v2922
        %v3055 = vpack.c.b16 %v2925, %v2923
        %v3056 = vpack.c.b16 %v2928, %v2926
        %v3057 = vpack.c.b16 %v2929, %v2927
        %v3058 = vpack.c.b16 %v2932, %v2930
        %v3059 = vpack.c.b16 %v2933, %v2931
        %v3060 = vpack.c.b16 %v2936, %v2934
        %v3061 = vpack.c.b16 %v2937, %v2935
        %v3062 = vpack.c.b16 %v2940, %v2938
        %v3063 = vpack.c.b16 %v2941, %v2939
        %v3064 = vpack.c.b16 %v2944, %v2942
        %v3065 = vpack.c.b16 %v2945, %v2943
        %v3066 = vpack.c.b16 %v2948, %v2946
        %v3067 = vpack.c.b16 %v2949, %v2947
        %v3068 = vpack.c.b16 %v2952, %v2950
        %v3069 = vpack.c.b16 %v2953, %v2951
        %v3070 = vpack.c.b16 %v2956, %v2954
        %v3071 = vpack.c.b16 %v2957, %v2955
        %v3072 = vpack.c.b16 %v2960, %v2958
        %v3073 = vpack.c.b16 %v2961, %v2959
        %v3074 = vpack.c.b16 %v2964, %v2962
        %v3075 = vpack.c.b16 %v2965, %v2963
        %v3076 = vpack.c.b16 %v2968, %v2966
        %v3077 = vpack.c.b16 %v2969, %v2967
        %v3078 = vpack.c.b16 %v2972, %v2970
        %v3079 = vpack.c.b16 %v2973, %v2971
        %v3080 = vpack.c.b16 %v2976, %v2974
        %v3081 = vpack.c.b16 %v2977, %v2975
        %v3082 = vpack.c.b16 %v2980, %v2978
        %v3083 = vpack.c.b16 %v2981, %v2979
        %v3084 = vpack.c.b16 %v2984, %v2982
        %v3085 = vpack.c.b16 %v2985, %v2983
        %v3086 = vpack.c.b16 %v2988, %v2986
        %v3087 = vpack.c.b16 %v2989, %v2987
        %v3088 = vpack.c.b16 %v2992, %v2990
        %v3089 = vpack.c.b16 %v2993, %v2991
        %3186 = vmatprep.subr.bf16.mxu0 %v3009
        %3187 = vmatpush1.bf16.msra.mxu0 %v3008
        %3188 = vmatprep.subr.bf16.mxu0 %v3007
        %3189 = vmatpush1.bf16.msra.mxu0 %v3006
        %3190 = vmatprep.subr.bf16.mxu0 %v3005
        %3191 = vmatpush1.bf16.msra.mxu0 %v3004
        %3192 = vmatprep.subr.bf16.mxu0 %v3003
        %3193 = vmatpush1.bf16.msra.mxu0 %v3002
        %3194 = vmatprep.subr.bf16.mxu0 %v3001
        %3195 = vmatpush1.bf16.msra.mxu0 %v3000
        %3196 = vmatprep.subr.bf16.mxu0 %v2999
        %3197 = vmatpush1.bf16.msra.mxu0 %v2998
        %3198 = vmatprep.subr.bf16.mxu0 %v2997
        %3199 = vmatpush1.bf16.msra.mxu0 %v2996
        %3200 = vmatprep.subr.bf16.mxu0 %v2995
        %3201 = vmatpush1.bf16.msra.mxu0 %v2994
        %3202 = vmatprep.subr.bf16.mxu0 %v3025
        %3203 = vmatpush2.bf16.msra.mxu0 %v3024
        %3204 = vmatprep.subr.bf16.mxu0 %v3023
        %3205 = vmatpush2.bf16.msra.mxu0 %v3022
        %3206 = vmatprep.subr.bf16.mxu0 %v3021
        %3207 = vmatpush2.bf16.msra.mxu0 %v3020
        %3208 = vmatprep.subr.bf16.mxu0 %v3019
        %3209 = vmatpush2.bf16.msra.mxu0 %v3018
        %3210 = vmatprep.subr.bf16.mxu0 %v3017
        %3211 = vmatpush2.bf16.msra.mxu0 %v3016
        %3212 = vmatprep.subr.bf16.mxu0 %v3015
        %3213 = vmatpush2.bf16.msra.mxu0 %v3014
        %3214 = vmatprep.subr.bf16.mxu0 %v3013
        %3215 = vmatpush2.bf16.msra.mxu0 %v3012
        %3216 = vmatprep.subr.bf16.mxu0 %v3011
        %3217 = vmatpush2.bf16.msra.mxu0 %v3010
        %3218 = vmatprep.mubr.bf16.mxu0 %v783
        %3219 = vmatmul.mubr.bf16.gmra.mxu0 %v782
        %v3220 = vpop.f32.mrf.mxu0
        %v3221 = vadd.f32 %v2548, %v3220
        %v3222 = vpop.f32.mrf.mxu0
        %v3223 = vadd.f32 %v2550, %v3222
        %v3224 = vpop.f32.mrf.mxu0
        %v3225 = vadd.f32 %v2552, %v3224
        %v3226 = vpop.f32.mrf.mxu0
        %v3227 = vadd.f32 %v2554, %v3226
        %3228 = vmatprep.mubr.bf16.mxu0 %v781
        %3229 = vmatmul.mubr.bf16.gmra.mxu0 %v780
        %v3230 = vpop.f32.mrf.mxu0
        %v3231 = vadd.f32 %v2558, %v3230
        %v3232 = vpop.f32.mrf.mxu0
        %v3233 = vadd.f32 %v2560, %v3232
        %v3234 = vpop.f32.mrf.mxu0
        %v3235 = vadd.f32 %v2562, %v3234
        %v3236 = vpop.f32.mrf.mxu0
        %v3237 = vadd.f32 %v2564, %v3236
        %3238 = vmatprep.mubr.bf16.mxu0 %v783
        %3239 = vmatmul.mubr.bf16.gmra.mxu0 %v782
        %v3240 = vpop.f32.mrf.mxu0
        %v3241 = vadd.f32 %v2568, %v3240
        %v3242 = vpop.f32.mrf.mxu0
        %v3243 = vadd.f32 %v2570, %v3242
        %v3244 = vpop.f32.mrf.mxu0
        %v3245 = vadd.f32 %v2572, %v3244
        %v3246 = vpop.f32.mrf.mxu0
        %v3247 = vadd.f32 %v2574, %v3246
        %3248 = vmatprep.mubr.bf16.mxu0 %v785
        %3249 = vmatmul.mubr.bf16.gmra.mxu0 %v784
        %v3250 = vpop.f32.mrf.mxu0
        %v3251 = vadd.f32 %v2578, %v3250
        %v3252 = vpop.f32.mrf.mxu0
        %v3253 = vadd.f32 %v2580, %v3252
        %v3254 = vpop.f32.mrf.mxu0
        %v3255 = vadd.f32 %v2582, %v3254
        %v3256 = vpop.f32.mrf.mxu0
        %v3257 = vadd.f32 %v2584, %v3256
        %3258 = vmatprep.mubr.bf16.mxu0 %v787
        %3259 = vmatmul.mubr.bf16.gmra.mxu0 %v786
        %v3260 = vpop.f32.mrf.mxu0
        %v3261 = vadd.f32 %v2588, %v3260
        %v3262 = vpop.f32.mrf.mxu0
        %v3263 = vadd.f32 %v2590, %v3262
        %v3264 = vpop.f32.mrf.mxu0
        %v3265 = vadd.f32 %v2592, %v3264
        %v3266 = vpop.f32.mrf.mxu0
        %v3267 = vadd.f32 %v2594, %v3266
        %3268 = vmatprep.mubr.bf16.mxu0 %v789
        %3269 = vmatmul.mubr.bf16.gmra.mxu0 %v788
        %v3270 = vpop.f32.mrf.mxu0
        %v3271 = vadd.f32 %v2598, %v3270
        %v3272 = vpop.f32.mrf.mxu0
        %v3273 = vadd.f32 %v2600, %v3272
        %v3274 = vpop.f32.mrf.mxu0
        %v3275 = vadd.f32 %v2602, %v3274
        %v3276 = vpop.f32.mrf.mxu0
        %v3277 = vadd.f32 %v2604, %v3276
        %3278 = vmatprep.mubr.bf16.mxu0 %v791
        %3279 = vmatmul.mubr.bf16.gmra.mxu0 %v790
        %v3280 = vpop.f32.mrf.mxu0
        %v3281 = vadd.f32 %v2608, %v3280
        %v3282 = vpop.f32.mrf.mxu0
        %v3283 = vadd.f32 %v2610, %v3282
        %v3284 = vpop.f32.mrf.mxu0
        %v3285 = vadd.f32 %v2612, %v3284
        %v3286 = vpop.f32.mrf.mxu0
        %v3287 = vadd.f32 %v2614, %v3286
        %3288 = vmatprep.mubr.bf16.mxu0 %v793
        %3289 = vmatmul.mubr.bf16.gmra.mxu0 %v792
        %v3290 = vpop.f32.mrf.mxu0
        %v3291 = vadd.f32 %v2618, %v3290
        %v3292 = vpop.f32.mrf.mxu0
        %v3293 = vadd.f32 %v2620, %v3292
        %v3294 = vpop.f32.mrf.mxu0
        %v3295 = vadd.f32 %v2622, %v3294
        %v3296 = vpop.f32.mrf.mxu0
        %v3297 = vadd.f32 %v2624, %v3296
        %3298 = vmatprep.mubr.bf16.mxu0 %v795
        %3299 = vmatmul.mubr.bf16.gmra.mxu0 %v794
        %v3300 = vpop.f32.mrf.mxu0
        %v3301 = vadd.f32 %v2628, %v3300
        %v3302 = vpop.f32.mrf.mxu0
        %v3303 = vadd.f32 %v2630, %v3302
        %v3304 = vpop.f32.mrf.mxu0
        %v3305 = vadd.f32 %v2632, %v3304
        %v3306 = vpop.f32.mrf.mxu0
        %v3307 = vadd.f32 %v2634, %v3306
        %3308 = vmatprep.mubr.bf16.mxu0 %v797
        %3309 = vmatmul.mubr.bf16.gmra.mxu0 %v796
        %v3310 = vpop.f32.mrf.mxu0
        %v3311 = vadd.f32 %v2638, %v3310
        %v3312 = vpop.f32.mrf.mxu0
        %v3313 = vadd.f32 %v2640, %v3312
        %v3314 = vpop.f32.mrf.mxu0
        %v3315 = vadd.f32 %v2642, %v3314
        %v3316 = vpop.f32.mrf.mxu0
        %v3317 = vadd.f32 %v2644, %v3316
        %3318 = vmatprep.mubr.bf16.mxu0 %v799
        %3319 = vmatmul.mubr.bf16.gmra.mxu0 %v798
        %v3320 = vpop.f32.mrf.mxu0
        %v3321 = vadd.f32 %v2648, %v3320
        %v3322 = vpop.f32.mrf.mxu0
        %v3323 = vadd.f32 %v2650, %v3322
        %v3324 = vpop.f32.mrf.mxu0
        %v3325 = vadd.f32 %v2652, %v3324
        %v3326 = vpop.f32.mrf.mxu0
        %v3327 = vadd.f32 %v2654, %v3326
        %3328 = vmatprep.mubr.bf16.mxu0 %v801
        %3329 = vmatmul.mubr.bf16.gmra.mxu0 %v800
        %v3330 = vpop.f32.mrf.mxu0
        %v3331 = vadd.f32 %v2658, %v3330
        %v3332 = vpop.f32.mrf.mxu0
        %v3333 = vadd.f32 %v2660, %v3332
        %v3334 = vpop.f32.mrf.mxu0
        %v3335 = vadd.f32 %v2662, %v3334
        %v3336 = vpop.f32.mrf.mxu0
        %v3337 = vadd.f32 %v2664, %v3336
        %3338 = vmatprep.mubr.bf16.mxu0 %v803
        %3339 = vmatmul.mubr.bf16.gmra.mxu0 %v802
        %v3340 = vpop.f32.mrf.mxu0
        %v3341 = vadd.f32 %v2668, %v3340
        %v3342 = vpop.f32.mrf.mxu0
        %v3343 = vadd.f32 %v2670, %v3342
        %v3344 = vpop.f32.mrf.mxu0
        %v3345 = vadd.f32 %v2672, %v3344
        %v3346 = vpop.f32.mrf.mxu0
        %v3347 = vadd.f32 %v2674, %v3346
        %3348 = vmatprep.mubr.bf16.mxu0 %v805
        %3349 = vmatmul.mubr.bf16.gmra.mxu0 %v804
        %v3350 = vpop.f32.mrf.mxu0
        %v3351 = vadd.f32 %v2678, %v3350
        %v3352 = vpop.f32.mrf.mxu0
        %v3353 = vadd.f32 %v2680, %v3352
        %v3354 = vpop.f32.mrf.mxu0
        %v3355 = vadd.f32 %v2682, %v3354
        %v3356 = vpop.f32.mrf.mxu0
        %v3357 = vadd.f32 %v2684, %v3356
        %3358 = vmatprep.mubr.bf16.mxu0 %v807
        %3359 = vmatmul.mubr.bf16.gmra.mxu0 %v806
        %v3360 = vpop.f32.mrf.mxu0
        %v3361 = vadd.f32 %v2688, %v3360
        %v3362 = vpop.f32.mrf.mxu0
        %v3363 = vadd.f32 %v2690, %v3362
        %v3364 = vpop.f32.mrf.mxu0
        %v3365 = vadd.f32 %v2692, %v3364
        %v3366 = vpop.f32.mrf.mxu0
        %v3367 = vadd.f32 %v2694, %v3366
        %3368 = vmatprep.mubr.bf16.mxu0 %v809
        %3369 = vmatmul.mubr.bf16.gmra.mxu0 %v808
        %v3370 = vpop.f32.mrf.mxu0
        %v3371 = vadd.f32 %v2698, %v3370
        %v3372 = vpop.f32.mrf.mxu0
        %v3373 = vadd.f32 %v2700, %v3372
        %v3374 = vpop.f32.mrf.mxu0
        %v3375 = vadd.f32 %v2702, %v3374
        %v3376 = vpop.f32.mrf.mxu0
        %v3377 = vadd.f32 %v2704, %v3376
        %3378 = vdwg.mxu0
        %3379 = vmatprep.subr.bf16.mxu0 %v3041
        %3380 = vmatpush1.bf16.msra.mxu0 %v3040
        %3381 = vmatprep.subr.bf16.mxu0 %v3039
        %3382 = vmatpush1.bf16.msra.mxu0 %v3038
        %3383 = vmatprep.subr.bf16.mxu0 %v3037
        %3384 = vmatpush1.bf16.msra.mxu0 %v3036
        %3385 = vmatprep.subr.bf16.mxu0 %v3035
        %3386 = vmatpush1.bf16.msra.mxu0 %v3034
        %3387 = vmatprep.subr.bf16.mxu0 %v3033
        %3388 = vmatpush1.bf16.msra.mxu0 %v3032
        %3389 = vmatprep.subr.bf16.mxu0 %v3031
        %3390 = vmatpush1.bf16.msra.mxu0 %v3030
        %3391 = vmatprep.subr.bf16.mxu0 %v3029
        %3392 = vmatpush1.bf16.msra.mxu0 %v3028
        %3393 = vmatprep.subr.bf16.mxu0 %v3027
        %3394 = vmatpush1.bf16.msra.mxu0 %v3026
        %3395 = vmatprep.subr.bf16.mxu0 %v3057
        %3396 = vmatpush2.bf16.msra.mxu0 %v3056
        %3397 = vmatprep.subr.bf16.mxu0 %v3055
        %3398 = vmatpush2.bf16.msra.mxu0 %v3054
        %3399 = vmatprep.subr.bf16.mxu0 %v3053
        %3400 = vmatpush2.bf16.msra.mxu0 %v3052
        %3401 = vmatprep.subr.bf16.mxu0 %v3051
        %3402 = vmatpush2.bf16.msra.mxu0 %v3050
        %3403 = vmatprep.subr.bf16.mxu0 %v3049
        %3404 = vmatpush2.bf16.msra.mxu0 %v3048
        %3405 = vmatprep.subr.bf16.mxu0 %v3047
        %3406 = vmatpush2.bf16.msra.mxu0 %v3046
        %3407 = vmatprep.subr.bf16.mxu0 %v3045
        %3408 = vmatpush2.bf16.msra.mxu0 %v3044
        %3409 = vmatprep.subr.bf16.mxu0 %v3043
        %3410 = vmatpush2.bf16.msra.mxu0 %v3042
        %3411 = vmatprep.mubr.bf16.mxu0 %v892
        %3412 = vmatmul.mubr.bf16.gmra.mxu0 %v880
        %v3413 = vpop.f32.mrf.mxu0
        %v3414 = vadd.f32 %v3221, %v3413
        %v3415 = vpop.f32.mrf.mxu0
        %v3416 = vadd.f32 %v3223, %v3415
        %v3417 = vpop.f32.mrf.mxu0
        %v3418 = vadd.f32 %v3225, %v3417
        %v3419 = vpop.f32.mrf.mxu0
        %v3420 = vadd.f32 %v3227, %v3419
        %3421 = vmatprep.mubr.bf16.mxu0 %v868
        %3422 = vmatmul.mubr.bf16.gmra.mxu0 %v856
        %v3423 = vpop.f32.mrf.mxu0
        %v3424 = vadd.f32 %v3231, %v3423
        %v3425 = vpop.f32.mrf.mxu0
        %v3426 = vadd.f32 %v3233, %v3425
        %v3427 = vpop.f32.mrf.mxu0
        %v3428 = vadd.f32 %v3235, %v3427
        %v3429 = vpop.f32.mrf.mxu0
        %v3430 = vadd.f32 %v3237, %v3429
        %3431 = vmatprep.mubr.bf16.mxu0 %v892
        %3432 = vmatmul.mubr.bf16.gmra.mxu0 %v880
        %v3433 = vpop.f32.mrf.mxu0
        %v3434 = vadd.f32 %v3241, %v3433
        %v3435 = vpop.f32.mrf.mxu0
        %v3436 = vadd.f32 %v3243, %v3435
        %v3437 = vpop.f32.mrf.mxu0
        %v3438 = vadd.f32 %v3245, %v3437
        %v3439 = vpop.f32.mrf.mxu0
        %v3440 = vadd.f32 %v3247, %v3439
        %3441 = vmatprep.mubr.bf16.mxu0 %v916
        %3442 = vmatmul.mubr.bf16.gmra.mxu0 %v904
        %v3443 = vpop.f32.mrf.mxu0
        %v3444 = vadd.f32 %v3251, %v3443
        %v3445 = vpop.f32.mrf.mxu0
        %v3446 = vadd.f32 %v3253, %v3445
        %v3447 = vpop.f32.mrf.mxu0
        %v3448 = vadd.f32 %v3255, %v3447
        %v3449 = vpop.f32.mrf.mxu0
        %v3450 = vadd.f32 %v3257, %v3449
        %3451 = vmatprep.mubr.bf16.mxu0 %v940
        %3452 = vmatmul.mubr.bf16.gmra.mxu0 %v928
        %v3453 = vpop.f32.mrf.mxu0
        %v3454 = vadd.f32 %v3261, %v3453
        %v3455 = vpop.f32.mrf.mxu0
        %v3456 = vadd.f32 %v3263, %v3455
        %v3457 = vpop.f32.mrf.mxu0
        %v3458 = vadd.f32 %v3265, %v3457
        %v3459 = vpop.f32.mrf.mxu0
        %v3460 = vadd.f32 %v3267, %v3459
        %3461 = vmatprep.mubr.bf16.mxu0 %v964
        %3462 = vmatmul.mubr.bf16.gmra.mxu0 %v952
        %v3463 = vpop.f32.mrf.mxu0
        %v3464 = vadd.f32 %v3271, %v3463
        %v3465 = vpop.f32.mrf.mxu0
        %v3466 = vadd.f32 %v3273, %v3465
        %v3467 = vpop.f32.mrf.mxu0
        %v3468 = vadd.f32 %v3275, %v3467
        %v3469 = vpop.f32.mrf.mxu0
        %v3470 = vadd.f32 %v3277, %v3469
        %3471 = vmatprep.mubr.bf16.mxu0 %v988
        %3472 = vmatmul.mubr.bf16.gmra.mxu0 %v976
        %v3473 = vpop.f32.mrf.mxu0
        %v3474 = vadd.f32 %v3281, %v3473
        %v3475 = vpop.f32.mrf.mxu0
        %v3476 = vadd.f32 %v3283, %v3475
        %v3477 = vpop.f32.mrf.mxu0
        %v3478 = vadd.f32 %v3285, %v3477
        %v3479 = vpop.f32.mrf.mxu0
        %v3480 = vadd.f32 %v3287, %v3479
        %3481 = vmatprep.mubr.bf16.mxu0 %v1012
        %3482 = vmatmul.mubr.bf16.gmra.mxu0 %v1000
        %v3483 = vpop.f32.mrf.mxu0
        %v3484 = vadd.f32 %v3291, %v3483
        %v3485 = vpop.f32.mrf.mxu0
        %v3486 = vadd.f32 %v3293, %v3485
        %v3487 = vpop.f32.mrf.mxu0
        %v3488 = vadd.f32 %v3295, %v3487
        %v3489 = vpop.f32.mrf.mxu0
        %v3490 = vadd.f32 %v3297, %v3489
        %3491 = vmatprep.mubr.bf16.mxu0 %v1036
        %3492 = vmatmul.mubr.bf16.gmra.mxu0 %v1024
        %v3493 = vpop.f32.mrf.mxu0
        %v3494 = vadd.f32 %v3301, %v3493
        %v3495 = vpop.f32.mrf.mxu0
        %v3496 = vadd.f32 %v3303, %v3495
        %v3497 = vpop.f32.mrf.mxu0
        %v3498 = vadd.f32 %v3305, %v3497
        %v3499 = vpop.f32.mrf.mxu0
        %v3500 = vadd.f32 %v3307, %v3499
        %3501 = vmatprep.mubr.bf16.mxu0 %v1060
        %3502 = vmatmul.mubr.bf16.gmra.mxu0 %v1048
        %v3503 = vpop.f32.mrf.mxu0
        %v3504 = vadd.f32 %v3311, %v3503
        %v3505 = vpop.f32.mrf.mxu0
        %v3506 = vadd.f32 %v3313, %v3505
        %v3507 = vpop.f32.mrf.mxu0
        %v3508 = vadd.f32 %v3315, %v3507
        %v3509 = vpop.f32.mrf.mxu0
        %v3510 = vadd.f32 %v3317, %v3509
        %3511 = vmatprep.mubr.bf16.mxu0 %v1084
        %3512 = vmatmul.mubr.bf16.gmra.mxu0 %v1072
        %v3513 = vpop.f32.mrf.mxu0
        %v3514 = vadd.f32 %v3321, %v3513
        %v3515 = vpop.f32.mrf.mxu0
        %v3516 = vadd.f32 %v3323, %v3515
        %v3517 = vpop.f32.mrf.mxu0
        %v3518 = vadd.f32 %v3325, %v3517
        %v3519 = vpop.f32.mrf.mxu0
        %v3520 = vadd.f32 %v3327, %v3519
        %3521 = vmatprep.mubr.bf16.mxu0 %v1108
        %3522 = vmatmul.mubr.bf16.gmra.mxu0 %v1096
        %v3523 = vpop.f32.mrf.mxu0
        %v3524 = vadd.f32 %v3331, %v3523
        %v3525 = vpop.f32.mrf.mxu0
        %v3526 = vadd.f32 %v3333, %v3525
        %v3527 = vpop.f32.mrf.mxu0
        %v3528 = vadd.f32 %v3335, %v3527
        %v3529 = vpop.f32.mrf.mxu0
        %v3530 = vadd.f32 %v3337, %v3529
        %3531 = vmatprep.mubr.bf16.mxu0 %v1132
        %3532 = vmatmul.mubr.bf16.gmra.mxu0 %v1120
        %v3533 = vpop.f32.mrf.mxu0
        %v3534 = vadd.f32 %v3341, %v3533
        %v3535 = vpop.f32.mrf.mxu0
        %v3536 = vadd.f32 %v3343, %v3535
        %v3537 = vpop.f32.mrf.mxu0
        %v3538 = vadd.f32 %v3345, %v3537
        %v3539 = vpop.f32.mrf.mxu0
        %v3540 = vadd.f32 %v3347, %v3539
        %3541 = vmatprep.mubr.bf16.mxu0 %v1156
        %3542 = vmatmul.mubr.bf16.gmra.mxu0 %v1144
        %v3543 = vpop.f32.mrf.mxu0
        %v3544 = vadd.f32 %v3351, %v3543
        %v3545 = vpop.f32.mrf.mxu0
        %v3546 = vadd.f32 %v3353, %v3545
        %v3547 = vpop.f32.mrf.mxu0
        %v3548 = vadd.f32 %v3355, %v3547
        %v3549 = vpop.f32.mrf.mxu0
        %v3550 = vadd.f32 %v3357, %v3549
        %3551 = vmatprep.mubr.bf16.mxu0 %v1180
        %3552 = vmatmul.mubr.bf16.gmra.mxu0 %v1168
        %v3553 = vpop.f32.mrf.mxu0
        %v3554 = vadd.f32 %v3361, %v3553
        %v3555 = vpop.f32.mrf.mxu0
        %v3556 = vadd.f32 %v3363, %v3555
        %v3557 = vpop.f32.mrf.mxu0
        %v3558 = vadd.f32 %v3365, %v3557
        %v3559 = vpop.f32.mrf.mxu0
        %v3560 = vadd.f32 %v3367, %v3559
        %3561 = vmatprep.mubr.bf16.mxu0 %v1204
        %3562 = vmatmul.mubr.bf16.gmra.mxu0 %v1192
        %v3563 = vpop.f32.mrf.mxu0
        %v3564 = vadd.f32 %v3371, %v3563
        %v3565 = vpop.f32.mrf.mxu0
        %v3566 = vadd.f32 %v3373, %v3565
        %v3567 = vpop.f32.mrf.mxu0
        %v3568 = vadd.f32 %v3375, %v3567
        %v3569 = vpop.f32.mrf.mxu0
        %v3570 = vadd.f32 %v3377, %v3569
        %3571 = vdwg.mxu0
        %3572 = vmatprep.subr.bf16.mxu0 %v3073
        %3573 = vmatpush1.bf16.msra.mxu0 %v3072
        %3574 = vmatprep.subr.bf16.mxu0 %v3071
        %3575 = vmatpush1.bf16.msra.mxu0 %v3070
        %3576 = vmatprep.subr.bf16.mxu0 %v3069
        %3577 = vmatpush1.bf16.msra.mxu0 %v3068
        %3578 = vmatprep.subr.bf16.mxu0 %v3067
        %3579 = vmatpush1.bf16.msra.mxu0 %v3066
        %3580 = vmatprep.subr.bf16.mxu0 %v3065
        %3581 = vmatpush1.bf16.msra.mxu0 %v3064
        %3582 = vmatprep.subr.bf16.mxu0 %v3063
        %3583 = vmatpush1.bf16.msra.mxu0 %v3062
        %3584 = vmatprep.subr.bf16.mxu0 %v3061
        %3585 = vmatpush1.bf16.msra.mxu0 %v3060
        %3586 = vmatprep.subr.bf16.mxu0 %v3059
        %3587 = vmatpush1.bf16.msra.mxu0 %v3058
        %3588 = vmatprep.subr.bf16.mxu0 %v3089
        %3589 = vmatpush2.bf16.msra.mxu0 %v3088
        %3590 = vmatprep.subr.bf16.mxu0 %v3087
        %3591 = vmatpush2.bf16.msra.mxu0 %v3086
        %3592 = vmatprep.subr.bf16.mxu0 %v3085
        %3593 = vmatpush2.bf16.msra.mxu0 %v3084
        %3594 = vmatprep.subr.bf16.mxu0 %v3083
        %3595 = vmatpush2.bf16.msra.mxu0 %v3082
        %3596 = vmatprep.subr.bf16.mxu0 %v3081
        %3597 = vmatpush2.bf16.msra.mxu0 %v3080
        %3598 = vmatprep.subr.bf16.mxu0 %v3079
        %3599 = vmatpush2.bf16.msra.mxu0 %v3078
        %3600 = vmatprep.subr.bf16.mxu0 %v3077
        %3601 = vmatpush2.bf16.msra.mxu0 %v3076
        %3602 = vmatprep.subr.bf16.mxu0 %v3075
        %3603 = vmatpush2.bf16.msra.mxu0 %v3074
        %3604 = vmatprep.mubr.bf16.mxu0 %v1337
        %3605 = vmatmul.mubr.bf16.gmra.mxu0 %v1334
        %v3606 = vpop.f32.mrf.mxu0
        %v3607 = vadd.f32 %v3414, %v3606
        %v3608 = vpop.f32.mrf.mxu0
        %v3609 = vadd.f32 %v3416, %v3608
        %v3610 = vpop.f32.mrf.mxu0
        %v3611 = vadd.f32 %v3418, %v3610
        %v3612 = vpop.f32.mrf.mxu0
        %v3613 = vadd.f32 %v3420, %v3612
        %3614 = vmatprep.mubr.bf16.mxu0 %v1331
        %3615 = vmatmul.mubr.bf16.gmra.mxu0 %v1328
        %v3616 = vpop.f32.mrf.mxu0
        %v3617 = vadd.f32 %v3424, %v3616
        %v3618 = vpop.f32.mrf.mxu0
        %v3619 = vadd.f32 %v3426, %v3618
        %v3620 = vpop.f32.mrf.mxu0
        %v3621 = vadd.f32 %v3428, %v3620
        %v3622 = vpop.f32.mrf.mxu0
        %v3623 = vadd.f32 %v3430, %v3622
        %3624 = vmatprep.mubr.bf16.mxu0 %v1337
        %3625 = vmatmul.mubr.bf16.gmra.mxu0 %v1334
        %v3626 = vpop.f32.mrf.mxu0
        %v3627 = vadd.f32 %v3434, %v3626
        %v3628 = vpop.f32.mrf.mxu0
        %v3629 = vadd.f32 %v3436, %v3628
        %v3630 = vpop.f32.mrf.mxu0
        %v3631 = vadd.f32 %v3438, %v3630
        %v3632 = vpop.f32.mrf.mxu0
        %v3633 = vadd.f32 %v3440, %v3632
        %3634 = vmatprep.mubr.bf16.mxu0 %v1343
        %3635 = vmatmul.mubr.bf16.gmra.mxu0 %v1340
        %v3636 = vpop.f32.mrf.mxu0
        %v3637 = vadd.f32 %v3444, %v3636
        %v3638 = vpop.f32.mrf.mxu0
        %v3639 = vadd.f32 %v3446, %v3638
        %v3640 = vpop.f32.mrf.mxu0
        %v3641 = vadd.f32 %v3448, %v3640
        %v3642 = vpop.f32.mrf.mxu0
        %v3643 = vadd.f32 %v3450, %v3642
        %3644 = vmatprep.mubr.bf16.mxu0 %v1349
        %3645 = vmatmul.mubr.bf16.gmra.mxu0 %v1346
        %v3646 = vpop.f32.mrf.mxu0
        %v3647 = vadd.f32 %v3454, %v3646
        %v3648 = vpop.f32.mrf.mxu0
        %v3649 = vadd.f32 %v3456, %v3648
        %v3650 = vpop.f32.mrf.mxu0
        %v3651 = vadd.f32 %v3458, %v3650
        %v3652 = vpop.f32.mrf.mxu0
        %v3653 = vadd.f32 %v3460, %v3652
        %3654 = vmatprep.mubr.bf16.mxu0 %v1355
        %3655 = vmatmul.mubr.bf16.gmra.mxu0 %v1352
        %v3656 = vpop.f32.mrf.mxu0
        %v3657 = vadd.f32 %v3464, %v3656
        %v3658 = vpop.f32.mrf.mxu0
        %v3659 = vadd.f32 %v3466, %v3658
        %v3660 = vpop.f32.mrf.mxu0
        %v3661 = vadd.f32 %v3468, %v3660
        %v3662 = vpop.f32.mrf.mxu0
        %v3663 = vadd.f32 %v3470, %v3662
        %3664 = vmatprep.mubr.bf16.mxu0 %v1361
        %3665 = vmatmul.mubr.bf16.gmra.mxu0 %v1358
        %v3666 = vpop.f32.mrf.mxu0
        %v3667 = vadd.f32 %v3474, %v3666
        %v3668 = vpop.f32.mrf.mxu0
        %v3669 = vadd.f32 %v3476, %v3668
        %v3670 = vpop.f32.mrf.mxu0
        %v3671 = vadd.f32 %v3478, %v3670
        %v3672 = vpop.f32.mrf.mxu0
        %v3673 = vadd.f32 %v3480, %v3672
        %3674 = vmatprep.mubr.bf16.mxu0 %v1367
        %3675 = vmatmul.mubr.bf16.gmra.mxu0 %v1364
        %v3676 = vpop.f32.mrf.mxu0
        %v3677 = vadd.f32 %v3484, %v3676
        %v3678 = vpop.f32.mrf.mxu0
        %v3679 = vadd.f32 %v3486, %v3678
        %v3680 = vpop.f32.mrf.mxu0
        %v3681 = vadd.f32 %v3488, %v3680
        %v3682 = vpop.f32.mrf.mxu0
        %v3683 = vadd.f32 %v3490, %v3682
        %3684 = vmatprep.mubr.bf16.mxu0 %v1373
        %3685 = vmatmul.mubr.bf16.gmra.mxu0 %v1370
        %v3686 = vpop.f32.mrf.mxu0
        %v3687 = vadd.f32 %v3494, %v3686
        %v3688 = vpop.f32.mrf.mxu0
        %v3689 = vadd.f32 %v3496, %v3688
        %v3690 = vpop.f32.mrf.mxu0
        %v3691 = vadd.f32 %v3498, %v3690
        %v3692 = vpop.f32.mrf.mxu0
        %v3693 = vadd.f32 %v3500, %v3692
        %3694 = vmatprep.mubr.bf16.mxu0 %v1379
        %3695 = vmatmul.mubr.bf16.gmra.mxu0 %v1376
        %v3696 = vpop.f32.mrf.mxu0
        %v3697 = vadd.f32 %v3504, %v3696
        %v3698 = vpop.f32.mrf.mxu0
        %v3699 = vadd.f32 %v3506, %v3698
        %v3700 = vpop.f32.mrf.mxu0
        %v3701 = vadd.f32 %v3508, %v3700
        %v3702 = vpop.f32.mrf.mxu0
        %v3703 = vadd.f32 %v3510, %v3702
        %3704 = vmatprep.mubr.bf16.mxu0 %v1385
        %3705 = vmatmul.mubr.bf16.gmra.mxu0 %v1382
        %v3706 = vpop.f32.mrf.mxu0
        %v3707 = vadd.f32 %v3514, %v3706
        %v3708 = vpop.f32.mrf.mxu0
        %v3709 = vadd.f32 %v3516, %v3708
        %v3710 = vpop.f32.mrf.mxu0
        %v3711 = vadd.f32 %v3518, %v3710
        %v3712 = vpop.f32.mrf.mxu0
        %v3713 = vadd.f32 %v3520, %v3712
        %3714 = vmatprep.mubr.bf16.mxu0 %v1391
        %3715 = vmatmul.mubr.bf16.gmra.mxu0 %v1388
        %v3716 = vpop.f32.mrf.mxu0
        %v3717 = vadd.f32 %v3524, %v3716
        %v3718 = vpop.f32.mrf.mxu0
        %v3719 = vadd.f32 %v3526, %v3718
        %v3720 = vpop.f32.mrf.mxu0
        %v3721 = vadd.f32 %v3528, %v3720
        %v3722 = vpop.f32.mrf.mxu0
        %v3723 = vadd.f32 %v3530, %v3722
        %3724 = vmatprep.mubr.bf16.mxu0 %v1397
        %3725 = vmatmul.mubr.bf16.gmra.mxu0 %v1394
        %v3726 = vpop.f32.mrf.mxu0
        %v3727 = vadd.f32 %v3534, %v3726
        %v3728 = vpop.f32.mrf.mxu0
        %v3729 = vadd.f32 %v3536, %v3728
        %v3730 = vpop.f32.mrf.mxu0
        %v3731 = vadd.f32 %v3538, %v3730
        %v3732 = vpop.f32.mrf.mxu0
        %v3733 = vadd.f32 %v3540, %v3732
        %3734 = vmatprep.mubr.bf16.mxu0 %v1403
        %3735 = vmatmul.mubr.bf16.gmra.mxu0 %v1400
        %v3736 = vpop.f32.mrf.mxu0
        %v3737 = vadd.f32 %v3544, %v3736
        %v3738 = vpop.f32.mrf.mxu0
        %v3739 = vadd.f32 %v3546, %v3738
        %v3740 = vpop.f32.mrf.mxu0
        %v3741 = vadd.f32 %v3548, %v3740
        %v3742 = vpop.f32.mrf.mxu0
        %v3743 = vadd.f32 %v3550, %v3742
        %3744 = vmatprep.mubr.bf16.mxu0 %v1409
        %3745 = vmatmul.mubr.bf16.gmra.mxu0 %v1406
        %v3746 = vpop.f32.mrf.mxu0
        %v3747 = vadd.f32 %v3554, %v3746
        %v3748 = vpop.f32.mrf.mxu0
        %v3749 = vadd.f32 %v3556, %v3748
        %v3750 = vpop.f32.mrf.mxu0
        %v3751 = vadd.f32 %v3558, %v3750
        %v3752 = vpop.f32.mrf.mxu0
        %v3753 = vadd.f32 %v3560, %v3752
        %3754 = vmatprep.mubr.bf16.mxu0 %v1415
        %3755 = vmatmul.mubr.bf16.gmra.mxu0 %v1412
        %v3756 = vpop.f32.mrf.mxu0
        %v3757 = vadd.f32 %v3564, %v3756
        %v3758 = vpop.f32.mrf.mxu0
        %v3759 = vadd.f32 %v3566, %v3758
        %v3760 = vpop.f32.mrf.mxu0
        %v3761 = vadd.f32 %v3568, %v3760
        %v3762 = vpop.f32.mrf.mxu0
        %v3763 = vadd.f32 %v3570, %v3762
        %3764 = vdwg.mxu0
        %s3765 = scalar_lea.vmem [#allocation5], 1536
        %v3766 = vld [vmem:[%s3765] sm:$0xff]
        %v3767 = vld [vmem:[%s3765 + $0x8] sm:$0xff]
        %v3768 = vld [vmem:[%s3765 + $0x10] sm:$0xff]
        %v3769 = vld [vmem:[%s3765 + $0x18] sm:$0xff]
        %v3770 = vld [vmem:[%s3765 + $0x20] sm:$0xff]
        %v3771 = vld [vmem:[%s3765 + $0x28] sm:$0xff]
        %v3772 = vld [vmem:[%s3765 + $0x30] sm:$0xff]
        %v3773 = vld [vmem:[%s3765 + $0x38] sm:$0xff]
        %v3774 = vld [vmem:[%s3765 + $0x40] sm:$0xff]
        %v3775 = vld [vmem:[%s3765 + $0x48] sm:$0xff]
        %v3776 = vld [vmem:[%s3765 + $0x50] sm:$0xff]
        %v3777 = vld [vmem:[%s3765 + $0x58] sm:$0xff]
        %v3778 = vld [vmem:[%s3765 + $0x60] sm:$0xff]
        %v3779 = vld [vmem:[%s3765 + $0x68] sm:$0xff]
        %v3780 = vld [vmem:[%s3765 + $0x70] sm:$0xff]
        %v3781 = vld [vmem:[%s3765 + $0x78] sm:$0xff]
        %v3782 = vld [vmem:[%s3765 + $0x80] sm:$0xff]
        %v3783 = vld [vmem:[%s3765 + $0x88] sm:$0xff]
        %v3784 = vld [vmem:[%s3765 + $0x90] sm:$0xff]
        %v3785 = vld [vmem:[%s3765 + $0x98] sm:$0xff]
        %v3786 = vld [vmem:[%s3765 + $0xa0] sm:$0xff]
        %v3787 = vld [vmem:[%s3765 + $0xa8] sm:$0xff]
        %v3788 = vld [vmem:[%s3765 + $0xb0] sm:$0xff]
        %v3789 = vld [vmem:[%s3765 + $0xb8] sm:$0xff]
        %v3790 = vld [vmem:[%s3765 + $0xc0] sm:$0xff]
        %v3791 = vld [vmem:[%s3765 + $0xc8] sm:$0xff]
        %v3792 = vld [vmem:[%s3765 + $0xd0] sm:$0xff]
        %v3793 = vld [vmem:[%s3765 + $0xd8] sm:$0xff]
        %v3794 = vld [vmem:[%s3765 + $0xe0] sm:$0xff]
        %v3795 = vld [vmem:[%s3765 + $0xe8] sm:$0xff]
        %v3796 = vld [vmem:[%s3765 + $0xf0] sm:$0xff]
        %v3797 = vld [vmem:[%s3765 + $0xf8] sm:$0xff]
        %v3798 = vld [vmem:[%s3765 + $0x100] sm:$0xff]
        %v3799 = vld [vmem:[%s3765 + $0x108] sm:$0xff]
        %v3800 = vld [vmem:[%s3765 + $0x110] sm:$0xff]
        %v3801 = vld [vmem:[%s3765 + $0x118] sm:$0xff]
        %v3802 = vld [vmem:[%s3765 + $0x120] sm:$0xff]
        %v3803 = vld [vmem:[%s3765 + $0x128] sm:$0xff]
        %v3804 = vld [vmem:[%s3765 + $0x130] sm:$0xff]
        %v3805 = vld [vmem:[%s3765 + $0x138] sm:$0xff]
        %v3806 = vld [vmem:[%s3765 + $0x140] sm:$0xff]
        %v3807 = vld [vmem:[%s3765 + $0x148] sm:$0xff]
        %v3808 = vld [vmem:[%s3765 + $0x150] sm:$0xff]
        %v3809 = vld [vmem:[%s3765 + $0x158] sm:$0xff]
        %v3810 = vld [vmem:[%s3765 + $0x160] sm:$0xff]
        %v3811 = vld [vmem:[%s3765 + $0x168] sm:$0xff]
        %v3812 = vld [vmem:[%s3765 + $0x170] sm:$0xff]
        %v3813 = vld [vmem:[%s3765 + $0x178] sm:$0xff]
        %v3814 = vld [vmem:[%s3765 + $0x180] sm:$0xff]
        %v3815 = vld [vmem:[%s3765 + $0x188] sm:$0xff]
        %v3816 = vld [vmem:[%s3765 + $0x190] sm:$0xff]
        %v3817 = vld [vmem:[%s3765 + $0x198] sm:$0xff]
        %v3818 = vld [vmem:[%s3765 + $0x1a0] sm:$0xff]
        %v3819 = vld [vmem:[%s3765 + $0x1a8] sm:$0xff]
        %v3820 = vld [vmem:[%s3765 + $0x1b0] sm:$0xff]
        %v3821 = vld [vmem:[%s3765 + $0x1b8] sm:$0xff]
        %v3822 = vld [vmem:[%s3765 + $0x1c0] sm:$0xff]
        %v3823 = vld [vmem:[%s3765 + $0x1c8] sm:$0xff]
        %v3824 = vld [vmem:[%s3765 + $0x1d0] sm:$0xff]
        %v3825 = vld [vmem:[%s3765 + $0x1d8] sm:$0xff]
        %v3826 = vld [vmem:[%s3765 + $0x1e0] sm:$0xff]
        %v3827 = vld [vmem:[%s3765 + $0x1e8] sm:$0xff]
        %v3828 = vld [vmem:[%s3765 + $0x1f0] sm:$0xff]
        %v3829 = vld [vmem:[%s3765 + $0x1f8] sm:$0xff]
        %v3830 = vld [vmem:[%s3765 + $0x200] sm:$0xff]
        %v3831 = vld [vmem:[%s3765 + $0x208] sm:$0xff]
        %v3832 = vld [vmem:[%s3765 + $0x210] sm:$0xff]
        %v3833 = vld [vmem:[%s3765 + $0x218] sm:$0xff]
        %v3834 = vld [vmem:[%s3765 + $0x220] sm:$0xff]
        %v3835 = vld [vmem:[%s3765 + $0x228] sm:$0xff]
        %v3836 = vld [vmem:[%s3765 + $0x230] sm:$0xff]
        %v3837 = vld [vmem:[%s3765 + $0x238] sm:$0xff]
        %v3838 = vld [vmem:[%s3765 + $0x240] sm:$0xff]
        %v3839 = vld [vmem:[%s3765 + $0x248] sm:$0xff]
        %v3840 = vld [vmem:[%s3765 + $0x250] sm:$0xff]
        %v3841 = vld [vmem:[%s3765 + $0x258] sm:$0xff]
        %v3842 = vld [vmem:[%s3765 + $0x260] sm:$0xff]
        %v3843 = vld [vmem:[%s3765 + $0x268] sm:$0xff]
        %v3844 = vld [vmem:[%s3765 + $0x270] sm:$0xff]
        %v3845 = vld [vmem:[%s3765 + $0x278] sm:$0xff]
        %v3846 = vld [vmem:[%s3765 + $0x280] sm:$0xff]
        %v3847 = vld [vmem:[%s3765 + $0x288] sm:$0xff]
        %v3848 = vld [vmem:[%s3765 + $0x290] sm:$0xff]
        %v3849 = vld [vmem:[%s3765 + $0x298] sm:$0xff]
        %v3850 = vld [vmem:[%s3765 + $0x2a0] sm:$0xff]
        %v3851 = vld [vmem:[%s3765 + $0x2a8] sm:$0xff]
        %v3852 = vld [vmem:[%s3765 + $0x2b0] sm:$0xff]
        %v3853 = vld [vmem:[%s3765 + $0x2b8] sm:$0xff]
        %v3854 = vld [vmem:[%s3765 + $0x2c0] sm:$0xff]
        %v3855 = vld [vmem:[%s3765 + $0x2c8] sm:$0xff]
        %v3856 = vld [vmem:[%s3765 + $0x2d0] sm:$0xff]
        %v3857 = vld [vmem:[%s3765 + $0x2d8] sm:$0xff]
        %v3858 = vld [vmem:[%s3765 + $0x2e0] sm:$0xff]
        %v3859 = vld [vmem:[%s3765 + $0x2e8] sm:$0xff]
        %v3860 = vld [vmem:[%s3765 + $0x2f0] sm:$0xff]
        %v3861 = vld [vmem:[%s3765 + $0x2f8] sm:$0xff]
        %v3958 = vunpack.c.l.b16 %v3766
        %v3959 = vunpack.c.h.b16 %v3766
        %v3960 = vunpack.c.l.b16 %v3767
        %v3961 = vunpack.c.h.b16 %v3767
        %v3962 = vunpack.c.l.b16 %v3768
        %v3963 = vunpack.c.h.b16 %v3768
        %v3964 = vunpack.c.l.b16 %v3769
        %v3965 = vunpack.c.h.b16 %v3769
        %v3966 = vunpack.c.l.b16 %v3770
        %v3967 = vunpack.c.h.b16 %v3770
        %v3968 = vunpack.c.l.b16 %v3771
        %v3969 = vunpack.c.h.b16 %v3771
        %v3970 = vunpack.c.l.b16 %v3772
        %v3971 = vunpack.c.h.b16 %v3772
        %v3972 = vunpack.c.l.b16 %v3773
        %v3973 = vunpack.c.h.b16 %v3773
        %v3974 = vunpack.c.l.b16 %v3774
        %v3975 = vunpack.c.h.b16 %v3774
        %v3976 = vunpack.c.l.b16 %v3775
        %v3977 = vunpack.c.h.b16 %v3775
        %v3978 = vunpack.c.l.b16 %v3776
        %v3979 = vunpack.c.h.b16 %v3776
        %v3980 = vunpack.c.l.b16 %v3777
        %v3981 = vunpack.c.h.b16 %v3777
        %v3982 = vunpack.c.l.b16 %v3778
        %v3983 = vunpack.c.h.b16 %v3778
        %v3984 = vunpack.c.l.b16 %v3779
        %v3985 = vunpack.c.h.b16 %v3779
        %v3986 = vunpack.c.l.b16 %v3780
        %v3987 = vunpack.c.h.b16 %v3780
        %v3988 = vunpack.c.l.b16 %v3781
        %v3989 = vunpack.c.h.b16 %v3781
        %v3990 = vunpack.c.l.b16 %v3782
        %v3991 = vunpack.c.h.b16 %v3782
        %v3992 = vunpack.c.l.b16 %v3783
        %v3993 = vunpack.c.h.b16 %v3783
        %v3994 = vunpack.c.l.b16 %v3784
        %v3995 = vunpack.c.h.b16 %v3784
        %v3996 = vunpack.c.l.b16 %v3785
        %v3997 = vunpack.c.h.b16 %v3785
        %v3998 = vunpack.c.l.b16 %v3786
        %v3999 = vunpack.c.h.b16 %v3786
        %v4000 = vunpack.c.l.b16 %v3787
        %v4001 = vunpack.c.h.b16 %v3787
        %v4002 = vunpack.c.l.b16 %v3788
        %v4003 = vunpack.c.h.b16 %v3788
        %v4004 = vunpack.c.l.b16 %v3789
        %v4005 = vunpack.c.h.b16 %v3789
        %v4006 = vunpack.c.l.b16 %v3790
        %v4007 = vunpack.c.h.b16 %v3790
        %v4008 = vunpack.c.l.b16 %v3791
        %v4009 = vunpack.c.h.b16 %v3791
        %v4010 = vunpack.c.l.b16 %v3792
        %v4011 = vunpack.c.h.b16 %v3792
        %v4012 = vunpack.c.l.b16 %v3793
        %v4013 = vunpack.c.h.b16 %v3793
        %v4014 = vunpack.c.l.b16 %v3794
        %v4015 = vunpack.c.h.b16 %v3794
        %v4016 = vunpack.c.l.b16 %v3795
        %v4017 = vunpack.c.h.b16 %v3795
        %v4018 = vunpack.c.l.b16 %v3796
        %v4019 = vunpack.c.h.b16 %v3796
        %v4020 = vunpack.c.l.b16 %v3797
        %v4021 = vunpack.c.h.b16 %v3797
        %v4022 = vunpack.c.l.b16 %v3798
        %v4023 = vunpack.c.h.b16 %v3798
        %v4024 = vunpack.c.l.b16 %v3799
        %v4025 = vunpack.c.h.b16 %v3799
        %v4026 = vunpack.c.l.b16 %v3800
        %v4027 = vunpack.c.h.b16 %v3800
        %v4028 = vunpack.c.l.b16 %v3801
        %v4029 = vunpack.c.h.b16 %v3801
        %v4030 = vunpack.c.l.b16 %v3802
        %v4031 = vunpack.c.h.b16 %v3802
        %v4032 = vunpack.c.l.b16 %v3803
        %v4033 = vunpack.c.h.b16 %v3803
        %v4034 = vunpack.c.l.b16 %v3804
        %v4035 = vunpack.c.h.b16 %v3804
        %v4036 = vunpack.c.l.b16 %v3805
        %v4037 = vunpack.c.h.b16 %v3805
        %v4038 = vunpack.c.l.b16 %v3806
        %v4039 = vunpack.c.h.b16 %v3806
        %v4040 = vunpack.c.l.b16 %v3807
        %v4041 = vunpack.c.h.b16 %v3807
        %v4042 = vunpack.c.l.b16 %v3808
        %v4043 = vunpack.c.h.b16 %v3808
        %v4044 = vunpack.c.l.b16 %v3809
        %v4045 = vunpack.c.h.b16 %v3809
        %v4046 = vunpack.c.l.b16 %v3810
        %v4047 = vunpack.c.h.b16 %v3810
        %v4048 = vunpack.c.l.b16 %v3811
        %v4049 = vunpack.c.h.b16 %v3811
        %v4050 = vunpack.c.l.b16 %v3812
        %v4051 = vunpack.c.h.b16 %v3812
        %v4052 = vunpack.c.l.b16 %v3813
        %v4053 = vunpack.c.h.b16 %v3813
        %v4054 = vunpack.c.l.b16 %v3814
        %v4055 = vunpack.c.h.b16 %v3814
        %v4056 = vunpack.c.l.b16 %v3815
        %v4057 = vunpack.c.h.b16 %v3815
        %v4058 = vunpack.c.l.b16 %v3816
        %v4059 = vunpack.c.h.b16 %v3816
        %v4060 = vunpack.c.l.b16 %v3817
        %v4061 = vunpack.c.h.b16 %v3817
        %v4062 = vunpack.c.l.b16 %v3818
        %v4063 = vunpack.c.h.b16 %v3818
        %v4064 = vunpack.c.l.b16 %v3819
        %v4065 = vunpack.c.h.b16 %v3819
        %v4066 = vunpack.c.l.b16 %v3820
        %v4067 = vunpack.c.h.b16 %v3820
        %v4068 = vunpack.c.l.b16 %v3821
        %v4069 = vunpack.c.h.b16 %v3821
        %v4070 = vunpack.c.l.b16 %v3822
        %v4071 = vunpack.c.h.b16 %v3822
        %v4072 = vunpack.c.l.b16 %v3823
        %v4073 = vunpack.c.h.b16 %v3823
        %v4074 = vunpack.c.l.b16 %v3824
        %v4075 = vunpack.c.h.b16 %v3824
        %v4076 = vunpack.c.l.b16 %v3825
        %v4077 = vunpack.c.h.b16 %v3825
        %v4078 = vunpack.c.l.b16 %v3826
        %v4079 = vunpack.c.h.b16 %v3826
        %v4080 = vunpack.c.l.b16 %v3827
        %v4081 = vunpack.c.h.b16 %v3827
        %v4082 = vunpack.c.l.b16 %v3828
        %v4083 = vunpack.c.h.b16 %v3828
        %v4084 = vunpack.c.l.b16 %v3829
        %v4085 = vunpack.c.h.b16 %v3829
        %v4086 = vunpack.c.l.b16 %v3830
        %v4087 = vunpack.c.h.b16 %v3830
        %v4088 = vunpack.c.l.b16 %v3831
        %v4089 = vunpack.c.h.b16 %v3831
        %v4090 = vunpack.c.l.b16 %v3832
        %v4091 = vunpack.c.h.b16 %v3832
        %v4092 = vunpack.c.l.b16 %v3833
        %v4093 = vunpack.c.h.b16 %v3833
        %v4094 = vunpack.c.l.b16 %v3834
        %v4095 = vunpack.c.h.b16 %v3834
        %v4096 = vunpack.c.l.b16 %v3835
        %v4097 = vunpack.c.h.b16 %v3835
        %v4098 = vunpack.c.l.b16 %v3836
        %v4099 = vunpack.c.h.b16 %v3836
        %v4100 = vunpack.c.l.b16 %v3837
        %v4101 = vunpack.c.h.b16 %v3837
        %v4102 = vunpack.c.l.b16 %v3838
        %v4103 = vunpack.c.h.b16 %v3838
        %v4104 = vunpack.c.l.b16 %v3839
        %v4105 = vunpack.c.h.b16 %v3839
        %v4106 = vunpack.c.l.b16 %v3840
        %v4107 = vunpack.c.h.b16 %v3840
        %v4108 = vunpack.c.l.b16 %v3841
        %v4109 = vunpack.c.h.b16 %v3841
        %v4110 = vunpack.c.l.b16 %v3842
        %v4111 = vunpack.c.h.b16 %v3842
        %v4112 = vunpack.c.l.b16 %v3843
        %v4113 = vunpack.c.h.b16 %v3843
        %v4114 = vunpack.c.l.b16 %v3844
        %v4115 = vunpack.c.h.b16 %v3844
        %v4116 = vunpack.c.l.b16 %v3845
        %v4117 = vunpack.c.h.b16 %v3845
        %v4118 = vunpack.c.l.b16 %v3846
        %v4119 = vunpack.c.h.b16 %v3846
        %v4120 = vunpack.c.l.b16 %v3847
        %v4121 = vunpack.c.h.b16 %v3847
        %v4122 = vunpack.c.l.b16 %v3848
        %v4123 = vunpack.c.h.b16 %v3848
        %v4124 = vunpack.c.l.b16 %v3849
        %v4125 = vunpack.c.h.b16 %v3849
        %v4126 = vunpack.c.l.b16 %v3850
        %v4127 = vunpack.c.h.b16 %v3850
        %v4128 = vunpack.c.l.b16 %v3851
        %v4129 = vunpack.c.h.b16 %v3851
        %v4130 = vunpack.c.l.b16 %v3852
        %v4131 = vunpack.c.h.b16 %v3852
        %v4132 = vunpack.c.l.b16 %v3853
        %v4133 = vunpack.c.h.b16 %v3853
        %v4134 = vunpack.c.l.b16 %v3854
        %v4135 = vunpack.c.h.b16 %v3854
        %v4136 = vunpack.c.l.b16 %v3855
        %v4137 = vunpack.c.h.b16 %v3855
        %v4138 = vunpack.c.l.b16 %v3856
        %v4139 = vunpack.c.h.b16 %v3856
        %v4140 = vunpack.c.l.b16 %v3857
        %v4141 = vunpack.c.h.b16 %v3857
        %v4142 = vunpack.c.l.b16 %v3858
        %v4143 = vunpack.c.h.b16 %v3858
        %v4144 = vunpack.c.l.b16 %v3859
        %v4145 = vunpack.c.h.b16 %v3859
        %v4146 = vunpack.c.l.b16 %v3860
        %v4147 = vunpack.c.h.b16 %v3860
        %v4148 = vunpack.c.l.b16 %v3861
        %v4149 = vunpack.c.h.b16 %v3861
        %v4150 = vpack.c.b16 %v3960, %v3958
        %v4151 = vpack.c.b16 %v3961, %v3959
        %v4152 = vpack.c.b16 %v3964, %v3962
        %v4153 = vpack.c.b16 %v3965, %v3963
        %v4154 = vpack.c.b16 %v3968, %v3966
        %v4155 = vpack.c.b16 %v3969, %v3967
        %v4156 = vpack.c.b16 %v3972, %v3970
        %v4157 = vpack.c.b16 %v3973, %v3971
        %v4158 = vpack.c.b16 %v3976, %v3974
        %v4159 = vpack.c.b16 %v3977, %v3975
        %v4160 = vpack.c.b16 %v3980, %v3978
        %v4161 = vpack.c.b16 %v3981, %v3979
        %v4162 = vpack.c.b16 %v3984, %v3982
        %v4163 = vpack.c.b16 %v3985, %v3983
        %v4164 = vpack.c.b16 %v3988, %v3986
        %v4165 = vpack.c.b16 %v3989, %v3987
        %v4166 = vpack.c.b16 %v3992, %v3990
        %v4167 = vpack.c.b16 %v3993, %v3991
        %v4168 = vpack.c.b16 %v3996, %v3994
        %v4169 = vpack.c.b16 %v3997, %v3995
        %v4170 = vpack.c.b16 %v4000, %v3998
        %v4171 = vpack.c.b16 %v4001, %v3999
        %v4172 = vpack.c.b16 %v4004, %v4002
        %v4173 = vpack.c.b16 %v4005, %v4003
        %v4174 = vpack.c.b16 %v4008, %v4006
        %v4175 = vpack.c.b16 %v4009, %v4007
        %v4176 = vpack.c.b16 %v4012, %v4010
        %v4177 = vpack.c.b16 %v4013, %v4011
        %v4178 = vpack.c.b16 %v4016, %v4014
        %v4179 = vpack.c.b16 %v4017, %v4015
        %v4180 = vpack.c.b16 %v4020, %v4018
        %v4181 = vpack.c.b16 %v4021, %v4019
        %v4182 = vpack.c.b16 %v4024, %v4022
        %v4183 = vpack.c.b16 %v4025, %v4023
        %v4184 = vpack.c.b16 %v4028, %v4026
        %v4185 = vpack.c.b16 %v4029, %v4027
        %v4186 = vpack.c.b16 %v4032, %v4030
        %v4187 = vpack.c.b16 %v4033, %v4031
        %v4188 = vpack.c.b16 %v4036, %v4034
        %v4189 = vpack.c.b16 %v4037, %v4035
        %v4190 = vpack.c.b16 %v4040, %v4038
        %v4191 = vpack.c.b16 %v4041, %v4039
        %v4192 = vpack.c.b16 %v4044, %v4042
        %v4193 = vpack.c.b16 %v4045, %v4043
        %v4194 = vpack.c.b16 %v4048, %v4046
        %v4195 = vpack.c.b16 %v4049, %v4047
        %v4196 = vpack.c.b16 %v4052, %v4050
        %v4197 = vpack.c.b16 %v4053, %v4051
        %v4198 = vpack.c.b16 %v4056, %v4054
        %v4199 = vpack.c.b16 %v4057, %v4055
        %v4200 = vpack.c.b16 %v4060, %v4058
        %v4201 = vpack.c.b16 %v4061, %v4059
        %v4202 = vpack.c.b16 %v4064, %v4062
        %v4203 = vpack.c.b16 %v4065, %v4063
        %v4204 = vpack.c.b16 %v4068, %v4066
        %v4205 = vpack.c.b16 %v4069, %v4067
        %v4206 = vpack.c.b16 %v4072, %v4070
        %v4207 = vpack.c.b16 %v4073, %v4071
        %v4208 = vpack.c.b16 %v4076, %v4074
        %v4209 = vpack.c.b16 %v4077, %v4075
        %v4210 = vpack.c.b16 %v4080, %v4078
        %v4211 = vpack.c.b16 %v4081, %v4079
        %v4212 = vpack.c.b16 %v4084, %v4082
        %v4213 = vpack.c.b16 %v4085, %v4083
        %v4214 = vpack.c.b16 %v4088, %v4086
        %v4215 = vpack.c.b16 %v4089, %v4087
        %v4216 = vpack.c.b16 %v4092, %v4090
        %v4217 = vpack.c.b16 %v4093, %v4091
        %v4218 = vpack.c.b16 %v4096, %v4094
        %v4219 = vpack.c.b16 %v4097, %v4095
        %v4220 = vpack.c.b16 %v4100, %v4098
        %v4221 = vpack.c.b16 %v4101, %v4099
        %v4222 = vpack.c.b16 %v4104, %v4102
        %v4223 = vpack.c.b16 %v4105, %v4103
        %v4224 = vpack.c.b16 %v4108, %v4106
        %v4225 = vpack.c.b16 %v4109, %v4107
        %v4226 = vpack.c.b16 %v4112, %v4110
        %v4227 = vpack.c.b16 %v4113, %v4111
        %v4228 = vpack.c.b16 %v4116, %v4114
        %v4229 = vpack.c.b16 %v4117, %v4115
        %v4230 = vpack.c.b16 %v4120, %v4118
        %v4231 = vpack.c.b16 %v4121, %v4119
        %v4232 = vpack.c.b16 %v4124, %v4122
        %v4233 = vpack.c.b16 %v4125, %v4123
        %v4234 = vpack.c.b16 %v4128, %v4126
        %v4235 = vpack.c.b16 %v4129, %v4127
        %v4236 = vpack.c.b16 %v4132, %v4130
        %v4237 = vpack.c.b16 %v4133, %v4131
        %v4238 = vpack.c.b16 %v4136, %v4134
        %v4239 = vpack.c.b16 %v4137, %v4135
        %v4240 = vpack.c.b16 %v4140, %v4138
        %v4241 = vpack.c.b16 %v4141, %v4139
        %v4242 = vpack.c.b16 %v4144, %v4142
        %v4243 = vpack.c.b16 %v4145, %v4143
        %v4244 = vpack.c.b16 %v4148, %v4146
        %v4245 = vpack.c.b16 %v4149, %v4147
        %4342 = vmatprep.subr.bf16.mxu0 %v4165
        %4343 = vmatpush1.bf16.msra.mxu0 %v4164
        %4344 = vmatprep.subr.bf16.mxu0 %v4163
        %4345 = vmatpush1.bf16.msra.mxu0 %v4162
        %4346 = vmatprep.subr.bf16.mxu0 %v4161
        %4347 = vmatpush1.bf16.msra.mxu0 %v4160
        %4348 = vmatprep.subr.bf16.mxu0 %v4159
        %4349 = vmatpush1.bf16.msra.mxu0 %v4158
        %4350 = vmatprep.subr.bf16.mxu0 %v4157
        %4351 = vmatpush1.bf16.msra.mxu0 %v4156
        %4352 = vmatprep.subr.bf16.mxu0 %v4155
        %4353 = vmatpush1.bf16.msra.mxu0 %v4154
        %4354 = vmatprep.subr.bf16.mxu0 %v4153
        %4355 = vmatpush1.bf16.msra.mxu0 %v4152
        %4356 = vmatprep.subr.bf16.mxu0 %v4151
        %4357 = vmatpush1.bf16.msra.mxu0 %v4150
        %4358 = vmatprep.subr.bf16.mxu0 %v4181
        %4359 = vmatpush2.bf16.msra.mxu0 %v4180
        %4360 = vmatprep.subr.bf16.mxu0 %v4179
        %4361 = vmatpush2.bf16.msra.mxu0 %v4178
        %4362 = vmatprep.subr.bf16.mxu0 %v4177
        %4363 = vmatpush2.bf16.msra.mxu0 %v4176
        %4364 = vmatprep.subr.bf16.mxu0 %v4175
        %4365 = vmatpush2.bf16.msra.mxu0 %v4174
        %4366 = vmatprep.subr.bf16.mxu0 %v4173
        %4367 = vmatpush2.bf16.msra.mxu0 %v4172
        %4368 = vmatprep.subr.bf16.mxu0 %v4171
        %4369 = vmatpush2.bf16.msra.mxu0 %v4170
        %4370 = vmatprep.subr.bf16.mxu0 %v4169
        %4371 = vmatpush2.bf16.msra.mxu0 %v4168
        %4372 = vmatprep.subr.bf16.mxu0 %v4167
        %4373 = vmatpush2.bf16.msra.mxu0 %v4166
        %4374 = vmatprep.mubr.bf16.mxu0 %v783
        %4375 = vmatmul.mubr.bf16.gmra.mxu0 %v782
        %v4376 = vpop.f32.mrf.mxu0
        %v4377 = vadd.f32 0.0, %v4376
        %v4378 = vpop.f32.mrf.mxu0
        %v4379 = vadd.f32 0.0, %v4378
        %v4380 = vpop.f32.mrf.mxu0
        %v4381 = vadd.f32 0.0, %v4380
        %v4382 = vpop.f32.mrf.mxu0
        %v4383 = vadd.f32 0.0, %v4382
        %4384 = vmatprep.mubr.bf16.mxu0 %v785
        %4385 = vmatmul.mubr.bf16.gmra.mxu0 %v784
        %v4386 = vpop.f32.mrf.mxu0
        %v4387 = vadd.f32 0.0, %v4386
        %v4388 = vpop.f32.mrf.mxu0
        %v4389 = vadd.f32 0.0, %v4388
        %v4390 = vpop.f32.mrf.mxu0
        %v4391 = vadd.f32 0.0, %v4390
        %v4392 = vpop.f32.mrf.mxu0
        %v4393 = vadd.f32 0.0, %v4392
        %4394 = vmatprep.mubr.bf16.mxu0 %v787
        %4395 = vmatmul.mubr.bf16.gmra.mxu0 %v786
        %v4396 = vpop.f32.mrf.mxu0
        %v4397 = vadd.f32 0.0, %v4396
        %v4398 = vpop.f32.mrf.mxu0
        %v4399 = vadd.f32 0.0, %v4398
        %v4400 = vpop.f32.mrf.mxu0
        %v4401 = vadd.f32 0.0, %v4400
        %v4402 = vpop.f32.mrf.mxu0
        %v4403 = vadd.f32 0.0, %v4402
        %4404 = vmatprep.mubr.bf16.mxu0 %v789
        %4405 = vmatmul.mubr.bf16.gmra.mxu0 %v788
        %v4406 = vpop.f32.mrf.mxu0
        %v4407 = vadd.f32 0.0, %v4406
        %v4408 = vpop.f32.mrf.mxu0
        %v4409 = vadd.f32 0.0, %v4408
        %v4410 = vpop.f32.mrf.mxu0
        %v4411 = vadd.f32 0.0, %v4410
        %v4412 = vpop.f32.mrf.mxu0
        %v4413 = vadd.f32 0.0, %v4412
        %4414 = vmatprep.mubr.bf16.mxu0 %v791
        %4415 = vmatmul.mubr.bf16.gmra.mxu0 %v790
        %v4416 = vpop.f32.mrf.mxu0
        %v4417 = vadd.f32 0.0, %v4416
        %v4418 = vpop.f32.mrf.mxu0
        %v4419 = vadd.f32 0.0, %v4418
        %v4420 = vpop.f32.mrf.mxu0
        %v4421 = vadd.f32 0.0, %v4420
        %v4422 = vpop.f32.mrf.mxu0
        %v4423 = vadd.f32 0.0, %v4422
        %4424 = vmatprep.mubr.bf16.mxu0 %v793
        %4425 = vmatmul.mubr.bf16.gmra.mxu0 %v792
        %v4426 = vpop.f32.mrf.mxu0
        %v4427 = vadd.f32 0.0, %v4426
        %v4428 = vpop.f32.mrf.mxu0
        %v4429 = vadd.f32 0.0, %v4428
        %v4430 = vpop.f32.mrf.mxu0
        %v4431 = vadd.f32 0.0, %v4430
        %v4432 = vpop.f32.mrf.mxu0
        %v4433 = vadd.f32 0.0, %v4432
        %4434 = vmatprep.mubr.bf16.mxu0 %v795
        %4435 = vmatmul.mubr.bf16.gmra.mxu0 %v794
        %v4436 = vpop.f32.mrf.mxu0
        %v4437 = vadd.f32 0.0, %v4436
        %v4438 = vpop.f32.mrf.mxu0
        %v4439 = vadd.f32 0.0, %v4438
        %v4440 = vpop.f32.mrf.mxu0
        %v4441 = vadd.f32 0.0, %v4440
        %v4442 = vpop.f32.mrf.mxu0
        %v4443 = vadd.f32 0.0, %v4442
        %4444 = vmatprep.mubr.bf16.mxu0 %v797
        %4445 = vmatmul.mubr.bf16.gmra.mxu0 %v796
        %v4446 = vpop.f32.mrf.mxu0
        %v4447 = vadd.f32 0.0, %v4446
        %v4448 = vpop.f32.mrf.mxu0
        %v4449 = vadd.f32 0.0, %v4448
        %v4450 = vpop.f32.mrf.mxu0
        %v4451 = vadd.f32 0.0, %v4450
        %v4452 = vpop.f32.mrf.mxu0
        %v4453 = vadd.f32 0.0, %v4452
        %4454 = vmatprep.mubr.bf16.mxu0 %v799
        %4455 = vmatmul.mubr.bf16.gmra.mxu0 %v798
        %v4456 = vpop.f32.mrf.mxu0
        %v4457 = vadd.f32 0.0, %v4456
        %v4458 = vpop.f32.mrf.mxu0
        %v4459 = vadd.f32 0.0, %v4458
        %v4460 = vpop.f32.mrf.mxu0
        %v4461 = vadd.f32 0.0, %v4460
        %v4462 = vpop.f32.mrf.mxu0
        %v4463 = vadd.f32 0.0, %v4462
        %4464 = vmatprep.mubr.bf16.mxu0 %v801
        %4465 = vmatmul.mubr.bf16.gmra.mxu0 %v800
        %v4466 = vpop.f32.mrf.mxu0
        %v4467 = vadd.f32 0.0, %v4466
        %v4468 = vpop.f32.mrf.mxu0
        %v4469 = vadd.f32 0.0, %v4468
        %v4470 = vpop.f32.mrf.mxu0
        %v4471 = vadd.f32 0.0, %v4470
        %v4472 = vpop.f32.mrf.mxu0
        %v4473 = vadd.f32 0.0, %v4472
        %4474 = vmatprep.mubr.bf16.mxu0 %v803
        %4475 = vmatmul.mubr.bf16.gmra.mxu0 %v802
        %v4476 = vpop.f32.mrf.mxu0
        %v4477 = vadd.f32 0.0, %v4476
        %v4478 = vpop.f32.mrf.mxu0
        %v4479 = vadd.f32 0.0, %v4478
        %v4480 = vpop.f32.mrf.mxu0
        %v4481 = vadd.f32 0.0, %v4480
        %v4482 = vpop.f32.mrf.mxu0
        %v4483 = vadd.f32 0.0, %v4482
        %4484 = vmatprep.mubr.bf16.mxu0 %v805
        %4485 = vmatmul.mubr.bf16.gmra.mxu0 %v804
        %v4486 = vpop.f32.mrf.mxu0
        %v4487 = vadd.f32 0.0, %v4486
        %v4488 = vpop.f32.mrf.mxu0
        %v4489 = vadd.f32 0.0, %v4488
        %v4490 = vpop.f32.mrf.mxu0
        %v4491 = vadd.f32 0.0, %v4490
        %v4492 = vpop.f32.mrf.mxu0
        %v4493 = vadd.f32 0.0, %v4492
        %4494 = vmatprep.mubr.bf16.mxu0 %v807
        %4495 = vmatmul.mubr.bf16.gmra.mxu0 %v806
        %v4496 = vpop.f32.mrf.mxu0
        %v4497 = vadd.f32 0.0, %v4496
        %v4498 = vpop.f32.mrf.mxu0
        %v4499 = vadd.f32 0.0, %v4498
        %v4500 = vpop.f32.mrf.mxu0
        %v4501 = vadd.f32 0.0, %v4500
        %v4502 = vpop.f32.mrf.mxu0
        %v4503 = vadd.f32 0.0, %v4502
        %4504 = vmatprep.mubr.bf16.mxu0 %v809
        %4505 = vmatmul.mubr.bf16.gmra.mxu0 %v808
        %v4506 = vpop.f32.mrf.mxu0
        %v4507 = vadd.f32 0.0, %v4506
        %v4508 = vpop.f32.mrf.mxu0
        %v4509 = vadd.f32 0.0, %v4508
        %v4510 = vpop.f32.mrf.mxu0
        %v4511 = vadd.f32 0.0, %v4510
        %v4512 = vpop.f32.mrf.mxu0
        %v4513 = vadd.f32 0.0, %v4512
        %4514 = vmatprep.mubr.bf16.mxu0 %v811
        %4515 = vmatmul.mubr.bf16.gmra.mxu0 %v810
        %v4516 = vpop.f32.mrf.mxu0
        %v4517 = vadd.f32 0.0, %v4516
        %v4518 = vpop.f32.mrf.mxu0
        %v4519 = vadd.f32 0.0, %v4518
        %v4520 = vpop.f32.mrf.mxu0
        %v4521 = vadd.f32 0.0, %v4520
        %v4522 = vpop.f32.mrf.mxu0
        %v4523 = vadd.f32 0.0, %v4522
        %4524 = vmatprep.mubr.bf16.mxu0 %v809
        %4525 = vmatmul.mubr.bf16.gmra.mxu0 %v808
        %v4526 = vpop.f32.mrf.mxu0
        %v4527 = vadd.f32 0.0, %v4526
        %v4528 = vpop.f32.mrf.mxu0
        %v4529 = vadd.f32 0.0, %v4528
        %v4530 = vpop.f32.mrf.mxu0
        %v4531 = vadd.f32 0.0, %v4530
        %v4532 = vpop.f32.mrf.mxu0
        %v4533 = vadd.f32 0.0, %v4532
        %4534 = vdwg.mxu0
        %4535 = vmatprep.subr.bf16.mxu0 %v4197
        %4536 = vmatpush1.bf16.msra.mxu0 %v4196
        %4537 = vmatprep.subr.bf16.mxu0 %v4195
        %4538 = vmatpush1.bf16.msra.mxu0 %v4194
        %4539 = vmatprep.subr.bf16.mxu0 %v4193
        %4540 = vmatpush1.bf16.msra.mxu0 %v4192
        %4541 = vmatprep.subr.bf16.mxu0 %v4191
        %4542 = vmatpush1.bf16.msra.mxu0 %v4190
        %4543 = vmatprep.subr.bf16.mxu0 %v4189
        %4544 = vmatpush1.bf16.msra.mxu0 %v4188
        %4545 = vmatprep.subr.bf16.mxu0 %v4187
        %4546 = vmatpush1.bf16.msra.mxu0 %v4186
        %4547 = vmatprep.subr.bf16.mxu0 %v4185
        %4548 = vmatpush1.bf16.msra.mxu0 %v4184
        %4549 = vmatprep.subr.bf16.mxu0 %v4183
        %4550 = vmatpush1.bf16.msra.mxu0 %v4182
        %4551 = vmatprep.subr.bf16.mxu0 %v4213
        %4552 = vmatpush2.bf16.msra.mxu0 %v4212
        %4553 = vmatprep.subr.bf16.mxu0 %v4211
        %4554 = vmatpush2.bf16.msra.mxu0 %v4210
        %4555 = vmatprep.subr.bf16.mxu0 %v4209
        %4556 = vmatpush2.bf16.msra.mxu0 %v4208
        %4557 = vmatprep.subr.bf16.mxu0 %v4207
        %4558 = vmatpush2.bf16.msra.mxu0 %v4206
        %4559 = vmatprep.subr.bf16.mxu0 %v4205
        %4560 = vmatpush2.bf16.msra.mxu0 %v4204
        %4561 = vmatprep.subr.bf16.mxu0 %v4203
        %4562 = vmatpush2.bf16.msra.mxu0 %v4202
        %4563 = vmatprep.subr.bf16.mxu0 %v4201
        %4564 = vmatpush2.bf16.msra.mxu0 %v4200
        %4565 = vmatprep.subr.bf16.mxu0 %v4199
        %4566 = vmatpush2.bf16.msra.mxu0 %v4198
        %4567 = vmatprep.mubr.bf16.mxu0 %v892
        %4568 = vmatmul.mubr.bf16.gmra.mxu0 %v880
        %v4569 = vpop.f32.mrf.mxu0
        %v4570 = vadd.f32 %v4377, %v4569
        %v4571 = vpop.f32.mrf.mxu0
        %v4572 = vadd.f32 %v4379, %v4571
        %v4573 = vpop.f32.mrf.mxu0
        %v4574 = vadd.f32 %v4381, %v4573
        %v4575 = vpop.f32.mrf.mxu0
        %v4576 = vadd.f32 %v4383, %v4575
        %4577 = vmatprep.mubr.bf16.mxu0 %v916
        %4578 = vmatmul.mubr.bf16.gmra.mxu0 %v904
        %v4579 = vpop.f32.mrf.mxu0
        %v4580 = vadd.f32 %v4387, %v4579
        %v4581 = vpop.f32.mrf.mxu0
        %v4582 = vadd.f32 %v4389, %v4581
        %v4583 = vpop.f32.mrf.mxu0
        %v4584 = vadd.f32 %v4391, %v4583
        %v4585 = vpop.f32.mrf.mxu0
        %v4586 = vadd.f32 %v4393, %v4585
        %4587 = vmatprep.mubr.bf16.mxu0 %v940
        %4588 = vmatmul.mubr.bf16.gmra.mxu0 %v928
        %v4589 = vpop.f32.mrf.mxu0
        %v4590 = vadd.f32 %v4397, %v4589
        %v4591 = vpop.f32.mrf.mxu0
        %v4592 = vadd.f32 %v4399, %v4591
        %v4593 = vpop.f32.mrf.mxu0
        %v4594 = vadd.f32 %v4401, %v4593
        %v4595 = vpop.f32.mrf.mxu0
        %v4596 = vadd.f32 %v4403, %v4595
        %4597 = vmatprep.mubr.bf16.mxu0 %v964
        %4598 = vmatmul.mubr.bf16.gmra.mxu0 %v952
        %v4599 = vpop.f32.mrf.mxu0
        %v4600 = vadd.f32 %v4407, %v4599
        %v4601 = vpop.f32.mrf.mxu0
        %v4602 = vadd.f32 %v4409, %v4601
        %v4603 = vpop.f32.mrf.mxu0
        %v4604 = vadd.f32 %v4411, %v4603
        %v4605 = vpop.f32.mrf.mxu0
        %v4606 = vadd.f32 %v4413, %v4605
        %4607 = vmatprep.mubr.bf16.mxu0 %v988
        %4608 = vmatmul.mubr.bf16.gmra.mxu0 %v976
        %v4609 = vpop.f32.mrf.mxu0
        %v4610 = vadd.f32 %v4417, %v4609
        %v4611 = vpop.f32.mrf.mxu0
        %v4612 = vadd.f32 %v4419, %v4611
        %v4613 = vpop.f32.mrf.mxu0
        %v4614 = vadd.f32 %v4421, %v4613
        %v4615 = vpop.f32.mrf.mxu0
        %v4616 = vadd.f32 %v4423, %v4615
        %4617 = vmatprep.mubr.bf16.mxu0 %v1012
        %4618 = vmatmul.mubr.bf16.gmra.mxu0 %v1000
        %v4619 = vpop.f32.mrf.mxu0
        %v4620 = vadd.f32 %v4427, %v4619
        %v4621 = vpop.f32.mrf.mxu0
        %v4622 = vadd.f32 %v4429, %v4621
        %v4623 = vpop.f32.mrf.mxu0
        %v4624 = vadd.f32 %v4431, %v4623
        %v4625 = vpop.f32.mrf.mxu0
        %v4626 = vadd.f32 %v4433, %v4625
        %4627 = vmatprep.mubr.bf16.mxu0 %v1036
        %4628 = vmatmul.mubr.bf16.gmra.mxu0 %v1024
        %v4629 = vpop.f32.mrf.mxu0
        %v4630 = vadd.f32 %v4437, %v4629
        %v4631 = vpop.f32.mrf.mxu0
        %v4632 = vadd.f32 %v4439, %v4631
        %v4633 = vpop.f32.mrf.mxu0
        %v4634 = vadd.f32 %v4441, %v4633
        %v4635 = vpop.f32.mrf.mxu0
        %v4636 = vadd.f32 %v4443, %v4635
        %4637 = vmatprep.mubr.bf16.mxu0 %v1060
        %4638 = vmatmul.mubr.bf16.gmra.mxu0 %v1048
        %v4639 = vpop.f32.mrf.mxu0
        %v4640 = vadd.f32 %v4447, %v4639
        %v4641 = vpop.f32.mrf.mxu0
        %v4642 = vadd.f32 %v4449, %v4641
        %v4643 = vpop.f32.mrf.mxu0
        %v4644 = vadd.f32 %v4451, %v4643
        %v4645 = vpop.f32.mrf.mxu0
        %v4646 = vadd.f32 %v4453, %v4645
        %4647 = vmatprep.mubr.bf16.mxu0 %v1084
        %4648 = vmatmul.mubr.bf16.gmra.mxu0 %v1072
        %v4649 = vpop.f32.mrf.mxu0
        %v4650 = vadd.f32 %v4457, %v4649
        %v4651 = vpop.f32.mrf.mxu0
        %v4652 = vadd.f32 %v4459, %v4651
        %v4653 = vpop.f32.mrf.mxu0
        %v4654 = vadd.f32 %v4461, %v4653
        %v4655 = vpop.f32.mrf.mxu0
        %v4656 = vadd.f32 %v4463, %v4655
        %4657 = vmatprep.mubr.bf16.mxu0 %v1108
        %4658 = vmatmul.mubr.bf16.gmra.mxu0 %v1096
        %v4659 = vpop.f32.mrf.mxu0
        %v4660 = vadd.f32 %v4467, %v4659
        %v4661 = vpop.f32.mrf.mxu0
        %v4662 = vadd.f32 %v4469, %v4661
        %v4663 = vpop.f32.mrf.mxu0
        %v4664 = vadd.f32 %v4471, %v4663
        %v4665 = vpop.f32.mrf.mxu0
        %v4666 = vadd.f32 %v4473, %v4665
        %4667 = vmatprep.mubr.bf16.mxu0 %v1132
        %4668 = vmatmul.mubr.bf16.gmra.mxu0 %v1120
        %v4669 = vpop.f32.mrf.mxu0
        %v4670 = vadd.f32 %v4477, %v4669
        %v4671 = vpop.f32.mrf.mxu0
        %v4672 = vadd.f32 %v4479, %v4671
        %v4673 = vpop.f32.mrf.mxu0
        %v4674 = vadd.f32 %v4481, %v4673
        %v4675 = vpop.f32.mrf.mxu0
        %v4676 = vadd.f32 %v4483, %v4675
        %4677 = vmatprep.mubr.bf16.mxu0 %v1156
        %4678 = vmatmul.mubr.bf16.gmra.mxu0 %v1144
        %v4679 = vpop.f32.mrf.mxu0
        %v4680 = vadd.f32 %v4487, %v4679
        %v4681 = vpop.f32.mrf.mxu0
        %v4682 = vadd.f32 %v4489, %v4681
        %v4683 = vpop.f32.mrf.mxu0
        %v4684 = vadd.f32 %v4491, %v4683
        %v4685 = vpop.f32.mrf.mxu0
        %v4686 = vadd.f32 %v4493, %v4685
        %4687 = vmatprep.mubr.bf16.mxu0 %v1180
        %4688 = vmatmul.mubr.bf16.gmra.mxu0 %v1168
        %v4689 = vpop.f32.mrf.mxu0
        %v4690 = vadd.f32 %v4497, %v4689
        %v4691 = vpop.f32.mrf.mxu0
        %v4692 = vadd.f32 %v4499, %v4691
        %v4693 = vpop.f32.mrf.mxu0
        %v4694 = vadd.f32 %v4501, %v4693
        %v4695 = vpop.f32.mrf.mxu0
        %v4696 = vadd.f32 %v4503, %v4695
        %4697 = vmatprep.mubr.bf16.mxu0 %v1204
        %4698 = vmatmul.mubr.bf16.gmra.mxu0 %v1192
        %v4699 = vpop.f32.mrf.mxu0
        %v4700 = vadd.f32 %v4507, %v4699
        %v4701 = vpop.f32.mrf.mxu0
        %v4702 = vadd.f32 %v4509, %v4701
        %v4703 = vpop.f32.mrf.mxu0
        %v4704 = vadd.f32 %v4511, %v4703
        %v4705 = vpop.f32.mrf.mxu0
        %v4706 = vadd.f32 %v4513, %v4705
        %4707 = vmatprep.mubr.bf16.mxu0 %v1228
        %4708 = vmatmul.mubr.bf16.gmra.mxu0 %v1216
        %v4709 = vpop.f32.mrf.mxu0
        %v4710 = vadd.f32 %v4517, %v4709
        %v4711 = vpop.f32.mrf.mxu0
        %v4712 = vadd.f32 %v4519, %v4711
        %v4713 = vpop.f32.mrf.mxu0
        %v4714 = vadd.f32 %v4521, %v4713
        %v4715 = vpop.f32.mrf.mxu0
        %v4716 = vadd.f32 %v4523, %v4715
        %4717 = vmatprep.mubr.bf16.mxu0 %v1204
        %4718 = vmatmul.mubr.bf16.gmra.mxu0 %v1192
        %v4719 = vpop.f32.mrf.mxu0
        %v4720 = vadd.f32 %v4527, %v4719
        %v4721 = vpop.f32.mrf.mxu0
        %v4722 = vadd.f32 %v4529, %v4721
        %v4723 = vpop.f32.mrf.mxu0
        %v4724 = vadd.f32 %v4531, %v4723
        %v4725 = vpop.f32.mrf.mxu0
        %v4726 = vadd.f32 %v4533, %v4725
        %4727 = vdwg.mxu0
        %4728 = vmatprep.subr.bf16.mxu0 %v4229
        %4729 = vmatpush1.bf16.msra.mxu0 %v4228
        %4730 = vmatprep.subr.bf16.mxu0 %v4227
        %4731 = vmatpush1.bf16.msra.mxu0 %v4226
        %4732 = vmatprep.subr.bf16.mxu0 %v4225
        %4733 = vmatpush1.bf16.msra.mxu0 %v4224
        %4734 = vmatprep.subr.bf16.mxu0 %v4223
        %4735 = vmatpush1.bf16.msra.mxu0 %v4222
        %4736 = vmatprep.subr.bf16.mxu0 %v4221
        %4737 = vmatpush1.bf16.msra.mxu0 %v4220
        %4738 = vmatprep.subr.bf16.mxu0 %v4219
        %4739 = vmatpush1.bf16.msra.mxu0 %v4218
        %4740 = vmatprep.subr.bf16.mxu0 %v4217
        %4741 = vmatpush1.bf16.msra.mxu0 %v4216
        %4742 = vmatprep.subr.bf16.mxu0 %v4215
        %4743 = vmatpush1.bf16.msra.mxu0 %v4214
        %4744 = vmatprep.subr.bf16.mxu0 %v4245
        %4745 = vmatpush2.bf16.msra.mxu0 %v4244
        %4746 = vmatprep.subr.bf16.mxu0 %v4243
        %4747 = vmatpush2.bf16.msra.mxu0 %v4242
        %4748 = vmatprep.subr.bf16.mxu0 %v4241
        %4749 = vmatpush2.bf16.msra.mxu0 %v4240
        %4750 = vmatprep.subr.bf16.mxu0 %v4239
        %4751 = vmatpush2.bf16.msra.mxu0 %v4238
        %4752 = vmatprep.subr.bf16.mxu0 %v4237
        %4753 = vmatpush2.bf16.msra.mxu0 %v4236
        %4754 = vmatprep.subr.bf16.mxu0 %v4235
        %4755 = vmatpush2.bf16.msra.mxu0 %v4234
        %4756 = vmatprep.subr.bf16.mxu0 %v4233
        %4757 = vmatpush2.bf16.msra.mxu0 %v4232
        %4758 = vmatprep.subr.bf16.mxu0 %v4231
        %4759 = vmatpush2.bf16.msra.mxu0 %v4230
        %4760 = vmatprep.mubr.bf16.mxu0 %v1337
        %4761 = vmatmul.mubr.bf16.gmra.mxu0 %v1334
        %v4762 = vpop.f32.mrf.mxu0
        %v4763 = vadd.f32 %v4570, %v4762
        %v4764 = vpop.f32.mrf.mxu0
        %v4765 = vadd.f32 %v4572, %v4764
        %v4766 = vpop.f32.mrf.mxu0
        %v4767 = vadd.f32 %v4574, %v4766
        %v4768 = vpop.f32.mrf.mxu0
        %v4769 = vadd.f32 %v4576, %v4768
        %4770 = vmatprep.mubr.bf16.mxu0 %v1343
        %4771 = vmatmul.mubr.bf16.gmra.mxu0 %v1340
        %v4772 = vpop.f32.mrf.mxu0
        %v4773 = vadd.f32 %v4580, %v4772
        %v4774 = vpop.f32.mrf.mxu0
        %v4775 = vadd.f32 %v4582, %v4774
        %v4776 = vpop.f32.mrf.mxu0
        %v4777 = vadd.f32 %v4584, %v4776
        %v4778 = vpop.f32.mrf.mxu0
        %v4779 = vadd.f32 %v4586, %v4778
        %4780 = vmatprep.mubr.bf16.mxu0 %v1349
        %4781 = vmatmul.mubr.bf16.gmra.mxu0 %v1346
        %v4782 = vpop.f32.mrf.mxu0
        %v4783 = vadd.f32 %v4590, %v4782
        %v4784 = vpop.f32.mrf.mxu0
        %v4785 = vadd.f32 %v4592, %v4784
        %v4786 = vpop.f32.mrf.mxu0
        %v4787 = vadd.f32 %v4594, %v4786
        %v4788 = vpop.f32.mrf.mxu0
        %v4789 = vadd.f32 %v4596, %v4788
        %4790 = vmatprep.mubr.bf16.mxu0 %v1355
        %4791 = vmatmul.mubr.bf16.gmra.mxu0 %v1352
        %v4792 = vpop.f32.mrf.mxu0
        %v4793 = vadd.f32 %v4600, %v4792
        %v4794 = vpop.f32.mrf.mxu0
        %v4795 = vadd.f32 %v4602, %v4794
        %v4796 = vpop.f32.mrf.mxu0
        %v4797 = vadd.f32 %v4604, %v4796
        %v4798 = vpop.f32.mrf.mxu0
        %v4799 = vadd.f32 %v4606, %v4798
        %4800 = vmatprep.mubr.bf16.mxu0 %v1361
        %4801 = vmatmul.mubr.bf16.gmra.mxu0 %v1358
        %v4802 = vpop.f32.mrf.mxu0
        %v4803 = vadd.f32 %v4610, %v4802
        %v4804 = vpop.f32.mrf.mxu0
        %v4805 = vadd.f32 %v4612, %v4804
        %v4806 = vpop.f32.mrf.mxu0
        %v4807 = vadd.f32 %v4614, %v4806
        %v4808 = vpop.f32.mrf.mxu0
        %v4809 = vadd.f32 %v4616, %v4808
        %4810 = vmatprep.mubr.bf16.mxu0 %v1367
        %4811 = vmatmul.mubr.bf16.gmra.mxu0 %v1364
        %v4812 = vpop.f32.mrf.mxu0
        %v4813 = vadd.f32 %v4620, %v4812
        %v4814 = vpop.f32.mrf.mxu0
        %v4815 = vadd.f32 %v4622, %v4814
        %v4816 = vpop.f32.mrf.mxu0
        %v4817 = vadd.f32 %v4624, %v4816
        %v4818 = vpop.f32.mrf.mxu0
        %v4819 = vadd.f32 %v4626, %v4818
        %4820 = vmatprep.mubr.bf16.mxu0 %v1373
        %4821 = vmatmul.mubr.bf16.gmra.mxu0 %v1370
        %v4822 = vpop.f32.mrf.mxu0
        %v4823 = vadd.f32 %v4630, %v4822
        %v4824 = vpop.f32.mrf.mxu0
        %v4825 = vadd.f32 %v4632, %v4824
        %v4826 = vpop.f32.mrf.mxu0
        %v4827 = vadd.f32 %v4634, %v4826
        %v4828 = vpop.f32.mrf.mxu0
        %v4829 = vadd.f32 %v4636, %v4828
        %4830 = vmatprep.mubr.bf16.mxu0 %v1379
        %4831 = vmatmul.mubr.bf16.gmra.mxu0 %v1376
        %v4832 = vpop.f32.mrf.mxu0
        %v4833 = vadd.f32 %v4640, %v4832
        %v4834 = vpop.f32.mrf.mxu0
        %v4835 = vadd.f32 %v4642, %v4834
        %v4836 = vpop.f32.mrf.mxu0
        %v4837 = vadd.f32 %v4644, %v4836
        %v4838 = vpop.f32.mrf.mxu0
        %v4839 = vadd.f32 %v4646, %v4838
        %4840 = vmatprep.mubr.bf16.mxu0 %v1385
        %4841 = vmatmul.mubr.bf16.gmra.mxu0 %v1382
        %v4842 = vpop.f32.mrf.mxu0
        %v4843 = vadd.f32 %v4650, %v4842
        %v4844 = vpop.f32.mrf.mxu0
        %v4845 = vadd.f32 %v4652, %v4844
        %v4846 = vpop.f32.mrf.mxu0
        %v4847 = vadd.f32 %v4654, %v4846
        %v4848 = vpop.f32.mrf.mxu0
        %v4849 = vadd.f32 %v4656, %v4848
        %4850 = vmatprep.mubr.bf16.mxu0 %v1391
        %4851 = vmatmul.mubr.bf16.gmra.mxu0 %v1388
        %v4852 = vpop.f32.mrf.mxu0
        %v4853 = vadd.f32 %v4660, %v4852
        %v4854 = vpop.f32.mrf.mxu0
        %v4855 = vadd.f32 %v4662, %v4854
        %v4856 = vpop.f32.mrf.mxu0
        %v4857 = vadd.f32 %v4664, %v4856
        %v4858 = vpop.f32.mrf.mxu0
        %v4859 = vadd.f32 %v4666, %v4858
        %4860 = vmatprep.mubr.bf16.mxu0 %v1397
        %4861 = vmatmul.mubr.bf16.gmra.mxu0 %v1394
        %v4862 = vpop.f32.mrf.mxu0
        %v4863 = vadd.f32 %v4670, %v4862
        %v4864 = vpop.f32.mrf.mxu0
        %v4865 = vadd.f32 %v4672, %v4864
        %v4866 = vpop.f32.mrf.mxu0
        %v4867 = vadd.f32 %v4674, %v4866
        %v4868 = vpop.f32.mrf.mxu0
        %v4869 = vadd.f32 %v4676, %v4868
        %4870 = vmatprep.mubr.bf16.mxu0 %v1403
        %4871 = vmatmul.mubr.bf16.gmra.mxu0 %v1400
        %v4872 = vpop.f32.mrf.mxu0
        %v4873 = vadd.f32 %v4680, %v4872
        %v4874 = vpop.f32.mrf.mxu0
        %v4875 = vadd.f32 %v4682, %v4874
        %v4876 = vpop.f32.mrf.mxu0
        %v4877 = vadd.f32 %v4684, %v4876
        %v4878 = vpop.f32.mrf.mxu0
        %v4879 = vadd.f32 %v4686, %v4878
        %4880 = vmatprep.mubr.bf16.mxu0 %v1409
        %4881 = vmatmul.mubr.bf16.gmra.mxu0 %v1406
        %v4882 = vpop.f32.mrf.mxu0
        %v4883 = vadd.f32 %v4690, %v4882
        %v4884 = vpop.f32.mrf.mxu0
        %v4885 = vadd.f32 %v4692, %v4884
        %v4886 = vpop.f32.mrf.mxu0
        %v4887 = vadd.f32 %v4694, %v4886
        %v4888 = vpop.f32.mrf.mxu0
        %v4889 = vadd.f32 %v4696, %v4888
        %4890 = vmatprep.mubr.bf16.mxu0 %v1415
        %4891 = vmatmul.mubr.bf16.gmra.mxu0 %v1412
        %v4892 = vpop.f32.mrf.mxu0
        %v4893 = vadd.f32 %v4700, %v4892
        %v4894 = vpop.f32.mrf.mxu0
        %v4895 = vadd.f32 %v4702, %v4894
        %v4896 = vpop.f32.mrf.mxu0
        %v4897 = vadd.f32 %v4704, %v4896
        %v4898 = vpop.f32.mrf.mxu0
        %v4899 = vadd.f32 %v4706, %v4898
        %4900 = vmatprep.mubr.bf16.mxu0 %v1421
        %4901 = vmatmul.mubr.bf16.gmra.mxu0 %v1418
        %v4902 = vpop.f32.mrf.mxu0
        %v4903 = vadd.f32 %v4710, %v4902
        %v4904 = vpop.f32.mrf.mxu0
        %v4905 = vadd.f32 %v4712, %v4904
        %v4906 = vpop.f32.mrf.mxu0
        %v4907 = vadd.f32 %v4714, %v4906
        %v4908 = vpop.f32.mrf.mxu0
        %v4909 = vadd.f32 %v4716, %v4908
        %4910 = vmatprep.mubr.bf16.mxu0 %v1415
        %4911 = vmatmul.mubr.bf16.gmra.mxu0 %v1412
        %v4912 = vpop.f32.mrf.mxu0
        %v4913 = vadd.f32 %v4720, %v4912
        %v4914 = vpop.f32.mrf.mxu0
        %v4915 = vadd.f32 %v4722, %v4914
        %v4916 = vpop.f32.mrf.mxu0
        %v4917 = vadd.f32 %v4724, %v4916
        %v4918 = vpop.f32.mrf.mxu0
        %v4919 = vadd.f32 %v4726, %v4918
        %4920 = vdwg.mxu0
        %v4921 = vadd.f32 %v3607, %v4763
        %v4922 = vadd.f32 %v3609, %v4765
        %v4923 = vadd.f32 %v3611, %v4767
        %v4924 = vadd.f32 %v3613, %v4769
        %v4925 = vadd.f32 %v3617, %v4773
        %v4926 = vadd.f32 %v3619, %v4775
        %v4927 = vadd.f32 %v3621, %v4777
        %v4928 = vadd.f32 %v3623, %v4779
        %v4929 = vadd.f32 %v3627, %v4783
        %v4930 = vadd.f32 %v3629, %v4785
        %v4931 = vadd.f32 %v3631, %v4787
        %v4932 = vadd.f32 %v3633, %v4789
        %v4933 = vadd.f32 %v3637, %v4793
        %v4934 = vadd.f32 %v3639, %v4795
        %v4935 = vadd.f32 %v3641, %v4797
        %v4936 = vadd.f32 %v3643, %v4799
        %v4937 = vadd.f32 %v3647, %v4803
        %v4938 = vadd.f32 %v3649, %v4805
        %v4939 = vadd.f32 %v3651, %v4807
        %v4940 = vadd.f32 %v3653, %v4809
        %v4941 = vadd.f32 %v3657, %v4813
        %v4942 = vadd.f32 %v3659, %v4815
        %v4943 = vadd.f32 %v3661, %v4817
        %v4944 = vadd.f32 %v3663, %v4819
        %v4945 = vadd.f32 %v3667, %v4823
        %v4946 = vadd.f32 %v3669, %v4825
        %v4947 = vadd.f32 %v3671, %v4827
        %v4948 = vadd.f32 %v3673, %v4829
        %v4949 = vadd.f32 %v3677, %v4833
        %v4950 = vadd.f32 %v3679, %v4835
        %v4951 = vadd.f32 %v3681, %v4837
        %v4952 = vadd.f32 %v3683, %v4839
        %v4953 = vadd.f32 %v3687, %v4843
        %v4954 = vadd.f32 %v3689, %v4845
        %v4955 = vadd.f32 %v3691, %v4847
        %v4956 = vadd.f32 %v3693, %v4849
        %v4957 = vadd.f32 %v3697, %v4853
        %v4958 = vadd.f32 %v3699, %v4855
        %v4959 = vadd.f32 %v3701, %v4857
        %v4960 = vadd.f32 %v3703, %v4859
        %v4961 = vadd.f32 %v3707, %v4863
        %v4962 = vadd.f32 %v3709, %v4865
        %v4963 = vadd.f32 %v3711, %v4867
        %v4964 = vadd.f32 %v3713, %v4869
        %v4965 = vadd.f32 %v3717, %v4873
        %v4966 = vadd.f32 %v3719, %v4875
        %v4967 = vadd.f32 %v3721, %v4877
        %v4968 = vadd.f32 %v3723, %v4879
        %v4969 = vadd.f32 %v3727, %v4883
        %v4970 = vadd.f32 %v3729, %v4885
        %v4971 = vadd.f32 %v3731, %v4887
        %v4972 = vadd.f32 %v3733, %v4889
        %v4973 = vadd.f32 %v3737, %v4893
        %v4974 = vadd.f32 %v3739, %v4895
        %v4975 = vadd.f32 %v3741, %v4897
        %v4976 = vadd.f32 %v3743, %v4899
        %v4977 = vadd.f32 %v3747, %v4903
        %v4978 = vadd.f32 %v3749, %v4905
        %v4979 = vadd.f32 %v3751, %v4907
        %v4980 = vadd.f32 %v3753, %v4909
        %v4981 = vadd.f32 %v3757, %v4913
        %v4982 = vadd.f32 %v3759, %v4915
        %v4983 = vadd.f32 %v3761, %v4917
        %v4984 = vadd.f32 %v3763, %v4919
        %v4985 = vld [vmem:[#allocation7] sm:$0x3]
        %v4987 = vlaneseq
        %v4988 = vshrl.u32 %v4987, 7
        %v4989 = vsub.s32 0, %v4988
        %v4990 = vrot.slane %v4985, %v4989
        %v4991 = vlaneseq
        %v4992 = vshrl.u32 %v4991, 7
        %v4993 = vsub.s32 1, %v4992
        %v4994 = vrot.slane %v4985, %v4993
        %v4997 = vadd.f32 %v4921, %v4990
        %v4998 = vadd.f32 %v4922, %v4994
        %v4999 = vadd.f32 %v4923, %v4990
        %v5000 = vadd.f32 %v4924, %v4994
        %v5001 = vadd.f32 %v4925, %v4990
        %v5002 = vadd.f32 %v4926, %v4994
        %v5003 = vadd.f32 %v4927, %v4990
        %v5004 = vadd.f32 %v4928, %v4994
        %v5005 = vadd.f32 %v4929, %v4990
        %v5006 = vadd.f32 %v4930, %v4994
        %v5007 = vadd.f32 %v4931, %v4990
        %v5008 = vadd.f32 %v4932, %v4994
        %v5009 = vadd.f32 %v4933, %v4990
        %v5010 = vadd.f32 %v4934, %v4994
        %v5011 = vadd.f32 %v4935, %v4990
        %v5012 = vadd.f32 %v4936, %v4994
        %v5013 = vadd.f32 %v4937, %v4990
        %v5014 = vadd.f32 %v4938, %v4994
        %v5015 = vadd.f32 %v4939, %v4990
        %v5016 = vadd.f32 %v4940, %v4994
        %v5017 = vadd.f32 %v4941, %v4990
        %v5018 = vadd.f32 %v4942, %v4994
        %v5019 = vadd.f32 %v4943, %v4990
        %v5020 = vadd.f32 %v4944, %v4994
        %v5021 = vadd.f32 %v4945, %v4990
        %v5022 = vadd.f32 %v4946, %v4994
        %v5023 = vadd.f32 %v4947, %v4990
        %v5024 = vadd.f32 %v4948, %v4994
        %v5025 = vadd.f32 %v4949, %v4990
        %v5026 = vadd.f32 %v4950, %v4994
        %v5027 = vadd.f32 %v4951, %v4990
        %v5028 = vadd.f32 %v4952, %v4994
        %v5029 = vadd.f32 %v4953, %v4990
        %v5030 = vadd.f32 %v4954, %v4994
        %v5031 = vadd.f32 %v4955, %v4990
        %v5032 = vadd.f32 %v4956, %v4994
        %v5033 = vadd.f32 %v4957, %v4990
        %v5034 = vadd.f32 %v4958, %v4994
        %v5035 = vadd.f32 %v4959, %v4990
        %v5036 = vadd.f32 %v4960, %v4994
        %v5037 = vadd.f32 %v4961, %v4990
        %v5038 = vadd.f32 %v4962, %v4994
        %v5039 = vadd.f32 %v4963, %v4990
        %v5040 = vadd.f32 %v4964, %v4994
        %v5041 = vadd.f32 %v4965, %v4990
        %v5042 = vadd.f32 %v4966, %v4994
        %v5043 = vadd.f32 %v4967, %v4990
        %v5044 = vadd.f32 %v4968, %v4994
        %v5045 = vadd.f32 %v4969, %v4990
        %v5046 = vadd.f32 %v4970, %v4994
        %v5047 = vadd.f32 %v4971, %v4990
        %v5048 = vadd.f32 %v4972, %v4994
        %v5049 = vadd.f32 %v4973, %v4990
        %v5050 = vadd.f32 %v4974, %v4994
        %v5051 = vadd.f32 %v4975, %v4990
        %v5052 = vadd.f32 %v4976, %v4994
        %v5053 = vadd.f32 %v4977, %v4990
        %v5054 = vadd.f32 %v4978, %v4994
        %v5055 = vadd.f32 %v4979, %v4990
        %v5056 = vadd.f32 %v4980, %v4994
        %v5057 = vadd.f32 %v4981, %v4990
        %v5058 = vadd.f32 %v4982, %v4994
        %v5059 = vadd.f32 %v4983, %v4990
        %v5060 = vadd.f32 %v4984, %v4994
        %v5061 = vadd.f32 %v4997, %v4999
        %v5062 = vadd.f32 %v5061, %v5001
        %v5063 = vadd.f32 %v5062, %v5003
        %v5064 = vadd.f32 %v5063, %v5005
        %v5065 = vadd.f32 %v5064, %v5007
        %v5066 = vadd.f32 %v5065, %v5009
        %v5067 = vadd.f32 %v5066, %v5011
        %v5068 = vadd.f32 %v5067, %v5013
        %v5069 = vadd.f32 %v5068, %v5015
        %v5070 = vadd.f32 %v5069, %v5017
        %v5071 = vadd.f32 %v5070, %v5019
        %v5072 = vadd.f32 %v5071, %v5021
        %v5073 = vadd.f32 %v5072, %v5023
        %v5074 = vadd.f32 %v5073, %v5025
        %v5075 = vadd.f32 %v5074, %v5027
        %v5076 = vadd.f32 %v5075, %v5029
        %v5077 = vadd.f32 %v5076, %v5031
        %v5078 = vadd.f32 %v5077, %v5033
        %v5079 = vadd.f32 %v5078, %v5035
        %v5080 = vadd.f32 %v5079, %v5037
        %v5081 = vadd.f32 %v5080, %v5039
        %v5082 = vadd.f32 %v5081, %v5041
        %v5083 = vadd.f32 %v5082, %v5043
        %v5084 = vadd.f32 %v5083, %v5045
        %v5085 = vadd.f32 %v5084, %v5047
        %v5086 = vadd.f32 %v5085, %v5049
        %v5087 = vadd.f32 %v5086, %v5051
        %v5088 = vadd.f32 %v5087, %v5053
        %v5089 = vadd.f32 %v5088, %v5055
        %v5090 = vadd.f32 %v5089, %v5057
        %v5091 = vadd.f32 %v5090, %v5059
        %v5092 = vrot.slane %v5091, 4
        %v5093 = vadd.f32 %v5091, %v5092
        %v5094 = vrot.slane %v5093, 2
        %v5095 = vadd.f32 %v5093, %v5094
        %v5096 = vrot.slane %v5095, 1
        %v5097 = vadd.f32 %v5095, %v5096
        %v5098 = vadd.f32 %v4998, %v5000
        %v5099 = vadd.f32 %v5098, %v5002
        %v5100 = vadd.f32 %v5099, %v5004
        %v5101 = vadd.f32 %v5100, %v5006
        %v5102 = vadd.f32 %v5101, %v5008
        %v5103 = vadd.f32 %v5102, %v5010
        %v5104 = vadd.f32 %v5103, %v5012
        %v5105 = vadd.f32 %v5104, %v5014
        %v5106 = vadd.f32 %v5105, %v5016
        %v5107 = vadd.f32 %v5106, %v5018
        %v5108 = vadd.f32 %v5107, %v5020
        %v5109 = vadd.f32 %v5108, %v5022
        %v5110 = vadd.f32 %v5109, %v5024
        %v5111 = vadd.f32 %v5110, %v5026
        %v5112 = vadd.f32 %v5111, %v5028
        %v5113 = vadd.f32 %v5112, %v5030
        %v5114 = vadd.f32 %v5113, %v5032
        %v5115 = vadd.f32 %v5114, %v5034
        %v5116 = vadd.f32 %v5115, %v5036
        %v5117 = vadd.f32 %v5116, %v5038
        %v5118 = vadd.f32 %v5117, %v5040
        %v5119 = vadd.f32 %v5118, %v5042
        %v5120 = vadd.f32 %v5119, %v5044
        %v5121 = vadd.f32 %v5120, %v5046
        %v5122 = vadd.f32 %v5121, %v5048
        %v5123 = vadd.f32 %v5122, %v5050
        %v5124 = vadd.f32 %v5123, %v5052
        %v5125 = vadd.f32 %v5124, %v5054
        %v5126 = vadd.f32 %v5125, %v5056
        %v5127 = vadd.f32 %v5126, %v5058
        %v5128 = vadd.f32 %v5127, %v5060
        %v5129 = vrot.slane %v5128, 4
        %v5130 = vadd.f32 %v5128, %v5129
        %v5131 = vrot.slane %v5130, 2
        %v5132 = vadd.f32 %v5130, %v5131
        %v5133 = vrot.slane %v5132, 1
        %v5134 = vadd.f32 %v5132, %v5133
        %v5135 = vrcp.pop 256.0
        %v5136 = vmul.f32 %v5097, %v5135
        %v5137 = vmul.f32 %v5134, %v5135
        %v5138 = vsub.f32 %v4997, %v5136
        %v5139 = vsub.f32 %v4998, %v5137
        %v5140 = vsub.f32 %v4999, %v5136
        %v5141 = vsub.f32 %v5000, %v5137
        %v5142 = vsub.f32 %v5001, %v5136
        %v5143 = vsub.f32 %v5002, %v5137
        %v5144 = vsub.f32 %v5003, %v5136
        %v5145 = vsub.f32 %v5004, %v5137
        %v5146 = vsub.f32 %v5005, %v5136
        %v5147 = vsub.f32 %v5006, %v5137
        %v5148 = vsub.f32 %v5007, %v5136
        %v5149 = vsub.f32 %v5008, %v5137
        %v5150 = vsub.f32 %v5009, %v5136
        %v5151 = vsub.f32 %v5010, %v5137
        %v5152 = vsub.f32 %v5011, %v5136
        %v5153 = vsub.f32 %v5012, %v5137
        %v5154 = vsub.f32 %v5013, %v5136
        %v5155 = vsub.f32 %v5014, %v5137
        %v5156 = vsub.f32 %v5015, %v5136
        %v5157 = vsub.f32 %v5016, %v5137
        %v5158 = vsub.f32 %v5017, %v5136
        %v5159 = vsub.f32 %v5018, %v5137
        %v5160 = vsub.f32 %v5019, %v5136
        %v5161 = vsub.f32 %v5020, %v5137
        %v5162 = vsub.f32 %v5021, %v5136
        %v5163 = vsub.f32 %v5022, %v5137
        %v5164 = vsub.f32 %v5023, %v5136
        %v5165 = vsub.f32 %v5024, %v5137
        %v5166 = vsub.f32 %v5025, %v5136
        %v5167 = vsub.f32 %v5026, %v5137
        %v5168 = vsub.f32 %v5027, %v5136
        %v5169 = vsub.f32 %v5028, %v5137
        %v5170 = vsub.f32 %v5029, %v5136
        %v5171 = vsub.f32 %v5030, %v5137
        %v5172 = vsub.f32 %v5031, %v5136
        %v5173 = vsub.f32 %v5032, %v5137
        %v5174 = vsub.f32 %v5033, %v5136
        %v5175 = vsub.f32 %v5034, %v5137
        %v5176 = vsub.f32 %v5035, %v5136
        %v5177 = vsub.f32 %v5036, %v5137
        %v5178 = vsub.f32 %v5037, %v5136
        %v5179 = vsub.f32 %v5038, %v5137
        %v5180 = vsub.f32 %v5039, %v5136
        %v5181 = vsub.f32 %v5040, %v5137
        %v5182 = vsub.f32 %v5041, %v5136
        %v5183 = vsub.f32 %v5042, %v5137
        %v5184 = vsub.f32 %v5043, %v5136
        %v5185 = vsub.f32 %v5044, %v5137
        %v5186 = vsub.f32 %v5045, %v5136
        %v5187 = vsub.f32 %v5046, %v5137
        %v5188 = vsub.f32 %v5047, %v5136
        %v5189 = vsub.f32 %v5048, %v5137
        %v5190 = vsub.f32 %v5049, %v5136
        %v5191 = vsub.f32 %v5050, %v5137
        %v5192 = vsub.f32 %v5051, %v5136
        %v5193 = vsub.f32 %v5052, %v5137
        %v5194 = vsub.f32 %v5053, %v5136
        %v5195 = vsub.f32 %v5054, %v5137
        %v5196 = vsub.f32 %v5055, %v5136
        %v5197 = vsub.f32 %v5056, %v5137
        %v5198 = vsub.f32 %v5057, %v5136
        %v5199 = vsub.f32 %v5058, %v5137
        %v5200 = vsub.f32 %v5059, %v5136
        %v5201 = vsub.f32 %v5060, %v5137
        %v5202 = vmul.f32 %v5138, %v5138
        %v5203 = vmul.f32 %v5139, %v5139
        %v5204 = vmul.f32 %v5140, %v5140
        %v5205 = vmul.f32 %v5141, %v5141
        %v5206 = vmul.f32 %v5142, %v5142
        %v5207 = vmul.f32 %v5143, %v5143
        %v5208 = vmul.f32 %v5144, %v5144
        %v5209 = vmul.f32 %v5145, %v5145
        %v5210 = vmul.f32 %v5146, %v5146
        %v5211 = vmul.f32 %v5147, %v5147
        %v5212 = vmul.f32 %v5148, %v5148
        %v5213 = vmul.f32 %v5149, %v5149
        %v5214 = vmul.f32 %v5150, %v5150
        %v5215 = vmul.f32 %v5151, %v5151
        %v5216 = vmul.f32 %v5152, %v5152
        %v5217 = vmul.f32 %v5153, %v5153
        %v5218 = vmul.f32 %v5154, %v5154
        %v5219 = vmul.f32 %v5155, %v5155
        %v5220 = vmul.f32 %v5156, %v5156
        %v5221 = vmul.f32 %v5157, %v5157
        %v5222 = vmul.f32 %v5158, %v5158
        %v5223 = vmul.f32 %v5159, %v5159
        %v5224 = vmul.f32 %v5160, %v5160
        %v5225 = vmul.f32 %v5161, %v5161
        %v5226 = vmul.f32 %v5162, %v5162
        %v5227 = vmul.f32 %v5163, %v5163
        %v5228 = vmul.f32 %v5164, %v5164
        %v5229 = vmul.f32 %v5165, %v5165
        %v5230 = vmul.f32 %v5166, %v5166
        %v5231 = vmul.f32 %v5167, %v5167
        %v5232 = vmul.f32 %v5168, %v5168
        %v5233 = vmul.f32 %v5169, %v5169
        %v5234 = vmul.f32 %v5170, %v5170
        %v5235 = vmul.f32 %v5171, %v5171
        %v5236 = vmul.f32 %v5172, %v5172
        %v5237 = vmul.f32 %v5173, %v5173
        %v5238 = vmul.f32 %v5174, %v5174
        %v5239 = vmul.f32 %v5175, %v5175
        %v5240 = vmul.f32 %v5176, %v5176
        %v5241 = vmul.f32 %v5177, %v5177
        %v5242 = vmul.f32 %v5178, %v5178
        %v5243 = vmul.f32 %v5179, %v5179
        %v5244 = vmul.f32 %v5180, %v5180
        %v5245 = vmul.f32 %v5181, %v5181
        %v5246 = vmul.f32 %v5182, %v5182
        %v5247 = vmul.f32 %v5183, %v5183
        %v5248 = vmul.f32 %v5184, %v5184
        %v5249 = vmul.f32 %v5185, %v5185
        %v5250 = vmul.f32 %v5186, %v5186
        %v5251 = vmul.f32 %v5187, %v5187
        %v5252 = vmul.f32 %v5188, %v5188
        %v5253 = vmul.f32 %v5189, %v5189
        %v5254 = vmul.f32 %v5190, %v5190
        %v5255 = vmul.f32 %v5191, %v5191
        %v5256 = vmul.f32 %v5192, %v5192
        %v5257 = vmul.f32 %v5193, %v5193
        %v5258 = vmul.f32 %v5194, %v5194
        %v5259 = vmul.f32 %v5195, %v5195
        %v5260 = vmul.f32 %v5196, %v5196
        %v5261 = vmul.f32 %v5197, %v5197
        %v5262 = vmul.f32 %v5198, %v5198
        %v5263 = vmul.f32 %v5199, %v5199
        %v5264 = vmul.f32 %v5200, %v5200
        %v5265 = vmul.f32 %v5201, %v5201
        %v5266 = vadd.f32 %v5202, %v5204
        %v5267 = vadd.f32 %v5266, %v5206
        %v5268 = vadd.f32 %v5267, %v5208
        %v5269 = vadd.f32 %v5268, %v5210
        %v5270 = vadd.f32 %v5269, %v5212
        %v5271 = vadd.f32 %v5270, %v5214
        %v5272 = vadd.f32 %v5271, %v5216
        %v5273 = vadd.f32 %v5272, %v5218
        %v5274 = vadd.f32 %v5273, %v5220
        %v5275 = vadd.f32 %v5274, %v5222
        %v5276 = vadd.f32 %v5275, %v5224
        %v5277 = vadd.f32 %v5276, %v5226
        %v5278 = vadd.f32 %v5277, %v5228
        %v5279 = vadd.f32 %v5278, %v5230
        %v5280 = vadd.f32 %v5279, %v5232
        %v5281 = vadd.f32 %v5280, %v5234
        %v5282 = vadd.f32 %v5281, %v5236
        %v5283 = vadd.f32 %v5282, %v5238
        %v5284 = vadd.f32 %v5283, %v5240
        %v5285 = vadd.f32 %v5284, %v5242
        %v5286 = vadd.f32 %v5285, %v5244
        %v5287 = vadd.f32 %v5286, %v5246
        %v5288 = vadd.f32 %v5287, %v5248
        %v5289 = vadd.f32 %v5288, %v5250
        %v5290 = vadd.f32 %v5289, %v5252
        %v5291 = vadd.f32 %v5290, %v5254
        %v5292 = vadd.f32 %v5291, %v5256
        %v5293 = vadd.f32 %v5292, %v5258
        %v5294 = vadd.f32 %v5293, %v5260
        %v5295 = vadd.f32 %v5294, %v5262
        %v5296 = vadd.f32 %v5295, %v5264
        %v5297 = vrot.slane %v5296, 4
        %v5298 = vadd.f32 %v5296, %v5297
        %v5299 = vrot.slane %v5298, 2
        %v5300 = vadd.f32 %v5298, %v5299
        %v5301 = vrot.slane %v5300, 1
        %v5302 = vadd.f32 %v5300, %v5301
        %v5303 = vadd.f32 %v5203, %v5205
        %v5304 = vadd.f32 %v5303, %v5207
        %v5305 = vadd.f32 %v5304, %v5209
        %v5306 = vadd.f32 %v5305, %v5211
        %v5307 = vadd.f32 %v5306, %v5213
        %v5308 = vadd.f32 %v5307, %v5215
        %v5309 = vadd.f32 %v5308, %v5217
        %v5310 = vadd.f32 %v5309, %v5219
        %v5311 = vadd.f32 %v5310, %v5221
        %v5312 = vadd.f32 %v5311, %v5223
        %v5313 = vadd.f32 %v5312, %v5225
        %v5314 = vadd.f32 %v5313, %v5227
        %v5315 = vadd.f32 %v5314, %v5229
        %v5316 = vadd.f32 %v5315, %v5231
        %v5317 = vadd.f32 %v5316, %v5233
        %v5318 = vadd.f32 %v5317, %v5235
        %v5319 = vadd.f32 %v5318, %v5237
        %v5320 = vadd.f32 %v5319, %v5239
        %v5321 = vadd.f32 %v5320, %v5241
        %v5322 = vadd.f32 %v5321, %v5243
        %v5323 = vadd.f32 %v5322, %v5245
        %v5324 = vadd.f32 %v5323, %v5247
        %v5325 = vadd.f32 %v5324, %v5249
        %v5326 = vadd.f32 %v5325, %v5251
        %v5327 = vadd.f32 %v5326, %v5253
        %v5328 = vadd.f32 %v5327, %v5255
        %v5329 = vadd.f32 %v5328, %v5257
        %v5330 = vadd.f32 %v5329, %v5259
        %v5331 = vadd.f32 %v5330, %v5261
        %v5332 = vadd.f32 %v5331, %v5263
        %v5333 = vadd.f32 %v5332, %v5265
        %v5334 = vrot.slane %v5333, 4
        %v5335 = vadd.f32 %v5333, %v5334
        %v5336 = vrot.slane %v5335, 2
        %v5337 = vadd.f32 %v5335, %v5336
        %v5338 = vrot.slane %v5337, 1
        %v5339 = vadd.f32 %v5337, %v5338
        %v5340 = vmul.f32 %v5302, %v5135
        %v5341 = vmul.f32 %v5339, %v5135
        %v5342 = vadd.f32 %v5340, 1e-05
        %v5343 = vadd.f32 %v5341, 1e-05
        %v5344 = vrsqrt.pop %v5342
        %v5345 = vrsqrt.pop %v5343
        %v5346 = vmul.f32 %v5138, %v5344
        %v5347 = vmul.f32 %v5139, %v5345
        %v5348 = vmul.f32 %v5140, %v5344
        %v5349 = vmul.f32 %v5141, %v5345
        %v5350 = vmul.f32 %v5142, %v5344
        %v5351 = vmul.f32 %v5143, %v5345
        %v5352 = vmul.f32 %v5144, %v5344
        %v5353 = vmul.f32 %v5145, %v5345
        %v5354 = vmul.f32 %v5146, %v5344
        %v5355 = vmul.f32 %v5147, %v5345
        %v5356 = vmul.f32 %v5148, %v5344
        %v5357 = vmul.f32 %v5149, %v5345
        %v5358 = vmul.f32 %v5150, %v5344
        %v5359 = vmul.f32 %v5151, %v5345
        %v5360 = vmul.f32 %v5152, %v5344
        %v5361 = vmul.f32 %v5153, %v5345
        %v5362 = vmul.f32 %v5154, %v5344
        %v5363 = vmul.f32 %v5155, %v5345
        %v5364 = vmul.f32 %v5156, %v5344
        %v5365 = vmul.f32 %v5157, %v5345
        %v5366 = vmul.f32 %v5158, %v5344
        %v5367 = vmul.f32 %v5159, %v5345
        %v5368 = vmul.f32 %v5160, %v5344
        %v5369 = vmul.f32 %v5161, %v5345
        %v5370 = vmul.f32 %v5162, %v5344
        %v5371 = vmul.f32 %v5163, %v5345
        %v5372 = vmul.f32 %v5164, %v5344
        %v5373 = vmul.f32 %v5165, %v5345
        %v5374 = vmul.f32 %v5166, %v5344
        %v5375 = vmul.f32 %v5167, %v5345
        %v5376 = vmul.f32 %v5168, %v5344
        %v5377 = vmul.f32 %v5169, %v5345
        %v5378 = vmul.f32 %v5170, %v5344
        %v5379 = vmul.f32 %v5171, %v5345
        %v5380 = vmul.f32 %v5172, %v5344
        %v5381 = vmul.f32 %v5173, %v5345
        %v5382 = vmul.f32 %v5174, %v5344
        %v5383 = vmul.f32 %v5175, %v5345
        %v5384 = vmul.f32 %v5176, %v5344
        %v5385 = vmul.f32 %v5177, %v5345
        %v5386 = vmul.f32 %v5178, %v5344
        %v5387 = vmul.f32 %v5179, %v5345
        %v5388 = vmul.f32 %v5180, %v5344
        %v5389 = vmul.f32 %v5181, %v5345
        %v5390 = vmul.f32 %v5182, %v5344
        %v5391 = vmul.f32 %v5183, %v5345
        %v5392 = vmul.f32 %v5184, %v5344
        %v5393 = vmul.f32 %v5185, %v5345
        %v5394 = vmul.f32 %v5186, %v5344
        %v5395 = vmul.f32 %v5187, %v5345
        %v5396 = vmul.f32 %v5188, %v5344
        %v5397 = vmul.f32 %v5189, %v5345
        %v5398 = vmul.f32 %v5190, %v5344
        %v5399 = vmul.f32 %v5191, %v5345
        %v5400 = vmul.f32 %v5192, %v5344
        %v5401 = vmul.f32 %v5193, %v5345
        %v5402 = vmul.f32 %v5194, %v5344
        %v5403 = vmul.f32 %v5195, %v5345
        %v5404 = vmul.f32 %v5196, %v5344
        %v5405 = vmul.f32 %v5197, %v5345
        %v5406 = vmul.f32 %v5198, %v5344
        %v5407 = vmul.f32 %v5199, %v5345
        %v5408 = vmul.f32 %v5200, %v5344
        %v5409 = vmul.f32 %v5201, %v5345
        %v5410 = vmax.f32 %v5346, 0.0
        %v5411 = vmax.f32 %v5347, 0.0
        %v5412 = vmax.f32 %v5348, 0.0
        %v5413 = vmax.f32 %v5349, 0.0
        %v5414 = vmax.f32 %v5350, 0.0
        %v5415 = vmax.f32 %v5351, 0.0
        %v5416 = vmax.f32 %v5352, 0.0
        %v5417 = vmax.f32 %v5353, 0.0
        %v5418 = vmax.f32 %v5354, 0.0
        %v5419 = vmax.f32 %v5355, 0.0
        %v5420 = vmax.f32 %v5356, 0.0
        %v5421 = vmax.f32 %v5357, 0.0
        %v5422 = vmax.f32 %v5358, 0.0
        %v5423 = vmax.f32 %v5359, 0.0
        %v5424 = vmax.f32 %v5360, 0.0
        %v5425 = vmax.f32 %v5361, 0.0
        %v5426 = vmax.f32 %v5362, 0.0
        %v5427 = vmax.f32 %v5363, 0.0
        %v5428 = vmax.f32 %v5364, 0.0
        %v5429 = vmax.f32 %v5365, 0.0
        %v5430 = vmax.f32 %v5366, 0.0
        %v5431 = vmax.f32 %v5367, 0.0
        %v5432 = vmax.f32 %v5368, 0.0
        %v5433 = vmax.f32 %v5369, 0.0
        %v5434 = vmax.f32 %v5370, 0.0
        %v5435 = vmax.f32 %v5371, 0.0
        %v5436 = vmax.f32 %v5372, 0.0
        %v5437 = vmax.f32 %v5373, 0.0
        %v5438 = vmax.f32 %v5374, 0.0
        %v5439 = vmax.f32 %v5375, 0.0
        %v5440 = vmax.f32 %v5376, 0.0
        %v5441 = vmax.f32 %v5377, 0.0
        %v5442 = vmax.f32 %v5378, 0.0
        %v5443 = vmax.f32 %v5379, 0.0
        %v5444 = vmax.f32 %v5380, 0.0
        %v5445 = vmax.f32 %v5381, 0.0
        %v5446 = vmax.f32 %v5382, 0.0
        %v5447 = vmax.f32 %v5383, 0.0
        %v5448 = vmax.f32 %v5384, 0.0
        %v5449 = vmax.f32 %v5385, 0.0
        %v5450 = vmax.f32 %v5386, 0.0
        %v5451 = vmax.f32 %v5387, 0.0
        %v5452 = vmax.f32 %v5388, 0.0
        %v5453 = vmax.f32 %v5389, 0.0
        %v5454 = vmax.f32 %v5390, 0.0
        %v5455 = vmax.f32 %v5391, 0.0
        %v5456 = vmax.f32 %v5392, 0.0
        %v5457 = vmax.f32 %v5393, 0.0
        %v5458 = vmax.f32 %v5394, 0.0
        %v5459 = vmax.f32 %v5395, 0.0
        %v5460 = vmax.f32 %v5396, 0.0
        %v5461 = vmax.f32 %v5397, 0.0
        %v5462 = vmax.f32 %v5398, 0.0
        %v5463 = vmax.f32 %v5399, 0.0
        %v5464 = vmax.f32 %v5400, 0.0
        %v5465 = vmax.f32 %v5401, 0.0
        %v5466 = vmax.f32 %v5402, 0.0
        %v5467 = vmax.f32 %v5403, 0.0
        %v5468 = vmax.f32 %v5404, 0.0
        %v5469 = vmax.f32 %v5405, 0.0
        %v5470 = vmax.f32 %v5406, 0.0
        %v5471 = vmax.f32 %v5407, 0.0
        %v5472 = vmax.f32 %v5408, 0.0
        %v5473 = vmax.f32 %v5409, 0.0
        %v5474 = vpack.c.bf16 %v5412, %v5410
        %v5475 = vpack.c.bf16 %v5413, %v5411
        %v5476 = vpack.c.bf16 %v5416, %v5414
        %v5477 = vpack.c.bf16 %v5417, %v5415
        %v5478 = vpack.c.bf16 %v5420, %v5418
        %v5479 = vpack.c.bf16 %v5421, %v5419
        %v5480 = vpack.c.bf16 %v5424, %v5422
        %v5481 = vpack.c.bf16 %v5425, %v5423
        %v5482 = vpack.c.bf16 %v5428, %v5426
        %v5483 = vpack.c.bf16 %v5429, %v5427
        %v5484 = vpack.c.bf16 %v5432, %v5430
        %v5485 = vpack.c.bf16 %v5433, %v5431
        %v5486 = vpack.c.bf16 %v5436, %v5434
        %v5487 = vpack.c.bf16 %v5437, %v5435
        %v5488 = vpack.c.bf16 %v5440, %v5438
        %v5489 = vpack.c.bf16 %v5441, %v5439
        %v5490 = vpack.c.bf16 %v5444, %v5442
        %v5491 = vpack.c.bf16 %v5445, %v5443
        %v5492 = vpack.c.bf16 %v5448, %v5446
        %v5493 = vpack.c.bf16 %v5449, %v5447
        %v5494 = vpack.c.bf16 %v5452, %v5450
        %v5495 = vpack.c.bf16 %v5453, %v5451
        %v5496 = vpack.c.bf16 %v5456, %v5454
        %v5497 = vpack.c.bf16 %v5457, %v5455
        %v5498 = vpack.c.bf16 %v5460, %v5458
        %v5499 = vpack.c.bf16 %v5461, %v5459
        %v5500 = vpack.c.bf16 %v5464, %v5462
        %v5501 = vpack.c.bf16 %v5465, %v5463
        %v5502 = vpack.c.bf16 %v5468, %v5466
        %v5503 = vpack.c.bf16 %v5469, %v5467
        %v5504 = vpack.c.bf16 %v5472, %v5470
        %v5505 = vpack.c.bf16 %v5473, %v5471
        %v5507 = vshrl.u32 %v5474, 16
        %v5510 = vshrl.u32 %v5475, 16
        %v5513 = vshrl.u32 %v5476, 16
        %v5516 = vshrl.u32 %v5477, 16
        %v5519 = vshrl.u32 %v5478, 16
        %v5522 = vshrl.u32 %v5479, 16
        %v5525 = vshrl.u32 %v5480, 16
        %v5528 = vshrl.u32 %v5481, 16
        %v5531 = vshrl.u32 %v5482, 16
        %v5534 = vshrl.u32 %v5483, 16
        %v5537 = vshrl.u32 %v5484, 16
        %v5540 = vshrl.u32 %v5485, 16
        %v5543 = vshrl.u32 %v5486, 16
        %v5546 = vshrl.u32 %v5487, 16
        %v5549 = vshrl.u32 %v5488, 16
        %v5552 = vshrl.u32 %v5489, 16
        %v5555 = vshrl.u32 %v5490, 16
        %v5558 = vshrl.u32 %v5491, 16
        %v5561 = vshrl.u32 %v5492, 16
        %v5564 = vshrl.u32 %v5493, 16
        %v5567 = vshrl.u32 %v5494, 16
        %v5570 = vshrl.u32 %v5495, 16
        %v5573 = vshrl.u32 %v5496, 16
        %v5576 = vshrl.u32 %v5497, 16
        %v5579 = vshrl.u32 %v5498, 16
        %v5582 = vshrl.u32 %v5499, 16
        %v5585 = vshrl.u32 %v5500, 16
        %v5588 = vshrl.u32 %v5501, 16
        %v5591 = vshrl.u32 %v5502, 16
        %v5594 = vshrl.u32 %v5503, 16
        %v5597 = vshrl.u32 %v5504, 16
        %v5600 = vshrl.u32 %v5505, 16
        %v5634 = vrot.slane %v5507, 7
        %v5635 = vshll.u32 %v5474, 16
        %v5637 = vor.u32 %v5634, %v5635
        %v5638 = vrot.slane %v5510, 7
        %v5639 = vshll.u32 %v5475, 16
        %v5641 = vor.u32 %v5638, %v5639
        %v5642 = vrot.slane %v5513, 7
        %v5643 = vshll.u32 %v5476, 16
        %v5645 = vor.u32 %v5642, %v5643
        %v5646 = vrot.slane %v5516, 7
        %v5647 = vshll.u32 %v5477, 16
        %v5649 = vor.u32 %v5646, %v5647
        %v5650 = vrot.slane %v5519, 7
        %v5651 = vshll.u32 %v5478, 16
        %v5653 = vor.u32 %v5650, %v5651
        %v5654 = vrot.slane %v5522, 7
        %v5655 = vshll.u32 %v5479, 16
        %v5657 = vor.u32 %v5654, %v5655
        %v5658 = vrot.slane %v5525, 7
        %v5659 = vshll.u32 %v5480, 16
        %v5661 = vor.u32 %v5658, %v5659
        %v5662 = vrot.slane %v5528, 7
        %v5663 = vshll.u32 %v5481, 16
        %v5665 = vor.u32 %v5662, %v5663
        %v5666 = vrot.slane %v5531, 7
        %v5667 = vshll.u32 %v5482, 16
        %v5669 = vor.u32 %v5666, %v5667
        %v5670 = vrot.slane %v5534, 7
        %v5671 = vshll.u32 %v5483, 16
        %v5673 = vor.u32 %v5670, %v5671
        %v5674 = vrot.slane %v5537, 7
        %v5675 = vshll.u32 %v5484, 16
        %v5677 = vor.u32 %v5674, %v5675
        %v5678 = vrot.slane %v5540, 7
        %v5679 = vshll.u32 %v5485, 16
        %v5681 = vor.u32 %v5678, %v5679
        %v5682 = vrot.slane %v5543, 7
        %v5683 = vshll.u32 %v5486, 16
        %v5685 = vor.u32 %v5682, %v5683
        %v5686 = vrot.slane %v5546, 7
        %v5687 = vshll.u32 %v5487, 16
        %v5689 = vor.u32 %v5686, %v5687
        %v5690 = vrot.slane %v5549, 7
        %v5691 = vshll.u32 %v5488, 16
        %v5693 = vor.u32 %v5690, %v5691
        %v5694 = vrot.slane %v5552, 7
        %v5695 = vshll.u32 %v5489, 16
        %v5697 = vor.u32 %v5694, %v5695
        %v5698 = vrot.slane %v5555, 7
        %v5699 = vshll.u32 %v5490, 16
        %v5701 = vor.u32 %v5698, %v5699
        %v5702 = vrot.slane %v5558, 7
        %v5703 = vshll.u32 %v5491, 16
        %v5705 = vor.u32 %v5702, %v5703
        %v5706 = vrot.slane %v5561, 7
        %v5707 = vshll.u32 %v5492, 16
        %v5709 = vor.u32 %v5706, %v5707
        %v5710 = vrot.slane %v5564, 7
        %v5711 = vshll.u32 %v5493, 16
        %v5713 = vor.u32 %v5710, %v5711
        %v5714 = vrot.slane %v5567, 7
        %v5715 = vshll.u32 %v5494, 16
        %v5717 = vor.u32 %v5714, %v5715
        %v5718 = vrot.slane %v5570, 7
        %v5719 = vshll.u32 %v5495, 16
        %v5721 = vor.u32 %v5718, %v5719
        %v5722 = vrot.slane %v5573, 7
        %v5723 = vshll.u32 %v5496, 16
        %v5725 = vor.u32 %v5722, %v5723
        %v5726 = vrot.slane %v5576, 7
        %v5727 = vshll.u32 %v5497, 16
        %v5729 = vor.u32 %v5726, %v5727
        %v5730 = vrot.slane %v5579, 7
        %v5731 = vshll.u32 %v5498, 16
        %v5733 = vor.u32 %v5730, %v5731
        %v5734 = vrot.slane %v5582, 7
        %v5735 = vshll.u32 %v5499, 16
        %v5737 = vor.u32 %v5734, %v5735
        %v5738 = vrot.slane %v5585, 7
        %v5739 = vshll.u32 %v5500, 16
        %v5741 = vor.u32 %v5738, %v5739
        %v5742 = vrot.slane %v5588, 7
        %v5743 = vshll.u32 %v5501, 16
        %v5745 = vor.u32 %v5742, %v5743
        %v5746 = vrot.slane %v5591, 7
        %v5747 = vshll.u32 %v5502, 16
        %v5749 = vor.u32 %v5746, %v5747
        %v5750 = vrot.slane %v5594, 7
        %v5751 = vshll.u32 %v5503, 16
        %v5753 = vor.u32 %v5750, %v5751
        %v5754 = vrot.slane %v5597, 7
        %v5755 = vshll.u32 %v5504, 16
        %v5757 = vor.u32 %v5754, %v5755
        %v5758 = vrot.slane %v5600, 7
        %v5759 = vshll.u32 %v5505, 16
        %v5761 = vor.u32 %v5758, %v5759
        %v5826 = vrot.slane %v5635, 7
        %v5827 = vrot.slane %v5639, 7
        %v5828 = vrot.slane %v5643, 7
        %v5829 = vrot.slane %v5647, 7
        %v5830 = vrot.slane %v5651, 7
        %v5831 = vrot.slane %v5655, 7
        %v5832 = vrot.slane %v5659, 7
        %v5833 = vrot.slane %v5663, 7
        %v5834 = vrot.slane %v5667, 7
        %v5835 = vrot.slane %v5671, 7
        %v5836 = vrot.slane %v5675, 7
        %v5837 = vrot.slane %v5679, 7
        %v5838 = vrot.slane %v5683, 7
        %v5839 = vrot.slane %v5687, 7
        %v5840 = vrot.slane %v5691, 7
        %v5841 = vrot.slane %v5695, 7
        %v5842 = vrot.slane %v5699, 7
        %v5843 = vrot.slane %v5703, 7
        %v5844 = vrot.slane %v5707, 7
        %v5845 = vrot.slane %v5711, 7
        %v5846 = vrot.slane %v5715, 7
        %v5847 = vrot.slane %v5719, 7
        %v5848 = vrot.slane %v5723, 7
        %v5849 = vrot.slane %v5727, 7
        %v5850 = vrot.slane %v5731, 7
        %v5851 = vrot.slane %v5735, 7
        %v5852 = vrot.slane %v5739, 7
        %v5853 = vrot.slane %v5743, 7
        %v5854 = vrot.slane %v5747, 7
        %v5855 = vrot.slane %v5751, 7
        %v5856 = vrot.slane %v5755, 7
        %v5857 = vrot.slane %v5759, 7
        %v5890 = vsel %vm779, %v5507, %v5637
        %v5891 = vsel %vm779, %v5510, %v5641
        %v5892 = vsel %vm779, %v5513, %v5645
        %v5893 = vsel %vm779, %v5516, %v5649
        %v5894 = vsel %vm779, %v5519, %v5653
        %v5895 = vsel %vm779, %v5522, %v5657
        %v5896 = vsel %vm779, %v5525, %v5661
        %v5897 = vsel %vm779, %v5528, %v5665
        %v5898 = vsel %vm779, %v5531, %v5669
        %v5899 = vsel %vm779, %v5534, %v5673
        %v5900 = vsel %vm779, %v5537, %v5677
        %v5901 = vsel %vm779, %v5540, %v5681
        %v5902 = vsel %vm779, %v5543, %v5685
        %v5903 = vsel %vm779, %v5546, %v5689
        %v5904 = vsel %vm779, %v5549, %v5693
        %v5905 = vsel %vm779, %v5552, %v5697
        %v5906 = vsel %vm779, %v5555, %v5701
        %v5907 = vsel %vm779, %v5558, %v5705
        %v5908 = vsel %vm779, %v5561, %v5709
        %v5909 = vsel %vm779, %v5564, %v5713
        %v5910 = vsel %vm779, %v5567, %v5717
        %v5911 = vsel %vm779, %v5570, %v5721
        %v5912 = vsel %vm779, %v5573, %v5725
        %v5913 = vsel %vm779, %v5576, %v5729
        %v5914 = vsel %vm779, %v5579, %v5733
        %v5915 = vsel %vm779, %v5582, %v5737
        %v5916 = vsel %vm779, %v5585, %v5741
        %v5917 = vsel %vm779, %v5588, %v5745
        %v5918 = vsel %vm779, %v5591, %v5749
        %v5919 = vsel %vm779, %v5594, %v5753
        %v5920 = vsel %vm779, %v5597, %v5757
        %v5921 = vsel %vm779, %v5600, %v5761
        %v5922 = vsel %vm779, %v5634, %v5826
        %v5923 = vsel %vm779, %v5638, %v5827
        %v5924 = vsel %vm779, %v5642, %v5828
        %v5925 = vsel %vm779, %v5646, %v5829
        %v5926 = vsel %vm779, %v5650, %v5830
        %v5927 = vsel %vm779, %v5654, %v5831
        %v5928 = vsel %vm779, %v5658, %v5832
        %v5929 = vsel %vm779, %v5662, %v5833
        %v5930 = vsel %vm779, %v5666, %v5834
        %v5931 = vsel %vm779, %v5670, %v5835
        %v5932 = vsel %vm779, %v5674, %v5836
        %v5933 = vsel %vm779, %v5678, %v5837
        %v5934 = vsel %vm779, %v5682, %v5838
        %v5935 = vsel %vm779, %v5686, %v5839
        %v5936 = vsel %vm779, %v5690, %v5840
        %v5937 = vsel %vm779, %v5694, %v5841
        %v5938 = vsel %vm779, %v5698, %v5842
        %v5939 = vsel %vm779, %v5702, %v5843
        %v5940 = vsel %vm779, %v5706, %v5844
        %v5941 = vsel %vm779, %v5710, %v5845
        %v5942 = vsel %vm779, %v5714, %v5846
        %v5943 = vsel %vm779, %v5718, %v5847
        %v5944 = vsel %vm779, %v5722, %v5848
        %v5945 = vsel %vm779, %v5726, %v5849
        %v5946 = vsel %vm779, %v5730, %v5850
        %v5947 = vsel %vm779, %v5734, %v5851
        %v5948 = vsel %vm779, %v5738, %v5852
        %v5949 = vsel %vm779, %v5742, %v5853
        %v5950 = vsel %vm779, %v5746, %v5854
        %v5951 = vsel %vm779, %v5750, %v5855
        %v5952 = vsel %vm779, %v5754, %v5856
        %v5953 = vsel %vm779, %v5758, %v5857
        %v5955 = vshrl.u32 %v5890, 16
        %v5957 = vshll.u32 %v5890, 16
        %v5959 = vrot.slane %v5957, 1
        %v5960 = vor.u32 %v5955, %v5959
        %v5962 = vshll.u32 %v5922, 16
        %v5964 = vrot.slane %v5962, 1
        %v5965 = vsel %vm844, %v5960, %v5964
        %v5967 = vshrl.u32 %v5891, 16
        %v5969 = vshll.u32 %v5891, 16
        %v5971 = vrot.slane %v5969, 1
        %v5972 = vor.u32 %v5967, %v5971
        %v5974 = vshll.u32 %v5923, 16
        %v5976 = vrot.slane %v5974, 1
        %v5977 = vsel %vm844, %v5972, %v5976
        %v5979 = vshrl.u32 %v5892, 16
        %v5981 = vshll.u32 %v5892, 16
        %v5983 = vrot.slane %v5981, 1
        %v5984 = vor.u32 %v5979, %v5983
        %v5986 = vshll.u32 %v5924, 16
        %v5988 = vrot.slane %v5986, 1
        %v5989 = vsel %vm844, %v5984, %v5988
        %v5991 = vshrl.u32 %v5893, 16
        %v5993 = vshll.u32 %v5893, 16
        %v5995 = vrot.slane %v5993, 1
        %v5996 = vor.u32 %v5991, %v5995
        %v5998 = vshll.u32 %v5925, 16
        %v6000 = vrot.slane %v5998, 1
        %v6001 = vsel %vm844, %v5996, %v6000
        %v6003 = vshrl.u32 %v5894, 16
        %v6005 = vshll.u32 %v5894, 16
        %v6007 = vrot.slane %v6005, 1
        %v6008 = vor.u32 %v6003, %v6007
        %v6010 = vshll.u32 %v5926, 16
        %v6012 = vrot.slane %v6010, 1
        %v6013 = vsel %vm844, %v6008, %v6012
        %v6015 = vshrl.u32 %v5895, 16
        %v6017 = vshll.u32 %v5895, 16
        %v6019 = vrot.slane %v6017, 1
        %v6020 = vor.u32 %v6015, %v6019
        %v6022 = vshll.u32 %v5927, 16
        %v6024 = vrot.slane %v6022, 1
        %v6025 = vsel %vm844, %v6020, %v6024
        %v6027 = vshrl.u32 %v5896, 16
        %v6029 = vshll.u32 %v5896, 16
        %v6031 = vrot.slane %v6029, 1
        %v6032 = vor.u32 %v6027, %v6031
        %v6034 = vshll.u32 %v5928, 16
        %v6036 = vrot.slane %v6034, 1
        %v6037 = vsel %vm844, %v6032, %v6036
        %v6039 = vshrl.u32 %v5897, 16
        %v6041 = vshll.u32 %v5897, 16
        %v6043 = vrot.slane %v6041, 1
        %v6044 = vor.u32 %v6039, %v6043
        %v6046 = vshll.u32 %v5929, 16
        %v6048 = vrot.slane %v6046, 1
        %v6049 = vsel %vm844, %v6044, %v6048
        %v6051 = vshrl.u32 %v5898, 16
        %v6053 = vshll.u32 %v5898, 16
        %v6055 = vrot.slane %v6053, 1
        %v6056 = vor.u32 %v6051, %v6055
        %v6058 = vshll.u32 %v5930, 16
        %v6060 = vrot.slane %v6058, 1
        %v6061 = vsel %vm844, %v6056, %v6060
        %v6063 = vshrl.u32 %v5899, 16
        %v6065 = vshll.u32 %v5899, 16
        %v6067 = vrot.slane %v6065, 1
        %v6068 = vor.u32 %v6063, %v6067
        %v6070 = vshll.u32 %v5931, 16
        %v6072 = vrot.slane %v6070, 1
        %v6073 = vsel %vm844, %v6068, %v6072
        %v6075 = vshrl.u32 %v5900, 16
        %v6077 = vshll.u32 %v5900, 16
        %v6079 = vrot.slane %v6077, 1
        %v6080 = vor.u32 %v6075, %v6079
        %v6082 = vshll.u32 %v5932, 16
        %v6084 = vrot.slane %v6082, 1
        %v6085 = vsel %vm844, %v6080, %v6084
        %v6087 = vshrl.u32 %v5901, 16
        %v6089 = vshll.u32 %v5901, 16
        %v6091 = vrot.slane %v6089, 1
        %v6092 = vor.u32 %v6087, %v6091
        %v6094 = vshll.u32 %v5933, 16
        %v6096 = vrot.slane %v6094, 1
        %v6097 = vsel %vm844, %v6092, %v6096
        %v6099 = vshrl.u32 %v5902, 16
        %v6101 = vshll.u32 %v5902, 16
        %v6103 = vrot.slane %v6101, 1
        %v6104 = vor.u32 %v6099, %v6103
        %v6106 = vshll.u32 %v5934, 16
        %v6108 = vrot.slane %v6106, 1
        %v6109 = vsel %vm844, %v6104, %v6108
        %v6111 = vshrl.u32 %v5903, 16
        %v6113 = vshll.u32 %v5903, 16
        %v6115 = vrot.slane %v6113, 1
        %v6116 = vor.u32 %v6111, %v6115
        %v6118 = vshll.u32 %v5935, 16
        %v6120 = vrot.slane %v6118, 1
        %v6121 = vsel %vm844, %v6116, %v6120
        %v6123 = vshrl.u32 %v5904, 16
        %v6125 = vshll.u32 %v5904, 16
        %v6127 = vrot.slane %v6125, 1
        %v6128 = vor.u32 %v6123, %v6127
        %v6130 = vshll.u32 %v5936, 16
        %v6132 = vrot.slane %v6130, 1
        %v6133 = vsel %vm844, %v6128, %v6132
        %v6135 = vshrl.u32 %v5905, 16
        %v6137 = vshll.u32 %v5905, 16
        %v6139 = vrot.slane %v6137, 1
        %v6140 = vor.u32 %v6135, %v6139
        %v6142 = vshll.u32 %v5937, 16
        %v6144 = vrot.slane %v6142, 1
        %v6145 = vsel %vm844, %v6140, %v6144
        %v6147 = vshrl.u32 %v5906, 16
        %v6149 = vshll.u32 %v5906, 16
        %v6151 = vrot.slane %v6149, 1
        %v6152 = vor.u32 %v6147, %v6151
        %v6154 = vshll.u32 %v5938, 16
        %v6156 = vrot.slane %v6154, 1
        %v6157 = vsel %vm844, %v6152, %v6156
        %v6159 = vshrl.u32 %v5907, 16
        %v6161 = vshll.u32 %v5907, 16
        %v6163 = vrot.slane %v6161, 1
        %v6164 = vor.u32 %v6159, %v6163
        %v6166 = vshll.u32 %v5939, 16
        %v6168 = vrot.slane %v6166, 1
        %v6169 = vsel %vm844, %v6164, %v6168
        %v6171 = vshrl.u32 %v5908, 16
        %v6173 = vshll.u32 %v5908, 16
        %v6175 = vrot.slane %v6173, 1
        %v6176 = vor.u32 %v6171, %v6175
        %v6178 = vshll.u32 %v5940, 16
        %v6180 = vrot.slane %v6178, 1
        %v6181 = vsel %vm844, %v6176, %v6180
        %v6183 = vshrl.u32 %v5909, 16
        %v6185 = vshll.u32 %v5909, 16
        %v6187 = vrot.slane %v6185, 1
        %v6188 = vor.u32 %v6183, %v6187
        %v6190 = vshll.u32 %v5941, 16
        %v6192 = vrot.slane %v6190, 1
        %v6193 = vsel %vm844, %v6188, %v6192
        %v6195 = vshrl.u32 %v5910, 16
        %v6197 = vshll.u32 %v5910, 16
        %v6199 = vrot.slane %v6197, 1
        %v6200 = vor.u32 %v6195, %v6199
        %v6202 = vshll.u32 %v5942, 16
        %v6204 = vrot.slane %v6202, 1
        %v6205 = vsel %vm844, %v6200, %v6204
        %v6207 = vshrl.u32 %v5911, 16
        %v6209 = vshll.u32 %v5911, 16
        %v6211 = vrot.slane %v6209, 1
        %v6212 = vor.u32 %v6207, %v6211
        %v6214 = vshll.u32 %v5943, 16
        %v6216 = vrot.slane %v6214, 1
        %v6217 = vsel %vm844, %v6212, %v6216
        %v6219 = vshrl.u32 %v5912, 16
        %v6221 = vshll.u32 %v5912, 16
        %v6223 = vrot.slane %v6221, 1
        %v6224 = vor.u32 %v6219, %v6223
        %v6226 = vshll.u32 %v5944, 16
        %v6228 = vrot.slane %v6226, 1
        %v6229 = vsel %vm844, %v6224, %v6228
        %v6231 = vshrl.u32 %v5913, 16
        %v6233 = vshll.u32 %v5913, 16
        %v6235 = vrot.slane %v6233, 1
        %v6236 = vor.u32 %v6231, %v6235
        %v6238 = vshll.u32 %v5945, 16
        %v6240 = vrot.slane %v6238, 1
        %v6241 = vsel %vm844, %v6236, %v6240
        %v6243 = vshrl.u32 %v5914, 16
        %v6245 = vshll.u32 %v5914, 16
        %v6247 = vrot.slane %v6245, 1
        %v6248 = vor.u32 %v6243, %v6247
        %v6250 = vshll.u32 %v5946, 16
        %v6252 = vrot.slane %v6250, 1
        %v6253 = vsel %vm844, %v6248, %v6252
        %v6255 = vshrl.u32 %v5915, 16
        %v6257 = vshll.u32 %v5915, 16
        %v6259 = vrot.slane %v6257, 1
        %v6260 = vor.u32 %v6255, %v6259
        %v6262 = vshll.u32 %v5947, 16
        %v6264 = vrot.slane %v6262, 1
        %v6265 = vsel %vm844, %v6260, %v6264
        %v6267 = vshrl.u32 %v5916, 16
        %v6269 = vshll.u32 %v5916, 16
        %v6271 = vrot.slane %v6269, 1
        %v6272 = vor.u32 %v6267, %v6271
        %v6274 = vshll.u32 %v5948, 16
        %v6276 = vrot.slane %v6274, 1
        %v6277 = vsel %vm844, %v6272, %v6276
        %v6279 = vshrl.u32 %v5917, 16
        %v6281 = vshll.u32 %v5917, 16
        %v6283 = vrot.slane %v6281, 1
        %v6284 = vor.u32 %v6279, %v6283
        %v6286 = vshll.u32 %v5949, 16
        %v6288 = vrot.slane %v6286, 1
        %v6289 = vsel %vm844, %v6284, %v6288
        %v6291 = vshrl.u32 %v5918, 16
        %v6293 = vshll.u32 %v5918, 16
        %v6295 = vrot.slane %v6293, 1
        %v6296 = vor.u32 %v6291, %v6295
        %v6298 = vshll.u32 %v5950, 16
        %v6300 = vrot.slane %v6298, 1
        %v6301 = vsel %vm844, %v6296, %v6300
        %v6303 = vshrl.u32 %v5919, 16
        %v6305 = vshll.u32 %v5919, 16
        %v6307 = vrot.slane %v6305, 1
        %v6308 = vor.u32 %v6303, %v6307
        %v6310 = vshll.u32 %v5951, 16
        %v6312 = vrot.slane %v6310, 1
        %v6313 = vsel %vm844, %v6308, %v6312
        %v6315 = vshrl.u32 %v5920, 16
        %v6317 = vshll.u32 %v5920, 16
        %v6319 = vrot.slane %v6317, 1
        %v6320 = vor.u32 %v6315, %v6319
        %v6322 = vshll.u32 %v5952, 16
        %v6324 = vrot.slane %v6322, 1
        %v6325 = vsel %vm844, %v6320, %v6324
        %v6327 = vshrl.u32 %v5921, 16
        %v6329 = vshll.u32 %v5921, 16
        %v6331 = vrot.slane %v6329, 1
        %v6332 = vor.u32 %v6327, %v6331
        %v6334 = vshll.u32 %v5953, 16
        %v6336 = vrot.slane %v6334, 1
        %v6337 = vsel %vm844, %v6332, %v6336
        %v6434 = vrot.slane %v5890, 1
        %v6435 = vrot.slane %v5922, 1
        %v6436 = vsel %vm1325, %v6434, %v6435
        %v6437 = vrot.slane %v5891, 1
        %v6438 = vrot.slane %v5923, 1
        %v6439 = vsel %vm1325, %v6437, %v6438
        %v6440 = vrot.slane %v5892, 1
        %v6441 = vrot.slane %v5924, 1
        %v6442 = vsel %vm1325, %v6440, %v6441
        %v6443 = vrot.slane %v5893, 1
        %v6444 = vrot.slane %v5925, 1
        %v6445 = vsel %vm1325, %v6443, %v6444
        %v6446 = vrot.slane %v5894, 1
        %v6447 = vrot.slane %v5926, 1
        %v6448 = vsel %vm1325, %v6446, %v6447
        %v6449 = vrot.slane %v5895, 1
        %v6450 = vrot.slane %v5927, 1
        %v6451 = vsel %vm1325, %v6449, %v6450
        %v6452 = vrot.slane %v5896, 1
        %v6453 = vrot.slane %v5928, 1
        %v6454 = vsel %vm1325, %v6452, %v6453
        %v6455 = vrot.slane %v5897, 1
        %v6456 = vrot.slane %v5929, 1
        %v6457 = vsel %vm1325, %v6455, %v6456
        %v6458 = vrot.slane %v5898, 1
        %v6459 = vrot.slane %v5930, 1
        %v6460 = vsel %vm1325, %v6458, %v6459
        %v6461 = vrot.slane %v5899, 1
        %v6462 = vrot.slane %v5931, 1
        %v6463 = vsel %vm1325, %v6461, %v6462
        %v6464 = vrot.slane %v5900, 1
        %v6465 = vrot.slane %v5932, 1
        %v6466 = vsel %vm1325, %v6464, %v6465
        %v6467 = vrot.slane %v5901, 1
        %v6468 = vrot.slane %v5933, 1
        %v6469 = vsel %vm1325, %v6467, %v6468
        %v6470 = vrot.slane %v5902, 1
        %v6471 = vrot.slane %v5934, 1
        %v6472 = vsel %vm1325, %v6470, %v6471
        %v6473 = vrot.slane %v5903, 1
        %v6474 = vrot.slane %v5935, 1
        %v6475 = vsel %vm1325, %v6473, %v6474
        %v6476 = vrot.slane %v5904, 1
        %v6477 = vrot.slane %v5936, 1
        %v6478 = vsel %vm1325, %v6476, %v6477
        %v6479 = vrot.slane %v5905, 1
        %v6480 = vrot.slane %v5937, 1
        %v6481 = vsel %vm1325, %v6479, %v6480
        %v6482 = vrot.slane %v5906, 1
        %v6483 = vrot.slane %v5938, 1
        %v6484 = vsel %vm1325, %v6482, %v6483
        %v6485 = vrot.slane %v5907, 1
        %v6486 = vrot.slane %v5939, 1
        %v6487 = vsel %vm1325, %v6485, %v6486
        %v6488 = vrot.slane %v5908, 1
        %v6489 = vrot.slane %v5940, 1
        %v6490 = vsel %vm1325, %v6488, %v6489
        %v6491 = vrot.slane %v5909, 1
        %v6492 = vrot.slane %v5941, 1
        %v6493 = vsel %vm1325, %v6491, %v6492
        %v6494 = vrot.slane %v5910, 1
        %v6495 = vrot.slane %v5942, 1
        %v6496 = vsel %vm1325, %v6494, %v6495
        %v6497 = vrot.slane %v5911, 1
        %v6498 = vrot.slane %v5943, 1
        %v6499 = vsel %vm1325, %v6497, %v6498
        %v6500 = vrot.slane %v5912, 1
        %v6501 = vrot.slane %v5944, 1
        %v6502 = vsel %vm1325, %v6500, %v6501
        %v6503 = vrot.slane %v5913, 1
        %v6504 = vrot.slane %v5945, 1
        %v6505 = vsel %vm1325, %v6503, %v6504
        %v6506 = vrot.slane %v5914, 1
        %v6507 = vrot.slane %v5946, 1
        %v6508 = vsel %vm1325, %v6506, %v6507
        %v6509 = vrot.slane %v5915, 1
        %v6510 = vrot.slane %v5947, 1
        %v6511 = vsel %vm1325, %v6509, %v6510
        %v6512 = vrot.slane %v5916, 1
        %v6513 = vrot.slane %v5948, 1
        %v6514 = vsel %vm1325, %v6512, %v6513
        %v6515 = vrot.slane %v5917, 1
        %v6516 = vrot.slane %v5949, 1
        %v6517 = vsel %vm1325, %v6515, %v6516
        %v6518 = vrot.slane %v5918, 1
        %v6519 = vrot.slane %v5950, 1
        %v6520 = vsel %vm1325, %v6518, %v6519
        %v6521 = vrot.slane %v5919, 1
        %v6522 = vrot.slane %v5951, 1
        %v6523 = vsel %vm1325, %v6521, %v6522
        %v6524 = vrot.slane %v5920, 1
        %v6525 = vrot.slane %v5952, 1
        %v6526 = vsel %vm1325, %v6524, %v6525
        %v6527 = vrot.slane %v5921, 1
        %v6528 = vrot.slane %v5953, 1
        %v6529 = vsel %vm1325, %v6527, %v6528
        %v6562 = vld [vmem:[#allocation8] sm:$0xff]
        %v6563 = vld [vmem:[#allocation8 + $0x8] sm:$0xff]
        %v6564 = vld [vmem:[#allocation8 + $0x10] sm:$0xff]
        %v6565 = vld [vmem:[#allocation8 + $0x18] sm:$0xff]
        %v6566 = vld [vmem:[#allocation8 + $0x20] sm:$0xff]
        %v6567 = vld [vmem:[#allocation8 + $0x28] sm:$0xff]
        %v6568 = vld [vmem:[#allocation8 + $0x30] sm:$0xff]
        %v6569 = vld [vmem:[#allocation8 + $0x38] sm:$0xff]
        %v6570 = vld [vmem:[#allocation8 + $0x40] sm:$0xff]
        %v6571 = vld [vmem:[#allocation8 + $0x48] sm:$0xff]
        %v6572 = vld [vmem:[#allocation8 + $0x50] sm:$0xff]
        %v6573 = vld [vmem:[#allocation8 + $0x58] sm:$0xff]
        %v6574 = vld [vmem:[#allocation8 + $0x60] sm:$0xff]
        %v6575 = vld [vmem:[#allocation8 + $0x68] sm:$0xff]
        %v6576 = vld [vmem:[#allocation8 + $0x70] sm:$0xff]
        %v6577 = vld [vmem:[#allocation8 + $0x78] sm:$0xff]
        %v6578 = vld [vmem:[#allocation8 + $0x80] sm:$0xff]
        %v6579 = vld [vmem:[#allocation8 + $0x88] sm:$0xff]
        %v6580 = vld [vmem:[#allocation8 + $0x90] sm:$0xff]
        %v6581 = vld [vmem:[#allocation8 + $0x98] sm:$0xff]
        %v6582 = vld [vmem:[#allocation8 + $0xa0] sm:$0xff]
        %v6583 = vld [vmem:[#allocation8 + $0xa8] sm:$0xff]
        %v6584 = vld [vmem:[#allocation8 + $0xb0] sm:$0xff]
        %v6585 = vld [vmem:[#allocation8 + $0xb8] sm:$0xff]
        %v6586 = vld [vmem:[#allocation8 + $0xc0] sm:$0xff]
        %v6587 = vld [vmem:[#allocation8 + $0xc8] sm:$0xff]
        %v6588 = vld [vmem:[#allocation8 + $0xd0] sm:$0xff]
        %v6589 = vld [vmem:[#allocation8 + $0xd8] sm:$0xff]
        %v6590 = vld [vmem:[#allocation8 + $0xe0] sm:$0xff]
        %v6591 = vld [vmem:[#allocation8 + $0xe8] sm:$0xff]
        %v6592 = vld [vmem:[#allocation8 + $0xf0] sm:$0xff]
        %v6593 = vld [vmem:[#allocation8 + $0xf8] sm:$0xff]
        %v6594 = vld [vmem:[#allocation8 + $0x100] sm:$0xff]
        %v6595 = vld [vmem:[#allocation8 + $0x108] sm:$0xff]
        %v6596 = vld [vmem:[#allocation8 + $0x110] sm:$0xff]
        %v6597 = vld [vmem:[#allocation8 + $0x118] sm:$0xff]
        %v6598 = vld [vmem:[#allocation8 + $0x120] sm:$0xff]
        %v6599 = vld [vmem:[#allocation8 + $0x128] sm:$0xff]
        %v6600 = vld [vmem:[#allocation8 + $0x130] sm:$0xff]
        %v6601 = vld [vmem:[#allocation8 + $0x138] sm:$0xff]
        %v6602 = vld [vmem:[#allocation8 + $0x140] sm:$0xff]
        %v6603 = vld [vmem:[#allocation8 + $0x148] sm:$0xff]
        %v6604 = vld [vmem:[#allocation8 + $0x150] sm:$0xff]
        %v6605 = vld [vmem:[#allocation8 + $0x158] sm:$0xff]
        %v6606 = vld [vmem:[#allocation8 + $0x160] sm:$0xff]
        %v6607 = vld [vmem:[#allocation8 + $0x168] sm:$0xff]
        %v6608 = vld [vmem:[#allocation8 + $0x170] sm:$0xff]
        %v6609 = vld [vmem:[#allocation8 + $0x178] sm:$0xff]
        %v6610 = vld [vmem:[#allocation8 + $0x180] sm:$0xff]
        %v6611 = vld [vmem:[#allocation8 + $0x188] sm:$0xff]
        %v6612 = vld [vmem:[#allocation8 + $0x190] sm:$0xff]
        %v6613 = vld [vmem:[#allocation8 + $0x198] sm:$0xff]
        %v6614 = vld [vmem:[#allocation8 + $0x1a0] sm:$0xff]
        %v6615 = vld [vmem:[#allocation8 + $0x1a8] sm:$0xff]
        %v6616 = vld [vmem:[#allocation8 + $0x1b0] sm:$0xff]
        %v6617 = vld [vmem:[#allocation8 + $0x1b8] sm:$0xff]
        %v6618 = vld [vmem:[#allocation8 + $0x1c0] sm:$0xff]
        %v6619 = vld [vmem:[#allocation8 + $0x1c8] sm:$0xff]
        %v6620 = vld [vmem:[#allocation8 + $0x1d0] sm:$0xff]
        %v6621 = vld [vmem:[#allocation8 + $0x1d8] sm:$0xff]
        %v6622 = vld [vmem:[#allocation8 + $0x1e0] sm:$0xff]
        %v6623 = vld [vmem:[#allocation8 + $0x1e8] sm:$0xff]
        %v6624 = vld [vmem:[#allocation8 + $0x1f0] sm:$0xff]
        %v6625 = vld [vmem:[#allocation8 + $0x1f8] sm:$0xff]
        %v6626 = vld [vmem:[#allocation8 + $0x200] sm:$0xff]
        %v6627 = vld [vmem:[#allocation8 + $0x208] sm:$0xff]
        %v6628 = vld [vmem:[#allocation8 + $0x210] sm:$0xff]
        %v6629 = vld [vmem:[#allocation8 + $0x218] sm:$0xff]
        %v6630 = vld [vmem:[#allocation8 + $0x220] sm:$0xff]
        %v6631 = vld [vmem:[#allocation8 + $0x228] sm:$0xff]
        %v6632 = vld [vmem:[#allocation8 + $0x230] sm:$0xff]
        %v6633 = vld [vmem:[#allocation8 + $0x238] sm:$0xff]
        %v6634 = vld [vmem:[#allocation8 + $0x240] sm:$0xff]
        %v6635 = vld [vmem:[#allocation8 + $0x248] sm:$0xff]
        %v6636 = vld [vmem:[#allocation8 + $0x250] sm:$0xff]
        %v6637 = vld [vmem:[#allocation8 + $0x258] sm:$0xff]
        %v6638 = vld [vmem:[#allocation8 + $0x260] sm:$0xff]
        %v6639 = vld [vmem:[#allocation8 + $0x268] sm:$0xff]
        %v6640 = vld [vmem:[#allocation8 + $0x270] sm:$0xff]
        %v6641 = vld [vmem:[#allocation8 + $0x278] sm:$0xff]
        %v6642 = vld [vmem:[#allocation8 + $0x280] sm:$0xff]
        %v6643 = vld [vmem:[#allocation8 + $0x288] sm:$0xff]
        %v6644 = vld [vmem:[#allocation8 + $0x290] sm:$0xff]
        %v6645 = vld [vmem:[#allocation8 + $0x298] sm:$0xff]
        %v6646 = vld [vmem:[#allocation8 + $0x2a0] sm:$0xff]
        %v6647 = vld [vmem:[#allocation8 + $0x2a8] sm:$0xff]
        %v6648 = vld [vmem:[#allocation8 + $0x2b0] sm:$0xff]
        %v6649 = vld [vmem:[#allocation8 + $0x2b8] sm:$0xff]
        %v6650 = vld [vmem:[#allocation8 + $0x2c0] sm:$0xff]
        %v6651 = vld [vmem:[#allocation8 + $0x2c8] sm:$0xff]
        %v6652 = vld [vmem:[#allocation8 + $0x2d0] sm:$0xff]
        %v6653 = vld [vmem:[#allocation8 + $0x2d8] sm:$0xff]
        %v6654 = vld [vmem:[#allocation8 + $0x2e0] sm:$0xff]
        %v6655 = vld [vmem:[#allocation8 + $0x2e8] sm:$0xff]
        %v6656 = vld [vmem:[#allocation8 + $0x2f0] sm:$0xff]
        %v6657 = vld [vmem:[#allocation8 + $0x2f8] sm:$0xff]
        %s6658 = scalar_lea.vmem [#allocation8], 768
        %v6659 = vld [vmem:[%s6658] sm:$0xff]
        %v6660 = vld [vmem:[%s6658 + $0x8] sm:$0xff]
        %v6661 = vld [vmem:[%s6658 + $0x10] sm:$0xff]
        %v6662 = vld [vmem:[%s6658 + $0x18] sm:$0xff]
        %v6663 = vld [vmem:[%s6658 + $0x20] sm:$0xff]
        %v6664 = vld [vmem:[%s6658 + $0x28] sm:$0xff]
        %v6665 = vld [vmem:[%s6658 + $0x30] sm:$0xff]
        %v6666 = vld [vmem:[%s6658 + $0x38] sm:$0xff]
        %v6667 = vld [vmem:[%s6658 + $0x40] sm:$0xff]
        %v6668 = vld [vmem:[%s6658 + $0x48] sm:$0xff]
        %v6669 = vld [vmem:[%s6658 + $0x50] sm:$0xff]
        %v6670 = vld [vmem:[%s6658 + $0x58] sm:$0xff]
        %v6671 = vld [vmem:[%s6658 + $0x60] sm:$0xff]
        %v6672 = vld [vmem:[%s6658 + $0x68] sm:$0xff]
        %v6673 = vld [vmem:[%s6658 + $0x70] sm:$0xff]
        %v6674 = vld [vmem:[%s6658 + $0x78] sm:$0xff]
        %v6675 = vld [vmem:[%s6658 + $0x80] sm:$0xff]
        %v6676 = vld [vmem:[%s6658 + $0x88] sm:$0xff]
        %v6677 = vld [vmem:[%s6658 + $0x90] sm:$0xff]
        %v6678 = vld [vmem:[%s6658 + $0x98] sm:$0xff]
        %v6679 = vld [vmem:[%s6658 + $0xa0] sm:$0xff]
        %v6680 = vld [vmem:[%s6658 + $0xa8] sm:$0xff]
        %v6681 = vld [vmem:[%s6658 + $0xb0] sm:$0xff]
        %v6682 = vld [vmem:[%s6658 + $0xb8] sm:$0xff]
        %v6683 = vld [vmem:[%s6658 + $0xc0] sm:$0xff]
        %v6684 = vld [vmem:[%s6658 + $0xc8] sm:$0xff]
        %v6685 = vld [vmem:[%s6658 + $0xd0] sm:$0xff]
        %v6686 = vld [vmem:[%s6658 + $0xd8] sm:$0xff]
        %v6687 = vld [vmem:[%s6658 + $0xe0] sm:$0xff]
        %v6688 = vld [vmem:[%s6658 + $0xe8] sm:$0xff]
        %v6689 = vld [vmem:[%s6658 + $0xf0] sm:$0xff]
        %v6690 = vld [vmem:[%s6658 + $0xf8] sm:$0xff]
        %v6691 = vld [vmem:[%s6658 + $0x100] sm:$0xff]
        %v6692 = vld [vmem:[%s6658 + $0x108] sm:$0xff]
        %v6693 = vld [vmem:[%s6658 + $0x110] sm:$0xff]
        %v6694 = vld [vmem:[%s6658 + $0x118] sm:$0xff]
        %v6695 = vld [vmem:[%s6658 + $0x120] sm:$0xff]
        %v6696 = vld [vmem:[%s6658 + $0x128] sm:$0xff]
        %v6697 = vld [vmem:[%s6658 + $0x130] sm:$0xff]
        %v6698 = vld [vmem:[%s6658 + $0x138] sm:$0xff]
        %v6699 = vld [vmem:[%s6658 + $0x140] sm:$0xff]
        %v6700 = vld [vmem:[%s6658 + $0x148] sm:$0xff]
        %v6701 = vld [vmem:[%s6658 + $0x150] sm:$0xff]
        %v6702 = vld [vmem:[%s6658 + $0x158] sm:$0xff]
        %v6703 = vld [vmem:[%s6658 + $0x160] sm:$0xff]
        %v6704 = vld [vmem:[%s6658 + $0x168] sm:$0xff]
        %v6705 = vld [vmem:[%s6658 + $0x170] sm:$0xff]
        %v6706 = vld [vmem:[%s6658 + $0x178] sm:$0xff]
        %v6707 = vld [vmem:[%s6658 + $0x180] sm:$0xff]
        %v6708 = vld [vmem:[%s6658 + $0x188] sm:$0xff]
        %v6709 = vld [vmem:[%s6658 + $0x190] sm:$0xff]
        %v6710 = vld [vmem:[%s6658 + $0x198] sm:$0xff]
        %v6711 = vld [vmem:[%s6658 + $0x1a0] sm:$0xff]
        %v6712 = vld [vmem:[%s6658 + $0x1a8] sm:$0xff]
        %v6713 = vld [vmem:[%s6658 + $0x1b0] sm:$0xff]
        %v6714 = vld [vmem:[%s6658 + $0x1b8] sm:$0xff]
        %v6715 = vld [vmem:[%s6658 + $0x1c0] sm:$0xff]
        %v6716 = vld [vmem:[%s6658 + $0x1c8] sm:$0xff]
        %v6717 = vld [vmem:[%s6658 + $0x1d0] sm:$0xff]
        %v6718 = vld [vmem:[%s6658 + $0x1d8] sm:$0xff]
        %v6719 = vld [vmem:[%s6658 + $0x1e0] sm:$0xff]
        %v6720 = vld [vmem:[%s6658 + $0x1e8] sm:$0xff]
        %v6721 = vld [vmem:[%s6658 + $0x1f0] sm:$0xff]
        %v6722 = vld [vmem:[%s6658 + $0x1f8] sm:$0xff]
        %v6723 = vld [vmem:[%s6658 + $0x200] sm:$0xff]
        %v6724 = vld [vmem:[%s6658 + $0x208] sm:$0xff]
        %v6725 = vld [vmem:[%s6658 + $0x210] sm:$0xff]
        %v6726 = vld [vmem:[%s6658 + $0x218] sm:$0xff]
        %v6727 = vld [vmem:[%s6658 + $0x220] sm:$0xff]
        %v6728 = vld [vmem:[%s6658 + $0x228] sm:$0xff]
        %v6729 = vld [vmem:[%s6658 + $0x230] sm:$0xff]
        %v6730 = vld [vmem:[%s6658 + $0x238] sm:$0xff]
        %v6731 = vld [vmem:[%s6658 + $0x240] sm:$0xff]
        %v6732 = vld [vmem:[%s6658 + $0x248] sm:$0xff]
        %v6733 = vld [vmem:[%s6658 + $0x250] sm:$0xff]
        %v6734 = vld [vmem:[%s6658 + $0x258] sm:$0xff]
        %v6735 = vld [vmem:[%s6658 + $0x260] sm:$0xff]
        %v6736 = vld [vmem:[%s6658 + $0x268] sm:$0xff]
        %v6737 = vld [vmem:[%s6658 + $0x270] sm:$0xff]
        %v6738 = vld [vmem:[%s6658 + $0x278] sm:$0xff]
        %v6739 = vld [vmem:[%s6658 + $0x280] sm:$0xff]
        %v6740 = vld [vmem:[%s6658 + $0x288] sm:$0xff]
        %v6741 = vld [vmem:[%s6658 + $0x290] sm:$0xff]
        %v6742 = vld [vmem:[%s6658 + $0x298] sm:$0xff]
        %v6743 = vld [vmem:[%s6658 + $0x2a0] sm:$0xff]
        %v6744 = vld [vmem:[%s6658 + $0x2a8] sm:$0xff]
        %v6745 = vld [vmem:[%s6658 + $0x2b0] sm:$0xff]
        %v6746 = vld [vmem:[%s6658 + $0x2b8] sm:$0xff]
        %v6747 = vld [vmem:[%s6658 + $0x2c0] sm:$0xff]
        %v6748 = vld [vmem:[%s6658 + $0x2c8] sm:$0xff]
        %v6749 = vld [vmem:[%s6658 + $0x2d0] sm:$0xff]
        %v6750 = vld [vmem:[%s6658 + $0x2d8] sm:$0xff]
        %v6751 = vld [vmem:[%s6658 + $0x2e0] sm:$0xff]
        %v6752 = vld [vmem:[%s6658 + $0x2e8] sm:$0xff]
        %v6753 = vld [vmem:[%s6658 + $0x2f0] sm:$0xff]
        %v6754 = vld [vmem:[%s6658 + $0x2f8] sm:$0xff]
        %v6851 = vunpack.c.l.b16 %v6659
        %v6852 = vunpack.c.h.b16 %v6659
        %v6853 = vunpack.c.l.b16 %v6660
        %v6854 = vunpack.c.h.b16 %v6660
        %v6855 = vunpack.c.l.b16 %v6661
        %v6856 = vunpack.c.h.b16 %v6661
        %v6857 = vunpack.c.l.b16 %v6662
        %v6858 = vunpack.c.h.b16 %v6662
        %v6859 = vunpack.c.l.b16 %v6663
        %v6860 = vunpack.c.h.b16 %v6663
        %v6861 = vunpack.c.l.b16 %v6664
        %v6862 = vunpack.c.h.b16 %v6664
        %v6863 = vunpack.c.l.b16 %v6665
        %v6864 = vunpack.c.h.b16 %v6665
        %v6865 = vunpack.c.l.b16 %v6666
        %v6866 = vunpack.c.h.b16 %v6666
        %v6867 = vunpack.c.l.b16 %v6667
        %v6868 = vunpack.c.h.b16 %v6667
        %v6869 = vunpack.c.l.b16 %v6668
        %v6870 = vunpack.c.h.b16 %v6668
        %v6871 = vunpack.c.l.b16 %v6669
        %v6872 = vunpack.c.h.b16 %v6669
        %v6873 = vunpack.c.l.b16 %v6670
        %v6874 = vunpack.c.h.b16 %v6670
        %v6875 = vunpack.c.l.b16 %v6671
        %v6876 = vunpack.c.h.b16 %v6671
        %v6877 = vunpack.c.l.b16 %v6672
        %v6878 = vunpack.c.h.b16 %v6672
        %v6879 = vunpack.c.l.b16 %v6673
        %v6880 = vunpack.c.h.b16 %v6673
        %v6881 = vunpack.c.l.b16 %v6674
        %v6882 = vunpack.c.h.b16 %v6674
        %v6883 = vunpack.c.l.b16 %v6675
        %v6884 = vunpack.c.h.b16 %v6675
        %v6885 = vunpack.c.l.b16 %v6676
        %v6886 = vunpack.c.h.b16 %v6676
        %v6887 = vunpack.c.l.b16 %v6677
        %v6888 = vunpack.c.h.b16 %v6677
        %v6889 = vunpack.c.l.b16 %v6678
        %v6890 = vunpack.c.h.b16 %v6678
        %v6891 = vunpack.c.l.b16 %v6679
        %v6892 = vunpack.c.h.b16 %v6679
        %v6893 = vunpack.c.l.b16 %v6680
        %v6894 = vunpack.c.h.b16 %v6680
        %v6895 = vunpack.c.l.b16 %v6681
        %v6896 = vunpack.c.h.b16 %v6681
        %v6897 = vunpack.c.l.b16 %v6682
        %v6898 = vunpack.c.h.b16 %v6682
        %v6899 = vunpack.c.l.b16 %v6683
        %v6900 = vunpack.c.h.b16 %v6683
        %v6901 = vunpack.c.l.b16 %v6684
        %v6902 = vunpack.c.h.b16 %v6684
        %v6903 = vunpack.c.l.b16 %v6685
        %v6904 = vunpack.c.h.b16 %v6685
        %v6905 = vunpack.c.l.b16 %v6686
        %v6906 = vunpack.c.h.b16 %v6686
        %v6907 = vunpack.c.l.b16 %v6687
        %v6908 = vunpack.c.h.b16 %v6687
        %v6909 = vunpack.c.l.b16 %v6688
        %v6910 = vunpack.c.h.b16 %v6688
        %v6911 = vunpack.c.l.b16 %v6689
        %v6912 = vunpack.c.h.b16 %v6689
        %v6913 = vunpack.c.l.b16 %v6690
        %v6914 = vunpack.c.h.b16 %v6690
        %v6915 = vunpack.c.l.b16 %v6691
        %v6916 = vunpack.c.h.b16 %v6691
        %v6917 = vunpack.c.l.b16 %v6692
        %v6918 = vunpack.c.h.b16 %v6692
        %v6919 = vunpack.c.l.b16 %v6693
        %v6920 = vunpack.c.h.b16 %v6693
        %v6921 = vunpack.c.l.b16 %v6694
        %v6922 = vunpack.c.h.b16 %v6694
        %v6923 = vunpack.c.l.b16 %v6695
        %v6924 = vunpack.c.h.b16 %v6695
        %v6925 = vunpack.c.l.b16 %v6696
        %v6926 = vunpack.c.h.b16 %v6696
        %v6927 = vunpack.c.l.b16 %v6697
        %v6928 = vunpack.c.h.b16 %v6697
        %v6929 = vunpack.c.l.b16 %v6698
        %v6930 = vunpack.c.h.b16 %v6698
        %v6931 = vunpack.c.l.b16 %v6699
        %v6932 = vunpack.c.h.b16 %v6699
        %v6933 = vunpack.c.l.b16 %v6700
        %v6934 = vunpack.c.h.b16 %v6700
        %v6935 = vunpack.c.l.b16 %v6701
        %v6936 = vunpack.c.h.b16 %v6701
        %v6937 = vunpack.c.l.b16 %v6702
        %v6938 = vunpack.c.h.b16 %v6702
        %v6939 = vunpack.c.l.b16 %v6703
        %v6940 = vunpack.c.h.b16 %v6703
        %v6941 = vunpack.c.l.b16 %v6704
        %v6942 = vunpack.c.h.b16 %v6704
        %v6943 = vunpack.c.l.b16 %v6705
        %v6944 = vunpack.c.h.b16 %v6705
        %v6945 = vunpack.c.l.b16 %v6706
        %v6946 = vunpack.c.h.b16 %v6706
        %v6947 = vunpack.c.l.b16 %v6707
        %v6948 = vunpack.c.h.b16 %v6707
        %v6949 = vunpack.c.l.b16 %v6708
        %v6950 = vunpack.c.h.b16 %v6708
        %v6951 = vunpack.c.l.b16 %v6709
        %v6952 = vunpack.c.h.b16 %v6709
        %v6953 = vunpack.c.l.b16 %v6710
        %v6954 = vunpack.c.h.b16 %v6710
        %v6955 = vunpack.c.l.b16 %v6711
        %v6956 = vunpack.c.h.b16 %v6711
        %v6957 = vunpack.c.l.b16 %v6712
        %v6958 = vunpack.c.h.b16 %v6712
        %v6959 = vunpack.c.l.b16 %v6713
        %v6960 = vunpack.c.h.b16 %v6713
        %v6961 = vunpack.c.l.b16 %v6714
        %v6962 = vunpack.c.h.b16 %v6714
        %v6963 = vunpack.c.l.b16 %v6715
        %v6964 = vunpack.c.h.b16 %v6715
        %v6965 = vunpack.c.l.b16 %v6716
        %v6966 = vunpack.c.h.b16 %v6716
        %v6967 = vunpack.c.l.b16 %v6717
        %v6968 = vunpack.c.h.b16 %v6717
        %v6969 = vunpack.c.l.b16 %v6718
        %v6970 = vunpack.c.h.b16 %v6718
        %v6971 = vunpack.c.l.b16 %v6719
        %v6972 = vunpack.c.h.b16 %v6719
        %v6973 = vunpack.c.l.b16 %v6720
        %v6974 = vunpack.c.h.b16 %v6720
        %v6975 = vunpack.c.l.b16 %v6721
        %v6976 = vunpack.c.h.b16 %v6721
        %v6977 = vunpack.c.l.b16 %v6722
        %v6978 = vunpack.c.h.b16 %v6722
        %v6979 = vunpack.c.l.b16 %v6723
        %v6980 = vunpack.c.h.b16 %v6723
        %v6981 = vunpack.c.l.b16 %v6724
        %v6982 = vunpack.c.h.b16 %v6724
        %v6983 = vunpack.c.l.b16 %v6725
        %v6984 = vunpack.c.h.b16 %v6725
        %v6985 = vunpack.c.l.b16 %v6726
        %v6986 = vunpack.c.h.b16 %v6726
        %v6987 = vunpack.c.l.b16 %v6727
        %v6988 = vunpack.c.h.b16 %v6727
        %v6989 = vunpack.c.l.b16 %v6728
        %v6990 = vunpack.c.h.b16 %v6728
        %v6991 = vunpack.c.l.b16 %v6729
        %v6992 = vunpack.c.h.b16 %v6729
        %v6993 = vunpack.c.l.b16 %v6730
        %v6994 = vunpack.c.h.b16 %v6730
        %v6995 = vunpack.c.l.b16 %v6731
        %v6996 = vunpack.c.h.b16 %v6731
        %v6997 = vunpack.c.l.b16 %v6732
        %v6998 = vunpack.c.h.b16 %v6732
        %v6999 = vunpack.c.l.b16 %v6733
        %v7000 = vunpack.c.h.b16 %v6733
        %v7001 = vunpack.c.l.b16 %v6734
        %v7002 = vunpack.c.h.b16 %v6734
        %v7003 = vunpack.c.l.b16 %v6735
        %v7004 = vunpack.c.h.b16 %v6735
        %v7005 = vunpack.c.l.b16 %v6736
        %v7006 = vunpack.c.h.b16 %v6736
        %v7007 = vunpack.c.l.b16 %v6737
        %v7008 = vunpack.c.h.b16 %v6737
        %v7009 = vunpack.c.l.b16 %v6738
        %v7010 = vunpack.c.h.b16 %v6738
        %v7011 = vunpack.c.l.b16 %v6739
        %v7012 = vunpack.c.h.b16 %v6739
        %v7013 = vunpack.c.l.b16 %v6740
        %v7014 = vunpack.c.h.b16 %v6740
        %v7015 = vunpack.c.l.b16 %v6741
        %v7016 = vunpack.c.h.b16 %v6741
        %v7017 = vunpack.c.l.b16 %v6742
        %v7018 = vunpack.c.h.b16 %v6742
        %v7019 = vunpack.c.l.b16 %v6743
        %v7020 = vunpack.c.h.b16 %v6743
        %v7021 = vunpack.c.l.b16 %v6744
        %v7022 = vunpack.c.h.b16 %v6744
        %v7023 = vunpack.c.l.b16 %v6745
        %v7024 = vunpack.c.h.b16 %v6745
        %v7025 = vunpack.c.l.b16 %v6746
        %v7026 = vunpack.c.h.b16 %v6746
        %v7027 = vunpack.c.l.b16 %v6747
        %v7028 = vunpack.c.h.b16 %v6747
        %v7029 = vunpack.c.l.b16 %v6748
        %v7030 = vunpack.c.h.b16 %v6748
        %v7031 = vunpack.c.l.b16 %v6749
        %v7032 = vunpack.c.h.b16 %v6749
        %v7033 = vunpack.c.l.b16 %v6750
        %v7034 = vunpack.c.h.b16 %v6750
        %v7035 = vunpack.c.l.b16 %v6751
        %v7036 = vunpack.c.h.b16 %v6751
        %v7037 = vunpack.c.l.b16 %v6752
        %v7038 = vunpack.c.h.b16 %v6752
        %v7039 = vunpack.c.l.b16 %v6753
        %v7040 = vunpack.c.h.b16 %v6753
        %v7041 = vunpack.c.l.b16 %v6754
        %v7042 = vunpack.c.h.b16 %v6754
        %v7043 = vpack.c.b16 %v6853, %v6851
        %v7044 = vpack.c.b16 %v6854, %v6852
        %v7045 = vpack.c.b16 %v6857, %v6855
        %v7046 = vpack.c.b16 %v6858, %v6856
        %v7047 = vpack.c.b16 %v6861, %v6859
        %v7048 = vpack.c.b16 %v6862, %v6860
        %v7049 = vpack.c.b16 %v6865, %v6863
        %v7050 = vpack.c.b16 %v6866, %v6864
        %v7051 = vpack.c.b16 %v6869, %v6867
        %v7052 = vpack.c.b16 %v6870, %v6868
        %v7053 = vpack.c.b16 %v6873, %v6871
        %v7054 = vpack.c.b16 %v6874, %v6872
        %v7055 = vpack.c.b16 %v6877, %v6875
        %v7056 = vpack.c.b16 %v6878, %v6876
        %v7057 = vpack.c.b16 %v6881, %v6879
        %v7058 = vpack.c.b16 %v6882, %v6880
        %v7059 = vpack.c.b16 %v6885, %v6883
        %v7060 = vpack.c.b16 %v6886, %v6884
        %v7061 = vpack.c.b16 %v6889, %v6887
        %v7062 = vpack.c.b16 %v6890, %v6888
        %v7063 = vpack.c.b16 %v6893, %v6891
        %v7064 = vpack.c.b16 %v6894, %v6892
        %v7065 = vpack.c.b16 %v6897, %v6895
        %v7066 = vpack.c.b16 %v6898, %v6896
        %v7067 = vpack.c.b16 %v6901, %v6899
        %v7068 = vpack.c.b16 %v6902, %v6900
        %v7069 = vpack.c.b16 %v6905, %v6903
        %v7070 = vpack.c.b16 %v6906, %v6904
        %v7071 = vpack.c.b16 %v6909, %v6907
        %v7072 = vpack.c.b16 %v6910, %v6908
        %v7073 = vpack.c.b16 %v6913, %v6911
        %v7074 = vpack.c.b16 %v6914, %v6912
        %v7075 = vpack.c.b16 %v6917, %v6915
        %v7076 = vpack.c.b16 %v6918, %v6916
        %v7077 = vpack.c.b16 %v6921, %v6919
        %v7078 = vpack.c.b16 %v6922, %v6920
        %v7079 = vpack.c.b16 %v6925, %v6923
        %v7080 = vpack.c.b16 %v6926, %v6924
        %v7081 = vpack.c.b16 %v6929, %v6927
        %v7082 = vpack.c.b16 %v6930, %v6928
        %v7083 = vpack.c.b16 %v6933, %v6931
        %v7084 = vpack.c.b16 %v6934, %v6932
        %v7085 = vpack.c.b16 %v6937, %v6935
        %v7086 = vpack.c.b16 %v6938, %v6936
        %v7087 = vpack.c.b16 %v6941, %v6939
        %v7088 = vpack.c.b16 %v6942, %v6940
        %v7089 = vpack.c.b16 %v6945, %v6943
        %v7090 = vpack.c.b16 %v6946, %v6944
        %v7091 = vpack.c.b16 %v6949, %v6947
        %v7092 = vpack.c.b16 %v6950, %v6948
        %v7093 = vpack.c.b16 %v6953, %v6951
        %v7094 = vpack.c.b16 %v6954, %v6952
        %v7095 = vpack.c.b16 %v6957, %v6955
        %v7096 = vpack.c.b16 %v6958, %v6956
        %v7097 = vpack.c.b16 %v6961, %v6959
        %v7098 = vpack.c.b16 %v6962, %v6960
        %v7099 = vpack.c.b16 %v6965, %v6963
        %v7100 = vpack.c.b16 %v6966, %v6964
        %v7101 = vpack.c.b16 %v6969, %v6967
        %v7102 = vpack.c.b16 %v6970, %v6968
        %v7103 = vpack.c.b16 %v6973, %v6971
        %v7104 = vpack.c.b16 %v6974, %v6972
        %v7105 = vpack.c.b16 %v6977, %v6975
        %v7106 = vpack.c.b16 %v6978, %v6976
        %v7107 = vpack.c.b16 %v6981, %v6979
        %v7108 = vpack.c.b16 %v6982, %v6980
        %v7109 = vpack.c.b16 %v6985, %v6983
        %v7110 = vpack.c.b16 %v6986, %v6984
        %v7111 = vpack.c.b16 %v6989, %v6987
        %v7112 = vpack.c.b16 %v6990, %v6988
        %v7113 = vpack.c.b16 %v6993, %v6991
        %v7114 = vpack.c.b16 %v6994, %v6992
        %v7115 = vpack.c.b16 %v6997, %v6995
        %v7116 = vpack.c.b16 %v6998, %v6996
        %v7117 = vpack.c.b16 %v7001, %v6999
        %v7118 = vpack.c.b16 %v7002, %v7000
        %v7119 = vpack.c.b16 %v7005, %v7003
        %v7120 = vpack.c.b16 %v7006, %v7004
        %v7121 = vpack.c.b16 %v7009, %v7007
        %v7122 = vpack.c.b16 %v7010, %v7008
        %v7123 = vpack.c.b16 %v7013, %v7011
        %v7124 = vpack.c.b16 %v7014, %v7012
        %v7125 = vpack.c.b16 %v7017, %v7015
        %v7126 = vpack.c.b16 %v7018, %v7016
        %v7127 = vpack.c.b16 %v7021, %v7019
        %v7128 = vpack.c.b16 %v7022, %v7020
        %v7129 = vpack.c.b16 %v7025, %v7023
        %v7130 = vpack.c.b16 %v7026, %v7024
        %v7131 = vpack.c.b16 %v7029, %v7027
        %v7132 = vpack.c.b16 %v7030, %v7028
        %v7133 = vpack.c.b16 %v7033, %v7031
        %v7134 = vpack.c.b16 %v7034, %v7032
        %v7135 = vpack.c.b16 %v7037, %v7035
        %v7136 = vpack.c.b16 %v7038, %v7036
        %v7137 = vpack.c.b16 %v7041, %v7039
        %v7138 = vpack.c.b16 %v7042, %v7040
        %7235 = vmatprep.subr.bf16.mxu0 %v7058
        %7236 = vmatpush1.bf16.msra.mxu0 %v7057
        %7237 = vmatprep.subr.bf16.mxu0 %v7056
        %7238 = vmatpush1.bf16.msra.mxu0 %v7055
        %7239 = vmatprep.subr.bf16.mxu0 %v7054
        %7240 = vmatpush1.bf16.msra.mxu0 %v7053
        %7241 = vmatprep.subr.bf16.mxu0 %v7052
        %7242 = vmatpush1.bf16.msra.mxu0 %v7051
        %7243 = vmatprep.subr.bf16.mxu0 %v7050
        %7244 = vmatpush1.bf16.msra.mxu0 %v7049
        %7245 = vmatprep.subr.bf16.mxu0 %v7048
        %7246 = vmatpush1.bf16.msra.mxu0 %v7047
        %7247 = vmatprep.subr.bf16.mxu0 %v7046
        %7248 = vmatpush1.bf16.msra.mxu0 %v7045
        %7249 = vmatprep.subr.bf16.mxu0 %v7044
        %7250 = vmatpush1.bf16.msra.mxu0 %v7043
        %7251 = vmatprep.subr.bf16.mxu0 %v7074
        %7252 = vmatpush2.bf16.msra.mxu0 %v7073
        %7253 = vmatprep.subr.bf16.mxu0 %v7072
        %7254 = vmatpush2.bf16.msra.mxu0 %v7071
        %7255 = vmatprep.subr.bf16.mxu0 %v7070
        %7256 = vmatpush2.bf16.msra.mxu0 %v7069
        %7257 = vmatprep.subr.bf16.mxu0 %v7068
        %7258 = vmatpush2.bf16.msra.mxu0 %v7067
        %7259 = vmatprep.subr.bf16.mxu0 %v7066
        %7260 = vmatpush2.bf16.msra.mxu0 %v7065
        %7261 = vmatprep.subr.bf16.mxu0 %v7064
        %7262 = vmatpush2.bf16.msra.mxu0 %v7063
        %7263 = vmatprep.subr.bf16.mxu0 %v7062
        %7264 = vmatpush2.bf16.msra.mxu0 %v7061
        %7265 = vmatprep.subr.bf16.mxu0 %v7060
        %7266 = vmatpush2.bf16.msra.mxu0 %v7059
        %7267 = vmatprep.mubr.bf16.mxu0 %v5891
        %7268 = vmatmul.mubr.bf16.gmra.mxu0 %v5890
        %v7269 = vpop.f32.mrf.mxu0
        %v7270 = vadd.f32 0.0, %v7269
        %v7271 = vpop.f32.mrf.mxu0
        %v7272 = vadd.f32 0.0, %v7271
        %v7273 = vpop.f32.mrf.mxu0
        %v7274 = vadd.f32 0.0, %v7273
        %v7275 = vpop.f32.mrf.mxu0
        %v7276 = vadd.f32 0.0, %v7275
        %7277 = vmatprep.mubr.bf16.mxu0 %v5893
        %7278 = vmatmul.mubr.bf16.gmra.mxu0 %v5892
        %v7279 = vpop.f32.mrf.mxu0
        %v7280 = vadd.f32 0.0, %v7279
        %v7281 = vpop.f32.mrf.mxu0
        %v7282 = vadd.f32 0.0, %v7281
        %v7283 = vpop.f32.mrf.mxu0
        %v7284 = vadd.f32 0.0, %v7283
        %v7285 = vpop.f32.mrf.mxu0
        %v7286 = vadd.f32 0.0, %v7285
        %7287 = vmatprep.mubr.bf16.mxu0 %v5895
        %7288 = vmatmul.mubr.bf16.gmra.mxu0 %v5894
        %v7289 = vpop.f32.mrf.mxu0
        %v7290 = vadd.f32 0.0, %v7289
        %v7291 = vpop.f32.mrf.mxu0
        %v7292 = vadd.f32 0.0, %v7291
        %v7293 = vpop.f32.mrf.mxu0
        %v7294 = vadd.f32 0.0, %v7293
        %v7295 = vpop.f32.mrf.mxu0
        %v7296 = vadd.f32 0.0, %v7295
        %7297 = vmatprep.mubr.bf16.mxu0 %v5897
        %7298 = vmatmul.mubr.bf16.gmra.mxu0 %v5896
        %v7299 = vpop.f32.mrf.mxu0
        %v7300 = vadd.f32 0.0, %v7299
        %v7301 = vpop.f32.mrf.mxu0
        %v7302 = vadd.f32 0.0, %v7301
        %v7303 = vpop.f32.mrf.mxu0
        %v7304 = vadd.f32 0.0, %v7303
        %v7305 = vpop.f32.mrf.mxu0
        %v7306 = vadd.f32 0.0, %v7305
        %7307 = vmatprep.mubr.bf16.mxu0 %v5899
        %7308 = vmatmul.mubr.bf16.gmra.mxu0 %v5898
        %v7309 = vpop.f32.mrf.mxu0
        %v7310 = vadd.f32 0.0, %v7309
        %v7311 = vpop.f32.mrf.mxu0
        %v7312 = vadd.f32 0.0, %v7311
        %v7313 = vpop.f32.mrf.mxu0
        %v7314 = vadd.f32 0.0, %v7313
        %v7315 = vpop.f32.mrf.mxu0
        %v7316 = vadd.f32 0.0, %v7315
        %7317 = vmatprep.mubr.bf16.mxu0 %v5901
        %7318 = vmatmul.mubr.bf16.gmra.mxu0 %v5900
        %v7319 = vpop.f32.mrf.mxu0
        %v7320 = vadd.f32 0.0, %v7319
        %v7321 = vpop.f32.mrf.mxu0
        %v7322 = vadd.f32 0.0, %v7321
        %v7323 = vpop.f32.mrf.mxu0
        %v7324 = vadd.f32 0.0, %v7323
        %v7325 = vpop.f32.mrf.mxu0
        %v7326 = vadd.f32 0.0, %v7325
        %7327 = vmatprep.mubr.bf16.mxu0 %v5903
        %7328 = vmatmul.mubr.bf16.gmra.mxu0 %v5902
        %v7329 = vpop.f32.mrf.mxu0
        %v7330 = vadd.f32 0.0, %v7329
        %v7331 = vpop.f32.mrf.mxu0
        %v7332 = vadd.f32 0.0, %v7331
        %v7333 = vpop.f32.mrf.mxu0
        %v7334 = vadd.f32 0.0, %v7333
        %v7335 = vpop.f32.mrf.mxu0
        %v7336 = vadd.f32 0.0, %v7335
        %7337 = vmatprep.mubr.bf16.mxu0 %v5905
        %7338 = vmatmul.mubr.bf16.gmra.mxu0 %v5904
        %v7339 = vpop.f32.mrf.mxu0
        %v7340 = vadd.f32 0.0, %v7339
        %v7341 = vpop.f32.mrf.mxu0
        %v7342 = vadd.f32 0.0, %v7341
        %v7343 = vpop.f32.mrf.mxu0
        %v7344 = vadd.f32 0.0, %v7343
        %v7345 = vpop.f32.mrf.mxu0
        %v7346 = vadd.f32 0.0, %v7345
        %7347 = vmatprep.mubr.bf16.mxu0 %v5907
        %7348 = vmatmul.mubr.bf16.gmra.mxu0 %v5906
        %v7349 = vpop.f32.mrf.mxu0
        %v7350 = vadd.f32 0.0, %v7349
        %v7351 = vpop.f32.mrf.mxu0
        %v7352 = vadd.f32 0.0, %v7351
        %v7353 = vpop.f32.mrf.mxu0
        %v7354 = vadd.f32 0.0, %v7353
        %v7355 = vpop.f32.mrf.mxu0
        %v7356 = vadd.f32 0.0, %v7355
        %7357 = vmatprep.mubr.bf16.mxu0 %v5909
        %7358 = vmatmul.mubr.bf16.gmra.mxu0 %v5908
        %v7359 = vpop.f32.mrf.mxu0
        %v7360 = vadd.f32 0.0, %v7359
        %v7361 = vpop.f32.mrf.mxu0
        %v7362 = vadd.f32 0.0, %v7361
        %v7363 = vpop.f32.mrf.mxu0
        %v7364 = vadd.f32 0.0, %v7363
        %v7365 = vpop.f32.mrf.mxu0
        %v7366 = vadd.f32 0.0, %v7365
        %7367 = vmatprep.mubr.bf16.mxu0 %v5911
        %7368 = vmatmul.mubr.bf16.gmra.mxu0 %v5910
        %v7369 = vpop.f32.mrf.mxu0
        %v7370 = vadd.f32 0.0, %v7369
        %v7371 = vpop.f32.mrf.mxu0
        %v7372 = vadd.f32 0.0, %v7371
        %v7373 = vpop.f32.mrf.mxu0
        %v7374 = vadd.f32 0.0, %v7373
        %v7375 = vpop.f32.mrf.mxu0
        %v7376 = vadd.f32 0.0, %v7375
        %7377 = vmatprep.mubr.bf16.mxu0 %v5913
        %7378 = vmatmul.mubr.bf16.gmra.mxu0 %v5912
        %v7379 = vpop.f32.mrf.mxu0
        %v7380 = vadd.f32 0.0, %v7379
        %v7381 = vpop.f32.mrf.mxu0
        %v7382 = vadd.f32 0.0, %v7381
        %v7383 = vpop.f32.mrf.mxu0
        %v7384 = vadd.f32 0.0, %v7383
        %v7385 = vpop.f32.mrf.mxu0
        %v7386 = vadd.f32 0.0, %v7385
        %7387 = vmatprep.mubr.bf16.mxu0 %v5915
        %7388 = vmatmul.mubr.bf16.gmra.mxu0 %v5914
        %v7389 = vpop.f32.mrf.mxu0
        %v7390 = vadd.f32 0.0, %v7389
        %v7391 = vpop.f32.mrf.mxu0
        %v7392 = vadd.f32 0.0, %v7391
        %v7393 = vpop.f32.mrf.mxu0
        %v7394 = vadd.f32 0.0, %v7393
        %v7395 = vpop.f32.mrf.mxu0
        %v7396 = vadd.f32 0.0, %v7395
        %7397 = vmatprep.mubr.bf16.mxu0 %v5917
        %7398 = vmatmul.mubr.bf16.gmra.mxu0 %v5916
        %v7399 = vpop.f32.mrf.mxu0
        %v7400 = vadd.f32 0.0, %v7399
        %v7401 = vpop.f32.mrf.mxu0
        %v7402 = vadd.f32 0.0, %v7401
        %v7403 = vpop.f32.mrf.mxu0
        %v7404 = vadd.f32 0.0, %v7403
        %v7405 = vpop.f32.mrf.mxu0
        %v7406 = vadd.f32 0.0, %v7405
        %7407 = vmatprep.mubr.bf16.mxu0 %v5919
        %7408 = vmatmul.mubr.bf16.gmra.mxu0 %v5918
        %v7409 = vpop.f32.mrf.mxu0
        %v7410 = vadd.f32 0.0, %v7409
        %v7411 = vpop.f32.mrf.mxu0
        %v7412 = vadd.f32 0.0, %v7411
        %v7413 = vpop.f32.mrf.mxu0
        %v7414 = vadd.f32 0.0, %v7413
        %v7415 = vpop.f32.mrf.mxu0
        %v7416 = vadd.f32 0.0, %v7415
        %7417 = vmatprep.mubr.bf16.mxu0 %v5921
        %7418 = vmatmul.mubr.bf16.gmra.mxu0 %v5920
        %v7419 = vpop.f32.mrf.mxu0
        %v7420 = vadd.f32 0.0, %v7419
        %v7421 = vpop.f32.mrf.mxu0
        %v7422 = vadd.f32 0.0, %v7421
        %v7423 = vpop.f32.mrf.mxu0
        %v7424 = vadd.f32 0.0, %v7423
        %v7425 = vpop.f32.mrf.mxu0
        %v7426 = vadd.f32 0.0, %v7425
        %7427 = vdwg.mxu0
        %7428 = vmatprep.subr.bf16.mxu0 %v7090
        %7429 = vmatpush1.bf16.msra.mxu0 %v7089
        %7430 = vmatprep.subr.bf16.mxu0 %v7088
        %7431 = vmatpush1.bf16.msra.mxu0 %v7087
        %7432 = vmatprep.subr.bf16.mxu0 %v7086
        %7433 = vmatpush1.bf16.msra.mxu0 %v7085
        %7434 = vmatprep.subr.bf16.mxu0 %v7084
        %7435 = vmatpush1.bf16.msra.mxu0 %v7083
        %7436 = vmatprep.subr.bf16.mxu0 %v7082
        %7437 = vmatpush1.bf16.msra.mxu0 %v7081
        %7438 = vmatprep.subr.bf16.mxu0 %v7080
        %7439 = vmatpush1.bf16.msra.mxu0 %v7079
        %7440 = vmatprep.subr.bf16.mxu0 %v7078
        %7441 = vmatpush1.bf16.msra.mxu0 %v7077
        %7442 = vmatprep.subr.bf16.mxu0 %v7076
        %7443 = vmatpush1.bf16.msra.mxu0 %v7075
        %7444 = vmatprep.subr.bf16.mxu0 %v7106
        %7445 = vmatpush2.bf16.msra.mxu0 %v7105
        %7446 = vmatprep.subr.bf16.mxu0 %v7104
        %7447 = vmatpush2.bf16.msra.mxu0 %v7103
        %7448 = vmatprep.subr.bf16.mxu0 %v7102
        %7449 = vmatpush2.bf16.msra.mxu0 %v7101
        %7450 = vmatprep.subr.bf16.mxu0 %v7100
        %7451 = vmatpush2.bf16.msra.mxu0 %v7099
        %7452 = vmatprep.subr.bf16.mxu0 %v7098
        %7453 = vmatpush2.bf16.msra.mxu0 %v7097
        %7454 = vmatprep.subr.bf16.mxu0 %v7096
        %7455 = vmatpush2.bf16.msra.mxu0 %v7095
        %7456 = vmatprep.subr.bf16.mxu0 %v7094
        %7457 = vmatpush2.bf16.msra.mxu0 %v7093
        %7458 = vmatprep.subr.bf16.mxu0 %v7092
        %7459 = vmatpush2.bf16.msra.mxu0 %v7091
        %7460 = vmatprep.mubr.bf16.mxu0 %v5977
        %7461 = vmatmul.mubr.bf16.gmra.mxu0 %v5965
        %v7462 = vpop.f32.mrf.mxu0
        %v7463 = vadd.f32 %v7270, %v7462
        %v7464 = vpop.f32.mrf.mxu0
        %v7465 = vadd.f32 %v7272, %v7464
        %v7466 = vpop.f32.mrf.mxu0
        %v7467 = vadd.f32 %v7274, %v7466
        %v7468 = vpop.f32.mrf.mxu0
        %v7469 = vadd.f32 %v7276, %v7468
        %7470 = vmatprep.mubr.bf16.mxu0 %v6001
        %7471 = vmatmul.mubr.bf16.gmra.mxu0 %v5989
        %v7472 = vpop.f32.mrf.mxu0
        %v7473 = vadd.f32 %v7280, %v7472
        %v7474 = vpop.f32.mrf.mxu0
        %v7475 = vadd.f32 %v7282, %v7474
        %v7476 = vpop.f32.mrf.mxu0
        %v7477 = vadd.f32 %v7284, %v7476
        %v7478 = vpop.f32.mrf.mxu0
        %v7479 = vadd.f32 %v7286, %v7478
        %7480 = vmatprep.mubr.bf16.mxu0 %v6025
        %7481 = vmatmul.mubr.bf16.gmra.mxu0 %v6013
        %v7482 = vpop.f32.mrf.mxu0
        %v7483 = vadd.f32 %v7290, %v7482
        %v7484 = vpop.f32.mrf.mxu0
        %v7485 = vadd.f32 %v7292, %v7484
        %v7486 = vpop.f32.mrf.mxu0
        %v7487 = vadd.f32 %v7294, %v7486
        %v7488 = vpop.f32.mrf.mxu0
        %v7489 = vadd.f32 %v7296, %v7488
        %7490 = vmatprep.mubr.bf16.mxu0 %v6049
        %7491 = vmatmul.mubr.bf16.gmra.mxu0 %v6037
        %v7492 = vpop.f32.mrf.mxu0
        %v7493 = vadd.f32 %v7300, %v7492
        %v7494 = vpop.f32.mrf.mxu0
        %v7495 = vadd.f32 %v7302, %v7494
        %v7496 = vpop.f32.mrf.mxu0
        %v7497 = vadd.f32 %v7304, %v7496
        %v7498 = vpop.f32.mrf.mxu0
        %v7499 = vadd.f32 %v7306, %v7498
        %7500 = vmatprep.mubr.bf16.mxu0 %v6073
        %7501 = vmatmul.mubr.bf16.gmra.mxu0 %v6061
        %v7502 = vpop.f32.mrf.mxu0
        %v7503 = vadd.f32 %v7310, %v7502
        %v7504 = vpop.f32.mrf.mxu0
        %v7505 = vadd.f32 %v7312, %v7504
        %v7506 = vpop.f32.mrf.mxu0
        %v7507 = vadd.f32 %v7314, %v7506
        %v7508 = vpop.f32.mrf.mxu0
        %v7509 = vadd.f32 %v7316, %v7508
        %7510 = vmatprep.mubr.bf16.mxu0 %v6097
        %7511 = vmatmul.mubr.bf16.gmra.mxu0 %v6085
        %v7512 = vpop.f32.mrf.mxu0
        %v7513 = vadd.f32 %v7320, %v7512
        %v7514 = vpop.f32.mrf.mxu0
        %v7515 = vadd.f32 %v7322, %v7514
        %v7516 = vpop.f32.mrf.mxu0
        %v7517 = vadd.f32 %v7324, %v7516
        %v7518 = vpop.f32.mrf.mxu0
        %v7519 = vadd.f32 %v7326, %v7518
        %7520 = vmatprep.mubr.bf16.mxu0 %v6121
        %7521 = vmatmul.mubr.bf16.gmra.mxu0 %v6109
        %v7522 = vpop.f32.mrf.mxu0
        %v7523 = vadd.f32 %v7330, %v7522
        %v7524 = vpop.f32.mrf.mxu0
        %v7525 = vadd.f32 %v7332, %v7524
        %v7526 = vpop.f32.mrf.mxu0
        %v7527 = vadd.f32 %v7334, %v7526
        %v7528 = vpop.f32.mrf.mxu0
        %v7529 = vadd.f32 %v7336, %v7528
        %7530 = vmatprep.mubr.bf16.mxu0 %v6145
        %7531 = vmatmul.mubr.bf16.gmra.mxu0 %v6133
        %v7532 = vpop.f32.mrf.mxu0
        %v7533 = vadd.f32 %v7340, %v7532
        %v7534 = vpop.f32.mrf.mxu0
        %v7535 = vadd.f32 %v7342, %v7534
        %v7536 = vpop.f32.mrf.mxu0
        %v7537 = vadd.f32 %v7344, %v7536
        %v7538 = vpop.f32.mrf.mxu0
        %v7539 = vadd.f32 %v7346, %v7538
        %7540 = vmatprep.mubr.bf16.mxu0 %v6169
        %7541 = vmatmul.mubr.bf16.gmra.mxu0 %v6157
        %v7542 = vpop.f32.mrf.mxu0
        %v7543 = vadd.f32 %v7350, %v7542
        %v7544 = vpop.f32.mrf.mxu0
        %v7545 = vadd.f32 %v7352, %v7544
        %v7546 = vpop.f32.mrf.mxu0
        %v7547 = vadd.f32 %v7354, %v7546
        %v7548 = vpop.f32.mrf.mxu0
        %v7549 = vadd.f32 %v7356, %v7548
        %7550 = vmatprep.mubr.bf16.mxu0 %v6193
        %7551 = vmatmul.mubr.bf16.gmra.mxu0 %v6181
        %v7552 = vpop.f32.mrf.mxu0
        %v7553 = vadd.f32 %v7360, %v7552
        %v7554 = vpop.f32.mrf.mxu0
        %v7555 = vadd.f32 %v7362, %v7554
        %v7556 = vpop.f32.mrf.mxu0
        %v7557 = vadd.f32 %v7364, %v7556
        %v7558 = vpop.f32.mrf.mxu0
        %v7559 = vadd.f32 %v7366, %v7558
        %7560 = vmatprep.mubr.bf16.mxu0 %v6217
        %7561 = vmatmul.mubr.bf16.gmra.mxu0 %v6205
        %v7562 = vpop.f32.mrf.mxu0
        %v7563 = vadd.f32 %v7370, %v7562
        %v7564 = vpop.f32.mrf.mxu0
        %v7565 = vadd.f32 %v7372, %v7564
        %v7566 = vpop.f32.mrf.mxu0
        %v7567 = vadd.f32 %v7374, %v7566
        %v7568 = vpop.f32.mrf.mxu0
        %v7569 = vadd.f32 %v7376, %v7568
        %7570 = vmatprep.mubr.bf16.mxu0 %v6241
        %7571 = vmatmul.mubr.bf16.gmra.mxu0 %v6229
        %v7572 = vpop.f32.mrf.mxu0
        %v7573 = vadd.f32 %v7380, %v7572
        %v7574 = vpop.f32.mrf.mxu0
        %v7575 = vadd.f32 %v7382, %v7574
        %v7576 = vpop.f32.mrf.mxu0
        %v7577 = vadd.f32 %v7384, %v7576
        %v7578 = vpop.f32.mrf.mxu0
        %v7579 = vadd.f32 %v7386, %v7578
        %7580 = vmatprep.mubr.bf16.mxu0 %v6265
        %7581 = vmatmul.mubr.bf16.gmra.mxu0 %v6253
        %v7582 = vpop.f32.mrf.mxu0
        %v7583 = vadd.f32 %v7390, %v7582
        %v7584 = vpop.f32.mrf.mxu0
        %v7585 = vadd.f32 %v7392, %v7584
        %v7586 = vpop.f32.mrf.mxu0
        %v7587 = vadd.f32 %v7394, %v7586
        %v7588 = vpop.f32.mrf.mxu0
        %v7589 = vadd.f32 %v7396, %v7588
        %7590 = vmatprep.mubr.bf16.mxu0 %v6289
        %7591 = vmatmul.mubr.bf16.gmra.mxu0 %v6277
        %v7592 = vpop.f32.mrf.mxu0
        %v7593 = vadd.f32 %v7400, %v7592
        %v7594 = vpop.f32.mrf.mxu0
        %v7595 = vadd.f32 %v7402, %v7594
        %v7596 = vpop.f32.mrf.mxu0
        %v7597 = vadd.f32 %v7404, %v7596
        %v7598 = vpop.f32.mrf.mxu0
        %v7599 = vadd.f32 %v7406, %v7598
        %7600 = vmatprep.mubr.bf16.mxu0 %v6313
        %7601 = vmatmul.mubr.bf16.gmra.mxu0 %v6301
        %v7602 = vpop.f32.mrf.mxu0
        %v7603 = vadd.f32 %v7410, %v7602
        %v7604 = vpop.f32.mrf.mxu0
        %v7605 = vadd.f32 %v7412, %v7604
        %v7606 = vpop.f32.mrf.mxu0
        %v7607 = vadd.f32 %v7414, %v7606
        %v7608 = vpop.f32.mrf.mxu0
        %v7609 = vadd.f32 %v7416, %v7608
        %7610 = vmatprep.mubr.bf16.mxu0 %v6337
        %7611 = vmatmul.mubr.bf16.gmra.mxu0 %v6325
        %v7612 = vpop.f32.mrf.mxu0
        %v7613 = vadd.f32 %v7420, %v7612
        %v7614 = vpop.f32.mrf.mxu0
        %v7615 = vadd.f32 %v7422, %v7614
        %v7616 = vpop.f32.mrf.mxu0
        %v7617 = vadd.f32 %v7424, %v7616
        %v7618 = vpop.f32.mrf.mxu0
        %v7619 = vadd.f32 %v7426, %v7618
        %7620 = vdwg.mxu0
        %7621 = vmatprep.subr.bf16.mxu0 %v7122
        %7622 = vmatpush1.bf16.msra.mxu0 %v7121
        %7623 = vmatprep.subr.bf16.mxu0 %v7120
        %7624 = vmatpush1.bf16.msra.mxu0 %v7119
        %7625 = vmatprep.subr.bf16.mxu0 %v7118
        %7626 = vmatpush1.bf16.msra.mxu0 %v7117
        %7627 = vmatprep.subr.bf16.mxu0 %v7116
        %7628 = vmatpush1.bf16.msra.mxu0 %v7115
        %7629 = vmatprep.subr.bf16.mxu0 %v7114
        %7630 = vmatpush1.bf16.msra.mxu0 %v7113
        %7631 = vmatprep.subr.bf16.mxu0 %v7112
        %7632 = vmatpush1.bf16.msra.mxu0 %v7111
        %7633 = vmatprep.subr.bf16.mxu0 %v7110
        %7634 = vmatpush1.bf16.msra.mxu0 %v7109
        %7635 = vmatprep.subr.bf16.mxu0 %v7108
        %7636 = vmatpush1.bf16.msra.mxu0 %v7107
        %7637 = vmatprep.subr.bf16.mxu0 %v7138
        %7638 = vmatpush2.bf16.msra.mxu0 %v7137
        %7639 = vmatprep.subr.bf16.mxu0 %v7136
        %7640 = vmatpush2.bf16.msra.mxu0 %v7135
        %7641 = vmatprep.subr.bf16.mxu0 %v7134
        %7642 = vmatpush2.bf16.msra.mxu0 %v7133
        %7643 = vmatprep.subr.bf16.mxu0 %v7132
        %7644 = vmatpush2.bf16.msra.mxu0 %v7131
        %7645 = vmatprep.subr.bf16.mxu0 %v7130
        %7646 = vmatpush2.bf16.msra.mxu0 %v7129
        %7647 = vmatprep.subr.bf16.mxu0 %v7128
        %7648 = vmatpush2.bf16.msra.mxu0 %v7127
        %7649 = vmatprep.subr.bf16.mxu0 %v7126
        %7650 = vmatpush2.bf16.msra.mxu0 %v7125
        %7651 = vmatprep.subr.bf16.mxu0 %v7124
        %7652 = vmatpush2.bf16.msra.mxu0 %v7123
        %7653 = vmatprep.mubr.bf16.mxu0 %v6439
        %7654 = vmatmul.mubr.bf16.gmra.mxu0 %v6436
        %v7655 = vpop.f32.mrf.mxu0
        %v7656 = vadd.f32 %v7463, %v7655
        %v7657 = vpop.f32.mrf.mxu0
        %v7658 = vadd.f32 %v7465, %v7657
        %v7659 = vpop.f32.mrf.mxu0
        %v7660 = vadd.f32 %v7467, %v7659
        %v7661 = vpop.f32.mrf.mxu0
        %v7662 = vadd.f32 %v7469, %v7661
        %7663 = vmatprep.mubr.bf16.mxu0 %v6445
        %7664 = vmatmul.mubr.bf16.gmra.mxu0 %v6442
        %v7665 = vpop.f32.mrf.mxu0
        %v7666 = vadd.f32 %v7473, %v7665
        %v7667 = vpop.f32.mrf.mxu0
        %v7668 = vadd.f32 %v7475, %v7667
        %v7669 = vpop.f32.mrf.mxu0
        %v7670 = vadd.f32 %v7477, %v7669
        %v7671 = vpop.f32.mrf.mxu0
        %v7672 = vadd.f32 %v7479, %v7671
        %7673 = vmatprep.mubr.bf16.mxu0 %v6451
        %7674 = vmatmul.mubr.bf16.gmra.mxu0 %v6448
        %v7675 = vpop.f32.mrf.mxu0
        %v7676 = vadd.f32 %v7483, %v7675
        %v7677 = vpop.f32.mrf.mxu0
        %v7678 = vadd.f32 %v7485, %v7677
        %v7679 = vpop.f32.mrf.mxu0
        %v7680 = vadd.f32 %v7487, %v7679
        %v7681 = vpop.f32.mrf.mxu0
        %v7682 = vadd.f32 %v7489, %v7681
        %7683 = vmatprep.mubr.bf16.mxu0 %v6457
        %7684 = vmatmul.mubr.bf16.gmra.mxu0 %v6454
        %v7685 = vpop.f32.mrf.mxu0
        %v7686 = vadd.f32 %v7493, %v7685
        %v7687 = vpop.f32.mrf.mxu0
        %v7688 = vadd.f32 %v7495, %v7687
        %v7689 = vpop.f32.mrf.mxu0
        %v7690 = vadd.f32 %v7497, %v7689
        %v7691 = vpop.f32.mrf.mxu0
        %v7692 = vadd.f32 %v7499, %v7691
        %7693 = vmatprep.mubr.bf16.mxu0 %v6463
        %7694 = vmatmul.mubr.bf16.gmra.mxu0 %v6460
        %v7695 = vpop.f32.mrf.mxu0
        %v7696 = vadd.f32 %v7503, %v7695
        %v7697 = vpop.f32.mrf.mxu0
        %v7698 = vadd.f32 %v7505, %v7697
        %v7699 = vpop.f32.mrf.mxu0
        %v7700 = vadd.f32 %v7507, %v7699
        %v7701 = vpop.f32.mrf.mxu0
        %v7702 = vadd.f32 %v7509, %v7701
        %7703 = vmatprep.mubr.bf16.mxu0 %v6469
        %7704 = vmatmul.mubr.bf16.gmra.mxu0 %v6466
        %v7705 = vpop.f32.mrf.mxu0
        %v7706 = vadd.f32 %v7513, %v7705
        %v7707 = vpop.f32.mrf.mxu0
        %v7708 = vadd.f32 %v7515, %v7707
        %v7709 = vpop.f32.mrf.mxu0
        %v7710 = vadd.f32 %v7517, %v7709
        %v7711 = vpop.f32.mrf.mxu0
        %v7712 = vadd.f32 %v7519, %v7711
        %7713 = vmatprep.mubr.bf16.mxu0 %v6475
        %7714 = vmatmul.mubr.bf16.gmra.mxu0 %v6472
        %v7715 = vpop.f32.mrf.mxu0
        %v7716 = vadd.f32 %v7523, %v7715
        %v7717 = vpop.f32.mrf.mxu0
        %v7718 = vadd.f32 %v7525, %v7717
        %v7719 = vpop.f32.mrf.mxu0
        %v7720 = vadd.f32 %v7527, %v7719
        %v7721 = vpop.f32.mrf.mxu0
        %v7722 = vadd.f32 %v7529, %v7721
        %7723 = vmatprep.mubr.bf16.mxu0 %v6481
        %7724 = vmatmul.mubr.bf16.gmra.mxu0 %v6478
        %v7725 = vpop.f32.mrf.mxu0
        %v7726 = vadd.f32 %v7533, %v7725
        %v7727 = vpop.f32.mrf.mxu0
        %v7728 = vadd.f32 %v7535, %v7727
        %v7729 = vpop.f32.mrf.mxu0
        %v7730 = vadd.f32 %v7537, %v7729
        %v7731 = vpop.f32.mrf.mxu0
        %v7732 = vadd.f32 %v7539, %v7731
        %7733 = vmatprep.mubr.bf16.mxu0 %v6487
        %7734 = vmatmul.mubr.bf16.gmra.mxu0 %v6484
        %v7735 = vpop.f32.mrf.mxu0
        %v7736 = vadd.f32 %v7543, %v7735
        %v7737 = vpop.f32.mrf.mxu0
        %v7738 = vadd.f32 %v7545, %v7737
        %v7739 = vpop.f32.mrf.mxu0
        %v7740 = vadd.f32 %v7547, %v7739
        %v7741 = vpop.f32.mrf.mxu0
        %v7742 = vadd.f32 %v7549, %v7741
        %7743 = vmatprep.mubr.bf16.mxu0 %v6493
        %7744 = vmatmul.mubr.bf16.gmra.mxu0 %v6490
        %v7745 = vpop.f32.mrf.mxu0
        %v7746 = vadd.f32 %v7553, %v7745
        %v7747 = vpop.f32.mrf.mxu0
        %v7748 = vadd.f32 %v7555, %v7747
        %v7749 = vpop.f32.mrf.mxu0
        %v7750 = vadd.f32 %v7557, %v7749
        %v7751 = vpop.f32.mrf.mxu0
        %v7752 = vadd.f32 %v7559, %v7751
        %7753 = vmatprep.mubr.bf16.mxu0 %v6499
        %7754 = vmatmul.mubr.bf16.gmra.mxu0 %v6496
        %v7755 = vpop.f32.mrf.mxu0
        %v7756 = vadd.f32 %v7563, %v7755
        %v7757 = vpop.f32.mrf.mxu0
        %v7758 = vadd.f32 %v7565, %v7757
        %v7759 = vpop.f32.mrf.mxu0
        %v7760 = vadd.f32 %v7567, %v7759
        %v7761 = vpop.f32.mrf.mxu0
        %v7762 = vadd.f32 %v7569, %v7761
        %7763 = vmatprep.mubr.bf16.mxu0 %v6505
        %7764 = vmatmul.mubr.bf16.gmra.mxu0 %v6502
        %v7765 = vpop.f32.mrf.mxu0
        %v7766 = vadd.f32 %v7573, %v7765
        %v7767 = vpop.f32.mrf.mxu0
        %v7768 = vadd.f32 %v7575, %v7767
        %v7769 = vpop.f32.mrf.mxu0
        %v7770 = vadd.f32 %v7577, %v7769
        %v7771 = vpop.f32.mrf.mxu0
        %v7772 = vadd.f32 %v7579, %v7771
        %7773 = vmatprep.mubr.bf16.mxu0 %v6511
        %7774 = vmatmul.mubr.bf16.gmra.mxu0 %v6508
        %v7775 = vpop.f32.mrf.mxu0
        %v7776 = vadd.f32 %v7583, %v7775
        %v7777 = vpop.f32.mrf.mxu0
        %v7778 = vadd.f32 %v7585, %v7777
        %v7779 = vpop.f32.mrf.mxu0
        %v7780 = vadd.f32 %v7587, %v7779
        %v7781 = vpop.f32.mrf.mxu0
        %v7782 = vadd.f32 %v7589, %v7781
        %7783 = vmatprep.mubr.bf16.mxu0 %v6517
        %7784 = vmatmul.mubr.bf16.gmra.mxu0 %v6514
        %v7785 = vpop.f32.mrf.mxu0
        %v7786 = vadd.f32 %v7593, %v7785
        %v7787 = vpop.f32.mrf.mxu0
        %v7788 = vadd.f32 %v7595, %v7787
        %v7789 = vpop.f32.mrf.mxu0
        %v7790 = vadd.f32 %v7597, %v7789
        %v7791 = vpop.f32.mrf.mxu0
        %v7792 = vadd.f32 %v7599, %v7791
        %7793 = vmatprep.mubr.bf16.mxu0 %v6523
        %7794 = vmatmul.mubr.bf16.gmra.mxu0 %v6520
        %v7795 = vpop.f32.mrf.mxu0
        %v7796 = vadd.f32 %v7603, %v7795
        %v7797 = vpop.f32.mrf.mxu0
        %v7798 = vadd.f32 %v7605, %v7797
        %v7799 = vpop.f32.mrf.mxu0
        %v7800 = vadd.f32 %v7607, %v7799
        %v7801 = vpop.f32.mrf.mxu0
        %v7802 = vadd.f32 %v7609, %v7801
        %7803 = vmatprep.mubr.bf16.mxu0 %v6529
        %7804 = vmatmul.mubr.bf16.gmra.mxu0 %v6526
        %v7805 = vpop.f32.mrf.mxu0
        %v7806 = vadd.f32 %v7613, %v7805
        %v7807 = vpop.f32.mrf.mxu0
        %v7808 = vadd.f32 %v7615, %v7807
        %v7809 = vpop.f32.mrf.mxu0
        %v7810 = vadd.f32 %v7617, %v7809
        %v7811 = vpop.f32.mrf.mxu0
        %v7812 = vadd.f32 %v7619, %v7811
        %7813 = vdwg.mxu0
        %v7910 = vunpack.c.l.b16 %v6562
        %v7911 = vunpack.c.h.b16 %v6562
        %v7912 = vunpack.c.l.b16 %v6563
        %v7913 = vunpack.c.h.b16 %v6563
        %v7914 = vunpack.c.l.b16 %v6564
        %v7915 = vunpack.c.h.b16 %v6564
        %v7916 = vunpack.c.l.b16 %v6565
        %v7917 = vunpack.c.h.b16 %v6565
        %v7918 = vunpack.c.l.b16 %v6566
        %v7919 = vunpack.c.h.b16 %v6566
        %v7920 = vunpack.c.l.b16 %v6567
        %v7921 = vunpack.c.h.b16 %v6567
        %v7922 = vunpack.c.l.b16 %v6568
        %v7923 = vunpack.c.h.b16 %v6568
        %v7924 = vunpack.c.l.b16 %v6569
        %v7925 = vunpack.c.h.b16 %v6569
        %v7926 = vunpack.c.l.b16 %v6570
        %v7927 = vunpack.c.h.b16 %v6570
        %v7928 = vunpack.c.l.b16 %v6571
        %v7929 = vunpack.c.h.b16 %v6571
        %v7930 = vunpack.c.l.b16 %v6572
        %v7931 = vunpack.c.h.b16 %v6572
        %v7932 = vunpack.c.l.b16 %v6573
        %v7933 = vunpack.c.h.b16 %v6573
        %v7934 = vunpack.c.l.b16 %v6574
        %v7935 = vunpack.c.h.b16 %v6574
        %v7936 = vunpack.c.l.b16 %v6575
        %v7937 = vunpack.c.h.b16 %v6575
        %v7938 = vunpack.c.l.b16 %v6576
        %v7939 = vunpack.c.h.b16 %v6576
        %v7940 = vunpack.c.l.b16 %v6577
        %v7941 = vunpack.c.h.b16 %v6577
        %v7942 = vunpack.c.l.b16 %v6578
        %v7943 = vunpack.c.h.b16 %v6578
        %v7944 = vunpack.c.l.b16 %v6579
        %v7945 = vunpack.c.h.b16 %v6579
        %v7946 = vunpack.c.l.b16 %v6580
        %v7947 = vunpack.c.h.b16 %v6580
        %v7948 = vunpack.c.l.b16 %v6581
        %v7949 = vunpack.c.h.b16 %v6581
        %v7950 = vunpack.c.l.b16 %v6582
        %v7951 = vunpack.c.h.b16 %v6582
        %v7952 = vunpack.c.l.b16 %v6583
        %v7953 = vunpack.c.h.b16 %v6583
        %v7954 = vunpack.c.l.b16 %v6584
        %v7955 = vunpack.c.h.b16 %v6584
        %v7956 = vunpack.c.l.b16 %v6585
        %v7957 = vunpack.c.h.b16 %v6585
        %v7958 = vunpack.c.l.b16 %v6586
        %v7959 = vunpack.c.h.b16 %v6586
        %v7960 = vunpack.c.l.b16 %v6587
        %v7961 = vunpack.c.h.b16 %v6587
        %v7962 = vunpack.c.l.b16 %v6588
        %v7963 = vunpack.c.h.b16 %v6588
        %v7964 = vunpack.c.l.b16 %v6589
        %v7965 = vunpack.c.h.b16 %v6589
        %v7966 = vunpack.c.l.b16 %v6590
        %v7967 = vunpack.c.h.b16 %v6590
        %v7968 = vunpack.c.l.b16 %v6591
        %v7969 = vunpack.c.h.b16 %v6591
        %v7970 = vunpack.c.l.b16 %v6592
        %v7971 = vunpack.c.h.b16 %v6592
        %v7972 = vunpack.c.l.b16 %v6593
        %v7973 = vunpack.c.h.b16 %v6593
        %v7974 = vunpack.c.l.b16 %v6594
        %v7975 = vunpack.c.h.b16 %v6594
        %v7976 = vunpack.c.l.b16 %v6595
        %v7977 = vunpack.c.h.b16 %v6595
        %v7978 = vunpack.c.l.b16 %v6596
        %v7979 = vunpack.c.h.b16 %v6596
        %v7980 = vunpack.c.l.b16 %v6597
        %v7981 = vunpack.c.h.b16 %v6597
        %v7982 = vunpack.c.l.b16 %v6598
        %v7983 = vunpack.c.h.b16 %v6598
        %v7984 = vunpack.c.l.b16 %v6599
        %v7985 = vunpack.c.h.b16 %v6599
        %v7986 = vunpack.c.l.b16 %v6600
        %v7987 = vunpack.c.h.b16 %v6600
        %v7988 = vunpack.c.l.b16 %v6601
        %v7989 = vunpack.c.h.b16 %v6601
        %v7990 = vunpack.c.l.b16 %v6602
        %v7991 = vunpack.c.h.b16 %v6602
        %v7992 = vunpack.c.l.b16 %v6603
        %v7993 = vunpack.c.h.b16 %v6603
        %v7994 = vunpack.c.l.b16 %v6604
        %v7995 = vunpack.c.h.b16 %v6604
        %v7996 = vunpack.c.l.b16 %v6605
        %v7997 = vunpack.c.h.b16 %v6605
        %v7998 = vunpack.c.l.b16 %v6606
        %v7999 = vunpack.c.h.b16 %v6606
        %v8000 = vunpack.c.l.b16 %v6607
        %v8001 = vunpack.c.h.b16 %v6607
        %v8002 = vunpack.c.l.b16 %v6608
        %v8003 = vunpack.c.h.b16 %v6608
        %v8004 = vunpack.c.l.b16 %v6609
        %v8005 = vunpack.c.h.b16 %v6609
        %v8006 = vunpack.c.l.b16 %v6610
        %v8007 = vunpack.c.h.b16 %v6610
        %v8008 = vunpack.c.l.b16 %v6611
        %v8009 = vunpack.c.h.b16 %v6611
        %v8010 = vunpack.c.l.b16 %v6612
        %v8011 = vunpack.c.h.b16 %v6612
        %v8012 = vunpack.c.l.b16 %v6613
        %v8013 = vunpack.c.h.b16 %v6613
        %v8014 = vunpack.c.l.b16 %v6614
        %v8015 = vunpack.c.h.b16 %v6614
        %v8016 = vunpack.c.l.b16 %v6615
        %v8017 = vunpack.c.h.b16 %v6615
        %v8018 = vunpack.c.l.b16 %v6616
        %v8019 = vunpack.c.h.b16 %v6616
        %v8020 = vunpack.c.l.b16 %v6617
        %v8021 = vunpack.c.h.b16 %v6617
        %v8022 = vunpack.c.l.b16 %v6618
        %v8023 = vunpack.c.h.b16 %v6618
        %v8024 = vunpack.c.l.b16 %v6619
        %v8025 = vunpack.c.h.b16 %v6619
        %v8026 = vunpack.c.l.b16 %v6620
        %v8027 = vunpack.c.h.b16 %v6620
        %v8028 = vunpack.c.l.b16 %v6621
        %v8029 = vunpack.c.h.b16 %v6621
        %v8030 = vunpack.c.l.b16 %v6622
        %v8031 = vunpack.c.h.b16 %v6622
        %v8032 = vunpack.c.l.b16 %v6623
        %v8033 = vunpack.c.h.b16 %v6623
        %v8034 = vunpack.c.l.b16 %v6624
        %v8035 = vunpack.c.h.b16 %v6624
        %v8036 = vunpack.c.l.b16 %v6625
        %v8037 = vunpack.c.h.b16 %v6625
        %v8038 = vunpack.c.l.b16 %v6626
        %v8039 = vunpack.c.h.b16 %v6626
        %v8040 = vunpack.c.l.b16 %v6627
        %v8041 = vunpack.c.h.b16 %v6627
        %v8042 = vunpack.c.l.b16 %v6628
        %v8043 = vunpack.c.h.b16 %v6628
        %v8044 = vunpack.c.l.b16 %v6629
        %v8045 = vunpack.c.h.b16 %v6629
        %v8046 = vunpack.c.l.b16 %v6630
        %v8047 = vunpack.c.h.b16 %v6630
        %v8048 = vunpack.c.l.b16 %v6631
        %v8049 = vunpack.c.h.b16 %v6631
        %v8050 = vunpack.c.l.b16 %v6632
        %v8051 = vunpack.c.h.b16 %v6632
        %v8052 = vunpack.c.l.b16 %v6633
        %v8053 = vunpack.c.h.b16 %v6633
        %v8054 = vunpack.c.l.b16 %v6634
        %v8055 = vunpack.c.h.b16 %v6634
        %v8056 = vunpack.c.l.b16 %v6635
        %v8057 = vunpack.c.h.b16 %v6635
        %v8058 = vunpack.c.l.b16 %v6636
        %v8059 = vunpack.c.h.b16 %v6636
        %v8060 = vunpack.c.l.b16 %v6637
        %v8061 = vunpack.c.h.b16 %v6637
        %v8062 = vunpack.c.l.b16 %v6638
        %v8063 = vunpack.c.h.b16 %v6638
        %v8064 = vunpack.c.l.b16 %v6639
        %v8065 = vunpack.c.h.b16 %v6639
        %v8066 = vunpack.c.l.b16 %v6640
        %v8067 = vunpack.c.h.b16 %v6640
        %v8068 = vunpack.c.l.b16 %v6641
        %v8069 = vunpack.c.h.b16 %v6641
        %v8070 = vunpack.c.l.b16 %v6642
        %v8071 = vunpack.c.h.b16 %v6642
        %v8072 = vunpack.c.l.b16 %v6643
        %v8073 = vunpack.c.h.b16 %v6643
        %v8074 = vunpack.c.l.b16 %v6644
        %v8075 = vunpack.c.h.b16 %v6644
        %v8076 = vunpack.c.l.b16 %v6645
        %v8077 = vunpack.c.h.b16 %v6645
        %v8078 = vunpack.c.l.b16 %v6646
        %v8079 = vunpack.c.h.b16 %v6646
        %v8080 = vunpack.c.l.b16 %v6647
        %v8081 = vunpack.c.h.b16 %v6647
        %v8082 = vunpack.c.l.b16 %v6648
        %v8083 = vunpack.c.h.b16 %v6648
        %v8084 = vunpack.c.l.b16 %v6649
        %v8085 = vunpack.c.h.b16 %v6649
        %v8086 = vunpack.c.l.b16 %v6650
        %v8087 = vunpack.c.h.b16 %v6650
        %v8088 = vunpack.c.l.b16 %v6651
        %v8089 = vunpack.c.h.b16 %v6651
        %v8090 = vunpack.c.l.b16 %v6652
        %v8091 = vunpack.c.h.b16 %v6652
        %v8092 = vunpack.c.l.b16 %v6653
        %v8093 = vunpack.c.h.b16 %v6653
        %v8094 = vunpack.c.l.b16 %v6654
        %v8095 = vunpack.c.h.b16 %v6654
        %v8096 = vunpack.c.l.b16 %v6655
        %v8097 = vunpack.c.h.b16 %v6655
        %v8098 = vunpack.c.l.b16 %v6656
        %v8099 = vunpack.c.h.b16 %v6656
        %v8100 = vunpack.c.l.b16 %v6657
        %v8101 = vunpack.c.h.b16 %v6657
        %v8102 = vpack.c.b16 %v7912, %v7910
        %v8103 = vpack.c.b16 %v7913, %v7911
        %v8104 = vpack.c.b16 %v7916, %v7914
        %v8105 = vpack.c.b16 %v7917, %v7915
        %v8106 = vpack.c.b16 %v7920, %v7918
        %v8107 = vpack.c.b16 %v7921, %v7919
        %v8108 = vpack.c.b16 %v7924, %v7922
        %v8109 = vpack.c.b16 %v7925, %v7923
        %v8110 = vpack.c.b16 %v7928, %v7926
        %v8111 = vpack.c.b16 %v7929, %v7927
        %v8112 = vpack.c.b16 %v7932, %v7930
        %v8113 = vpack.c.b16 %v7933, %v7931
        %v8114 = vpack.c.b16 %v7936, %v7934
        %v8115 = vpack.c.b16 %v7937, %v7935
        %v8116 = vpack.c.b16 %v7940, %v7938
        %v8117 = vpack.c.b16 %v7941, %v7939
        %v8118 = vpack.c.b16 %v7944, %v7942
        %v8119 = vpack.c.b16 %v7945, %v7943
        %v8120 = vpack.c.b16 %v7948, %v7946
        %v8121 = vpack.c.b16 %v7949, %v7947
        %v8122 = vpack.c.b16 %v7952, %v7950
        %v8123 = vpack.c.b16 %v7953, %v7951
        %v8124 = vpack.c.b16 %v7956, %v7954
        %v8125 = vpack.c.b16 %v7957, %v7955
        %v8126 = vpack.c.b16 %v7960, %v7958
        %v8127 = vpack.c.b16 %v7961, %v7959
        %v8128 = vpack.c.b16 %v7964, %v7962
        %v8129 = vpack.c.b16 %v7965, %v7963
        %v8130 = vpack.c.b16 %v7968, %v7966
        %v8131 = vpack.c.b16 %v7969, %v7967
        %v8132 = vpack.c.b16 %v7972, %v7970
        %v8133 = vpack.c.b16 %v7973, %v7971
        %v8134 = vpack.c.b16 %v7976, %v7974
        %v8135 = vpack.c.b16 %v7977, %v7975
        %v8136 = vpack.c.b16 %v7980, %v7978
        %v8137 = vpack.c.b16 %v7981, %v7979
        %v8138 = vpack.c.b16 %v7984, %v7982
        %v8139 = vpack.c.b16 %v7985, %v7983
        %v8140 = vpack.c.b16 %v7988, %v7986
        %v8141 = vpack.c.b16 %v7989, %v7987
        %v8142 = vpack.c.b16 %v7992, %v7990
        %v8143 = vpack.c.b16 %v7993, %v7991
        %v8144 = vpack.c.b16 %v7996, %v7994
        %v8145 = vpack.c.b16 %v7997, %v7995
        %v8146 = vpack.c.b16 %v8000, %v7998
        %v8147 = vpack.c.b16 %v8001, %v7999
        %v8148 = vpack.c.b16 %v8004, %v8002
        %v8149 = vpack.c.b16 %v8005, %v8003
        %v8150 = vpack.c.b16 %v8008, %v8006
        %v8151 = vpack.c.b16 %v8009, %v8007
        %v8152 = vpack.c.b16 %v8012, %v8010
        %v8153 = vpack.c.b16 %v8013, %v8011
        %v8154 = vpack.c.b16 %v8016, %v8014
        %v8155 = vpack.c.b16 %v8017, %v8015
        %v8156 = vpack.c.b16 %v8020, %v8018
        %v8157 = vpack.c.b16 %v8021, %v8019
        %v8158 = vpack.c.b16 %v8024, %v8022
        %v8159 = vpack.c.b16 %v8025, %v8023
        %v8160 = vpack.c.b16 %v8028, %v8026
        %v8161 = vpack.c.b16 %v8029, %v8027
        %v8162 = vpack.c.b16 %v8032, %v8030
        %v8163 = vpack.c.b16 %v8033, %v8031
        %v8164 = vpack.c.b16 %v8036, %v8034
        %v8165 = vpack.c.b16 %v8037, %v8035
        %v8166 = vpack.c.b16 %v8040, %v8038
        %v8167 = vpack.c.b16 %v8041, %v8039
        %v8168 = vpack.c.b16 %v8044, %v8042
        %v8169 = vpack.c.b16 %v8045, %v8043
        %v8170 = vpack.c.b16 %v8048, %v8046
        %v8171 = vpack.c.b16 %v8049, %v8047
        %v8172 = vpack.c.b16 %v8052, %v8050
        %v8173 = vpack.c.b16 %v8053, %v8051
        %v8174 = vpack.c.b16 %v8056, %v8054
        %v8175 = vpack.c.b16 %v8057, %v8055
        %v8176 = vpack.c.b16 %v8060, %v8058
        %v8177 = vpack.c.b16 %v8061, %v8059
        %v8178 = vpack.c.b16 %v8064, %v8062
        %v8179 = vpack.c.b16 %v8065, %v8063
        %v8180 = vpack.c.b16 %v8068, %v8066
        %v8181 = vpack.c.b16 %v8069, %v8067
        %v8182 = vpack.c.b16 %v8072, %v8070
        %v8183 = vpack.c.b16 %v8073, %v8071
        %v8184 = vpack.c.b16 %v8076, %v8074
        %v8185 = vpack.c.b16 %v8077, %v8075
        %v8186 = vpack.c.b16 %v8080, %v8078
        %v8187 = vpack.c.b16 %v8081, %v8079
        %v8188 = vpack.c.b16 %v8084, %v8082
        %v8189 = vpack.c.b16 %v8085, %v8083
        %v8190 = vpack.c.b16 %v8088, %v8086
        %v8191 = vpack.c.b16 %v8089, %v8087
        %v8192 = vpack.c.b16 %v8092, %v8090
        %v8193 = vpack.c.b16 %v8093, %v8091
        %v8194 = vpack.c.b16 %v8096, %v8094
        %v8195 = vpack.c.b16 %v8097, %v8095
        %v8196 = vpack.c.b16 %v8100, %v8098
        %v8197 = vpack.c.b16 %v8101, %v8099
        %8294 = vmatprep.subr.bf16.mxu0 %v8117
        %8295 = vmatpush1.bf16.msra.mxu0 %v8116
        %8296 = vmatprep.subr.bf16.mxu0 %v8115
        %8297 = vmatpush1.bf16.msra.mxu0 %v8114
        %8298 = vmatprep.subr.bf16.mxu0 %v8113
        %8299 = vmatpush1.bf16.msra.mxu0 %v8112
        %8300 = vmatprep.subr.bf16.mxu0 %v8111
        %8301 = vmatpush1.bf16.msra.mxu0 %v8110
        %8302 = vmatprep.subr.bf16.mxu0 %v8109
        %8303 = vmatpush1.bf16.msra.mxu0 %v8108
        %8304 = vmatprep.subr.bf16.mxu0 %v8107
        %8305 = vmatpush1.bf16.msra.mxu0 %v8106
        %8306 = vmatprep.subr.bf16.mxu0 %v8105
        %8307 = vmatpush1.bf16.msra.mxu0 %v8104
        %8308 = vmatprep.subr.bf16.mxu0 %v8103
        %8309 = vmatpush1.bf16.msra.mxu0 %v8102
        %8310 = vmatprep.subr.bf16.mxu0 %v8133
        %8311 = vmatpush2.bf16.msra.mxu0 %v8132
        %8312 = vmatprep.subr.bf16.mxu0 %v8131
        %8313 = vmatpush2.bf16.msra.mxu0 %v8130
        %8314 = vmatprep.subr.bf16.mxu0 %v8129
        %8315 = vmatpush2.bf16.msra.mxu0 %v8128
        %8316 = vmatprep.subr.bf16.mxu0 %v8127
        %8317 = vmatpush2.bf16.msra.mxu0 %v8126
        %8318 = vmatprep.subr.bf16.mxu0 %v8125
        %8319 = vmatpush2.bf16.msra.mxu0 %v8124
        %8320 = vmatprep.subr.bf16.mxu0 %v8123
        %8321 = vmatpush2.bf16.msra.mxu0 %v8122
        %8322 = vmatprep.subr.bf16.mxu0 %v8121
        %8323 = vmatpush2.bf16.msra.mxu0 %v8120
        %8324 = vmatprep.subr.bf16.mxu0 %v8119
        %8325 = vmatpush2.bf16.msra.mxu0 %v8118
        %8326 = vmatprep.mubr.bf16.mxu0 %v5893
        %8327 = vmatmul.mubr.bf16.gmra.mxu0 %v5892
        %v8328 = vpop.f32.mrf.mxu0
        %v8329 = vadd.f32 %v7656, %v8328
        %v8330 = vpop.f32.mrf.mxu0
        %v8331 = vadd.f32 %v7658, %v8330
        %v8332 = vpop.f32.mrf.mxu0
        %v8333 = vadd.f32 %v7660, %v8332
        %v8334 = vpop.f32.mrf.mxu0
        %v8335 = vadd.f32 %v7662, %v8334
        %8336 = vmatprep.mubr.bf16.mxu0 %v5891
        %8337 = vmatmul.mubr.bf16.gmra.mxu0 %v5890
        %v8338 = vpop.f32.mrf.mxu0
        %v8339 = vadd.f32 %v7666, %v8338
        %v8340 = vpop.f32.mrf.mxu0
        %v8341 = vadd.f32 %v7668, %v8340
        %v8342 = vpop.f32.mrf.mxu0
        %v8343 = vadd.f32 %v7670, %v8342
        %v8344 = vpop.f32.mrf.mxu0
        %v8345 = vadd.f32 %v7672, %v8344
        %8346 = vmatprep.mubr.bf16.mxu0 %v5893
        %8347 = vmatmul.mubr.bf16.gmra.mxu0 %v5892
        %v8348 = vpop.f32.mrf.mxu0
        %v8349 = vadd.f32 %v7676, %v8348
        %v8350 = vpop.f32.mrf.mxu0
        %v8351 = vadd.f32 %v7678, %v8350
        %v8352 = vpop.f32.mrf.mxu0
        %v8353 = vadd.f32 %v7680, %v8352
        %v8354 = vpop.f32.mrf.mxu0
        %v8355 = vadd.f32 %v7682, %v8354
        %8356 = vmatprep.mubr.bf16.mxu0 %v5895
        %8357 = vmatmul.mubr.bf16.gmra.mxu0 %v5894
        %v8358 = vpop.f32.mrf.mxu0
        %v8359 = vadd.f32 %v7686, %v8358
        %v8360 = vpop.f32.mrf.mxu0
        %v8361 = vadd.f32 %v7688, %v8360
        %v8362 = vpop.f32.mrf.mxu0
        %v8363 = vadd.f32 %v7690, %v8362
        %v8364 = vpop.f32.mrf.mxu0
        %v8365 = vadd.f32 %v7692, %v8364
        %8366 = vmatprep.mubr.bf16.mxu0 %v5897
        %8367 = vmatmul.mubr.bf16.gmra.mxu0 %v5896
        %v8368 = vpop.f32.mrf.mxu0
        %v8369 = vadd.f32 %v7696, %v8368
        %v8370 = vpop.f32.mrf.mxu0
        %v8371 = vadd.f32 %v7698, %v8370
        %v8372 = vpop.f32.mrf.mxu0
        %v8373 = vadd.f32 %v7700, %v8372
        %v8374 = vpop.f32.mrf.mxu0
        %v8375 = vadd.f32 %v7702, %v8374
        %8376 = vmatprep.mubr.bf16.mxu0 %v5899
        %8377 = vmatmul.mubr.bf16.gmra.mxu0 %v5898
        %v8378 = vpop.f32.mrf.mxu0
        %v8379 = vadd.f32 %v7706, %v8378
        %v8380 = vpop.f32.mrf.mxu0
        %v8381 = vadd.f32 %v7708, %v8380
        %v8382 = vpop.f32.mrf.mxu0
        %v8383 = vadd.f32 %v7710, %v8382
        %v8384 = vpop.f32.mrf.mxu0
        %v8385 = vadd.f32 %v7712, %v8384
        %8386 = vmatprep.mubr.bf16.mxu0 %v5901
        %8387 = vmatmul.mubr.bf16.gmra.mxu0 %v5900
        %v8388 = vpop.f32.mrf.mxu0
        %v8389 = vadd.f32 %v7716, %v8388
        %v8390 = vpop.f32.mrf.mxu0
        %v8391 = vadd.f32 %v7718, %v8390
        %v8392 = vpop.f32.mrf.mxu0
        %v8393 = vadd.f32 %v7720, %v8392
        %v8394 = vpop.f32.mrf.mxu0
        %v8395 = vadd.f32 %v7722, %v8394
        %8396 = vmatprep.mubr.bf16.mxu0 %v5903
        %8397 = vmatmul.mubr.bf16.gmra.mxu0 %v5902
        %v8398 = vpop.f32.mrf.mxu0
        %v8399 = vadd.f32 %v7726, %v8398
        %v8400 = vpop.f32.mrf.mxu0
        %v8401 = vadd.f32 %v7728, %v8400
        %v8402 = vpop.f32.mrf.mxu0
        %v8403 = vadd.f32 %v7730, %v8402
        %v8404 = vpop.f32.mrf.mxu0
        %v8405 = vadd.f32 %v7732, %v8404
        %8406 = vmatprep.mubr.bf16.mxu0 %v5905
        %8407 = vmatmul.mubr.bf16.gmra.mxu0 %v5904
        %v8408 = vpop.f32.mrf.mxu0
        %v8409 = vadd.f32 %v7736, %v8408
        %v8410 = vpop.f32.mrf.mxu0
        %v8411 = vadd.f32 %v7738, %v8410
        %v8412 = vpop.f32.mrf.mxu0
        %v8413 = vadd.f32 %v7740, %v8412
        %v8414 = vpop.f32.mrf.mxu0
        %v8415 = vadd.f32 %v7742, %v8414
        %8416 = vmatprep.mubr.bf16.mxu0 %v5907
        %8417 = vmatmul.mubr.bf16.gmra.mxu0 %v5906
        %v8418 = vpop.f32.mrf.mxu0
        %v8419 = vadd.f32 %v7746, %v8418
        %v8420 = vpop.f32.mrf.mxu0
        %v8421 = vadd.f32 %v7748, %v8420
        %v8422 = vpop.f32.mrf.mxu0
        %v8423 = vadd.f32 %v7750, %v8422
        %v8424 = vpop.f32.mrf.mxu0
        %v8425 = vadd.f32 %v7752, %v8424
        %8426 = vmatprep.mubr.bf16.mxu0 %v5909
        %8427 = vmatmul.mubr.bf16.gmra.mxu0 %v5908
        %v8428 = vpop.f32.mrf.mxu0
        %v8429 = vadd.f32 %v7756, %v8428
        %v8430 = vpop.f32.mrf.mxu0
        %v8431 = vadd.f32 %v7758, %v8430
        %v8432 = vpop.f32.mrf.mxu0
        %v8433 = vadd.f32 %v7760, %v8432
        %v8434 = vpop.f32.mrf.mxu0
        %v8435 = vadd.f32 %v7762, %v8434
        %8436 = vmatprep.mubr.bf16.mxu0 %v5911
        %8437 = vmatmul.mubr.bf16.gmra.mxu0 %v5910
        %v8438 = vpop.f32.mrf.mxu0
        %v8439 = vadd.f32 %v7766, %v8438
        %v8440 = vpop.f32.mrf.mxu0
        %v8441 = vadd.f32 %v7768, %v8440
        %v8442 = vpop.f32.mrf.mxu0
        %v8443 = vadd.f32 %v7770, %v8442
        %v8444 = vpop.f32.mrf.mxu0
        %v8445 = vadd.f32 %v7772, %v8444
        %8446 = vmatprep.mubr.bf16.mxu0 %v5913
        %8447 = vmatmul.mubr.bf16.gmra.mxu0 %v5912
        %v8448 = vpop.f32.mrf.mxu0
        %v8449 = vadd.f32 %v7776, %v8448
        %v8450 = vpop.f32.mrf.mxu0
        %v8451 = vadd.f32 %v7778, %v8450
        %v8452 = vpop.f32.mrf.mxu0
        %v8453 = vadd.f32 %v7780, %v8452
        %v8454 = vpop.f32.mrf.mxu0
        %v8455 = vadd.f32 %v7782, %v8454
        %8456 = vmatprep.mubr.bf16.mxu0 %v5915
        %8457 = vmatmul.mubr.bf16.gmra.mxu0 %v5914
        %v8458 = vpop.f32.mrf.mxu0
        %v8459 = vadd.f32 %v7786, %v8458
        %v8460 = vpop.f32.mrf.mxu0
        %v8461 = vadd.f32 %v7788, %v8460
        %v8462 = vpop.f32.mrf.mxu0
        %v8463 = vadd.f32 %v7790, %v8462
        %v8464 = vpop.f32.mrf.mxu0
        %v8465 = vadd.f32 %v7792, %v8464
        %8466 = vmatprep.mubr.bf16.mxu0 %v5917
        %8467 = vmatmul.mubr.bf16.gmra.mxu0 %v5916
        %v8468 = vpop.f32.mrf.mxu0
        %v8469 = vadd.f32 %v7796, %v8468
        %v8470 = vpop.f32.mrf.mxu0
        %v8471 = vadd.f32 %v7798, %v8470
        %v8472 = vpop.f32.mrf.mxu0
        %v8473 = vadd.f32 %v7800, %v8472
        %v8474 = vpop.f32.mrf.mxu0
        %v8475 = vadd.f32 %v7802, %v8474
        %8476 = vmatprep.mubr.bf16.mxu0 %v5919
        %8477 = vmatmul.mubr.bf16.gmra.mxu0 %v5918
        %v8478 = vpop.f32.mrf.mxu0
        %v8479 = vadd.f32 %v7806, %v8478
        %v8480 = vpop.f32.mrf.mxu0
        %v8481 = vadd.f32 %v7808, %v8480
        %v8482 = vpop.f32.mrf.mxu0
        %v8483 = vadd.f32 %v7810, %v8482
        %v8484 = vpop.f32.mrf.mxu0
        %v8485 = vadd.f32 %v7812, %v8484
        %8486 = vdwg.mxu0
        %8487 = vmatprep.subr.bf16.mxu0 %v8149
        %8488 = vmatpush1.bf16.msra.mxu0 %v8148
        %8489 = vmatprep.subr.bf16.mxu0 %v8147
        %8490 = vmatpush1.bf16.msra.mxu0 %v8146
        %8491 = vmatprep.subr.bf16.mxu0 %v8145
        %8492 = vmatpush1.bf16.msra.mxu0 %v8144
        %8493 = vmatprep.subr.bf16.mxu0 %v8143
        %8494 = vmatpush1.bf16.msra.mxu0 %v8142
        %8495 = vmatprep.subr.bf16.mxu0 %v8141
        %8496 = vmatpush1.bf16.msra.mxu0 %v8140
        %8497 = vmatprep.subr.bf16.mxu0 %v8139
        %8498 = vmatpush1.bf16.msra.mxu0 %v8138
        %8499 = vmatprep.subr.bf16.mxu0 %v8137
        %8500 = vmatpush1.bf16.msra.mxu0 %v8136
        %8501 = vmatprep.subr.bf16.mxu0 %v8135
        %8502 = vmatpush1.bf16.msra.mxu0 %v8134
        %8503 = vmatprep.subr.bf16.mxu0 %v8165
        %8504 = vmatpush2.bf16.msra.mxu0 %v8164
        %8505 = vmatprep.subr.bf16.mxu0 %v8163
        %8506 = vmatpush2.bf16.msra.mxu0 %v8162
        %8507 = vmatprep.subr.bf16.mxu0 %v8161
        %8508 = vmatpush2.bf16.msra.mxu0 %v8160
        %8509 = vmatprep.subr.bf16.mxu0 %v8159
        %8510 = vmatpush2.bf16.msra.mxu0 %v8158
        %8511 = vmatprep.subr.bf16.mxu0 %v8157
        %8512 = vmatpush2.bf16.msra.mxu0 %v8156
        %8513 = vmatprep.subr.bf16.mxu0 %v8155
        %8514 = vmatpush2.bf16.msra.mxu0 %v8154
        %8515 = vmatprep.subr.bf16.mxu0 %v8153
        %8516 = vmatpush2.bf16.msra.mxu0 %v8152
        %8517 = vmatprep.subr.bf16.mxu0 %v8151
        %8518 = vmatpush2.bf16.msra.mxu0 %v8150
        %8519 = vmatprep.mubr.bf16.mxu0 %v6001
        %8520 = vmatmul.mubr.bf16.gmra.mxu0 %v5989
        %v8521 = vpop.f32.mrf.mxu0
        %v8522 = vadd.f32 %v8329, %v8521
        %v8523 = vpop.f32.mrf.mxu0
        %v8524 = vadd.f32 %v8331, %v8523
        %v8525 = vpop.f32.mrf.mxu0
        %v8526 = vadd.f32 %v8333, %v8525
        %v8527 = vpop.f32.mrf.mxu0
        %v8528 = vadd.f32 %v8335, %v8527
        %8529 = vmatprep.mubr.bf16.mxu0 %v5977
        %8530 = vmatmul.mubr.bf16.gmra.mxu0 %v5965
        %v8531 = vpop.f32.mrf.mxu0
        %v8532 = vadd.f32 %v8339, %v8531
        %v8533 = vpop.f32.mrf.mxu0
        %v8534 = vadd.f32 %v8341, %v8533
        %v8535 = vpop.f32.mrf.mxu0
        %v8536 = vadd.f32 %v8343, %v8535
        %v8537 = vpop.f32.mrf.mxu0
        %v8538 = vadd.f32 %v8345, %v8537
        %8539 = vmatprep.mubr.bf16.mxu0 %v6001
        %8540 = vmatmul.mubr.bf16.gmra.mxu0 %v5989
        %v8541 = vpop.f32.mrf.mxu0
        %v8542 = vadd.f32 %v8349, %v8541
        %v8543 = vpop.f32.mrf.mxu0
        %v8544 = vadd.f32 %v8351, %v8543
        %v8545 = vpop.f32.mrf.mxu0
        %v8546 = vadd.f32 %v8353, %v8545
        %v8547 = vpop.f32.mrf.mxu0
        %v8548 = vadd.f32 %v8355, %v8547
        %8549 = vmatprep.mubr.bf16.mxu0 %v6025
        %8550 = vmatmul.mubr.bf16.gmra.mxu0 %v6013
        %v8551 = vpop.f32.mrf.mxu0
        %v8552 = vadd.f32 %v8359, %v8551
        %v8553 = vpop.f32.mrf.mxu0
        %v8554 = vadd.f32 %v8361, %v8553
        %v8555 = vpop.f32.mrf.mxu0
        %v8556 = vadd.f32 %v8363, %v8555
        %v8557 = vpop.f32.mrf.mxu0
        %v8558 = vadd.f32 %v8365, %v8557
        %8559 = vmatprep.mubr.bf16.mxu0 %v6049
        %8560 = vmatmul.mubr.bf16.gmra.mxu0 %v6037
        %v8561 = vpop.f32.mrf.mxu0
        %v8562 = vadd.f32 %v8369, %v8561
        %v8563 = vpop.f32.mrf.mxu0
        %v8564 = vadd.f32 %v8371, %v8563
        %v8565 = vpop.f32.mrf.mxu0
        %v8566 = vadd.f32 %v8373, %v8565
        %v8567 = vpop.f32.mrf.mxu0
        %v8568 = vadd.f32 %v8375, %v8567
        %8569 = vmatprep.mubr.bf16.mxu0 %v6073
        %8570 = vmatmul.mubr.bf16.gmra.mxu0 %v6061
        %v8571 = vpop.f32.mrf.mxu0
        %v8572 = vadd.f32 %v8379, %v8571
        %v8573 = vpop.f32.mrf.mxu0
        %v8574 = vadd.f32 %v8381, %v8573
        %v8575 = vpop.f32.mrf.mxu0
        %v8576 = vadd.f32 %v8383, %v8575
        %v8577 = vpop.f32.mrf.mxu0
        %v8578 = vadd.f32 %v8385, %v8577
        %8579 = vmatprep.mubr.bf16.mxu0 %v6097
        %8580 = vmatmul.mubr.bf16.gmra.mxu0 %v6085
        %v8581 = vpop.f32.mrf.mxu0
        %v8582 = vadd.f32 %v8389, %v8581
        %v8583 = vpop.f32.mrf.mxu0
        %v8584 = vadd.f32 %v8391, %v8583
        %v8585 = vpop.f32.mrf.mxu0
        %v8586 = vadd.f32 %v8393, %v8585
        %v8587 = vpop.f32.mrf.mxu0
        %v8588 = vadd.f32 %v8395, %v8587
        %8589 = vmatprep.mubr.bf16.mxu0 %v6121
        %8590 = vmatmul.mubr.bf16.gmra.mxu0 %v6109
        %v8591 = vpop.f32.mrf.mxu0
        %v8592 = vadd.f32 %v8399, %v8591
        %v8593 = vpop.f32.mrf.mxu0
        %v8594 = vadd.f32 %v8401, %v8593
        %v8595 = vpop.f32.mrf.mxu0
        %v8596 = vadd.f32 %v8403, %v8595
        %v8597 = vpop.f32.mrf.mxu0
        %v8598 = vadd.f32 %v8405, %v8597
        %8599 = vmatprep.mubr.bf16.mxu0 %v6145
        %8600 = vmatmul.mubr.bf16.gmra.mxu0 %v6133
        %v8601 = vpop.f32.mrf.mxu0
        %v8602 = vadd.f32 %v8409, %v8601
        %v8603 = vpop.f32.mrf.mxu0
        %v8604 = vadd.f32 %v8411, %v8603
        %v8605 = vpop.f32.mrf.mxu0
        %v8606 = vadd.f32 %v8413, %v8605
        %v8607 = vpop.f32.mrf.mxu0
        %v8608 = vadd.f32 %v8415, %v8607
        %8609 = vmatprep.mubr.bf16.mxu0 %v6169
        %8610 = vmatmul.mubr.bf16.gmra.mxu0 %v6157
        %v8611 = vpop.f32.mrf.mxu0
        %v8612 = vadd.f32 %v8419, %v8611
        %v8613 = vpop.f32.mrf.mxu0
        %v8614 = vadd.f32 %v8421, %v8613
        %v8615 = vpop.f32.mrf.mxu0
        %v8616 = vadd.f32 %v8423, %v8615
        %v8617 = vpop.f32.mrf.mxu0
        %v8618 = vadd.f32 %v8425, %v8617
        %8619 = vmatprep.mubr.bf16.mxu0 %v6193
        %8620 = vmatmul.mubr.bf16.gmra.mxu0 %v6181
        %v8621 = vpop.f32.mrf.mxu0
        %v8622 = vadd.f32 %v8429, %v8621
        %v8623 = vpop.f32.mrf.mxu0
        %v8624 = vadd.f32 %v8431, %v8623
        %v8625 = vpop.f32.mrf.mxu0
        %v8626 = vadd.f32 %v8433, %v8625
        %v8627 = vpop.f32.mrf.mxu0
        %v8628 = vadd.f32 %v8435, %v8627
        %8629 = vmatprep.mubr.bf16.mxu0 %v6217
        %8630 = vmatmul.mubr.bf16.gmra.mxu0 %v6205
        %v8631 = vpop.f32.mrf.mxu0
        %v8632 = vadd.f32 %v8439, %v8631
        %v8633 = vpop.f32.mrf.mxu0
        %v8634 = vadd.f32 %v8441, %v8633
        %v8635 = vpop.f32.mrf.mxu0
        %v8636 = vadd.f32 %v8443, %v8635
        %v8637 = vpop.f32.mrf.mxu0
        %v8638 = vadd.f32 %v8445, %v8637
        %8639 = vmatprep.mubr.bf16.mxu0 %v6241
        %8640 = vmatmul.mubr.bf16.gmra.mxu0 %v6229
        %v8641 = vpop.f32.mrf.mxu0
        %v8642 = vadd.f32 %v8449, %v8641
        %v8643 = vpop.f32.mrf.mxu0
        %v8644 = vadd.f32 %v8451, %v8643
        %v8645 = vpop.f32.mrf.mxu0
        %v8646 = vadd.f32 %v8453, %v8645
        %v8647 = vpop.f32.mrf.mxu0
        %v8648 = vadd.f32 %v8455, %v8647
        %8649 = vmatprep.mubr.bf16.mxu0 %v6265
        %8650 = vmatmul.mubr.bf16.gmra.mxu0 %v6253
        %v8651 = vpop.f32.mrf.mxu0
        %v8652 = vadd.f32 %v8459, %v8651
        %v8653 = vpop.f32.mrf.mxu0
        %v8654 = vadd.f32 %v8461, %v8653
        %v8655 = vpop.f32.mrf.mxu0
        %v8656 = vadd.f32 %v8463, %v8655
        %v8657 = vpop.f32.mrf.mxu0
        %v8658 = vadd.f32 %v8465, %v8657
        %8659 = vmatprep.mubr.bf16.mxu0 %v6289
        %8660 = vmatmul.mubr.bf16.gmra.mxu0 %v6277
        %v8661 = vpop.f32.mrf.mxu0
        %v8662 = vadd.f32 %v8469, %v8661
        %v8663 = vpop.f32.mrf.mxu0
        %v8664 = vadd.f32 %v8471, %v8663
        %v8665 = vpop.f32.mrf.mxu0
        %v8666 = vadd.f32 %v8473, %v8665
        %v8667 = vpop.f32.mrf.mxu0
        %v8668 = vadd.f32 %v8475, %v8667
        %8669 = vmatprep.mubr.bf16.mxu0 %v6313
        %8670 = vmatmul.mubr.bf16.gmra.mxu0 %v6301
        %v8671 = vpop.f32.mrf.mxu0
        %v8672 = vadd.f32 %v8479, %v8671
        %v8673 = vpop.f32.mrf.mxu0
        %v8674 = vadd.f32 %v8481, %v8673
        %v8675 = vpop.f32.mrf.mxu0
        %v8676 = vadd.f32 %v8483, %v8675
        %v8677 = vpop.f32.mrf.mxu0
        %v8678 = vadd.f32 %v8485, %v8677
        %8679 = vdwg.mxu0
        %8680 = vmatprep.subr.bf16.mxu0 %v8181
        %8681 = vmatpush1.bf16.msra.mxu0 %v8180
        %8682 = vmatprep.subr.bf16.mxu0 %v8179
        %8683 = vmatpush1.bf16.msra.mxu0 %v8178
        %8684 = vmatprep.subr.bf16.mxu0 %v8177
        %8685 = vmatpush1.bf16.msra.mxu0 %v8176
        %8686 = vmatprep.subr.bf16.mxu0 %v8175
        %8687 = vmatpush1.bf16.msra.mxu0 %v8174
        %8688 = vmatprep.subr.bf16.mxu0 %v8173
        %8689 = vmatpush1.bf16.msra.mxu0 %v8172
        %8690 = vmatprep.subr.bf16.mxu0 %v8171
        %8691 = vmatpush1.bf16.msra.mxu0 %v8170
        %8692 = vmatprep.subr.bf16.mxu0 %v8169
        %8693 = vmatpush1.bf16.msra.mxu0 %v8168
        %8694 = vmatprep.subr.bf16.mxu0 %v8167
        %8695 = vmatpush1.bf16.msra.mxu0 %v8166
        %8696 = vmatprep.subr.bf16.mxu0 %v8197
        %8697 = vmatpush2.bf16.msra.mxu0 %v8196
        %8698 = vmatprep.subr.bf16.mxu0 %v8195
        %8699 = vmatpush2.bf16.msra.mxu0 %v8194
        %8700 = vmatprep.subr.bf16.mxu0 %v8193
        %8701 = vmatpush2.bf16.msra.mxu0 %v8192
        %8702 = vmatprep.subr.bf16.mxu0 %v8191
        %8703 = vmatpush2.bf16.msra.mxu0 %v8190
        %8704 = vmatprep.subr.bf16.mxu0 %v8189
        %8705 = vmatpush2.bf16.msra.mxu0 %v8188
        %8706 = vmatprep.subr.bf16.mxu0 %v8187
        %8707 = vmatpush2.bf16.msra.mxu0 %v8186
        %8708 = vmatprep.subr.bf16.mxu0 %v8185
        %8709 = vmatpush2.bf16.msra.mxu0 %v8184
        %8710 = vmatprep.subr.bf16.mxu0 %v8183
        %8711 = vmatpush2.bf16.msra.mxu0 %v8182
        %8712 = vmatprep.mubr.bf16.mxu0 %v6445
        %8713 = vmatmul.mubr.bf16.gmra.mxu0 %v6442
        %v8714 = vpop.f32.mrf.mxu0
        %v8715 = vadd.f32 %v8522, %v8714
        %v8716 = vpop.f32.mrf.mxu0
        %v8717 = vadd.f32 %v8524, %v8716
        %v8718 = vpop.f32.mrf.mxu0
        %v8719 = vadd.f32 %v8526, %v8718
        %v8720 = vpop.f32.mrf.mxu0
        %v8721 = vadd.f32 %v8528, %v8720
        %8722 = vmatprep.mubr.bf16.mxu0 %v6439
        %8723 = vmatmul.mubr.bf16.gmra.mxu0 %v6436
        %v8724 = vpop.f32.mrf.mxu0
        %v8725 = vadd.f32 %v8532, %v8724
        %v8726 = vpop.f32.mrf.mxu0
        %v8727 = vadd.f32 %v8534, %v8726
        %v8728 = vpop.f32.mrf.mxu0
        %v8729 = vadd.f32 %v8536, %v8728
        %v8730 = vpop.f32.mrf.mxu0
        %v8731 = vadd.f32 %v8538, %v8730
        %8732 = vmatprep.mubr.bf16.mxu0 %v6445
        %8733 = vmatmul.mubr.bf16.gmra.mxu0 %v6442
        %v8734 = vpop.f32.mrf.mxu0
        %v8735 = vadd.f32 %v8542, %v8734
        %v8736 = vpop.f32.mrf.mxu0
        %v8737 = vadd.f32 %v8544, %v8736
        %v8738 = vpop.f32.mrf.mxu0
        %v8739 = vadd.f32 %v8546, %v8738
        %v8740 = vpop.f32.mrf.mxu0
        %v8741 = vadd.f32 %v8548, %v8740
        %8742 = vmatprep.mubr.bf16.mxu0 %v6451
        %8743 = vmatmul.mubr.bf16.gmra.mxu0 %v6448
        %v8744 = vpop.f32.mrf.mxu0
        %v8745 = vadd.f32 %v8552, %v8744
        %v8746 = vpop.f32.mrf.mxu0
        %v8747 = vadd.f32 %v8554, %v8746
        %v8748 = vpop.f32.mrf.mxu0
        %v8749 = vadd.f32 %v8556, %v8748
        %v8750 = vpop.f32.mrf.mxu0
        %v8751 = vadd.f32 %v8558, %v8750
        %8752 = vmatprep.mubr.bf16.mxu0 %v6457
        %8753 = vmatmul.mubr.bf16.gmra.mxu0 %v6454
        %v8754 = vpop.f32.mrf.mxu0
        %v8755 = vadd.f32 %v8562, %v8754
        %v8756 = vpop.f32.mrf.mxu0
        %v8757 = vadd.f32 %v8564, %v8756
        %v8758 = vpop.f32.mrf.mxu0
        %v8759 = vadd.f32 %v8566, %v8758
        %v8760 = vpop.f32.mrf.mxu0
        %v8761 = vadd.f32 %v8568, %v8760
        %8762 = vmatprep.mubr.bf16.mxu0 %v6463
        %8763 = vmatmul.mubr.bf16.gmra.mxu0 %v6460
        %v8764 = vpop.f32.mrf.mxu0
        %v8765 = vadd.f32 %v8572, %v8764
        %v8766 = vpop.f32.mrf.mxu0
        %v8767 = vadd.f32 %v8574, %v8766
        %v8768 = vpop.f32.mrf.mxu0
        %v8769 = vadd.f32 %v8576, %v8768
        %v8770 = vpop.f32.mrf.mxu0
        %v8771 = vadd.f32 %v8578, %v8770
        %8772 = vmatprep.mubr.bf16.mxu0 %v6469
        %8773 = vmatmul.mubr.bf16.gmra.mxu0 %v6466
        %v8774 = vpop.f32.mrf.mxu0
        %v8775 = vadd.f32 %v8582, %v8774
        %v8776 = vpop.f32.mrf.mxu0
        %v8777 = vadd.f32 %v8584, %v8776
        %v8778 = vpop.f32.mrf.mxu0
        %v8779 = vadd.f32 %v8586, %v8778
        %v8780 = vpop.f32.mrf.mxu0
        %v8781 = vadd.f32 %v8588, %v8780
        %8782 = vmatprep.mubr.bf16.mxu0 %v6475
        %8783 = vmatmul.mubr.bf16.gmra.mxu0 %v6472
        %v8784 = vpop.f32.mrf.mxu0
        %v8785 = vadd.f32 %v8592, %v8784
        %v8786 = vpop.f32.mrf.mxu0
        %v8787 = vadd.f32 %v8594, %v8786
        %v8788 = vpop.f32.mrf.mxu0
        %v8789 = vadd.f32 %v8596, %v8788
        %v8790 = vpop.f32.mrf.mxu0
        %v8791 = vadd.f32 %v8598, %v8790
        %8792 = vmatprep.mubr.bf16.mxu0 %v6481
        %8793 = vmatmul.mubr.bf16.gmra.mxu0 %v6478
        %v8794 = vpop.f32.mrf.mxu0
        %v8795 = vadd.f32 %v8602, %v8794
        %v8796 = vpop.f32.mrf.mxu0
        %v8797 = vadd.f32 %v8604, %v8796
        %v8798 = vpop.f32.mrf.mxu0
        %v8799 = vadd.f32 %v8606, %v8798
        %v8800 = vpop.f32.mrf.mxu0
        %v8801 = vadd.f32 %v8608, %v8800
        %8802 = vmatprep.mubr.bf16.mxu0 %v6487
        %8803 = vmatmul.mubr.bf16.gmra.mxu0 %v6484
        %v8804 = vpop.f32.mrf.mxu0
        %v8805 = vadd.f32 %v8612, %v8804
        %v8806 = vpop.f32.mrf.mxu0
        %v8807 = vadd.f32 %v8614, %v8806
        %v8808 = vpop.f32.mrf.mxu0
        %v8809 = vadd.f32 %v8616, %v8808
        %v8810 = vpop.f32.mrf.mxu0
        %v8811 = vadd.f32 %v8618, %v8810
        %8812 = vmatprep.mubr.bf16.mxu0 %v6493
        %8813 = vmatmul.mubr.bf16.gmra.mxu0 %v6490
        %v8814 = vpop.f32.mrf.mxu0
        %v8815 = vadd.f32 %v8622, %v8814
        %v8816 = vpop.f32.mrf.mxu0
        %v8817 = vadd.f32 %v8624, %v8816
        %v8818 = vpop.f32.mrf.mxu0
        %v8819 = vadd.f32 %v8626, %v8818
        %v8820 = vpop.f32.mrf.mxu0
        %v8821 = vadd.f32 %v8628, %v8820
        %8822 = vmatprep.mubr.bf16.mxu0 %v6499
        %8823 = vmatmul.mubr.bf16.gmra.mxu0 %v6496
        %v8824 = vpop.f32.mrf.mxu0
        %v8825 = vadd.f32 %v8632, %v8824
        %v8826 = vpop.f32.mrf.mxu0
        %v8827 = vadd.f32 %v8634, %v8826
        %v8828 = vpop.f32.mrf.mxu0
        %v8829 = vadd.f32 %v8636, %v8828
        %v8830 = vpop.f32.mrf.mxu0
        %v8831 = vadd.f32 %v8638, %v8830
        %8832 = vmatprep.mubr.bf16.mxu0 %v6505
        %8833 = vmatmul.mubr.bf16.gmra.mxu0 %v6502
        %v8834 = vpop.f32.mrf.mxu0
        %v8835 = vadd.f32 %v8642, %v8834
        %v8836 = vpop.f32.mrf.mxu0
        %v8837 = vadd.f32 %v8644, %v8836
        %v8838 = vpop.f32.mrf.mxu0
        %v8839 = vadd.f32 %v8646, %v8838
        %v8840 = vpop.f32.mrf.mxu0
        %v8841 = vadd.f32 %v8648, %v8840
        %8842 = vmatprep.mubr.bf16.mxu0 %v6511
        %8843 = vmatmul.mubr.bf16.gmra.mxu0 %v6508
        %v8844 = vpop.f32.mrf.mxu0
        %v8845 = vadd.f32 %v8652, %v8844
        %v8846 = vpop.f32.mrf.mxu0
        %v8847 = vadd.f32 %v8654, %v8846
        %v8848 = vpop.f32.mrf.mxu0
        %v8849 = vadd.f32 %v8656, %v8848
        %v8850 = vpop.f32.mrf.mxu0
        %v8851 = vadd.f32 %v8658, %v8850
        %8852 = vmatprep.mubr.bf16.mxu0 %v6517
        %8853 = vmatmul.mubr.bf16.gmra.mxu0 %v6514
        %v8854 = vpop.f32.mrf.mxu0
        %v8855 = vadd.f32 %v8662, %v8854
        %v8856 = vpop.f32.mrf.mxu0
        %v8857 = vadd.f32 %v8664, %v8856
        %v8858 = vpop.f32.mrf.mxu0
        %v8859 = vadd.f32 %v8666, %v8858
        %v8860 = vpop.f32.mrf.mxu0
        %v8861 = vadd.f32 %v8668, %v8860
        %8862 = vmatprep.mubr.bf16.mxu0 %v6523
        %8863 = vmatmul.mubr.bf16.gmra.mxu0 %v6520
        %v8864 = vpop.f32.mrf.mxu0
        %v8865 = vadd.f32 %v8672, %v8864
        %v8866 = vpop.f32.mrf.mxu0
        %v8867 = vadd.f32 %v8674, %v8866
        %v8868 = vpop.f32.mrf.mxu0
        %v8869 = vadd.f32 %v8676, %v8868
        %v8870 = vpop.f32.mrf.mxu0
        %v8871 = vadd.f32 %v8678, %v8870
        %8872 = vdwg.mxu0
        %s8873 = scalar_lea.vmem [#allocation8], 1536
        %v8874 = vld [vmem:[%s8873] sm:$0xff]
        %v8875 = vld [vmem:[%s8873 + $0x8] sm:$0xff]
        %v8876 = vld [vmem:[%s8873 + $0x10] sm:$0xff]
        %v8877 = vld [vmem:[%s8873 + $0x18] sm:$0xff]
        %v8878 = vld [vmem:[%s8873 + $0x20] sm:$0xff]
        %v8879 = vld [vmem:[%s8873 + $0x28] sm:$0xff]
        %v8880 = vld [vmem:[%s8873 + $0x30] sm:$0xff]
        %v8881 = vld [vmem:[%s8873 + $0x38] sm:$0xff]
        %v8882 = vld [vmem:[%s8873 + $0x40] sm:$0xff]
        %v8883 = vld [vmem:[%s8873 + $0x48] sm:$0xff]
        %v8884 = vld [vmem:[%s8873 + $0x50] sm:$0xff]
        %v8885 = vld [vmem:[%s8873 + $0x58] sm:$0xff]
        %v8886 = vld [vmem:[%s8873 + $0x60] sm:$0xff]
        %v8887 = vld [vmem:[%s8873 + $0x68] sm:$0xff]
        %v8888 = vld [vmem:[%s8873 + $0x70] sm:$0xff]
        %v8889 = vld [vmem:[%s8873 + $0x78] sm:$0xff]
        %v8890 = vld [vmem:[%s8873 + $0x80] sm:$0xff]
        %v8891 = vld [vmem:[%s8873 + $0x88] sm:$0xff]
        %v8892 = vld [vmem:[%s8873 + $0x90] sm:$0xff]
        %v8893 = vld [vmem:[%s8873 + $0x98] sm:$0xff]
        %v8894 = vld [vmem:[%s8873 + $0xa0] sm:$0xff]
        %v8895 = vld [vmem:[%s8873 + $0xa8] sm:$0xff]
        %v8896 = vld [vmem:[%s8873 + $0xb0] sm:$0xff]
        %v8897 = vld [vmem:[%s8873 + $0xb8] sm:$0xff]
        %v8898 = vld [vmem:[%s8873 + $0xc0] sm:$0xff]
        %v8899 = vld [vmem:[%s8873 + $0xc8] sm:$0xff]
        %v8900 = vld [vmem:[%s8873 + $0xd0] sm:$0xff]
        %v8901 = vld [vmem:[%s8873 + $0xd8] sm:$0xff]
        %v8902 = vld [vmem:[%s8873 + $0xe0] sm:$0xff]
        %v8903 = vld [vmem:[%s8873 + $0xe8] sm:$0xff]
        %v8904 = vld [vmem:[%s8873 + $0xf0] sm:$0xff]
        %v8905 = vld [vmem:[%s8873 + $0xf8] sm:$0xff]
        %v8906 = vld [vmem:[%s8873 + $0x100] sm:$0xff]
        %v8907 = vld [vmem:[%s8873 + $0x108] sm:$0xff]
        %v8908 = vld [vmem:[%s8873 + $0x110] sm:$0xff]
        %v8909 = vld [vmem:[%s8873 + $0x118] sm:$0xff]
        %v8910 = vld [vmem:[%s8873 + $0x120] sm:$0xff]
        %v8911 = vld [vmem:[%s8873 + $0x128] sm:$0xff]
        %v8912 = vld [vmem:[%s8873 + $0x130] sm:$0xff]
        %v8913 = vld [vmem:[%s8873 + $0x138] sm:$0xff]
        %v8914 = vld [vmem:[%s8873 + $0x140] sm:$0xff]
        %v8915 = vld [vmem:[%s8873 + $0x148] sm:$0xff]
        %v8916 = vld [vmem:[%s8873 + $0x150] sm:$0xff]
        %v8917 = vld [vmem:[%s8873 + $0x158] sm:$0xff]
        %v8918 = vld [vmem:[%s8873 + $0x160] sm:$0xff]
        %v8919 = vld [vmem:[%s8873 + $0x168] sm:$0xff]
        %v8920 = vld [vmem:[%s8873 + $0x170] sm:$0xff]
        %v8921 = vld [vmem:[%s8873 + $0x178] sm:$0xff]
        %v8922 = vld [vmem:[%s8873 + $0x180] sm:$0xff]
        %v8923 = vld [vmem:[%s8873 + $0x188] sm:$0xff]
        %v8924 = vld [vmem:[%s8873 + $0x190] sm:$0xff]
        %v8925 = vld [vmem:[%s8873 + $0x198] sm:$0xff]
        %v8926 = vld [vmem:[%s8873 + $0x1a0] sm:$0xff]
        %v8927 = vld [vmem:[%s8873 + $0x1a8] sm:$0xff]
        %v8928 = vld [vmem:[%s8873 + $0x1b0] sm:$0xff]
        %v8929 = vld [vmem:[%s8873 + $0x1b8] sm:$0xff]
        %v8930 = vld [vmem:[%s8873 + $0x1c0] sm:$0xff]
        %v8931 = vld [vmem:[%s8873 + $0x1c8] sm:$0xff]
        %v8932 = vld [vmem:[%s8873 + $0x1d0] sm:$0xff]
        %v8933 = vld [vmem:[%s8873 + $0x1d8] sm:$0xff]
        %v8934 = vld [vmem:[%s8873 + $0x1e0] sm:$0xff]
        %v8935 = vld [vmem:[%s8873 + $0x1e8] sm:$0xff]
        %v8936 = vld [vmem:[%s8873 + $0x1f0] sm:$0xff]
        %v8937 = vld [vmem:[%s8873 + $0x1f8] sm:$0xff]
        %v8938 = vld [vmem:[%s8873 + $0x200] sm:$0xff]
        %v8939 = vld [vmem:[%s8873 + $0x208] sm:$0xff]
        %v8940 = vld [vmem:[%s8873 + $0x210] sm:$0xff]
        %v8941 = vld [vmem:[%s8873 + $0x218] sm:$0xff]
        %v8942 = vld [vmem:[%s8873 + $0x220] sm:$0xff]
        %v8943 = vld [vmem:[%s8873 + $0x228] sm:$0xff]
        %v8944 = vld [vmem:[%s8873 + $0x230] sm:$0xff]
        %v8945 = vld [vmem:[%s8873 + $0x238] sm:$0xff]
        %v8946 = vld [vmem:[%s8873 + $0x240] sm:$0xff]
        %v8947 = vld [vmem:[%s8873 + $0x248] sm:$0xff]
        %v8948 = vld [vmem:[%s8873 + $0x250] sm:$0xff]
        %v8949 = vld [vmem:[%s8873 + $0x258] sm:$0xff]
        %v8950 = vld [vmem:[%s8873 + $0x260] sm:$0xff]
        %v8951 = vld [vmem:[%s8873 + $0x268] sm:$0xff]
        %v8952 = vld [vmem:[%s8873 + $0x270] sm:$0xff]
        %v8953 = vld [vmem:[%s8873 + $0x278] sm:$0xff]
        %v8954 = vld [vmem:[%s8873 + $0x280] sm:$0xff]
        %v8955 = vld [vmem:[%s8873 + $0x288] sm:$0xff]
        %v8956 = vld [vmem:[%s8873 + $0x290] sm:$0xff]
        %v8957 = vld [vmem:[%s8873 + $0x298] sm:$0xff]
        %v8958 = vld [vmem:[%s8873 + $0x2a0] sm:$0xff]
        %v8959 = vld [vmem:[%s8873 + $0x2a8] sm:$0xff]
        %v8960 = vld [vmem:[%s8873 + $0x2b0] sm:$0xff]
        %v8961 = vld [vmem:[%s8873 + $0x2b8] sm:$0xff]
        %v8962 = vld [vmem:[%s8873 + $0x2c0] sm:$0xff]
        %v8963 = vld [vmem:[%s8873 + $0x2c8] sm:$0xff]
        %v8964 = vld [vmem:[%s8873 + $0x2d0] sm:$0xff]
        %v8965 = vld [vmem:[%s8873 + $0x2d8] sm:$0xff]
        %v8966 = vld [vmem:[%s8873 + $0x2e0] sm:$0xff]
        %v8967 = vld [vmem:[%s8873 + $0x2e8] sm:$0xff]
        %v8968 = vld [vmem:[%s8873 + $0x2f0] sm:$0xff]
        %v8969 = vld [vmem:[%s8873 + $0x2f8] sm:$0xff]
        %v9066 = vunpack.c.l.b16 %v8874
        %v9067 = vunpack.c.h.b16 %v8874
        %v9068 = vunpack.c.l.b16 %v8875
        %v9069 = vunpack.c.h.b16 %v8875
        %v9070 = vunpack.c.l.b16 %v8876
        %v9071 = vunpack.c.h.b16 %v8876
        %v9072 = vunpack.c.l.b16 %v8877
        %v9073 = vunpack.c.h.b16 %v8877
        %v9074 = vunpack.c.l.b16 %v8878
        %v9075 = vunpack.c.h.b16 %v8878
        %v9076 = vunpack.c.l.b16 %v8879
        %v9077 = vunpack.c.h.b16 %v8879
        %v9078 = vunpack.c.l.b16 %v8880
        %v9079 = vunpack.c.h.b16 %v8880
        %v9080 = vunpack.c.l.b16 %v8881
        %v9081 = vunpack.c.h.b16 %v8881
        %v9082 = vunpack.c.l.b16 %v8882
        %v9083 = vunpack.c.h.b16 %v8882
        %v9084 = vunpack.c.l.b16 %v8883
        %v9085 = vunpack.c.h.b16 %v8883
        %v9086 = vunpack.c.l.b16 %v8884
        %v9087 = vunpack.c.h.b16 %v8884
        %v9088 = vunpack.c.l.b16 %v8885
        %v9089 = vunpack.c.h.b16 %v8885
        %v9090 = vunpack.c.l.b16 %v8886
        %v9091 = vunpack.c.h.b16 %v8886
        %v9092 = vunpack.c.l.b16 %v8887
        %v9093 = vunpack.c.h.b16 %v8887
        %v9094 = vunpack.c.l.b16 %v8888
        %v9095 = vunpack.c.h.b16 %v8888
        %v9096 = vunpack.c.l.b16 %v8889
        %v9097 = vunpack.c.h.b16 %v8889
        %v9098 = vunpack.c.l.b16 %v8890
        %v9099 = vunpack.c.h.b16 %v8890
        %v9100 = vunpack.c.l.b16 %v8891
        %v9101 = vunpack.c.h.b16 %v8891
        %v9102 = vunpack.c.l.b16 %v8892
        %v9103 = vunpack.c.h.b16 %v8892
        %v9104 = vunpack.c.l.b16 %v8893
        %v9105 = vunpack.c.h.b16 %v8893
        %v9106 = vunpack.c.l.b16 %v8894
        %v9107 = vunpack.c.h.b16 %v8894
        %v9108 = vunpack.c.l.b16 %v8895
        %v9109 = vunpack.c.h.b16 %v8895
        %v9110 = vunpack.c.l.b16 %v8896
        %v9111 = vunpack.c.h.b16 %v8896
        %v9112 = vunpack.c.l.b16 %v8897
        %v9113 = vunpack.c.h.b16 %v8897
        %v9114 = vunpack.c.l.b16 %v8898
        %v9115 = vunpack.c.h.b16 %v8898
        %v9116 = vunpack.c.l.b16 %v8899
        %v9117 = vunpack.c.h.b16 %v8899
        %v9118 = vunpack.c.l.b16 %v8900
        %v9119 = vunpack.c.h.b16 %v8900
        %v9120 = vunpack.c.l.b16 %v8901
        %v9121 = vunpack.c.h.b16 %v8901
        %v9122 = vunpack.c.l.b16 %v8902
        %v9123 = vunpack.c.h.b16 %v8902
        %v9124 = vunpack.c.l.b16 %v8903
        %v9125 = vunpack.c.h.b16 %v8903
        %v9126 = vunpack.c.l.b16 %v8904
        %v9127 = vunpack.c.h.b16 %v8904
        %v9128 = vunpack.c.l.b16 %v8905
        %v9129 = vunpack.c.h.b16 %v8905
        %v9130 = vunpack.c.l.b16 %v8906
        %v9131 = vunpack.c.h.b16 %v8906
        %v9132 = vunpack.c.l.b16 %v8907
        %v9133 = vunpack.c.h.b16 %v8907
        %v9134 = vunpack.c.l.b16 %v8908
        %v9135 = vunpack.c.h.b16 %v8908
        %v9136 = vunpack.c.l.b16 %v8909
        %v9137 = vunpack.c.h.b16 %v8909
        %v9138 = vunpack.c.l.b16 %v8910
        %v9139 = vunpack.c.h.b16 %v8910
        %v9140 = vunpack.c.l.b16 %v8911
        %v9141 = vunpack.c.h.b16 %v8911
        %v9142 = vunpack.c.l.b16 %v8912
        %v9143 = vunpack.c.h.b16 %v8912
        %v9144 = vunpack.c.l.b16 %v8913
        %v9145 = vunpack.c.h.b16 %v8913
        %v9146 = vunpack.c.l.b16 %v8914
        %v9147 = vunpack.c.h.b16 %v8914
        %v9148 = vunpack.c.l.b16 %v8915
        %v9149 = vunpack.c.h.b16 %v8915
        %v9150 = vunpack.c.l.b16 %v8916
        %v9151 = vunpack.c.h.b16 %v8916
        %v9152 = vunpack.c.l.b16 %v8917
        %v9153 = vunpack.c.h.b16 %v8917
        %v9154 = vunpack.c.l.b16 %v8918
        %v9155 = vunpack.c.h.b16 %v8918
        %v9156 = vunpack.c.l.b16 %v8919
        %v9157 = vunpack.c.h.b16 %v8919
        %v9158 = vunpack.c.l.b16 %v8920
        %v9159 = vunpack.c.h.b16 %v8920
        %v9160 = vunpack.c.l.b16 %v8921
        %v9161 = vunpack.c.h.b16 %v8921
        %v9162 = vunpack.c.l.b16 %v8922
        %v9163 = vunpack.c.h.b16 %v8922
        %v9164 = vunpack.c.l.b16 %v8923
        %v9165 = vunpack.c.h.b16 %v8923
        %v9166 = vunpack.c.l.b16 %v8924
        %v9167 = vunpack.c.h.b16 %v8924
        %v9168 = vunpack.c.l.b16 %v8925
        %v9169 = vunpack.c.h.b16 %v8925
        %v9170 = vunpack.c.l.b16 %v8926
        %v9171 = vunpack.c.h.b16 %v8926
        %v9172 = vunpack.c.l.b16 %v8927
        %v9173 = vunpack.c.h.b16 %v8927
        %v9174 = vunpack.c.l.b16 %v8928
        %v9175 = vunpack.c.h.b16 %v8928
        %v9176 = vunpack.c.l.b16 %v8929
        %v9177 = vunpack.c.h.b16 %v8929
        %v9178 = vunpack.c.l.b16 %v8930
        %v9179 = vunpack.c.h.b16 %v8930
        %v9180 = vunpack.c.l.b16 %v8931
        %v9181 = vunpack.c.h.b16 %v8931
        %v9182 = vunpack.c.l.b16 %v8932
        %v9183 = vunpack.c.h.b16 %v8932
        %v9184 = vunpack.c.l.b16 %v8933
        %v9185 = vunpack.c.h.b16 %v8933
        %v9186 = vunpack.c.l.b16 %v8934
        %v9187 = vunpack.c.h.b16 %v8934
        %v9188 = vunpack.c.l.b16 %v8935
        %v9189 = vunpack.c.h.b16 %v8935
        %v9190 = vunpack.c.l.b16 %v8936
        %v9191 = vunpack.c.h.b16 %v8936
        %v9192 = vunpack.c.l.b16 %v8937
        %v9193 = vunpack.c.h.b16 %v8937
        %v9194 = vunpack.c.l.b16 %v8938
        %v9195 = vunpack.c.h.b16 %v8938
        %v9196 = vunpack.c.l.b16 %v8939
        %v9197 = vunpack.c.h.b16 %v8939
        %v9198 = vunpack.c.l.b16 %v8940
        %v9199 = vunpack.c.h.b16 %v8940
        %v9200 = vunpack.c.l.b16 %v8941
        %v9201 = vunpack.c.h.b16 %v8941
        %v9202 = vunpack.c.l.b16 %v8942
        %v9203 = vunpack.c.h.b16 %v8942
        %v9204 = vunpack.c.l.b16 %v8943
        %v9205 = vunpack.c.h.b16 %v8943
        %v9206 = vunpack.c.l.b16 %v8944
        %v9207 = vunpack.c.h.b16 %v8944
        %v9208 = vunpack.c.l.b16 %v8945
        %v9209 = vunpack.c.h.b16 %v8945
        %v9210 = vunpack.c.l.b16 %v8946
        %v9211 = vunpack.c.h.b16 %v8946
        %v9212 = vunpack.c.l.b16 %v8947
        %v9213 = vunpack.c.h.b16 %v8947
        %v9214 = vunpack.c.l.b16 %v8948
        %v9215 = vunpack.c.h.b16 %v8948
        %v9216 = vunpack.c.l.b16 %v8949
        %v9217 = vunpack.c.h.b16 %v8949
        %v9218 = vunpack.c.l.b16 %v8950
        %v9219 = vunpack.c.h.b16 %v8950
        %v9220 = vunpack.c.l.b16 %v8951
        %v9221 = vunpack.c.h.b16 %v8951
        %v9222 = vunpack.c.l.b16 %v8952
        %v9223 = vunpack.c.h.b16 %v8952
        %v9224 = vunpack.c.l.b16 %v8953
        %v9225 = vunpack.c.h.b16 %v8953
        %v9226 = vunpack.c.l.b16 %v8954
        %v9227 = vunpack.c.h.b16 %v8954
        %v9228 = vunpack.c.l.b16 %v8955
        %v9229 = vunpack.c.h.b16 %v8955
        %v9230 = vunpack.c.l.b16 %v8956
        %v9231 = vunpack.c.h.b16 %v8956
        %v9232 = vunpack.c.l.b16 %v8957
        %v9233 = vunpack.c.h.b16 %v8957
        %v9234 = vunpack.c.l.b16 %v8958
        %v9235 = vunpack.c.h.b16 %v8958
        %v9236 = vunpack.c.l.b16 %v8959
        %v9237 = vunpack.c.h.b16 %v8959
        %v9238 = vunpack.c.l.b16 %v8960
        %v9239 = vunpack.c.h.b16 %v8960
        %v9240 = vunpack.c.l.b16 %v8961
        %v9241 = vunpack.c.h.b16 %v8961
        %v9242 = vunpack.c.l.b16 %v8962
        %v9243 = vunpack.c.h.b16 %v8962
        %v9244 = vunpack.c.l.b16 %v8963
        %v9245 = vunpack.c.h.b16 %v8963
        %v9246 = vunpack.c.l.b16 %v8964
        %v9247 = vunpack.c.h.b16 %v8964
        %v9248 = vunpack.c.l.b16 %v8965
        %v9249 = vunpack.c.h.b16 %v8965
        %v9250 = vunpack.c.l.b16 %v8966
        %v9251 = vunpack.c.h.b16 %v8966
        %v9252 = vunpack.c.l.b16 %v8967
        %v9253 = vunpack.c.h.b16 %v8967
        %v9254 = vunpack.c.l.b16 %v8968
        %v9255 = vunpack.c.h.b16 %v8968
        %v9256 = vunpack.c.l.b16 %v8969
        %v9257 = vunpack.c.h.b16 %v8969
        %v9258 = vpack.c.b16 %v9068, %v9066
        %v9259 = vpack.c.b16 %v9069, %v9067
        %v9260 = vpack.c.b16 %v9072, %v9070
        %v9261 = vpack.c.b16 %v9073, %v9071
        %v9262 = vpack.c.b16 %v9076, %v9074
        %v9263 = vpack.c.b16 %v9077, %v9075
        %v9264 = vpack.c.b16 %v9080, %v9078
        %v9265 = vpack.c.b16 %v9081, %v9079
        %v9266 = vpack.c.b16 %v9084, %v9082
        %v9267 = vpack.c.b16 %v9085, %v9083
        %v9268 = vpack.c.b16 %v9088, %v9086
        %v9269 = vpack.c.b16 %v9089, %v9087
        %v9270 = vpack.c.b16 %v9092, %v9090
        %v9271 = vpack.c.b16 %v9093, %v9091
        %v9272 = vpack.c.b16 %v9096, %v9094
        %v9273 = vpack.c.b16 %v9097, %v9095
        %v9274 = vpack.c.b16 %v9100, %v9098
        %v9275 = vpack.c.b16 %v9101, %v9099
        %v9276 = vpack.c.b16 %v9104, %v9102
        %v9277 = vpack.c.b16 %v9105, %v9103
        %v9278 = vpack.c.b16 %v9108, %v9106
        %v9279 = vpack.c.b16 %v9109, %v9107
        %v9280 = vpack.c.b16 %v9112, %v9110
        %v9281 = vpack.c.b16 %v9113, %v9111
        %v9282 = vpack.c.b16 %v9116, %v9114
        %v9283 = vpack.c.b16 %v9117, %v9115
        %v9284 = vpack.c.b16 %v9120, %v9118
        %v9285 = vpack.c.b16 %v9121, %v9119
        %v9286 = vpack.c.b16 %v9124, %v9122
        %v9287 = vpack.c.b16 %v9125, %v9123
        %v9288 = vpack.c.b16 %v9128, %v9126
        %v9289 = vpack.c.b16 %v9129, %v9127
        %v9290 = vpack.c.b16 %v9132, %v9130
        %v9291 = vpack.c.b16 %v9133, %v9131
        %v9292 = vpack.c.b16 %v9136, %v9134
        %v9293 = vpack.c.b16 %v9137, %v9135
        %v9294 = vpack.c.b16 %v9140, %v9138
        %v9295 = vpack.c.b16 %v9141, %v9139
        %v9296 = vpack.c.b16 %v9144, %v9142
        %v9297 = vpack.c.b16 %v9145, %v9143
        %v9298 = vpack.c.b16 %v9148, %v9146
        %v9299 = vpack.c.b16 %v9149, %v9147
        %v9300 = vpack.c.b16 %v9152, %v9150
        %v9301 = vpack.c.b16 %v9153, %v9151
        %v9302 = vpack.c.b16 %v9156, %v9154
        %v9303 = vpack.c.b16 %v9157, %v9155
        %v9304 = vpack.c.b16 %v9160, %v9158
        %v9305 = vpack.c.b16 %v9161, %v9159
        %v9306 = vpack.c.b16 %v9164, %v9162
        %v9307 = vpack.c.b16 %v9165, %v9163
        %v9308 = vpack.c.b16 %v9168, %v9166
        %v9309 = vpack.c.b16 %v9169, %v9167
        %v9310 = vpack.c.b16 %v9172, %v9170
        %v9311 = vpack.c.b16 %v9173, %v9171
        %v9312 = vpack.c.b16 %v9176, %v9174
        %v9313 = vpack.c.b16 %v9177, %v9175
        %v9314 = vpack.c.b16 %v9180, %v9178
        %v9315 = vpack.c.b16 %v9181, %v9179
        %v9316 = vpack.c.b16 %v9184, %v9182
        %v9317 = vpack.c.b16 %v9185, %v9183
        %v9318 = vpack.c.b16 %v9188, %v9186
        %v9319 = vpack.c.b16 %v9189, %v9187
        %v9320 = vpack.c.b16 %v9192, %v9190
        %v9321 = vpack.c.b16 %v9193, %v9191
        %v9322 = vpack.c.b16 %v9196, %v9194
        %v9323 = vpack.c.b16 %v9197, %v9195
        %v9324 = vpack.c.b16 %v9200, %v9198
        %v9325 = vpack.c.b16 %v9201, %v9199
        %v9326 = vpack.c.b16 %v9204, %v9202
        %v9327 = vpack.c.b16 %v9205, %v9203
        %v9328 = vpack.c.b16 %v9208, %v9206
        %v9329 = vpack.c.b16 %v9209, %v9207
        %v9330 = vpack.c.b16 %v9212, %v9210
        %v9331 = vpack.c.b16 %v9213, %v9211
        %v9332 = vpack.c.b16 %v9216, %v9214
        %v9333 = vpack.c.b16 %v9217, %v9215
        %v9334 = vpack.c.b16 %v9220, %v9218
        %v9335 = vpack.c.b16 %v9221, %v9219
        %v9336 = vpack.c.b16 %v9224, %v9222
        %v9337 = vpack.c.b16 %v9225, %v9223
        %v9338 = vpack.c.b16 %v9228, %v9226
        %v9339 = vpack.c.b16 %v9229, %v9227
        %v9340 = vpack.c.b16 %v9232, %v9230
        %v9341 = vpack.c.b16 %v9233, %v9231
        %v9342 = vpack.c.b16 %v9236, %v9234
        %v9343 = vpack.c.b16 %v9237, %v9235
        %v9344 = vpack.c.b16 %v9240, %v9238
        %v9345 = vpack.c.b16 %v9241, %v9239
        %v9346 = vpack.c.b16 %v9244, %v9242
        %v9347 = vpack.c.b16 %v9245, %v9243
        %v9348 = vpack.c.b16 %v9248, %v9246
        %v9349 = vpack.c.b16 %v9249, %v9247
        %v9350 = vpack.c.b16 %v9252, %v9250
        %v9351 = vpack.c.b16 %v9253, %v9251
        %v9352 = vpack.c.b16 %v9256, %v9254
        %v9353 = vpack.c.b16 %v9257, %v9255
        %9450 = vmatprep.subr.bf16.mxu0 %v9273
        %9451 = vmatpush1.bf16.msra.mxu0 %v9272
        %9452 = vmatprep.subr.bf16.mxu0 %v9271
        %9453 = vmatpush1.bf16.msra.mxu0 %v9270
        %9454 = vmatprep.subr.bf16.mxu0 %v9269
        %9455 = vmatpush1.bf16.msra.mxu0 %v9268
        %9456 = vmatprep.subr.bf16.mxu0 %v9267
        %9457 = vmatpush1.bf16.msra.mxu0 %v9266
        %9458 = vmatprep.subr.bf16.mxu0 %v9265
        %9459 = vmatpush1.bf16.msra.mxu0 %v9264
        %9460 = vmatprep.subr.bf16.mxu0 %v9263
        %9461 = vmatpush1.bf16.msra.mxu0 %v9262
        %9462 = vmatprep.subr.bf16.mxu0 %v9261
        %9463 = vmatpush1.bf16.msra.mxu0 %v9260
        %9464 = vmatprep.subr.bf16.mxu0 %v9259
        %9465 = vmatpush1.bf16.msra.mxu0 %v9258
        %9466 = vmatprep.subr.bf16.mxu0 %v9289
        %9467 = vmatpush2.bf16.msra.mxu0 %v9288
        %9468 = vmatprep.subr.bf16.mxu0 %v9287
        %9469 = vmatpush2.bf16.msra.mxu0 %v9286
        %9470 = vmatprep.subr.bf16.mxu0 %v9285
        %9471 = vmatpush2.bf16.msra.mxu0 %v9284
        %9472 = vmatprep.subr.bf16.mxu0 %v9283
        %9473 = vmatpush2.bf16.msra.mxu0 %v9282
        %9474 = vmatprep.subr.bf16.mxu0 %v9281
        %9475 = vmatpush2.bf16.msra.mxu0 %v9280
        %9476 = vmatprep.subr.bf16.mxu0 %v9279
        %9477 = vmatpush2.bf16.msra.mxu0 %v9278
        %9478 = vmatprep.subr.bf16.mxu0 %v9277
        %9479 = vmatpush2.bf16.msra.mxu0 %v9276
        %9480 = vmatprep.subr.bf16.mxu0 %v9275
        %9481 = vmatpush2.bf16.msra.mxu0 %v9274
        %9482 = vmatprep.mubr.bf16.mxu0 %v5893
        %9483 = vmatmul.mubr.bf16.gmra.mxu0 %v5892
        %v9484 = vpop.f32.mrf.mxu0
        %v9485 = vadd.f32 0.0, %v9484
        %v9486 = vpop.f32.mrf.mxu0
        %v9487 = vadd.f32 0.0, %v9486
        %v9488 = vpop.f32.mrf.mxu0
        %v9489 = vadd.f32 0.0, %v9488
        %v9490 = vpop.f32.mrf.mxu0
        %v9491 = vadd.f32 0.0, %v9490
        %9492 = vmatprep.mubr.bf16.mxu0 %v5895
        %9493 = vmatmul.mubr.bf16.gmra.mxu0 %v5894
        %v9494 = vpop.f32.mrf.mxu0
        %v9495 = vadd.f32 0.0, %v9494
        %v9496 = vpop.f32.mrf.mxu0
        %v9497 = vadd.f32 0.0, %v9496
        %v9498 = vpop.f32.mrf.mxu0
        %v9499 = vadd.f32 0.0, %v9498
        %v9500 = vpop.f32.mrf.mxu0
        %v9501 = vadd.f32 0.0, %v9500
        %9502 = vmatprep.mubr.bf16.mxu0 %v5897
        %9503 = vmatmul.mubr.bf16.gmra.mxu0 %v5896
        %v9504 = vpop.f32.mrf.mxu0
        %v9505 = vadd.f32 0.0, %v9504
        %v9506 = vpop.f32.mrf.mxu0
        %v9507 = vadd.f32 0.0, %v9506
        %v9508 = vpop.f32.mrf.mxu0
        %v9509 = vadd.f32 0.0, %v9508
        %v9510 = vpop.f32.mrf.mxu0
        %v9511 = vadd.f32 0.0, %v9510
        %9512 = vmatprep.mubr.bf16.mxu0 %v5899
        %9513 = vmatmul.mubr.bf16.gmra.mxu0 %v5898
        %v9514 = vpop.f32.mrf.mxu0
        %v9515 = vadd.f32 0.0, %v9514
        %v9516 = vpop.f32.mrf.mxu0
        %v9517 = vadd.f32 0.0, %v9516
        %v9518 = vpop.f32.mrf.mxu0
        %v9519 = vadd.f32 0.0, %v9518
        %v9520 = vpop.f32.mrf.mxu0
        %v9521 = vadd.f32 0.0, %v9520
        %9522 = vmatprep.mubr.bf16.mxu0 %v5901
        %9523 = vmatmul.mubr.bf16.gmra.mxu0 %v5900
        %v9524 = vpop.f32.mrf.mxu0
        %v9525 = vadd.f32 0.0, %v9524
        %v9526 = vpop.f32.mrf.mxu0
        %v9527 = vadd.f32 0.0, %v9526
        %v9528 = vpop.f32.mrf.mxu0
        %v9529 = vadd.f32 0.0, %v9528
        %v9530 = vpop.f32.mrf.mxu0
        %v9531 = vadd.f32 0.0, %v9530
        %9532 = vmatprep.mubr.bf16.mxu0 %v5903
        %9533 = vmatmul.mubr.bf16.gmra.mxu0 %v5902
        %v9534 = vpop.f32.mrf.mxu0
        %v9535 = vadd.f32 0.0, %v9534
        %v9536 = vpop.f32.mrf.mxu0
        %v9537 = vadd.f32 0.0, %v9536
        %v9538 = vpop.f32.mrf.mxu0
        %v9539 = vadd.f32 0.0, %v9538
        %v9540 = vpop.f32.mrf.mxu0
        %v9541 = vadd.f32 0.0, %v9540
        %9542 = vmatprep.mubr.bf16.mxu0 %v5905
        %9543 = vmatmul.mubr.bf16.gmra.mxu0 %v5904
        %v9544 = vpop.f32.mrf.mxu0
        %v9545 = vadd.f32 0.0, %v9544
        %v9546 = vpop.f32.mrf.mxu0
        %v9547 = vadd.f32 0.0, %v9546
        %v9548 = vpop.f32.mrf.mxu0
        %v9549 = vadd.f32 0.0, %v9548
        %v9550 = vpop.f32.mrf.mxu0
        %v9551 = vadd.f32 0.0, %v9550
        %9552 = vmatprep.mubr.bf16.mxu0 %v5907
        %9553 = vmatmul.mubr.bf16.gmra.mxu0 %v5906
        %v9554 = vpop.f32.mrf.mxu0
        %v9555 = vadd.f32 0.0, %v9554
        %v9556 = vpop.f32.mrf.mxu0
        %v9557 = vadd.f32 0.0, %v9556
        %v9558 = vpop.f32.mrf.mxu0
        %v9559 = vadd.f32 0.0, %v9558
        %v9560 = vpop.f32.mrf.mxu0
        %v9561 = vadd.f32 0.0, %v9560
        %9562 = vmatprep.mubr.bf16.mxu0 %v5909
        %9563 = vmatmul.mubr.bf16.gmra.mxu0 %v5908
        %v9564 = vpop.f32.mrf.mxu0
        %v9565 = vadd.f32 0.0, %v9564
        %v9566 = vpop.f32.mrf.mxu0
        %v9567 = vadd.f32 0.0, %v9566
        %v9568 = vpop.f32.mrf.mxu0
        %v9569 = vadd.f32 0.0, %v9568
        %v9570 = vpop.f32.mrf.mxu0
        %v9571 = vadd.f32 0.0, %v9570
        %9572 = vmatprep.mubr.bf16.mxu0 %v5911
        %9573 = vmatmul.mubr.bf16.gmra.mxu0 %v5910
        %v9574 = vpop.f32.mrf.mxu0
        %v9575 = vadd.f32 0.0, %v9574
        %v9576 = vpop.f32.mrf.mxu0
        %v9577 = vadd.f32 0.0, %v9576
        %v9578 = vpop.f32.mrf.mxu0
        %v9579 = vadd.f32 0.0, %v9578
        %v9580 = vpop.f32.mrf.mxu0
        %v9581 = vadd.f32 0.0, %v9580
        %9582 = vmatprep.mubr.bf16.mxu0 %v5913
        %9583 = vmatmul.mubr.bf16.gmra.mxu0 %v5912
        %v9584 = vpop.f32.mrf.mxu0
        %v9585 = vadd.f32 0.0, %v9584
        %v9586 = vpop.f32.mrf.mxu0
        %v9587 = vadd.f32 0.0, %v9586
        %v9588 = vpop.f32.mrf.mxu0
        %v9589 = vadd.f32 0.0, %v9588
        %v9590 = vpop.f32.mrf.mxu0
        %v9591 = vadd.f32 0.0, %v9590
        %9592 = vmatprep.mubr.bf16.mxu0 %v5915
        %9593 = vmatmul.mubr.bf16.gmra.mxu0 %v5914
        %v9594 = vpop.f32.mrf.mxu0
        %v9595 = vadd.f32 0.0, %v9594
        %v9596 = vpop.f32.mrf.mxu0
        %v9597 = vadd.f32 0.0, %v9596
        %v9598 = vpop.f32.mrf.mxu0
        %v9599 = vadd.f32 0.0, %v9598
        %v9600 = vpop.f32.mrf.mxu0
        %v9601 = vadd.f32 0.0, %v9600
        %9602 = vmatprep.mubr.bf16.mxu0 %v5917
        %9603 = vmatmul.mubr.bf16.gmra.mxu0 %v5916
        %v9604 = vpop.f32.mrf.mxu0
        %v9605 = vadd.f32 0.0, %v9604
        %v9606 = vpop.f32.mrf.mxu0
        %v9607 = vadd.f32 0.0, %v9606
        %v9608 = vpop.f32.mrf.mxu0
        %v9609 = vadd.f32 0.0, %v9608
        %v9610 = vpop.f32.mrf.mxu0
        %v9611 = vadd.f32 0.0, %v9610
        %9612 = vmatprep.mubr.bf16.mxu0 %v5919
        %9613 = vmatmul.mubr.bf16.gmra.mxu0 %v5918
        %v9614 = vpop.f32.mrf.mxu0
        %v9615 = vadd.f32 0.0, %v9614
        %v9616 = vpop.f32.mrf.mxu0
        %v9617 = vadd.f32 0.0, %v9616
        %v9618 = vpop.f32.mrf.mxu0
        %v9619 = vadd.f32 0.0, %v9618
        %v9620 = vpop.f32.mrf.mxu0
        %v9621 = vadd.f32 0.0, %v9620
        %9622 = vmatprep.mubr.bf16.mxu0 %v5921
        %9623 = vmatmul.mubr.bf16.gmra.mxu0 %v5920
        %v9624 = vpop.f32.mrf.mxu0
        %v9625 = vadd.f32 0.0, %v9624
        %v9626 = vpop.f32.mrf.mxu0
        %v9627 = vadd.f32 0.0, %v9626
        %v9628 = vpop.f32.mrf.mxu0
        %v9629 = vadd.f32 0.0, %v9628
        %v9630 = vpop.f32.mrf.mxu0
        %v9631 = vadd.f32 0.0, %v9630
        %9632 = vmatprep.mubr.bf16.mxu0 %v5919
        %9633 = vmatmul.mubr.bf16.gmra.mxu0 %v5918
        %v9634 = vpop.f32.mrf.mxu0
        %v9635 = vadd.f32 0.0, %v9634
        %v9636 = vpop.f32.mrf.mxu0
        %v9637 = vadd.f32 0.0, %v9636
        %v9638 = vpop.f32.mrf.mxu0
        %v9639 = vadd.f32 0.0, %v9638
        %v9640 = vpop.f32.mrf.mxu0
        %v9641 = vadd.f32 0.0, %v9640
        %9642 = vdwg.mxu0
        %9643 = vmatprep.subr.bf16.mxu0 %v9305
        %9644 = vmatpush1.bf16.msra.mxu0 %v9304
        %9645 = vmatprep.subr.bf16.mxu0 %v9303
        %9646 = vmatpush1.bf16.msra.mxu0 %v9302
        %9647 = vmatprep.subr.bf16.mxu0 %v9301
        %9648 = vmatpush1.bf16.msra.mxu0 %v9300
        %9649 = vmatprep.subr.bf16.mxu0 %v9299
        %9650 = vmatpush1.bf16.msra.mxu0 %v9298
        %9651 = vmatprep.subr.bf16.mxu0 %v9297
        %9652 = vmatpush1.bf16.msra.mxu0 %v9296
        %9653 = vmatprep.subr.bf16.mxu0 %v9295
        %9654 = vmatpush1.bf16.msra.mxu0 %v9294
        %9655 = vmatprep.subr.bf16.mxu0 %v9293
        %9656 = vmatpush1.bf16.msra.mxu0 %v9292
        %9657 = vmatprep.subr.bf16.mxu0 %v9291
        %9658 = vmatpush1.bf16.msra.mxu0 %v9290
        %9659 = vmatprep.subr.bf16.mxu0 %v9321
        %9660 = vmatpush2.bf16.msra.mxu0 %v9320
        %9661 = vmatprep.subr.bf16.mxu0 %v9319
        %9662 = vmatpush2.bf16.msra.mxu0 %v9318
        %9663 = vmatprep.subr.bf16.mxu0 %v9317
        %9664 = vmatpush2.bf16.msra.mxu0 %v9316
        %9665 = vmatprep.subr.bf16.mxu0 %v9315
        %9666 = vmatpush2.bf16.msra.mxu0 %v9314
        %9667 = vmatprep.subr.bf16.mxu0 %v9313
        %9668 = vmatpush2.bf16.msra.mxu0 %v9312
        %9669 = vmatprep.subr.bf16.mxu0 %v9311
        %9670 = vmatpush2.bf16.msra.mxu0 %v9310
        %9671 = vmatprep.subr.bf16.mxu0 %v9309
        %9672 = vmatpush2.bf16.msra.mxu0 %v9308
        %9673 = vmatprep.subr.bf16.mxu0 %v9307
        %9674 = vmatpush2.bf16.msra.mxu0 %v9306
        %9675 = vmatprep.mubr.bf16.mxu0 %v6001
        %9676 = vmatmul.mubr.bf16.gmra.mxu0 %v5989
        %v9677 = vpop.f32.mrf.mxu0
        %v9678 = vadd.f32 %v9485, %v9677
        %v9679 = vpop.f32.mrf.mxu0
        %v9680 = vadd.f32 %v9487, %v9679
        %v9681 = vpop.f32.mrf.mxu0
        %v9682 = vadd.f32 %v9489, %v9681
        %v9683 = vpop.f32.mrf.mxu0
        %v9684 = vadd.f32 %v9491, %v9683
        %9685 = vmatprep.mubr.bf16.mxu0 %v6025
        %9686 = vmatmul.mubr.bf16.gmra.mxu0 %v6013
        %v9687 = vpop.f32.mrf.mxu0
        %v9688 = vadd.f32 %v9495, %v9687
        %v9689 = vpop.f32.mrf.mxu0
        %v9690 = vadd.f32 %v9497, %v9689
        %v9691 = vpop.f32.mrf.mxu0
        %v9692 = vadd.f32 %v9499, %v9691
        %v9693 = vpop.f32.mrf.mxu0
        %v9694 = vadd.f32 %v9501, %v9693
        %9695 = vmatprep.mubr.bf16.mxu0 %v6049
        %9696 = vmatmul.mubr.bf16.gmra.mxu0 %v6037
        %v9697 = vpop.f32.mrf.mxu0
        %v9698 = vadd.f32 %v9505, %v9697
        %v9699 = vpop.f32.mrf.mxu0
        %v9700 = vadd.f32 %v9507, %v9699
        %v9701 = vpop.f32.mrf.mxu0
        %v9702 = vadd.f32 %v9509, %v9701
        %v9703 = vpop.f32.mrf.mxu0
        %v9704 = vadd.f32 %v9511, %v9703
        %9705 = vmatprep.mubr.bf16.mxu0 %v6073
        %9706 = vmatmul.mubr.bf16.gmra.mxu0 %v6061
        %v9707 = vpop.f32.mrf.mxu0
        %v9708 = vadd.f32 %v9515, %v9707
        %v9709 = vpop.f32.mrf.mxu0
        %v9710 = vadd.f32 %v9517, %v9709
        %v9711 = vpop.f32.mrf.mxu0
        %v9712 = vadd.f32 %v9519, %v9711
        %v9713 = vpop.f32.mrf.mxu0
        %v9714 = vadd.f32 %v9521, %v9713
        %9715 = vmatprep.mubr.bf16.mxu0 %v6097
        %9716 = vmatmul.mubr.bf16.gmra.mxu0 %v6085
        %v9717 = vpop.f32.mrf.mxu0
        %v9718 = vadd.f32 %v9525, %v9717
        %v9719 = vpop.f32.mrf.mxu0
        %v9720 = vadd.f32 %v9527, %v9719
        %v9721 = vpop.f32.mrf.mxu0
        %v9722 = vadd.f32 %v9529, %v9721
        %v9723 = vpop.f32.mrf.mxu0
        %v9724 = vadd.f32 %v9531, %v9723
        %9725 = vmatprep.mubr.bf16.mxu0 %v6121
        %9726 = vmatmul.mubr.bf16.gmra.mxu0 %v6109
        %v9727 = vpop.f32.mrf.mxu0
        %v9728 = vadd.f32 %v9535, %v9727
        %v9729 = vpop.f32.mrf.mxu0
        %v9730 = vadd.f32 %v9537, %v9729
        %v9731 = vpop.f32.mrf.mxu0
        %v9732 = vadd.f32 %v9539, %v9731
        %v9733 = vpop.f32.mrf.mxu0
        %v9734 = vadd.f32 %v9541, %v9733
        %9735 = vmatprep.mubr.bf16.mxu0 %v6145
        %9736 = vmatmul.mubr.bf16.gmra.mxu0 %v6133
        %v9737 = vpop.f32.mrf.mxu0
        %v9738 = vadd.f32 %v9545, %v9737
        %v9739 = vpop.f32.mrf.mxu0
        %v9740 = vadd.f32 %v9547, %v9739
        %v9741 = vpop.f32.mrf.mxu0
        %v9742 = vadd.f32 %v9549, %v9741
        %v9743 = vpop.f32.mrf.mxu0
        %v9744 = vadd.f32 %v9551, %v9743
        %9745 = vmatprep.mubr.bf16.mxu0 %v6169
        %9746 = vmatmul.mubr.bf16.gmra.mxu0 %v6157
        %v9747 = vpop.f32.mrf.mxu0
        %v9748 = vadd.f32 %v9555, %v9747
        %v9749 = vpop.f32.mrf.mxu0
        %v9750 = vadd.f32 %v9557, %v9749
        %v9751 = vpop.f32.mrf.mxu0
        %v9752 = vadd.f32 %v9559, %v9751
        %v9753 = vpop.f32.mrf.mxu0
        %v9754 = vadd.f32 %v9561, %v9753
        %9755 = vmatprep.mubr.bf16.mxu0 %v6193
        %9756 = vmatmul.mubr.bf16.gmra.mxu0 %v6181
        %v9757 = vpop.f32.mrf.mxu0
        %v9758 = vadd.f32 %v9565, %v9757
        %v9759 = vpop.f32.mrf.mxu0
        %v9760 = vadd.f32 %v9567, %v9759
        %v9761 = vpop.f32.mrf.mxu0
        %v9762 = vadd.f32 %v9569, %v9761
        %v9763 = vpop.f32.mrf.mxu0
        %v9764 = vadd.f32 %v9571, %v9763
        %9765 = vmatprep.mubr.bf16.mxu0 %v6217
        %9766 = vmatmul.mubr.bf16.gmra.mxu0 %v6205
        %v9767 = vpop.f32.mrf.mxu0
        %v9768 = vadd.f32 %v9575, %v9767
        %v9769 = vpop.f32.mrf.mxu0
        %v9770 = vadd.f32 %v9577, %v9769
        %v9771 = vpop.f32.mrf.mxu0
        %v9772 = vadd.f32 %v9579, %v9771
        %v9773 = vpop.f32.mrf.mxu0
        %v9774 = vadd.f32 %v9581, %v9773
        %9775 = vmatprep.mubr.bf16.mxu0 %v6241
        %9776 = vmatmul.mubr.bf16.gmra.mxu0 %v6229
        %v9777 = vpop.f32.mrf.mxu0
        %v9778 = vadd.f32 %v9585, %v9777
        %v9779 = vpop.f32.mrf.mxu0
        %v9780 = vadd.f32 %v9587, %v9779
        %v9781 = vpop.f32.mrf.mxu0
        %v9782 = vadd.f32 %v9589, %v9781
        %v9783 = vpop.f32.mrf.mxu0
        %v9784 = vadd.f32 %v9591, %v9783
        %9785 = vmatprep.mubr.bf16.mxu0 %v6265
        %9786 = vmatmul.mubr.bf16.gmra.mxu0 %v6253
        %v9787 = vpop.f32.mrf.mxu0
        %v9788 = vadd.f32 %v9595, %v9787
        %v9789 = vpop.f32.mrf.mxu0
        %v9790 = vadd.f32 %v9597, %v9789
        %v9791 = vpop.f32.mrf.mxu0
        %v9792 = vadd.f32 %v9599, %v9791
        %v9793 = vpop.f32.mrf.mxu0
        %v9794 = vadd.f32 %v9601, %v9793
        %9795 = vmatprep.mubr.bf16.mxu0 %v6289
        %9796 = vmatmul.mubr.bf16.gmra.mxu0 %v6277
        %v9797 = vpop.f32.mrf.mxu0
        %v9798 = vadd.f32 %v9605, %v9797
        %v9799 = vpop.f32.mrf.mxu0
        %v9800 = vadd.f32 %v9607, %v9799
        %v9801 = vpop.f32.mrf.mxu0
        %v9802 = vadd.f32 %v9609, %v9801
        %v9803 = vpop.f32.mrf.mxu0
        %v9804 = vadd.f32 %v9611, %v9803
        %9805 = vmatprep.mubr.bf16.mxu0 %v6313
        %9806 = vmatmul.mubr.bf16.gmra.mxu0 %v6301
        %v9807 = vpop.f32.mrf.mxu0
        %v9808 = vadd.f32 %v9615, %v9807
        %v9809 = vpop.f32.mrf.mxu0
        %v9810 = vadd.f32 %v9617, %v9809
        %v9811 = vpop.f32.mrf.mxu0
        %v9812 = vadd.f32 %v9619, %v9811
        %v9813 = vpop.f32.mrf.mxu0
        %v9814 = vadd.f32 %v9621, %v9813
        %9815 = vmatprep.mubr.bf16.mxu0 %v6337
        %9816 = vmatmul.mubr.bf16.gmra.mxu0 %v6325
        %v9817 = vpop.f32.mrf.mxu0
        %v9818 = vadd.f32 %v9625, %v9817
        %v9819 = vpop.f32.mrf.mxu0
        %v9820 = vadd.f32 %v9627, %v9819
        %v9821 = vpop.f32.mrf.mxu0
        %v9822 = vadd.f32 %v9629, %v9821
        %v9823 = vpop.f32.mrf.mxu0
        %v9824 = vadd.f32 %v9631, %v9823
        %9825 = vmatprep.mubr.bf16.mxu0 %v6313
        %9826 = vmatmul.mubr.bf16.gmra.mxu0 %v6301
        %v9827 = vpop.f32.mrf.mxu0
        %v9828 = vadd.f32 %v9635, %v9827
        %v9829 = vpop.f32.mrf.mxu0
        %v9830 = vadd.f32 %v9637, %v9829
        %v9831 = vpop.f32.mrf.mxu0
        %v9832 = vadd.f32 %v9639, %v9831
        %v9833 = vpop.f32.mrf.mxu0
        %v9834 = vadd.f32 %v9641, %v9833
        %9835 = vdwg.mxu0
        %9836 = vmatprep.subr.bf16.mxu0 %v9337
        %9837 = vmatpush1.bf16.msra.mxu0 %v9336
        %9838 = vmatprep.subr.bf16.mxu0 %v9335
        %9839 = vmatpush1.bf16.msra.mxu0 %v9334
        %9840 = vmatprep.subr.bf16.mxu0 %v9333
        %9841 = vmatpush1.bf16.msra.mxu0 %v9332
        %9842 = vmatprep.subr.bf16.mxu0 %v9331
        %9843 = vmatpush1.bf16.msra.mxu0 %v9330
        %9844 = vmatprep.subr.bf16.mxu0 %v9329
        %9845 = vmatpush1.bf16.msra.mxu0 %v9328
        %9846 = vmatprep.subr.bf16.mxu0 %v9327
        %9847 = vmatpush1.bf16.msra.mxu0 %v9326
        %9848 = vmatprep.subr.bf16.mxu0 %v9325
        %9849 = vmatpush1.bf16.msra.mxu0 %v9324
        %9850 = vmatprep.subr.bf16.mxu0 %v9323
        %9851 = vmatpush1.bf16.msra.mxu0 %v9322
        %9852 = vmatprep.subr.bf16.mxu0 %v9353
        %9853 = vmatpush2.bf16.msra.mxu0 %v9352
        %9854 = vmatprep.subr.bf16.mxu0 %v9351
        %9855 = vmatpush2.bf16.msra.mxu0 %v9350
        %9856 = vmatprep.subr.bf16.mxu0 %v9349
        %9857 = vmatpush2.bf16.msra.mxu0 %v9348
        %9858 = vmatprep.subr.bf16.mxu0 %v9347
        %9859 = vmatpush2.bf16.msra.mxu0 %v9346
        %9860 = vmatprep.subr.bf16.mxu0 %v9345
        %9861 = vmatpush2.bf16.msra.mxu0 %v9344
        %9862 = vmatprep.subr.bf16.mxu0 %v9343
        %9863 = vmatpush2.bf16.msra.mxu0 %v9342
        %9864 = vmatprep.subr.bf16.mxu0 %v9341
        %9865 = vmatpush2.bf16.msra.mxu0 %v9340
        %9866 = vmatprep.subr.bf16.mxu0 %v9339
        %9867 = vmatpush2.bf16.msra.mxu0 %v9338
        %9868 = vmatprep.mubr.bf16.mxu0 %v6445
        %9869 = vmatmul.mubr.bf16.gmra.mxu0 %v6442
        %v9870 = vpop.f32.mrf.mxu0
        %v9871 = vadd.f32 %v9678, %v9870
        %v9872 = vpop.f32.mrf.mxu0
        %v9873 = vadd.f32 %v9680, %v9872
        %v9874 = vpop.f32.mrf.mxu0
        %v9875 = vadd.f32 %v9682, %v9874
        %v9876 = vpop.f32.mrf.mxu0
        %v9877 = vadd.f32 %v9684, %v9876
        %9878 = vmatprep.mubr.bf16.mxu0 %v6451
        %9879 = vmatmul.mubr.bf16.gmra.mxu0 %v6448
        %v9880 = vpop.f32.mrf.mxu0
        %v9881 = vadd.f32 %v9688, %v9880
        %v9882 = vpop.f32.mrf.mxu0
        %v9883 = vadd.f32 %v9690, %v9882
        %v9884 = vpop.f32.mrf.mxu0
        %v9885 = vadd.f32 %v9692, %v9884
        %v9886 = vpop.f32.mrf.mxu0
        %v9887 = vadd.f32 %v9694, %v9886
        %9888 = vmatprep.mubr.bf16.mxu0 %v6457
        %9889 = vmatmul.mubr.bf16.gmra.mxu0 %v6454
        %v9890 = vpop.f32.mrf.mxu0
        %v9891 = vadd.f32 %v9698, %v9890
        %v9892 = vpop.f32.mrf.mxu0
        %v9893 = vadd.f32 %v9700, %v9892
        %v9894 = vpop.f32.mrf.mxu0
        %v9895 = vadd.f32 %v9702, %v9894
        %v9896 = vpop.f32.mrf.mxu0
        %v9897 = vadd.f32 %v9704, %v9896
        %9898 = vmatprep.mubr.bf16.mxu0 %v6463
        %9899 = vmatmul.mubr.bf16.gmra.mxu0 %v6460
        %v9900 = vpop.f32.mrf.mxu0
        %v9901 = vadd.f32 %v9708, %v9900
        %v9902 = vpop.f32.mrf.mxu0
        %v9903 = vadd.f32 %v9710, %v9902
        %v9904 = vpop.f32.mrf.mxu0
        %v9905 = vadd.f32 %v9712, %v9904
        %v9906 = vpop.f32.mrf.mxu0
        %v9907 = vadd.f32 %v9714, %v9906
        %9908 = vmatprep.mubr.bf16.mxu0 %v6469
        %9909 = vmatmul.mubr.bf16.gmra.mxu0 %v6466
        %v9910 = vpop.f32.mrf.mxu0
        %v9911 = vadd.f32 %v9718, %v9910
        %v9912 = vpop.f32.mrf.mxu0
        %v9913 = vadd.f32 %v9720, %v9912
        %v9914 = vpop.f32.mrf.mxu0
        %v9915 = vadd.f32 %v9722, %v9914
        %v9916 = vpop.f32.mrf.mxu0
        %v9917 = vadd.f32 %v9724, %v9916
        %9918 = vmatprep.mubr.bf16.mxu0 %v6475
        %9919 = vmatmul.mubr.bf16.gmra.mxu0 %v6472
        %v9920 = vpop.f32.mrf.mxu0
        %v9921 = vadd.f32 %v9728, %v9920
        %v9922 = vpop.f32.mrf.mxu0
        %v9923 = vadd.f32 %v9730, %v9922
        %v9924 = vpop.f32.mrf.mxu0
        %v9925 = vadd.f32 %v9732, %v9924
        %v9926 = vpop.f32.mrf.mxu0
        %v9927 = vadd.f32 %v9734, %v9926
        %9928 = vmatprep.mubr.bf16.mxu0 %v6481
        %9929 = vmatmul.mubr.bf16.gmra.mxu0 %v6478
        %v9930 = vpop.f32.mrf.mxu0
        %v9931 = vadd.f32 %v9738, %v9930
        %v9932 = vpop.f32.mrf.mxu0
        %v9933 = vadd.f32 %v9740, %v9932
        %v9934 = vpop.f32.mrf.mxu0
        %v9935 = vadd.f32 %v9742, %v9934
        %v9936 = vpop.f32.mrf.mxu0
        %v9937 = vadd.f32 %v9744, %v9936
        %9938 = vmatprep.mubr.bf16.mxu0 %v6487
        %9939 = vmatmul.mubr.bf16.gmra.mxu0 %v6484
        %v9940 = vpop.f32.mrf.mxu0
        %v9941 = vadd.f32 %v9748, %v9940
        %v9942 = vpop.f32.mrf.mxu0
        %v9943 = vadd.f32 %v9750, %v9942
        %v9944 = vpop.f32.mrf.mxu0
        %v9945 = vadd.f32 %v9752, %v9944
        %v9946 = vpop.f32.mrf.mxu0
        %v9947 = vadd.f32 %v9754, %v9946
        %9948 = vmatprep.mubr.bf16.mxu0 %v6493
        %9949 = vmatmul.mubr.bf16.gmra.mxu0 %v6490
        %v9950 = vpop.f32.mrf.mxu0
        %v9951 = vadd.f32 %v9758, %v9950
        %v9952 = vpop.f32.mrf.mxu0
        %v9953 = vadd.f32 %v9760, %v9952
        %v9954 = vpop.f32.mrf.mxu0
        %v9955 = vadd.f32 %v9762, %v9954
        %v9956 = vpop.f32.mrf.mxu0
        %v9957 = vadd.f32 %v9764, %v9956
        %9958 = vmatprep.mubr.bf16.mxu0 %v6499
        %9959 = vmatmul.mubr.bf16.gmra.mxu0 %v6496
        %v9960 = vpop.f32.mrf.mxu0
        %v9961 = vadd.f32 %v9768, %v9960
        %v9962 = vpop.f32.mrf.mxu0
        %v9963 = vadd.f32 %v9770, %v9962
        %v9964 = vpop.f32.mrf.mxu0
        %v9965 = vadd.f32 %v9772, %v9964
        %v9966 = vpop.f32.mrf.mxu0
        %v9967 = vadd.f32 %v9774, %v9966
        %9968 = vmatprep.mubr.bf16.mxu0 %v6505
        %9969 = vmatmul.mubr.bf16.gmra.mxu0 %v6502
        %v9970 = vpop.f32.mrf.mxu0
        %v9971 = vadd.f32 %v9778, %v9970
        %v9972 = vpop.f32.mrf.mxu0
        %v9973 = vadd.f32 %v9780, %v9972
        %v9974 = vpop.f32.mrf.mxu0
        %v9975 = vadd.f32 %v9782, %v9974
        %v9976 = vpop.f32.mrf.mxu0
        %v9977 = vadd.f32 %v9784, %v9976
        %9978 = vmatprep.mubr.bf16.mxu0 %v6511
        %9979 = vmatmul.mubr.bf16.gmra.mxu0 %v6508
        %v9980 = vpop.f32.mrf.mxu0
        %v9981 = vadd.f32 %v9788, %v9980
        %v9982 = vpop.f32.mrf.mxu0
        %v9983 = vadd.f32 %v9790, %v9982
        %v9984 = vpop.f32.mrf.mxu0
        %v9985 = vadd.f32 %v9792, %v9984
        %v9986 = vpop.f32.mrf.mxu0
        %v9987 = vadd.f32 %v9794, %v9986
        %9988 = vmatprep.mubr.bf16.mxu0 %v6517
        %9989 = vmatmul.mubr.bf16.gmra.mxu0 %v6514
        %v9990 = vpop.f32.mrf.mxu0
        %v9991 = vadd.f32 %v9798, %v9990
        %v9992 = vpop.f32.mrf.mxu0
        %v9993 = vadd.f32 %v9800, %v9992
        %v9994 = vpop.f32.mrf.mxu0
        %v9995 = vadd.f32 %v9802, %v9994
        %v9996 = vpop.f32.mrf.mxu0
        %v9997 = vadd.f32 %v9804, %v9996
        %9998 = vmatprep.mubr.bf16.mxu0 %v6523
        %9999 = vmatmul.mubr.bf16.gmra.mxu0 %v6520
        %v10000 = vpop.f32.mrf.mxu0
        %v10001 = vadd.f32 %v9808, %v10000
        %v10002 = vpop.f32.mrf.mxu0
        %v10003 = vadd.f32 %v9810, %v10002
        %v10004 = vpop.f32.mrf.mxu0
        %v10005 = vadd.f32 %v9812, %v10004
        %v10006 = vpop.f32.mrf.mxu0
        %v10007 = vadd.f32 %v9814, %v10006
        %10008 = vmatprep.mubr.bf16.mxu0 %v6529
        %10009 = vmatmul.mubr.bf16.gmra.mxu0 %v6526
        %v10010 = vpop.f32.mrf.mxu0
        %v10011 = vadd.f32 %v9818, %v10010
        %v10012 = vpop.f32.mrf.mxu0
        %v10013 = vadd.f32 %v9820, %v10012
        %v10014 = vpop.f32.mrf.mxu0
        %v10015 = vadd.f32 %v9822, %v10014
        %v10016 = vpop.f32.mrf.mxu0
        %v10017 = vadd.f32 %v9824, %v10016
        %10018 = vmatprep.mubr.bf16.mxu0 %v6523
        %10019 = vmatmul.mubr.bf16.gmra.mxu0 %v6520
        %v10020 = vpop.f32.mrf.mxu0
        %v10021 = vadd.f32 %v9828, %v10020
        %v10022 = vpop.f32.mrf.mxu0
        %v10023 = vadd.f32 %v9830, %v10022
        %v10024 = vpop.f32.mrf.mxu0
        %v10025 = vadd.f32 %v9832, %v10024
        %v10026 = vpop.f32.mrf.mxu0
        %v10027 = vadd.f32 %v9834, %v10026
        %10028 = vdwg.mxu0
        %v10029 = vadd.f32 %v8715, %v9871
        %v10030 = vadd.f32 %v8717, %v9873
        %v10031 = vadd.f32 %v8719, %v9875
        %v10032 = vadd.f32 %v8721, %v9877
        %v10033 = vadd.f32 %v8725, %v9881
        %v10034 = vadd.f32 %v8727, %v9883
        %v10035 = vadd.f32 %v8729, %v9885
        %v10036 = vadd.f32 %v8731, %v9887
        %v10037 = vadd.f32 %v8735, %v9891
        %v10038 = vadd.f32 %v8737, %v9893
        %v10039 = vadd.f32 %v8739, %v9895
        %v10040 = vadd.f32 %v8741, %v9897
        %v10041 = vadd.f32 %v8745, %v9901
        %v10042 = vadd.f32 %v8747, %v9903
        %v10043 = vadd.f32 %v8749, %v9905
        %v10044 = vadd.f32 %v8751, %v9907
        %v10045 = vadd.f32 %v8755, %v9911
        %v10046 = vadd.f32 %v8757, %v9913
        %v10047 = vadd.f32 %v8759, %v9915
        %v10048 = vadd.f32 %v8761, %v9917
        %v10049 = vadd.f32 %v8765, %v9921
        %v10050 = vadd.f32 %v8767, %v9923
        %v10051 = vadd.f32 %v8769, %v9925
        %v10052 = vadd.f32 %v8771, %v9927
        %v10053 = vadd.f32 %v8775, %v9931
        %v10054 = vadd.f32 %v8777, %v9933
        %v10055 = vadd.f32 %v8779, %v9935
        %v10056 = vadd.f32 %v8781, %v9937
        %v10057 = vadd.f32 %v8785, %v9941
        %v10058 = vadd.f32 %v8787, %v9943
        %v10059 = vadd.f32 %v8789, %v9945
        %v10060 = vadd.f32 %v8791, %v9947
        %v10061 = vadd.f32 %v8795, %v9951
        %v10062 = vadd.f32 %v8797, %v9953
        %v10063 = vadd.f32 %v8799, %v9955
        %v10064 = vadd.f32 %v8801, %v9957
        %v10065 = vadd.f32 %v8805, %v9961
        %v10066 = vadd.f32 %v8807, %v9963
        %v10067 = vadd.f32 %v8809, %v9965
        %v10068 = vadd.f32 %v8811, %v9967
        %v10069 = vadd.f32 %v8815, %v9971
        %v10070 = vadd.f32 %v8817, %v9973
        %v10071 = vadd.f32 %v8819, %v9975
        %v10072 = vadd.f32 %v8821, %v9977
        %v10073 = vadd.f32 %v8825, %v9981
        %v10074 = vadd.f32 %v8827, %v9983
        %v10075 = vadd.f32 %v8829, %v9985
        %v10076 = vadd.f32 %v8831, %v9987
        %v10077 = vadd.f32 %v8835, %v9991
        %v10078 = vadd.f32 %v8837, %v9993
        %v10079 = vadd.f32 %v8839, %v9995
        %v10080 = vadd.f32 %v8841, %v9997
        %v10081 = vadd.f32 %v8845, %v10001
        %v10082 = vadd.f32 %v8847, %v10003
        %v10083 = vadd.f32 %v8849, %v10005
        %v10084 = vadd.f32 %v8851, %v10007
        %v10085 = vadd.f32 %v8855, %v10011
        %v10086 = vadd.f32 %v8857, %v10013
        %v10087 = vadd.f32 %v8859, %v10015
        %v10088 = vadd.f32 %v8861, %v10017
        %v10089 = vadd.f32 %v8865, %v10021
        %v10090 = vadd.f32 %v8867, %v10023
        %v10091 = vadd.f32 %v8869, %v10025
        %v10092 = vadd.f32 %v8871, %v10027
        %v10093 = vld [vmem:[#allocation10] sm:$0x3]
        %v10095 = vlaneseq
        %v10096 = vshrl.u32 %v10095, 7
        %v10097 = vsub.s32 0, %v10096
        %v10098 = vrot.slane %v10093, %v10097
        %v10099 = vlaneseq
        %v10100 = vshrl.u32 %v10099, 7
        %v10101 = vsub.s32 1, %v10100
        %v10102 = vrot.slane %v10093, %v10101
        %v10105 = vadd.f32 %v10029, %v10098
        %v10106 = vadd.f32 %v10030, %v10102
        %v10107 = vadd.f32 %v10031, %v10098
        %v10108 = vadd.f32 %v10032, %v10102
        %v10109 = vadd.f32 %v10033, %v10098
        %v10110 = vadd.f32 %v10034, %v10102
        %v10111 = vadd.f32 %v10035, %v10098
        %v10112 = vadd.f32 %v10036, %v10102
        %v10113 = vadd.f32 %v10037, %v10098
        %v10114 = vadd.f32 %v10038, %v10102
        %v10115 = vadd.f32 %v10039, %v10098
        %v10116 = vadd.f32 %v10040, %v10102
        %v10117 = vadd.f32 %v10041, %v10098
        %v10118 = vadd.f32 %v10042, %v10102
        %v10119 = vadd.f32 %v10043, %v10098
        %v10120 = vadd.f32 %v10044, %v10102
        %v10121 = vadd.f32 %v10045, %v10098
        %v10122 = vadd.f32 %v10046, %v10102
        %v10123 = vadd.f32 %v10047, %v10098
        %v10124 = vadd.f32 %v10048, %v10102
        %v10125 = vadd.f32 %v10049, %v10098
        %v10126 = vadd.f32 %v10050, %v10102
        %v10127 = vadd.f32 %v10051, %v10098
        %v10128 = vadd.f32 %v10052, %v10102
        %v10129 = vadd.f32 %v10053, %v10098
        %v10130 = vadd.f32 %v10054, %v10102
        %v10131 = vadd.f32 %v10055, %v10098
        %v10132 = vadd.f32 %v10056, %v10102
        %v10133 = vadd.f32 %v10057, %v10098
        %v10134 = vadd.f32 %v10058, %v10102
        %v10135 = vadd.f32 %v10059, %v10098
        %v10136 = vadd.f32 %v10060, %v10102
        %v10137 = vadd.f32 %v10061, %v10098
        %v10138 = vadd.f32 %v10062, %v10102
        %v10139 = vadd.f32 %v10063, %v10098
        %v10140 = vadd.f32 %v10064, %v10102
        %v10141 = vadd.f32 %v10065, %v10098
        %v10142 = vadd.f32 %v10066, %v10102
        %v10143 = vadd.f32 %v10067, %v10098
        %v10144 = vadd.f32 %v10068, %v10102
        %v10145 = vadd.f32 %v10069, %v10098
        %v10146 = vadd.f32 %v10070, %v10102
        %v10147 = vadd.f32 %v10071, %v10098
        %v10148 = vadd.f32 %v10072, %v10102
        %v10149 = vadd.f32 %v10073, %v10098
        %v10150 = vadd.f32 %v10074, %v10102
        %v10151 = vadd.f32 %v10075, %v10098
        %v10152 = vadd.f32 %v10076, %v10102
        %v10153 = vadd.f32 %v10077, %v10098
        %v10154 = vadd.f32 %v10078, %v10102
        %v10155 = vadd.f32 %v10079, %v10098
        %v10156 = vadd.f32 %v10080, %v10102
        %v10157 = vadd.f32 %v10081, %v10098
        %v10158 = vadd.f32 %v10082, %v10102
        %v10159 = vadd.f32 %v10083, %v10098
        %v10160 = vadd.f32 %v10084, %v10102
        %v10161 = vadd.f32 %v10085, %v10098
        %v10162 = vadd.f32 %v10086, %v10102
        %v10163 = vadd.f32 %v10087, %v10098
        %v10164 = vadd.f32 %v10088, %v10102
        %v10165 = vadd.f32 %v10089, %v10098
        %v10166 = vadd.f32 %v10090, %v10102
        %v10167 = vadd.f32 %v10091, %v10098
        %v10168 = vadd.f32 %v10092, %v10102
        %v10169 = vadd.f32 %v10105, %v10107
        %v10170 = vadd.f32 %v10169, %v10109
        %v10171 = vadd.f32 %v10170, %v10111
        %v10172 = vadd.f32 %v10171, %v10113
        %v10173 = vadd.f32 %v10172, %v10115
        %v10174 = vadd.f32 %v10173, %v10117
        %v10175 = vadd.f32 %v10174, %v10119
        %v10176 = vadd.f32 %v10175, %v10121
        %v10177 = vadd.f32 %v10176, %v10123
        %v10178 = vadd.f32 %v10177, %v10125
        %v10179 = vadd.f32 %v10178, %v10127
        %v10180 = vadd.f32 %v10179, %v10129
        %v10181 = vadd.f32 %v10180, %v10131
        %v10182 = vadd.f32 %v10181, %v10133
        %v10183 = vadd.f32 %v10182, %v10135
        %v10184 = vadd.f32 %v10183, %v10137
        %v10185 = vadd.f32 %v10184, %v10139
        %v10186 = vadd.f32 %v10185, %v10141
        %v10187 = vadd.f32 %v10186, %v10143
        %v10188 = vadd.f32 %v10187, %v10145
        %v10189 = vadd.f32 %v10188, %v10147
        %v10190 = vadd.f32 %v10189, %v10149
        %v10191 = vadd.f32 %v10190, %v10151
        %v10192 = vadd.f32 %v10191, %v10153
        %v10193 = vadd.f32 %v10192, %v10155
        %v10194 = vadd.f32 %v10193, %v10157
        %v10195 = vadd.f32 %v10194, %v10159
        %v10196 = vadd.f32 %v10195, %v10161
        %v10197 = vadd.f32 %v10196, %v10163
        %v10198 = vadd.f32 %v10197, %v10165
        %v10199 = vadd.f32 %v10198, %v10167
        %v10200 = vrot.slane %v10199, 4
        %v10201 = vadd.f32 %v10199, %v10200
        %v10202 = vrot.slane %v10201, 2
        %v10203 = vadd.f32 %v10201, %v10202
        %v10204 = vrot.slane %v10203, 1
        %v10205 = vadd.f32 %v10203, %v10204
        %v10206 = vadd.f32 %v10106, %v10108
        %v10207 = vadd.f32 %v10206, %v10110
        %v10208 = vadd.f32 %v10207, %v10112
        %v10209 = vadd.f32 %v10208, %v10114
        %v10210 = vadd.f32 %v10209, %v10116
        %v10211 = vadd.f32 %v10210, %v10118
        %v10212 = vadd.f32 %v10211, %v10120
        %v10213 = vadd.f32 %v10212, %v10122
        %v10214 = vadd.f32 %v10213, %v10124
        %v10215 = vadd.f32 %v10214, %v10126
        %v10216 = vadd.f32 %v10215, %v10128
        %v10217 = vadd.f32 %v10216, %v10130
        %v10218 = vadd.f32 %v10217, %v10132
        %v10219 = vadd.f32 %v10218, %v10134
        %v10220 = vadd.f32 %v10219, %v10136
        %v10221 = vadd.f32 %v10220, %v10138
        %v10222 = vadd.f32 %v10221, %v10140
        %v10223 = vadd.f32 %v10222, %v10142
        %v10224 = vadd.f32 %v10223, %v10144
        %v10225 = vadd.f32 %v10224, %v10146
        %v10226 = vadd.f32 %v10225, %v10148
        %v10227 = vadd.f32 %v10226, %v10150
        %v10228 = vadd.f32 %v10227, %v10152
        %v10229 = vadd.f32 %v10228, %v10154
        %v10230 = vadd.f32 %v10229, %v10156
        %v10231 = vadd.f32 %v10230, %v10158
        %v10232 = vadd.f32 %v10231, %v10160
        %v10233 = vadd.f32 %v10232, %v10162
        %v10234 = vadd.f32 %v10233, %v10164
        %v10235 = vadd.f32 %v10234, %v10166
        %v10236 = vadd.f32 %v10235, %v10168
        %v10237 = vrot.slane %v10236, 4
        %v10238 = vadd.f32 %v10236, %v10237
        %v10239 = vrot.slane %v10238, 2
        %v10240 = vadd.f32 %v10238, %v10239
        %v10241 = vrot.slane %v10240, 1
        %v10242 = vadd.f32 %v10240, %v10241
        %v10243 = vmul.f32 %v10205, %v5135
        %v10244 = vmul.f32 %v10242, %v5135
        %v10245 = vsub.f32 %v10105, %v10243
        %v10246 = vsub.f32 %v10106, %v10244
        %v10247 = vsub.f32 %v10107, %v10243
        %v10248 = vsub.f32 %v10108, %v10244
        %v10249 = vsub.f32 %v10109, %v10243
        %v10250 = vsub.f32 %v10110, %v10244
        %v10251 = vsub.f32 %v10111, %v10243
        %v10252 = vsub.f32 %v10112, %v10244
        %v10253 = vsub.f32 %v10113, %v10243
        %v10254 = vsub.f32 %v10114, %v10244
        %v10255 = vsub.f32 %v10115, %v10243
        %v10256 = vsub.f32 %v10116, %v10244
        %v10257 = vsub.f32 %v10117, %v10243
        %v10258 = vsub.f32 %v10118, %v10244
        %v10259 = vsub.f32 %v10119, %v10243
        %v10260 = vsub.f32 %v10120, %v10244
        %v10261 = vsub.f32 %v10121, %v10243
        %v10262 = vsub.f32 %v10122, %v10244
        %v10263 = vsub.f32 %v10123, %v10243
        %v10264 = vsub.f32 %v10124, %v10244
        %v10265 = vsub.f32 %v10125, %v10243
        %v10266 = vsub.f32 %v10126, %v10244
        %v10267 = vsub.f32 %v10127, %v10243
        %v10268 = vsub.f32 %v10128, %v10244
        %v10269 = vsub.f32 %v10129, %v10243
        %v10270 = vsub.f32 %v10130, %v10244
        %v10271 = vsub.f32 %v10131, %v10243
        %v10272 = vsub.f32 %v10132, %v10244
        %v10273 = vsub.f32 %v10133, %v10243
        %v10274 = vsub.f32 %v10134, %v10244
        %v10275 = vsub.f32 %v10135, %v10243
        %v10276 = vsub.f32 %v10136, %v10244
        %v10277 = vsub.f32 %v10137, %v10243
        %v10278 = vsub.f32 %v10138, %v10244
        %v10279 = vsub.f32 %v10139, %v10243
        %v10280 = vsub.f32 %v10140, %v10244
        %v10281 = vsub.f32 %v10141, %v10243
        %v10282 = vsub.f32 %v10142, %v10244
        %v10283 = vsub.f32 %v10143, %v10243
        %v10284 = vsub.f32 %v10144, %v10244
        %v10285 = vsub.f32 %v10145, %v10243
        %v10286 = vsub.f32 %v10146, %v10244
        %v10287 = vsub.f32 %v10147, %v10243
        %v10288 = vsub.f32 %v10148, %v10244
        %v10289 = vsub.f32 %v10149, %v10243
        %v10290 = vsub.f32 %v10150, %v10244
        %v10291 = vsub.f32 %v10151, %v10243
        %v10292 = vsub.f32 %v10152, %v10244
        %v10293 = vsub.f32 %v10153, %v10243
        %v10294 = vsub.f32 %v10154, %v10244
        %v10295 = vsub.f32 %v10155, %v10243
        %v10296 = vsub.f32 %v10156, %v10244
        %v10297 = vsub.f32 %v10157, %v10243
        %v10298 = vsub.f32 %v10158, %v10244
        %v10299 = vsub.f32 %v10159, %v10243
        %v10300 = vsub.f32 %v10160, %v10244
        %v10301 = vsub.f32 %v10161, %v10243
        %v10302 = vsub.f32 %v10162, %v10244
        %v10303 = vsub.f32 %v10163, %v10243
        %v10304 = vsub.f32 %v10164, %v10244
        %v10305 = vsub.f32 %v10165, %v10243
        %v10306 = vsub.f32 %v10166, %v10244
        %v10307 = vsub.f32 %v10167, %v10243
        %v10308 = vsub.f32 %v10168, %v10244
        %v10309 = vmul.f32 %v10245, %v10245
        %v10310 = vmul.f32 %v10246, %v10246
        %v10311 = vmul.f32 %v10247, %v10247
        %v10312 = vmul.f32 %v10248, %v10248
        %v10313 = vmul.f32 %v10249, %v10249
        %v10314 = vmul.f32 %v10250, %v10250
        %v10315 = vmul.f32 %v10251, %v10251
        %v10316 = vmul.f32 %v10252, %v10252
        %v10317 = vmul.f32 %v10253, %v10253
        %v10318 = vmul.f32 %v10254, %v10254
        %v10319 = vmul.f32 %v10255, %v10255
        %v10320 = vmul.f32 %v10256, %v10256
        %v10321 = vmul.f32 %v10257, %v10257
        %v10322 = vmul.f32 %v10258, %v10258
        %v10323 = vmul.f32 %v10259, %v10259
        %v10324 = vmul.f32 %v10260, %v10260
        %v10325 = vmul.f32 %v10261, %v10261
        %v10326 = vmul.f32 %v10262, %v10262
        %v10327 = vmul.f32 %v10263, %v10263
        %v10328 = vmul.f32 %v10264, %v10264
        %v10329 = vmul.f32 %v10265, %v10265
        %v10330 = vmul.f32 %v10266, %v10266
        %v10331 = vmul.f32 %v10267, %v10267
        %v10332 = vmul.f32 %v10268, %v10268
        %v10333 = vmul.f32 %v10269, %v10269
        %v10334 = vmul.f32 %v10270, %v10270
        %v10335 = vmul.f32 %v10271, %v10271
        %v10336 = vmul.f32 %v10272, %v10272
        %v10337 = vmul.f32 %v10273, %v10273
        %v10338 = vmul.f32 %v10274, %v10274
        %v10339 = vmul.f32 %v10275, %v10275
        %v10340 = vmul.f32 %v10276, %v10276
        %v10341 = vmul.f32 %v10277, %v10277
        %v10342 = vmul.f32 %v10278, %v10278
        %v10343 = vmul.f32 %v10279, %v10279
        %v10344 = vmul.f32 %v10280, %v10280
        %v10345 = vmul.f32 %v10281, %v10281
        %v10346 = vmul.f32 %v10282, %v10282
        %v10347 = vmul.f32 %v10283, %v10283
        %v10348 = vmul.f32 %v10284, %v10284
        %v10349 = vmul.f32 %v10285, %v10285
        %v10350 = vmul.f32 %v10286, %v10286
        %v10351 = vmul.f32 %v10287, %v10287
        %v10352 = vmul.f32 %v10288, %v10288
        %v10353 = vmul.f32 %v10289, %v10289
        %v10354 = vmul.f32 %v10290, %v10290
        %v10355 = vmul.f32 %v10291, %v10291
        %v10356 = vmul.f32 %v10292, %v10292
        %v10357 = vmul.f32 %v10293, %v10293
        %v10358 = vmul.f32 %v10294, %v10294
        %v10359 = vmul.f32 %v10295, %v10295
        %v10360 = vmul.f32 %v10296, %v10296
        %v10361 = vmul.f32 %v10297, %v10297
        %v10362 = vmul.f32 %v10298, %v10298
        %v10363 = vmul.f32 %v10299, %v10299
        %v10364 = vmul.f32 %v10300, %v10300
        %v10365 = vmul.f32 %v10301, %v10301
        %v10366 = vmul.f32 %v10302, %v10302
        %v10367 = vmul.f32 %v10303, %v10303
        %v10368 = vmul.f32 %v10304, %v10304
        %v10369 = vmul.f32 %v10305, %v10305
        %v10370 = vmul.f32 %v10306, %v10306
        %v10371 = vmul.f32 %v10307, %v10307
        %v10372 = vmul.f32 %v10308, %v10308
        %v10373 = vadd.f32 %v10309, %v10311
        %v10374 = vadd.f32 %v10373, %v10313
        %v10375 = vadd.f32 %v10374, %v10315
        %v10376 = vadd.f32 %v10375, %v10317
        %v10377 = vadd.f32 %v10376, %v10319
        %v10378 = vadd.f32 %v10377, %v10321
        %v10379 = vadd.f32 %v10378, %v10323
        %v10380 = vadd.f32 %v10379, %v10325
        %v10381 = vadd.f32 %v10380, %v10327
        %v10382 = vadd.f32 %v10381, %v10329
        %v10383 = vadd.f32 %v10382, %v10331
        %v10384 = vadd.f32 %v10383, %v10333
        %v10385 = vadd.f32 %v10384, %v10335
        %v10386 = vadd.f32 %v10385, %v10337
        %v10387 = vadd.f32 %v10386, %v10339
        %v10388 = vadd.f32 %v10387, %v10341
        %v10389 = vadd.f32 %v10388, %v10343
        %v10390 = vadd.f32 %v10389, %v10345
        %v10391 = vadd.f32 %v10390, %v10347
        %v10392 = vadd.f32 %v10391, %v10349
        %v10393 = vadd.f32 %v10392, %v10351
        %v10394 = vadd.f32 %v10393, %v10353
        %v10395 = vadd.f32 %v10394, %v10355
        %v10396 = vadd.f32 %v10395, %v10357
        %v10397 = vadd.f32 %v10396, %v10359
        %v10398 = vadd.f32 %v10397, %v10361
        %v10399 = vadd.f32 %v10398, %v10363
        %v10400 = vadd.f32 %v10399, %v10365
        %v10401 = vadd.f32 %v10400, %v10367
        %v10402 = vadd.f32 %v10401, %v10369
        %v10403 = vadd.f32 %v10402, %v10371
        %v10404 = vrot.slane %v10403, 4
        %v10405 = vadd.f32 %v10403, %v10404
        %v10406 = vrot.slane %v10405, 2
        %v10407 = vadd.f32 %v10405, %v10406
        %v10408 = vrot.slane %v10407, 1
        %v10409 = vadd.f32 %v10407, %v10408
        %v10410 = vadd.f32 %v10310, %v10312
        %v10411 = vadd.f32 %v10410, %v10314
        %v10412 = vadd.f32 %v10411, %v10316
        %v10413 = vadd.f32 %v10412, %v10318
        %v10414 = vadd.f32 %v10413, %v10320
        %v10415 = vadd.f32 %v10414, %v10322
        %v10416 = vadd.f32 %v10415, %v10324
        %v10417 = vadd.f32 %v10416, %v10326
        %v10418 = vadd.f32 %v10417, %v10328
        %v10419 = vadd.f32 %v10418, %v10330
        %v10420 = vadd.f32 %v10419, %v10332
        %v10421 = vadd.f32 %v10420, %v10334
        %v10422 = vadd.f32 %v10421, %v10336
        %v10423 = vadd.f32 %v10422, %v10338
        %v10424 = vadd.f32 %v10423, %v10340
        %v10425 = vadd.f32 %v10424, %v10342
        %v10426 = vadd.f32 %v10425, %v10344
        %v10427 = vadd.f32 %v10426, %v10346
        %v10428 = vadd.f32 %v10427, %v10348
        %v10429 = vadd.f32 %v10428, %v10350
        %v10430 = vadd.f32 %v10429, %v10352
        %v10431 = vadd.f32 %v10430, %v10354
        %v10432 = vadd.f32 %v10431, %v10356
        %v10433 = vadd.f32 %v10432, %v10358
        %v10434 = vadd.f32 %v10433, %v10360
        %v10435 = vadd.f32 %v10434, %v10362
        %v10436 = vadd.f32 %v10435, %v10364
        %v10437 = vadd.f32 %v10436, %v10366
        %v10438 = vadd.f32 %v10437, %v10368
        %v10439 = vadd.f32 %v10438, %v10370
        %v10440 = vadd.f32 %v10439, %v10372
        %v10441 = vrot.slane %v10440, 4
        %v10442 = vadd.f32 %v10440, %v10441
        %v10443 = vrot.slane %v10442, 2
        %v10444 = vadd.f32 %v10442, %v10443
        %v10445 = vrot.slane %v10444, 1
        %v10446 = vadd.f32 %v10444, %v10445
        %v10447 = vmul.f32 %v10409, %v5135
        %v10448 = vmul.f32 %v10446, %v5135
        %v10449 = vadd.f32 %v10447, 1e-05
        %v10450 = vadd.f32 %v10448, 1e-05
        %v10451 = vrsqrt.pop %v10449
        %v10452 = vrsqrt.pop %v10450
        %v10453 = vmul.f32 %v10245, %v10451
        %v10454 = vmul.f32 %v10246, %v10452
        %v10455 = vmul.f32 %v10247, %v10451
        %v10456 = vmul.f32 %v10248, %v10452
        %v10457 = vmul.f32 %v10249, %v10451
        %v10458 = vmul.f32 %v10250, %v10452
        %v10459 = vmul.f32 %v10251, %v10451
        %v10460 = vmul.f32 %v10252, %v10452
        %v10461 = vmul.f32 %v10253, %v10451
        %v10462 = vmul.f32 %v10254, %v10452
        %v10463 = vmul.f32 %v10255, %v10451
        %v10464 = vmul.f32 %v10256, %v10452
        %v10465 = vmul.f32 %v10257, %v10451
        %v10466 = vmul.f32 %v10258, %v10452
        %v10467 = vmul.f32 %v10259, %v10451
        %v10468 = vmul.f32 %v10260, %v10452
        %v10469 = vmul.f32 %v10261, %v10451
        %v10470 = vmul.f32 %v10262, %v10452
        %v10471 = vmul.f32 %v10263, %v10451
        %v10472 = vmul.f32 %v10264, %v10452
        %v10473 = vmul.f32 %v10265, %v10451
        %v10474 = vmul.f32 %v10266, %v10452
        %v10475 = vmul.f32 %v10267, %v10451
        %v10476 = vmul.f32 %v10268, %v10452
        %v10477 = vmul.f32 %v10269, %v10451
        %v10478 = vmul.f32 %v10270, %v10452
        %v10479 = vmul.f32 %v10271, %v10451
        %v10480 = vmul.f32 %v10272, %v10452
        %v10481 = vmul.f32 %v10273, %v10451
        %v10482 = vmul.f32 %v10274, %v10452
        %v10483 = vmul.f32 %v10275, %v10451
        %v10484 = vmul.f32 %v10276, %v10452
        %v10485 = vmul.f32 %v10277, %v10451
        %v10486 = vmul.f32 %v10278, %v10452
        %v10487 = vmul.f32 %v10279, %v10451
        %v10488 = vmul.f32 %v10280, %v10452
        %v10489 = vmul.f32 %v10281, %v10451
        %v10490 = vmul.f32 %v10282, %v10452
        %v10491 = vmul.f32 %v10283, %v10451
        %v10492 = vmul.f32 %v10284, %v10452
        %v10493 = vmul.f32 %v10285, %v10451
        %v10494 = vmul.f32 %v10286, %v10452
        %v10495 = vmul.f32 %v10287, %v10451
        %v10496 = vmul.f32 %v10288, %v10452
        %v10497 = vmul.f32 %v10289, %v10451
        %v10498 = vmul.f32 %v10290, %v10452
        %v10499 = vmul.f32 %v10291, %v10451
        %v10500 = vmul.f32 %v10292, %v10452
        %v10501 = vmul.f32 %v10293, %v10451
        %v10502 = vmul.f32 %v10294, %v10452
        %v10503 = vmul.f32 %v10295, %v10451
        %v10504 = vmul.f32 %v10296, %v10452
        %v10505 = vmul.f32 %v10297, %v10451
        %v10506 = vmul.f32 %v10298, %v10452
        %v10507 = vmul.f32 %v10299, %v10451
        %v10508 = vmul.f32 %v10300, %v10452
        %v10509 = vmul.f32 %v10301, %v10451
        %v10510 = vmul.f32 %v10302, %v10452
        %v10511 = vmul.f32 %v10303, %v10451
        %v10512 = vmul.f32 %v10304, %v10452
        %v10513 = vmul.f32 %v10305, %v10451
        %v10514 = vmul.f32 %v10306, %v10452
        %v10515 = vmul.f32 %v10307, %v10451
        %v10516 = vmul.f32 %v10308, %v10452
        %v10517 = vadd.f32 %v297, %v10453
        %v10518 = vadd.f32 %v298, %v10454
        %v10519 = vadd.f32 %v299, %v10455
        %v10520 = vadd.f32 %v300, %v10456
        %v10521 = vadd.f32 %v301, %v10457
        %v10522 = vadd.f32 %v302, %v10458
        %v10523 = vadd.f32 %v303, %v10459
        %v10524 = vadd.f32 %v304, %v10460
        %v10525 = vadd.f32 %v305, %v10461
        %v10526 = vadd.f32 %v306, %v10462
        %v10527 = vadd.f32 %v307, %v10463
        %v10528 = vadd.f32 %v308, %v10464
        %v10529 = vadd.f32 %v309, %v10465
        %v10530 = vadd.f32 %v310, %v10466
        %v10531 = vadd.f32 %v311, %v10467
        %v10532 = vadd.f32 %v312, %v10468
        %v10533 = vadd.f32 %v313, %v10469
        %v10534 = vadd.f32 %v314, %v10470
        %v10535 = vadd.f32 %v315, %v10471
        %v10536 = vadd.f32 %v316, %v10472
        %v10537 = vadd.f32 %v317, %v10473
        %v10538 = vadd.f32 %v318, %v10474
        %v10539 = vadd.f32 %v319, %v10475
        %v10540 = vadd.f32 %v320, %v10476
        %v10541 = vadd.f32 %v321, %v10477
        %v10542 = vadd.f32 %v322, %v10478
        %v10543 = vadd.f32 %v323, %v10479
        %v10544 = vadd.f32 %v324, %v10480
        %v10545 = vadd.f32 %v325, %v10481
        %v10546 = vadd.f32 %v326, %v10482
        %v10547 = vadd.f32 %v327, %v10483
        %v10548 = vadd.f32 %v328, %v10484
        %v10549 = vadd.f32 %v329, %v10485
        %v10550 = vadd.f32 %v330, %v10486
        %v10551 = vadd.f32 %v331, %v10487
        %v10552 = vadd.f32 %v332, %v10488
        %v10553 = vadd.f32 %v333, %v10489
        %v10554 = vadd.f32 %v334, %v10490
        %v10555 = vadd.f32 %v335, %v10491
        %v10556 = vadd.f32 %v336, %v10492
        %v10557 = vadd.f32 %v337, %v10493
        %v10558 = vadd.f32 %v338, %v10494
        %v10559 = vadd.f32 %v339, %v10495
        %v10560 = vadd.f32 %v340, %v10496
        %v10561 = vadd.f32 %v341, %v10497
        %v10562 = vadd.f32 %v342, %v10498
        %v10563 = vadd.f32 %v343, %v10499
        %v10564 = vadd.f32 %v344, %v10500
        %v10565 = vadd.f32 %v345, %v10501
        %v10566 = vadd.f32 %v346, %v10502
        %v10567 = vadd.f32 %v347, %v10503
        %v10568 = vadd.f32 %v348, %v10504
        %v10569 = vadd.f32 %v349, %v10505
        %v10570 = vadd.f32 %v350, %v10506
        %v10571 = vadd.f32 %v351, %v10507
        %v10572 = vadd.f32 %v352, %v10508
        %v10573 = vadd.f32 %v353, %v10509
        %v10574 = vadd.f32 %v354, %v10510
        %v10575 = vadd.f32 %v355, %v10511
        %v10576 = vadd.f32 %v356, %v10512
        %v10577 = vadd.f32 %v357, %v10513
        %v10578 = vadd.f32 %v358, %v10514
        %v10579 = vadd.f32 %v359, %v10515
        %v10580 = vadd.f32 %v360, %v10516
        %10581 = vst [vmem:[%s296] sm:$0xff] %v10517
        %10582 = vst [vmem:[%s296 + $0x8] sm:$0xff] %v10518
        %10583 = vst [vmem:[%s296 + $0x10] sm:$0xff] %v10519
        %10584 = vst [vmem:[%s296 + $0x18] sm:$0xff] %v10520
        %10585 = vst [vmem:[%s296 + $0x20] sm:$0xff] %v10521
        %10586 = vst [vmem:[%s296 + $0x28] sm:$0xff] %v10522
        %10587 = vst [vmem:[%s296 + $0x30] sm:$0xff] %v10523
        %10588 = vst [vmem:[%s296 + $0x38] sm:$0xff] %v10524
        %10589 = vst [vmem:[%s296 + $0x40] sm:$0xff] %v10525
        %10590 = vst [vmem:[%s296 + $0x48] sm:$0xff] %v10526
        %10591 = vst [vmem:[%s296 + $0x50] sm:$0xff] %v10527
        %10592 = vst [vmem:[%s296 + $0x58] sm:$0xff] %v10528
        %10593 = vst [vmem:[%s296 + $0x60] sm:$0xff] %v10529
        %10594 = vst [vmem:[%s296 + $0x68] sm:$0xff] %v10530
        %10595 = vst [vmem:[%s296 + $0x70] sm:$0xff] %v10531
        %10596 = vst [vmem:[%s296 + $0x78] sm:$0xff] %v10532
        %10597 = vst [vmem:[%s296 + $0x80] sm:$0xff] %v10533
        %10598 = vst [vmem:[%s296 + $0x88] sm:$0xff] %v10534
        %10599 = vst [vmem:[%s296 + $0x90] sm:$0xff] %v10535
        %10600 = vst [vmem:[%s296 + $0x98] sm:$0xff] %v10536
        %10601 = vst [vmem:[%s296 + $0xa0] sm:$0xff] %v10537
        %10602 = vst [vmem:[%s296 + $0xa8] sm:$0xff] %v10538
        %10603 = vst [vmem:[%s296 + $0xb0] sm:$0xff] %v10539
        %10604 = vst [vmem:[%s296 + $0xb8] sm:$0xff] %v10540
        %10605 = vst [vmem:[%s296 + $0xc0] sm:$0xff] %v10541
        %10606 = vst [vmem:[%s296 + $0xc8] sm:$0xff] %v10542
        %10607 = vst [vmem:[%s296 + $0xd0] sm:$0xff] %v10543
        %10608 = vst [vmem:[%s296 + $0xd8] sm:$0xff] %v10544
        %10609 = vst [vmem:[%s296 + $0xe0] sm:$0xff] %v10545
        %10610 = vst [vmem:[%s296 + $0xe8] sm:$0xff] %v10546
        %10611 = vst [vmem:[%s296 + $0xf0] sm:$0xff] %v10547
        %10612 = vst [vmem:[%s296 + $0xf8] sm:$0xff] %v10548
        %10613 = vst [vmem:[%s296 + $0x100] sm:$0xff] %v10549
        %10614 = vst [vmem:[%s296 + $0x108] sm:$0xff] %v10550
        %10615 = vst [vmem:[%s296 + $0x110] sm:$0xff] %v10551
        %10616 = vst [vmem:[%s296 + $0x118] sm:$0xff] %v10552
        %10617 = vst [vmem:[%s296 + $0x120] sm:$0xff] %v10553
        %10618 = vst [vmem:[%s296 + $0x128] sm:$0xff] %v10554
        %10619 = vst [vmem:[%s296 + $0x130] sm:$0xff] %v10555
        %10620 = vst [vmem:[%s296 + $0x138] sm:$0xff] %v10556
        %10621 = vst [vmem:[%s296 + $0x140] sm:$0xff] %v10557
        %10622 = vst [vmem:[%s296 + $0x148] sm:$0xff] %v10558
        %10623 = vst [vmem:[%s296 + $0x150] sm:$0xff] %v10559
        %10624 = vst [vmem:[%s296 + $0x158] sm:$0xff] %v10560
        %10625 = vst [vmem:[%s296 + $0x160] sm:$0xff] %v10561
        %10626 = vst [vmem:[%s296 + $0x168] sm:$0xff] %v10562
        %10627 = vst [vmem:[%s296 + $0x170] sm:$0xff] %v10563
        %10628 = vst [vmem:[%s296 + $0x178] sm:$0xff] %v10564
        %10629 = vst [vmem:[%s296 + $0x180] sm:$0xff] %v10565
        %10630 = vst [vmem:[%s296 + $0x188] sm:$0xff] %v10566
        %10631 = vst [vmem:[%s296 + $0x190] sm:$0xff] %v10567
        %10632 = vst [vmem:[%s296 + $0x198] sm:$0xff] %v10568
        %10633 = vst [vmem:[%s296 + $0x1a0] sm:$0xff] %v10569
        %10634 = vst [vmem:[%s296 + $0x1a8] sm:$0xff] %v10570
        %10635 = vst [vmem:[%s296 + $0x1b0] sm:$0xff] %v10571
        %10636 = vst [vmem:[%s296 + $0x1b8] sm:$0xff] %v10572
        %10637 = vst [vmem:[%s296 + $0x1c0] sm:$0xff] %v10573
        %10638 = vst [vmem:[%s296 + $0x1c8] sm:$0xff] %v10574
        %10639 = vst [vmem:[%s296 + $0x1d0] sm:$0xff] %v10575
        %10640 = vst [vmem:[%s296 + $0x1d8] sm:$0xff] %v10576
        %10641 = vst [vmem:[%s296 + $0x1e0] sm:$0xff] %v10577
        %10642 = vst [vmem:[%s296 + $0x1e8] sm:$0xff] %v10578
        %10643 = vst [vmem:[%s296 + $0x1f0] sm:$0xff] %v10579
        %10644 = vst [vmem:[%s296 + $0x1f8] sm:$0xff] %v10580
        %s10645 = sand.u32 %s142, 1
        %s10646 = scalar_lea.sflag [#allocation4], %s10645
        %s10647 = sand.u32 %s142, 1
        %s10648 = smul.addr %s10647, 512
        %s10649 = scalar_lea.vmem [#allocation11], %s10648
        // Predicated region
        $region61: #{tpu_custom_call.1} parent=39 // pred_check
          %p10650 = pneg %p152
        $region62: #{tpu_custom_call.1} parent=39 // pred_check_branch
          %10652 = sbr.rel (%p10650) target = $region64
        $region63: #{tpu_custom_call.1} parent=39 // pred_region
          %s10654 = ssub.s32 8192, 8192
          %10655 = vsyncadd %s10646, %s10654
          %s10656 = smul.addr %s24, 64
          %s10657 = smul.addr %s10656, 128
          %s10658 = scalar_lea.hbm %s5, %s10657
          %s10659 = sshll.u32 %s10649, 4
          %s10660 = int_to_ptr.vmem [resolvable:$true] %s10659
          %10665 = dma.vmem_to_hbm [thread:$0]  %s10660, 8192, %s10658, %s10646, 256, 256, 16
        $region64: #{tpu_custom_call.1} parent=39 // pred_fallthru
          _
      $region40: #{tpu_custom_call.1} parent=5 // pred_fallthru
        _
      %p10666 = scmp.le.s32.totalorder 2, %s19
      // Predicated region
      $region65: #{tpu_custom_call.1} parent=5 // pred_check
        %p10667 = pneg %p10666
      $region66: #{tpu_custom_call.1} parent=5 // pred_check_branch
        %10669 = sbr.rel (%p10667) target = $region68
      $region67: #{tpu_custom_call.1} parent=5 // pred_region
        %s10670 = ssub.s32 %s19, 2
        // Predicated region
        $region69: #{tpu_custom_call.1} parent=67 // pred_check
          %p10671 = pneg %p158
        $region70: #{tpu_custom_call.1} parent=67 // pred_check_branch
          %10673 = sbr.rel (%p10671) target = $region72
        $region71: #{tpu_custom_call.1} parent=67 // pred_region
          %s10674 = sand.u32 %s143, 1
          %s10675 = scalar_lea.sflag [#allocation4], %s10674
          %s10676 = sand.u32 %s143, 1
          %s10677 = smul.addr %s10676, 512
          %s10678 = scalar_lea.vmem [#allocation11], %s10677
          %10679 = dma.done %s10675, 8192
        $region72: #{tpu_custom_call.1} parent=67 // pred_fallthru
          _
      $region68: #{tpu_custom_call.1} parent=5 // pred_fallthru
        _
    $region6: #{tpu_custom_call.1} parent=1 // loop_footer
      %s23 = sadd.s32 1, %s19
    $region7: #{tpu_custom_call.1} parent=1 // loop_footer_branch
      %18 = sbr.rel target = $region3
    $region8: #{tpu_custom_call.1} parent=1 // loop_exit
      _
    %10680 = vsyncpa [#allocation3], 1
    %s10681 = scalar_lea.sflag [#allocation3], 1
    %10682 = vsyncpa %s10681, 1
    %10683 = vsyncpa [#allocation6], 1
    %10684 = vsyncpa [#allocation9], 1
    %10685 = vsyncpa [#allocation4], 1
    %s10686 = scalar_lea.sflag [#allocation4], 1
    %10687 = vsyncpa %s10686, 1

</llo_original>
